<compile_context>
chip_gen: v6e
topology: v6e:2x2x1
jax: 0.10.0
libtpu: 0.0.40
codegen_flags: <defaults>
</compile_context>

<pallas_src>
import jax
import jax.numpy as jnp
from jax import lax
from jax.experimental import pallas as pl
from jax.experimental.pallas import tpu as pltpu

EPS = 1e-5


def _fused_block_kernel(x_ref,                       # (N, H, W, C) f32, NHWC
                        w1_ref, g1_ref, be1_ref,     # (9C, C) bf16, (1, C) f32
                        w2_ref, g2_ref, be2_ref,
                        o_ref,                       # (N, H, W, C) f32
                        pad_ref):                    # VMEM scratch (N, H+2, W+2, C) f32
    N, H, W, C = x_ref.shape
    Hp, Wp = H + 2, W + 2
    Cout = o_ref.shape[-1]

    # Zero only the 1-pixel halo of the padded scratch; the interior is always
    # overwritten before the convolution reads it (avoids a full-buffer store).
    zero_row = jnp.zeros((N, 1, Wp, C), jnp.float32)
    zero_col = jnp.zeros((N, H, 1, C), jnp.float32)
    pad_ref[:, 0:1, :, :] = zero_row
    pad_ref[:, H + 1:H + 2, :, :] = zero_row
    pad_ref[:, 1:H + 1, 0:1, :] = zero_col
    pad_ref[:, 1:H + 1, W + 1:W + 2, :] = zero_col

    def conv3x3(w_ref):
        # im2col: 9 shifted taps concatenated on the lane axis -> one big-K
        # bf16 MXU matmul (K = 9*C) with f32 accumulation.
        src = pad_ref[...]
        taps = [src[:, dy:dy + H, dx:dx + W, :].astype(jnp.bfloat16)
                for dy in range(3) for dx in range(3)]
        patch = jnp.concatenate(taps, axis=-1).reshape(N * H * W, 9 * C)
        return jnp.dot(patch, w_ref[...], preferred_element_type=jnp.float32)

    def bn_relu(y, g_ref, be_ref):
        # Train-mode BatchNorm (biased variance over N*H*W) folded to a single
        # per-channel scale/shift, fused with the ReLU.  Conv bias is omitted:
        # it cancels exactly under train-mode BN.
        inv_m = 1.0 / float(N * H * W)
        mean = jnp.sum(y, axis=0, keepdims=True) * inv_m            # (1, C)
        ex2 = jnp.sum(y * y, axis=0, keepdims=True) * inv_m         # (1, C)
        var = ex2 - mean * mean
        scale = g_ref[...] * lax.rsqrt(var + EPS)                   # (1, C)
        shift = be_ref[...] - mean * scale
        return jnp.maximum(y * scale + shift, 0.0)

    # ---- layer 1 ----
    pad_ref[:, 1:H + 1, 1:W + 1, :] = x_ref[...]
    y1 = bn_relu(conv3x3(w1_ref), g1_ref, be1_ref)                  # (N*H*W, C)

    # ---- layer 2 (re-pad the intermediate in the same scratch) ----
    pad_ref[:, 1:H + 1, 1:W + 1, :] = y1.reshape(N, H, W, C)
    y2 = bn_relu(conv3x3(w2_ref), g2_ref, be2_ref)
    o_ref[...] = y2.reshape(N, H, W, Cout)


def fused_conv_bn_relu_x2_nhwc(x_nhwc, params):
    """NHWC fast path: no wrapper-side pad/transpose.  x_nhwc: (N,H,W,C) f32."""
    w1, b1, g1, be1, w2, b2, g2, be2 = params        # weights in HWIO (3,3,C,C)
    del b1, b2                                       # cancel under train-mode BN
    N, H, W, C = x_nhwc.shape

    # Reshape weights for the im2col matmul: (3,3,Cin,Cout) -> (9*Cin, Cout),
    # row order (dy, dx, cin) matching the tap concatenation order; cast bf16.
    w1r = w1.reshape(9 * C, C).astype(jnp.bfloat16)
    w2r = w2.reshape(9 * C, C).astype(jnp.bfloat16)

    vmem = pl.BlockSpec(memory_space=pltpu.MemorySpace.VMEM)
    return pl.pallas_call(
        _fused_block_kernel,
        out_shape=jax.ShapeDtypeStruct((N, H, W, C), jnp.float32),
        in_specs=[vmem] * 7,
        out_specs=vmem,
        scratch_shapes=[pltpu.VMEM((N, H + 2, W + 2, C), jnp.float32)],
        compiler_params=pltpu.CompilerParams(
            vmem_limit_bytes=48 * 1024 * 1024),
    )(x_nhwc,
      w1r, g1.reshape(1, C), be1.reshape(1, C),
      w2r, g2.reshape(1, C), be2.reshape(1, C))


def fused_conv_bn_relu_x2(x_nchw, params):
    """PyTorch-layout adapter: (N, C, H, W) f32 in / out."""
    x_nhwc = jnp.transpose(x_nchw, (0, 2, 3, 1))
    y = fused_conv_bn_relu_x2_nhwc(x_nhwc, params)
    return jnp.transpose(y, (0, 3, 1, 2))


def _reference(x_nchw, params):
    """Pure-JAX reference (bf16-cast conv + f32 accum, train-mode BN, ReLU)."""
    w1, b1, g1, be1, w2, b2, g2, be2 = params
    x = jnp.transpose(x_nchw, (0, 2, 3, 1))

    def block(x, w, b, g, be):
        y = lax.conv_general_dilated(
            x.astype(jnp.bfloat16), w.astype(jnp.bfloat16),
            window_strides=(1, 1), padding="SAME",
            dimension_numbers=("NHWC", "HWIO", "NHWC"),
            preferred_element_type=jnp.float32) + b
        mean = jnp.mean(y, axis=(0, 1, 2), keepdims=True)
        var = jnp.mean((y - mean) ** 2, axis=(0, 1, 2), keepdims=True)
        return jnp.maximum((y - mean) * lax.rsqrt(var + EPS) * g + be, 0.0)

    y = block(block(x, w1, b1, g1, be1), w2, b2, g2, be2)
    return jnp.transpose(y, (0, 3, 1, 2))


if __name__ == "__main__":
    # Small shapes consistent with the module (original: 1 x 256 x 56 x 56).
    # C=128 keeps the channel axis lane-dense (unmasked stores, full MXU lanes).
    N, C, H, W = 2, 128, 16, 16

    key = jax.random.PRNGKey(0)
    ks = jax.random.split(key, 9)
    scale = 1.0 / (3.0 * 3.0 * C) ** 0.5  # kaiming-uniform-ish fan_in scale
    w1 = jax.random.uniform(ks[0], (3, 3, C, C), jnp.float32, -scale, scale)
    b1 = jax.random.uniform(ks[1], (C,), jnp.float32, -scale, scale)
    g1 = jax.random.uniform(ks[2], (C,), jnp.float32, 0.5, 1.5)
    be1 = jax.random.uniform(ks[3], (C,), jnp.float32, -0.1, 0.1)
    w2 = jax.random.uniform(ks[4], (3, 3, C, C), jnp.float32, -scale, scale)
    b2 = jax.random.uniform(ks[5], (C,), jnp.float32, -scale, scale)
    g2 = jax.random.uniform(ks[6], (C,), jnp.float32, 0.5, 1.5)
    be2 = jax.random.uniform(ks[7], (C,), jnp.float32, -0.1, 0.1)
    params = (w1, b1, g1, be1, w2, b2, g2, be2)

    x = jax.random.normal(ks[8], (N, C, H, W), jnp.float32)  # NCHW (PyTorch)

    out = jax.block_until_ready(fused_conv_bn_relu_x2(x, params))
    ref = jax.block_until_ready(_reference(x, params))

    assert out.shape == (N, C, H, W)
    err = float(jnp.max(jnp.abs(out - ref)))
    # bf16 matmul inputs (f32 accumulation) -> allow bf16-level mismatch
    assert err < 2e-2, f"max abs err {err}"
    print("KERNEL_OK")
</pallas_src>

<mosaic_0001>
module attributes {stable_mosaic.version = 11 : i64} {
  func.func @_fused_block_kernel(%arg0: memref<2x16x16x128xf32, #tpu.memory_space<vmem>>, %arg1: memref<1152x128xbf16, #tpu.memory_space<vmem>>, %arg2: memref<1x128xf32, #tpu.memory_space<vmem>>, %arg3: memref<1x128xf32, #tpu.memory_space<vmem>>, %arg4: memref<1152x128xbf16, #tpu.memory_space<vmem>>, %arg5: memref<1x128xf32, #tpu.memory_space<vmem>>, %arg6: memref<1x128xf32, #tpu.memory_space<vmem>>, %arg7: memref<2x16x16x128xf32, #tpu.memory_space<vmem>>, %arg8: memref<2x18x18x128xf32, #tpu.memory_space<vmem>>) attributes {dimension_semantics = [], scalar_prefetch = 0 : i64, scratch_operands = 1 : i64, tpu.core_type = #tpu.core_type<tc>} {
    %cst = arith.constant 0.000000e+00 : f32
    %0 = vector.broadcast %cst : f32 to vector<2x1x18x128xf32>
    %cst_0 = arith.constant 0.000000e+00 : f32
    %1 = vector.broadcast %cst_0 : f32 to vector<2x16x1x128xf32>
    %c0 = arith.constant 0 : index
    %c0_1 = arith.constant 0 : index
    %c0_2 = arith.constant 0 : index
    %c0_3 = arith.constant 0 : index
    %2 = vector.load %arg8[%c0, %c0_1, %c0_2, %c0_3] : memref<2x18x18x128xf32, #tpu.memory_space<vmem>>, vector<2x1x18x128xf32>
    tpu.vector_store %arg8[%c0, %c0_1, %c0_2, %c0_3], %0 {strides = array<i32>} : memref<2x18x18x128xf32, #tpu.memory_space<vmem>>, vector<2x1x18x128xf32>,
    %c0_4 = arith.constant 0 : index
    %c17 = arith.constant 17 : index
    %c0_5 = arith.constant 0 : index
    %c0_6 = arith.constant 0 : index
    %3 = vector.load %arg8[%c0_4, %c17, %c0_5, %c0_6] : memref<2x18x18x128xf32, #tpu.memory_space<vmem>>, vector<2x1x18x128xf32>
    tpu.vector_store %arg8[%c0_4, %c17, %c0_5, %c0_6], %0 {strides = array<i32>} : memref<2x18x18x128xf32, #tpu.memory_space<vmem>>, vector<2x1x18x128xf32>,
    %c0_7 = arith.constant 0 : index
    %c1 = arith.constant 1 : index
    %c0_8 = arith.constant 0 : index
    %c0_9 = arith.constant 0 : index
    %4 = vector.load %arg8[%c0_7, %c1, %c0_8, %c0_9] : memref<2x18x18x128xf32, #tpu.memory_space<vmem>>, vector<2x16x1x128xf32>
    tpu.vector_store %arg8[%c0_7, %c1, %c0_8, %c0_9], %1 {strides = array<i32>} : memref<2x18x18x128xf32, #tpu.memory_space<vmem>>, vector<2x16x1x128xf32>,
    %c0_10 = arith.constant 0 : index
    %c1_11 = arith.constant 1 : index
    %c17_12 = arith.constant 17 : index
    %c0_13 = arith.constant 0 : index
    %5 = vector.load %arg8[%c0_10, %c1_11, %c17_12, %c0_13] : memref<2x18x18x128xf32, #tpu.memory_space<vmem>>, vector<2x16x1x128xf32>
    tpu.vector_store %arg8[%c0_10, %c1_11, %c17_12, %c0_13], %1 {strides = array<i32>} : memref<2x18x18x128xf32, #tpu.memory_space<vmem>>, vector<2x16x1x128xf32>,
    %c0_14 = arith.constant 0 : index
    %c0_15 = arith.constant 0 : index
    %c0_16 = arith.constant 0 : index
    %c0_17 = arith.constant 0 : index
    %6 = vector.load %arg0[%c0_14, %c0_15, %c0_16, %c0_17] : memref<2x16x16x128xf32, #tpu.memory_space<vmem>>, vector<2x16x16x128xf32>
    %c0_18 = arith.constant 0 : index
    %c1_19 = arith.constant 1 : index
    %c1_20 = arith.constant 1 : index
    %c0_21 = arith.constant 0 : index
    %7 = vector.load %arg8[%c0_18, %c1_19, %c1_20, %c0_21] : memref<2x18x18x128xf32, #tpu.memory_space<vmem>>, vector<2x16x16x128xf32>
    tpu.vector_store %arg8[%c0_18, %c1_19, %c1_20, %c0_21], %6 {strides = array<i32>} : memref<2x18x18x128xf32, #tpu.memory_space<vmem>>, vector<2x16x16x128xf32>,
    %c0_22 = arith.constant 0 : index
    %c0_23 = arith.constant 0 : index
    %c0_24 = arith.constant 0 : index
    %c0_25 = arith.constant 0 : index
    %8 = vector.load %arg8[%c0_22, %c0_23, %c0_24, %c0_25] : memref<2x18x18x128xf32, #tpu.memory_space<vmem>>, vector<2x18x18x128xf32>
    %9 = vector.extract_strided_slice %8 {offsets = [0, 0, 0, 0], sizes = [2, 16, 16, 128], strides = [1, 1, 1, 1]} : vector<2x18x18x128xf32> to vector<2x16x16x128xf32>
    %10 = arith.truncf %9 : vector<2x16x16x128xf32> to vector<2x16x16x128xbf16>
    %11 = vector.extract_strided_slice %8 {offsets = [0, 0, 1, 0], sizes = [2, 16, 16, 128], strides = [1, 1, 1, 1]} : vector<2x18x18x128xf32> to vector<2x16x16x128xf32>
    %12 = arith.truncf %11 : vector<2x16x16x128xf32> to vector<2x16x16x128xbf16>
    %13 = vector.extract_strided_slice %8 {offsets = [0, 0, 2, 0], sizes = [2, 16, 16, 128], strides = [1, 1, 1, 1]} : vector<2x18x18x128xf32> to vector<2x16x16x128xf32>
    %14 = arith.truncf %13 : vector<2x16x16x128xf32> to vector<2x16x16x128xbf16>
    %15 = vector.extract_strided_slice %8 {offsets = [0, 1, 0, 0], sizes = [2, 16, 16, 128], strides = [1, 1, 1, 1]} : vector<2x18x18x128xf32> to vector<2x16x16x128xf32>
    %16 = arith.truncf %15 : vector<2x16x16x128xf32> to vector<2x16x16x128xbf16>
    %17 = vector.extract_strided_slice %8 {offsets = [0, 1, 1, 0], sizes = [2, 16, 16, 128], strides = [1, 1, 1, 1]} : vector<2x18x18x128xf32> to vector<2x16x16x128xf32>
    %18 = arith.truncf %17 : vector<2x16x16x128xf32> to vector<2x16x16x128xbf16>
    %19 = vector.extract_strided_slice %8 {offsets = [0, 1, 2, 0], sizes = [2, 16, 16, 128], strides = [1, 1, 1, 1]} : vector<2x18x18x128xf32> to vector<2x16x16x128xf32>
    %20 = arith.truncf %19 : vector<2x16x16x128xf32> to vector<2x16x16x128xbf16>
    %21 = vector.extract_strided_slice %8 {offsets = [0, 2, 0, 0], sizes = [2, 16, 16, 128], strides = [1, 1, 1, 1]} : vector<2x18x18x128xf32> to vector<2x16x16x128xf32>
    %22 = arith.truncf %21 : vector<2x16x16x128xf32> to vector<2x16x16x128xbf16>
    %23 = vector.extract_strided_slice %8 {offsets = [0, 2, 1, 0], sizes = [2, 16, 16, 128], strides = [1, 1, 1, 1]} : vector<2x18x18x128xf32> to vector<2x16x16x128xf32>
    %24 = arith.truncf %23 : vector<2x16x16x128xf32> to vector<2x16x16x128xbf16>
    %25 = vector.extract_strided_slice %8 {offsets = [0, 2, 2, 0], sizes = [2, 16, 16, 128], strides = [1, 1, 1, 1]} : vector<2x18x18x128xf32> to vector<2x16x16x128xf32>
    %26 = arith.truncf %25 : vector<2x16x16x128xf32> to vector<2x16x16x128xbf16>
    %27 = tpu.concatenate %10, %12, %14, %16, %18, %20, %22, %24, %26 in 3 : vector<2x16x16x128xbf16>, vector<2x16x16x128xbf16>, vector<2x16x16x128xbf16>, vector<2x16x16x128xbf16>, vector<2x16x16x128xbf16>, vector<2x16x16x128xbf16>, vector<2x16x16x128xbf16>, vector<2x16x16x128xbf16>, vector<2x16x16x128xbf16> -> vector<2x16x16x1152xbf16>
    %28 = vector.shape_cast %27 : vector<2x16x16x1152xbf16> to vector<512x1152xbf16>
    %c0_26 = arith.constant 0 : index
    %c0_27 = arith.constant 0 : index
    %29 = vector.load %arg1[%c0_26, %c0_27] : memref<1152x128xbf16, #tpu.memory_space<vmem>>, vector<1152x128xbf16>
    %cst_28 = arith.constant dense<0.000000e+00> : vector<512x128xf32>
    %30 = tpu.matmul %28, %29, %cst_28 {dimension_numbers = #tpu.dot_dimension_numbers<[1], [0], [0], [1], [0, 0, 1, 1], [], []>} : vector<512x1152xbf16>, vector<1152x128xbf16>, vector<512x128xf32> -> vector<512x128xf32>
    %cst_29 = arith.constant dense<0.000000e+00> : vector<128xf32>
    %31 = vector.multi_reduction <add>, %30, %cst_29 [0] : vector<512x128xf32> to vector<128xf32>
    %32 = vector.shape_cast %31 : vector<128xf32> to vector<1x128xf32>
    %cst_30 = arith.constant 0.001953125 : f32
    %33 = vector.broadcast %cst_30 : f32 to vector<1x128xf32>
    %34 = arith.mulf %32, %33 : vector<1x128xf32>
    %35 = arith.mulf %30, %30 : vector<512x128xf32>
    %cst_31 = arith.constant dense<0.000000e+00> : vector<128xf32>
    %36 = vector.multi_reduction <add>, %35, %cst_31 [0] : vector<512x128xf32> to vector<128xf32>
    %37 = vector.shape_cast %36 : vector<128xf32> to vector<1x128xf32>
    %cst_32 = arith.constant 0.001953125 : f32
    %38 = vector.broadcast %cst_32 : f32 to vector<1x128xf32>
    %39 = arith.mulf %37, %38 : vector<1x128xf32>
    %40 = arith.mulf %34, %34 : vector<1x128xf32>
    %41 = arith.subf %39, %40 : vector<1x128xf32>
    %c0_33 = arith.constant 0 : index
    %c0_34 = arith.constant 0 : index
    %42 = vector.load %arg2[%c0_33, %c0_34] : memref<1x128xf32, #tpu.memory_space<vmem>>, vector<1x128xf32>
    %cst_35 = arith.constant 9.99999974E-6 : f32
    %43 = vector.broadcast %cst_35 : f32 to vector<1x128xf32>
    %44 = arith.addf %41, %43 : vector<1x128xf32>
    %45 = math.rsqrt %44 : vector<1x128xf32>
    %46 = arith.mulf %42, %45 : vector<1x128xf32>
    %c0_36 = arith.constant 0 : index
    %c0_37 = arith.constant 0 : index
    %47 = vector.load %arg3[%c0_36, %c0_37] : memref<1x128xf32, #tpu.memory_space<vmem>>, vector<1x128xf32>
    %48 = arith.mulf %34, %46 : vector<1x128xf32>
    %49 = arith.subf %47, %48 : vector<1x128xf32>
    %50 = vector.broadcast %46 : vector<1x128xf32> to vector<512x128xf32>
    %51 = arith.mulf %30, %50 : vector<512x128xf32>
    %52 = vector.broadcast %49 : vector<1x128xf32> to vector<512x128xf32>
    %53 = arith.addf %51, %52 : vector<512x128xf32>
    %cst_38 = arith.constant 0.000000e+00 : f32
    %54 = vector.broadcast %cst_38 : f32 to vector<512x128xf32>
    %55 = arith.maximumf %53, %54 : vector<512x128xf32>
    %56 = vector.shape_cast %55 : vector<512x128xf32> to vector<2x16x16x128xf32>
    %c0_39 = arith.constant 0 : index
    %c1_40 = arith.constant 1 : index
    %c1_41 = arith.constant 1 : index
    %c0_42 = arith.constant 0 : index
    %57 = vector.load %arg8[%c0_39, %c1_40, %c1_41, %c0_42] : memref<2x18x18x128xf32, #tpu.memory_space<vmem>>, vector<2x16x16x128xf32>
    tpu.vector_store %arg8[%c0_39, %c1_40, %c1_41, %c0_42], %56 {strides = array<i32>} : memref<2x18x18x128xf32, #tpu.memory_space<vmem>>, vector<2x16x16x128xf32>,
    %c0_43 = arith.constant 0 : index
    %c0_44 = arith.constant 0 : index
    %c0_45 = arith.constant 0 : index
    %c0_46 = arith.constant 0 : index
    %58 = vector.load %arg8[%c0_43, %c0_44, %c0_45, %c0_46] : memref<2x18x18x128xf32, #tpu.memory_space<vmem>>, vector<2x18x18x128xf32>
    %59 = vector.extract_strided_slice %58 {offsets = [0, 0, 0, 0], sizes = [2, 16, 16, 128], strides = [1, 1, 1, 1]} : vector<2x18x18x128xf32> to vector<2x16x16x128xf32>
    %60 = arith.truncf %59 : vector<2x16x16x128xf32> to vector<2x16x16x128xbf16>
    %61 = vector.extract_strided_slice %58 {offsets = [0, 0, 1, 0], sizes = [2, 16, 16, 128], strides = [1, 1, 1, 1]} : vector<2x18x18x128xf32> to vector<2x16x16x128xf32>
    %62 = arith.truncf %61 : vector<2x16x16x128xf32> to vector<2x16x16x128xbf16>
    %63 = vector.extract_strided_slice %58 {offsets = [0, 0, 2, 0], sizes = [2, 16, 16, 128], strides = [1, 1, 1, 1]} : vector<2x18x18x128xf32> to vector<2x16x16x128xf32>
    %64 = arith.truncf %63 : vector<2x16x16x128xf32> to vector<2x16x16x128xbf16>
    %65 = vector.extract_strided_slice %58 {offsets = [0, 1, 0, 0], sizes = [2, 16, 16, 128], strides = [1, 1, 1, 1]} : vector<2x18x18x128xf32> to vector<2x16x16x128xf32>
    %66 = arith.truncf %65 : vector<2x16x16x128xf32> to vector<2x16x16x128xbf16>
    %67 = vector.extract_strided_slice %58 {offsets = [0, 1, 1, 0], sizes = [2, 16, 16, 128], strides = [1, 1, 1, 1]} : vector<2x18x18x128xf32> to vector<2x16x16x128xf32>
    %68 = arith.truncf %67 : vector<2x16x16x128xf32> to vector<2x16x16x128xbf16>
    %69 = vector.extract_strided_slice %58 {offsets = [0, 1, 2, 0], sizes = [2, 16, 16, 128], strides = [1, 1, 1, 1]} : vector<2x18x18x128xf32> to vector<2x16x16x128xf32>
    %70 = arith.truncf %69 : vector<2x16x16x128xf32> to vector<2x16x16x128xbf16>
    %71 = vector.extract_strided_slice %58 {offsets = [0, 2, 0, 0], sizes = [2, 16, 16, 128], strides = [1, 1, 1, 1]} : vector<2x18x18x128xf32> to vector<2x16x16x128xf32>
    %72 = arith.truncf %71 : vector<2x16x16x128xf32> to vector<2x16x16x128xbf16>
    %73 = vector.extract_strided_slice %58 {offsets = [0, 2, 1, 0], sizes = [2, 16, 16, 128], strides = [1, 1, 1, 1]} : vector<2x18x18x128xf32> to vector<2x16x16x128xf32>
    %74 = arith.truncf %73 : vector<2x16x16x128xf32> to vector<2x16x16x128xbf16>
    %75 = vector.extract_strided_slice %58 {offsets = [0, 2, 2, 0], sizes = [2, 16, 16, 128], strides = [1, 1, 1, 1]} : vector<2x18x18x128xf32> to vector<2x16x16x128xf32>
    %76 = arith.truncf %75 : vector<2x16x16x128xf32> to vector<2x16x16x128xbf16>
    %77 = tpu.concatenate %60, %62, %64, %66, %68, %70, %72, %74, %76 in 3 : vector<2x16x16x128xbf16>, vector<2x16x16x128xbf16>, vector<2x16x16x128xbf16>, vector<2x16x16x128xbf16>, vector<2x16x16x128xbf16>, vector<2x16x16x128xbf16>, vector<2x16x16x128xbf16>, vector<2x16x16x128xbf16>, vector<2x16x16x128xbf16> -> vector<2x16x16x1152xbf16>
    %78 = vector.shape_cast %77 : vector<2x16x16x1152xbf16> to vector<512x1152xbf16>
    %c0_47 = arith.constant 0 : index
    %c0_48 = arith.constant 0 : index
    %79 = vector.load %arg4[%c0_47, %c0_48] : memref<1152x128xbf16, #tpu.memory_space<vmem>>, vector<1152x128xbf16>
    %cst_49 = arith.constant dense<0.000000e+00> : vector<512x128xf32>
    %80 = tpu.matmul %78, %79, %cst_49 {dimension_numbers = #tpu.dot_dimension_numbers<[1], [0], [0], [1], [0, 0, 1, 1], [], []>} : vector<512x1152xbf16>, vector<1152x128xbf16>, vector<512x128xf32> -> vector<512x128xf32>
    %cst_50 = arith.constant dense<0.000000e+00> : vector<128xf32>
    %81 = vector.multi_reduction <add>, %80, %cst_50 [0] : vector<512x128xf32> to vector<128xf32>
    %82 = vector.shape_cast %81 : vector<128xf32> to vector<1x128xf32>
    %cst_51 = arith.constant 0.001953125 : f32
    %83 = vector.broadcast %cst_51 : f32 to vector<1x128xf32>
    %84 = arith.mulf %82, %83 : vector<1x128xf32>
    %85 = arith.mulf %80, %80 : vector<512x128xf32>
    %cst_52 = arith.constant dense<0.000000e+00> : vector<128xf32>
    %86 = vector.multi_reduction <add>, %85, %cst_52 [0] : vector<512x128xf32> to vector<128xf32>
    %87 = vector.shape_cast %86 : vector<128xf32> to vector<1x128xf32>
    %cst_53 = arith.constant 0.001953125 : f32
    %88 = vector.broadcast %cst_53 : f32 to vector<1x128xf32>
    %89 = arith.mulf %87, %88 : vector<1x128xf32>
    %90 = arith.mulf %84, %84 : vector<1x128xf32>
    %91 = arith.subf %89, %90 : vector<1x128xf32>
    %c0_54 = arith.constant 0 : index
    %c0_55 = arith.constant 0 : index
    %92 = vector.load %arg5[%c0_54, %c0_55] : memref<1x128xf32, #tpu.memory_space<vmem>>, vector<1x128xf32>
    %cst_56 = arith.constant 9.99999974E-6 : f32
    %93 = vector.broadcast %cst_56 : f32 to vector<1x128xf32>
    %94 = arith.addf %91, %93 : vector<1x128xf32>
    %95 = math.rsqrt %94 : vector<1x128xf32>
    %96 = arith.mulf %92, %95 : vector<1x128xf32>
    %c0_57 = arith.constant 0 : index
    %c0_58 = arith.constant 0 : index
    %97 = vector.load %arg6[%c0_57, %c0_58] : memref<1x128xf32, #tpu.memory_space<vmem>>, vector<1x128xf32>
    %98 = arith.mulf %84, %96 : vector<1x128xf32>
    %99 = arith.subf %97, %98 : vector<1x128xf32>
    %100 = vector.broadcast %96 : vector<1x128xf32> to vector<512x128xf32>
    %101 = arith.mulf %80, %100 : vector<512x128xf32>
    %102 = vector.broadcast %99 : vector<1x128xf32> to vector<512x128xf32>
    %103 = arith.addf %101, %102 : vector<512x128xf32>
    %cst_59 = arith.constant 0.000000e+00 : f32
    %104 = vector.broadcast %cst_59 : f32 to vector<512x128xf32>
    %105 = arith.maximumf %103, %104 : vector<512x128xf32>
    %106 = vector.shape_cast %105 : vector<512x128xf32> to vector<2x16x16x128xf32>
    %c0_60 = arith.constant 0 : index
    %c0_61 = arith.constant 0 : index
    %c0_62 = arith.constant 0 : index
    %c0_63 = arith.constant 0 : index
    %107 = vector.load %arg7[%c0_60, %c0_61, %c0_62, %c0_63] : memref<2x16x16x128xf32, #tpu.memory_space<vmem>>, vector<2x16x16x128xf32>
    tpu.vector_store %arg7[%c0_60, %c0_61, %c0_62, %c0_63], %106 {strides = array<i32>} : memref<2x16x16x128xf32, #tpu.memory_space<vmem>>, vector<2x16x16x128xf32>,
    return
  }
}

</mosaic_0001>

<llo_original>
// kernel: tpu_custom_call.1
$region0: #{tpu_custom_call.1}
  #allocation0 [shape = 'u32[]', space=smem, size = 0x4, offset = 0x4, fixed_abs, tag = 'smem constant byte address 0x4 - core index']
  #allocation1 [shape = 'u32[144,128]{1,0:T(1,128)}', space=vmem, size = 0x12000, scoped, tag = 'internal scratch']
  #allocation2 [shape = 'f32[2,18,18,128]{3,2,1,0:T(8,128)}', space=vmem, size = 0x6c000, scoped, tag = 'scratch operand']
  %s0 = inlined_call_operand.hbm [shape: f32[2,16,16,128], index: 0, kind: input, shape index: {}]
  %s1 = inlined_call_operand.hbm [shape: bf16[1152,128], index: 1, kind: input, shape index: {}]
  %s2 = inlined_call_operand.vmem [shape: f32[1,128], index: 2, kind: input, shape index: {}]
  %s3 = inlined_call_operand.vmem [shape: f32[1,128], index: 3, kind: input, shape index: {}]
  %s4 = inlined_call_operand.hbm [shape: bf16[1152,128], index: 4, kind: input, shape index: {}]
  %s5 = inlined_call_operand.vmem [shape: f32[1,128], index: 5, kind: input, shape index: {}]
  %s6 = inlined_call_operand.vmem [shape: f32[1,128], index: 6, kind: input, shape index: {}]
  %s7 = inlined_call_operand.hbm [shape: f32[2,16,16,128], index: 7, kind: output, shape index: {}]
  %s8 = sld [smem:[#allocation0]]
  $region50: #{tpu_custom_call.1} parent=0
    _
  %s10 = ssub.s32 1, %s8
  %s11 = scalar_select 0, %s10, %s8
  $region1: #{tpu_custom_call.1} parent=0
    #allocation3 [shape = 'u8[262144]{0}', space=vmem, size = 0x40000, scoped, tag = 'input window, operand 0, single buffered']
    #allocation4 [shape = 's32[1]{0}', space=sflag, size = 0x4, scoped, tag = 'scoped memory for tpu_custom_call.1']
    #allocation5 [shape = 's32[1]{0}', space=sflag, size = 0x4, scoped, tag = 'scoped memory for tpu_custom_call.1']
    #allocation6 [shape = 'u8[294912]{0}', space=vmem, size = 0x48000, scoped, tag = 'input window, operand 1, single buffered']
    #allocation7 [shape = 's32[1]{0}', space=sflag, size = 0x4, scoped, tag = 'scoped memory for tpu_custom_call.1']
    #allocation8 [shape = 'u8[294912]{0}', space=vmem, size = 0x48000, scoped, tag = 'input window, operand 4, single buffered']
    #allocation9 [shape = 'u8[262144]{0}', space=vmem, size = 0x40000, scoped, tag = 'output window, operand 0, single buffered']
    %12 = vsyncpa [#allocation4], 0
    %13 = vsyncpa [#allocation7], 0
    %14 = vsyncpa [#allocation5], 0
    // Predicated region
    $region2: #{tpu_custom_call.1} parent=1 // pred_check
      _
    $region3: #{tpu_custom_call.1} parent=1 // pred_check_branch
      %16 = sbr.rel (0) target = $region5
    $region4: #{tpu_custom_call.1} parent=1 // pred_region
      %s18 = ssub.s32 8192, 8192
      %19 = vsyncadd [#allocation4], %s18
      %s20 = sshll.u32 [#allocation3], 4
      %s21 = int_to_ptr.vmem [resolvable:$true] %s20
      %26 = dma.hbm_to_vmem [thread:$0]  %s0, 8192, %s21, [#allocation4], 128, 128, 8
    $region5: #{tpu_custom_call.1} parent=1 // pred_fallthru
      _
    // Predicated region
    $region6: #{tpu_custom_call.1} parent=1 // pred_check
      _
    $region7: #{tpu_custom_call.1} parent=1 // pred_check_branch
      %28 = sbr.rel (0) target = $region9
    $region8: #{tpu_custom_call.1} parent=1 // pred_region
      %s30 = ssub.s32 9216, 9216
      %31 = vsyncadd [#allocation7], %s30
      %s32 = sshll.u32 [#allocation6], 4
      %s33 = int_to_ptr.vmem [resolvable:$true] %s32
      %38 = dma.hbm_to_vmem [thread:$0]  %s1, 9216, %s33, [#allocation7], 64, 64, 4
    $region9: #{tpu_custom_call.1} parent=1 // pred_fallthru
      _
    // Predicated region
    $region10: #{tpu_custom_call.1} parent=1 // pred_check
      _
    $region11: #{tpu_custom_call.1} parent=1 // pred_check_branch
      %40 = sbr.rel (0) target = $region13
    $region12: #{tpu_custom_call.1} parent=1 // pred_region
      _
    $region13: #{tpu_custom_call.1} parent=1 // pred_fallthru
      _
    // Predicated region
    $region14: #{tpu_custom_call.1} parent=1 // pred_check
      _
    $region15: #{tpu_custom_call.1} parent=1 // pred_check_branch
      %42 = sbr.rel (0) target = $region17
    $region16: #{tpu_custom_call.1} parent=1 // pred_region
      _
    $region17: #{tpu_custom_call.1} parent=1 // pred_fallthru
      _
    // Predicated region
    $region18: #{tpu_custom_call.1} parent=1 // pred_check
      _
    $region19: #{tpu_custom_call.1} parent=1 // pred_check_branch
      %44 = sbr.rel (0) target = $region21
    $region20: #{tpu_custom_call.1} parent=1 // pred_region
      %s46 = ssub.s32 9216, 9216
      %47 = vsyncadd [#allocation7], %s46
      %s48 = sshll.u32 [#allocation8], 4
      %s49 = int_to_ptr.vmem [resolvable:$true] %s48
      %54 = dma.hbm_to_vmem [thread:$0]  %s4, 9216, %s49, [#allocation7], 64, 64, 4
    $region21: #{tpu_custom_call.1} parent=1 // pred_fallthru
      _
    // Predicated region
    $region22: #{tpu_custom_call.1} parent=1 // pred_check
      _
    $region23: #{tpu_custom_call.1} parent=1 // pred_check_branch
      %56 = sbr.rel (0) target = $region25
    $region24: #{tpu_custom_call.1} parent=1 // pred_region
      _
    $region25: #{tpu_custom_call.1} parent=1 // pred_fallthru
      _
    // Predicated region
    $region26: #{tpu_custom_call.1} parent=1 // pred_check
      _
    $region27: #{tpu_custom_call.1} parent=1 // pred_check_branch
      %58 = sbr.rel (0) target = $region29
    $region28: #{tpu_custom_call.1} parent=1 // pred_region
      _
    $region29: #{tpu_custom_call.1} parent=1 // pred_fallthru
      _
    // Predicated region
    $region30: #{tpu_custom_call.1} parent=1 // pred_check
      _
    $region31: #{tpu_custom_call.1} parent=1 // pred_check_branch
      %60 = sbr.rel (0) target = $region33
    $region32: #{tpu_custom_call.1} parent=1 // pred_region
      %61 = dma.done [#allocation4], 8192
    $region33: #{tpu_custom_call.1} parent=1 // pred_fallthru
      _
    // Predicated region
    $region34: #{tpu_custom_call.1} parent=1 // pred_check
      _
    $region35: #{tpu_custom_call.1} parent=1 // pred_check_branch
      %63 = sbr.rel (0) target = $region37
    $region36: #{tpu_custom_call.1} parent=1 // pred_region
      %64 = dma.done [#allocation7], 9216
    $region37: #{tpu_custom_call.1} parent=1 // pred_fallthru
      _
    // Predicated region
    $region38: #{tpu_custom_call.1} parent=1 // pred_check
      _
    $region39: #{tpu_custom_call.1} parent=1 // pred_check_branch
      %66 = sbr.rel (0) target = $region41
    $region40: #{tpu_custom_call.1} parent=1 // pred_region
      %67 = dma.done [#allocation7], 9216
    $region41: #{tpu_custom_call.1} parent=1 // pred_fallthru
      _
    %69 = vst [vmem:[#allocation2] sm:$0xff] 0.0
    %70 = vst [vmem:[#allocation2 + $0x8] sm:$0xff] 0.0
    %71 = vst [vmem:[#allocation2 + $0x10] sm:$0x3] 0.0
    %72 = vst [vmem:[#allocation2 + $0x1b0] sm:$0xff] 0.0
    %73 = vst [vmem:[#allocation2 + $0x1b8] sm:$0xff] 0.0
    %74 = vst [vmem:[#allocation2 + $0x1c0] sm:$0x3] 0.0
    %s75 = scalar_lea.vmem [#allocation2], 408
    %76 = vst [vmem:[%s75] sm:$0xff] 0.0
    %77 = vst [vmem:[%s75 + $0x8] sm:$0xff] 0.0
    %78 = vst [vmem:[%s75 + $0x10] sm:$0x3] 0.0
    %79 = vst [vmem:[%s75 + $0x1b0] sm:$0xff] 0.0
    %80 = vst [vmem:[%s75 + $0x1b8] sm:$0xff] 0.0
    %81 = vst [vmem:[%s75 + $0x1c0] sm:$0x3] 0.0
    %s82 = scalar_lea.vmem [#allocation2], 24
    %83 = vst [vmem:[%s82] sm:$0x1] 0.0
    %84 = vst [vmem:[%s82 + $0x18] sm:$0x1] 0.0
    %85 = vst [vmem:[%s82 + $0x30] sm:$0x1] 0.0
    %86 = vst [vmem:[%s82 + $0x48] sm:$0x1] 0.0
    %87 = vst [vmem:[%s82 + $0x60] sm:$0x1] 0.0
    %88 = vst [vmem:[%s82 + $0x78] sm:$0x1] 0.0
    %89 = vst [vmem:[%s82 + $0x90] sm:$0x1] 0.0
    %90 = vst [vmem:[%s82 + $0xa8] sm:$0x1] 0.0
    %91 = vst [vmem:[%s82 + $0xc0] sm:$0x1] 0.0
    %92 = vst [vmem:[%s82 + $0xd8] sm:$0x1] 0.0
    %93 = vst [vmem:[%s82 + $0xf0] sm:$0x1] 0.0
    %94 = vst [vmem:[%s82 + $0x108] sm:$0x1] 0.0
    %95 = vst [vmem:[%s82 + $0x120] sm:$0x1] 0.0
    %96 = vst [vmem:[%s82 + $0x138] sm:$0x1] 0.0
    %97 = vst [vmem:[%s82 + $0x150] sm:$0x1] 0.0
    %98 = vst [vmem:[%s82 + $0x168] sm:$0x1] 0.0
    %99 = vst [vmem:[%s82 + $0x1b0] sm:$0x1] 0.0
    %100 = vst [vmem:[%s82 + $0x1c8] sm:$0x1] 0.0
    %101 = vst [vmem:[%s82 + $0x1e0] sm:$0x1] 0.0
    %102 = vst [vmem:[%s82 + $0x1f8] sm:$0x1] 0.0
    %103 = vst [vmem:[%s82 + $0x210] sm:$0x1] 0.0
    %104 = vst [vmem:[%s82 + $0x228] sm:$0x1] 0.0
    %105 = vst [vmem:[%s82 + $0x240] sm:$0x1] 0.0
    %106 = vst [vmem:[%s82 + $0x258] sm:$0x1] 0.0
    %107 = vst [vmem:[%s82 + $0x270] sm:$0x1] 0.0
    %108 = vst [vmem:[%s82 + $0x288] sm:$0x1] 0.0
    %109 = vst [vmem:[%s82 + $0x2a0] sm:$0x1] 0.0
    %110 = vst [vmem:[%s82 + $0x2b8] sm:$0x1] 0.0
    %111 = vst [vmem:[%s82 + $0x2d0] sm:$0x1] 0.0
    %112 = vst [vmem:[%s82 + $0x2e8] sm:$0x1] 0.0
    %113 = vst [vmem:[%s82 + $0x300] sm:$0x1] 0.0
    %114 = vst [vmem:[%s82 + $0x318] sm:$0x1] 0.0
    %115 = vst [vmem:[%s82 + $0x11] sm:$0x1] 0.0
    %116 = vst [vmem:[%s82 + $0x29] sm:$0x1] 0.0
    %117 = vst [vmem:[%s82 + $0x41] sm:$0x1] 0.0
    %118 = vst [vmem:[%s82 + $0x59] sm:$0x1] 0.0
    %119 = vst [vmem:[%s82 + $0x71] sm:$0x1] 0.0
    %120 = vst [vmem:[%s82 + $0x89] sm:$0x1] 0.0
    %121 = vst [vmem:[%s82 + $0xa1] sm:$0x1] 0.0
    %122 = vst [vmem:[%s82 + $0xb9] sm:$0x1] 0.0
    %123 = vst [vmem:[%s82 + $0xd1] sm:$0x1] 0.0
    %124 = vst [vmem:[%s82 + $0xe9] sm:$0x1] 0.0
    %125 = vst [vmem:[%s82 + $0x101] sm:$0x1] 0.0
    %126 = vst [vmem:[%s82 + $0x119] sm:$0x1] 0.0
    %127 = vst [vmem:[%s82 + $0x131] sm:$0x1] 0.0
    %128 = vst [vmem:[%s82 + $0x149] sm:$0x1] 0.0
    %129 = vst [vmem:[%s82 + $0x161] sm:$0x1] 0.0
    %130 = vst [vmem:[%s82 + $0x179] sm:$0x1] 0.0
    %131 = vst [vmem:[%s82 + $0x1c1] sm:$0x1] 0.0
    %132 = vst [vmem:[%s82 + $0x1d9] sm:$0x1] 0.0
    %133 = vst [vmem:[%s82 + $0x1f1] sm:$0x1] 0.0
    %134 = vst [vmem:[%s82 + $0x209] sm:$0x1] 0.0
    %135 = vst [vmem:[%s82 + $0x221] sm:$0x1] 0.0
    %136 = vst [vmem:[%s82 + $0x239] sm:$0x1] 0.0
    %137 = vst [vmem:[%s82 + $0x251] sm:$0x1] 0.0
    %138 = vst [vmem:[%s82 + $0x269] sm:$0x1] 0.0
    %139 = vst [vmem:[%s82 + $0x281] sm:$0x1] 0.0
    %140 = vst [vmem:[%s82 + $0x299] sm:$0x1] 0.0
    %141 = vst [vmem:[%s82 + $0x2b1] sm:$0x1] 0.0
    %142 = vst [vmem:[%s82 + $0x2c9] sm:$0x1] 0.0
    %143 = vst [vmem:[%s82 + $0x2e1] sm:$0x1] 0.0
    %144 = vst [vmem:[%s82 + $0x2f9] sm:$0x1] 0.0
    %145 = vst [vmem:[%s82 + $0x311] sm:$0x1] 0.0
    %146 = vst [vmem:[%s82 + $0x329] sm:$0x1] 0.0
    %v147 = vld [vmem:[#allocation3] sm:$0xff]
    %v148 = vld [vmem:[#allocation3 + $0x8] sm:$0xff]
    %v149 = vld [vmem:[#allocation3 + $0x10] sm:$0xff]
    %v150 = vld [vmem:[#allocation3 + $0x18] sm:$0xff]
    %v151 = vld [vmem:[#allocation3 + $0x20] sm:$0xff]
    %v152 = vld [vmem:[#allocation3 + $0x28] sm:$0xff]
    %v153 = vld [vmem:[#allocation3 + $0x30] sm:$0xff]
    %v154 = vld [vmem:[#allocation3 + $0x38] sm:$0xff]
    %v155 = vld [vmem:[#allocation3 + $0x40] sm:$0xff]
    %v156 = vld [vmem:[#allocation3 + $0x48] sm:$0xff]
    %v157 = vld [vmem:[#allocation3 + $0x50] sm:$0xff]
    %v158 = vld [vmem:[#allocation3 + $0x58] sm:$0xff]
    %v159 = vld [vmem:[#allocation3 + $0x60] sm:$0xff]
    %v160 = vld [vmem:[#allocation3 + $0x68] sm:$0xff]
    %v161 = vld [vmem:[#allocation3 + $0x70] sm:$0xff]
    %v162 = vld [vmem:[#allocation3 + $0x78] sm:$0xff]
    %v163 = vld [vmem:[#allocation3 + $0x80] sm:$0xff]
    %v164 = vld [vmem:[#allocation3 + $0x88] sm:$0xff]
    %v165 = vld [vmem:[#allocation3 + $0x90] sm:$0xff]
    %v166 = vld [vmem:[#allocation3 + $0x98] sm:$0xff]
    %v167 = vld [vmem:[#allocation3 + $0xa0] sm:$0xff]
    %v168 = vld [vmem:[#allocation3 + $0xa8] sm:$0xff]
    %v169 = vld [vmem:[#allocation3 + $0xb0] sm:$0xff]
    %v170 = vld [vmem:[#allocation3 + $0xb8] sm:$0xff]
    %v171 = vld [vmem:[#allocation3 + $0xc0] sm:$0xff]
    %v172 = vld [vmem:[#allocation3 + $0xc8] sm:$0xff]
    %v173 = vld [vmem:[#allocation3 + $0xd0] sm:$0xff]
    %v174 = vld [vmem:[#allocation3 + $0xd8] sm:$0xff]
    %v175 = vld [vmem:[#allocation3 + $0xe0] sm:$0xff]
    %v176 = vld [vmem:[#allocation3 + $0xe8] sm:$0xff]
    %v177 = vld [vmem:[#allocation3 + $0xf0] sm:$0xff]
    %v178 = vld [vmem:[#allocation3 + $0xf8] sm:$0xff]
    %v179 = vld [vmem:[#allocation3 + $0x100] sm:$0xff]
    %v180 = vld [vmem:[#allocation3 + $0x108] sm:$0xff]
    %v181 = vld [vmem:[#allocation3 + $0x110] sm:$0xff]
    %v182 = vld [vmem:[#allocation3 + $0x118] sm:$0xff]
    %v183 = vld [vmem:[#allocation3 + $0x120] sm:$0xff]
    %v184 = vld [vmem:[#allocation3 + $0x128] sm:$0xff]
    %v185 = vld [vmem:[#allocation3 + $0x130] sm:$0xff]
    %v186 = vld [vmem:[#allocation3 + $0x138] sm:$0xff]
    %v187 = vld [vmem:[#allocation3 + $0x140] sm:$0xff]
    %v188 = vld [vmem:[#allocation3 + $0x148] sm:$0xff]
    %v189 = vld [vmem:[#allocation3 + $0x150] sm:$0xff]
    %v190 = vld [vmem:[#allocation3 + $0x158] sm:$0xff]
    %v191 = vld [vmem:[#allocation3 + $0x160] sm:$0xff]
    %v192 = vld [vmem:[#allocation3 + $0x168] sm:$0xff]
    %v193 = vld [vmem:[#allocation3 + $0x170] sm:$0xff]
    %v194 = vld [vmem:[#allocation3 + $0x178] sm:$0xff]
    %v195 = vld [vmem:[#allocation3 + $0x180] sm:$0xff]
    %v196 = vld [vmem:[#allocation3 + $0x188] sm:$0xff]
    %v197 = vld [vmem:[#allocation3 + $0x190] sm:$0xff]
    %v198 = vld [vmem:[#allocation3 + $0x198] sm:$0xff]
    %v199 = vld [vmem:[#allocation3 + $0x1a0] sm:$0xff]
    %v200 = vld [vmem:[#allocation3 + $0x1a8] sm:$0xff]
    %v201 = vld [vmem:[#allocation3 + $0x1b0] sm:$0xff]
    %v202 = vld [vmem:[#allocation3 + $0x1b8] sm:$0xff]
    %v203 = vld [vmem:[#allocation3 + $0x1c0] sm:$0xff]
    %v204 = vld [vmem:[#allocation3 + $0x1c8] sm:$0xff]
    %v205 = vld [vmem:[#allocation3 + $0x1d0] sm:$0xff]
    %v206 = vld [vmem:[#allocation3 + $0x1d8] sm:$0xff]
    %v207 = vld [vmem:[#allocation3 + $0x1e0] sm:$0xff]
    %v208 = vld [vmem:[#allocation3 + $0x1e8] sm:$0xff]
    %v209 = vld [vmem:[#allocation3 + $0x1f0] sm:$0xff]
    %v210 = vld [vmem:[#allocation3 + $0x1f8] sm:$0xff]
    %211 = vst [vmem:[%s82 + $0x1] sm:$0xff] %v147
    %212 = vst [vmem:[%s82 + $0x9] sm:$0xff] %v148
    %213 = vst [vmem:[%s82 + $0x19] sm:$0xff] %v149
    %214 = vst [vmem:[%s82 + $0x21] sm:$0xff] %v150
    %215 = vst [vmem:[%s82 + $0x31] sm:$0xff] %v151
    %216 = vst [vmem:[%s82 + $0x39] sm:$0xff] %v152
    %217 = vst [vmem:[%s82 + $0x49] sm:$0xff] %v153
    %218 = vst [vmem:[%s82 + $0x51] sm:$0xff] %v154
    %219 = vst [vmem:[%s82 + $0x61] sm:$0xff] %v155
    %220 = vst [vmem:[%s82 + $0x69] sm:$0xff] %v156
    %221 = vst [vmem:[%s82 + $0x79] sm:$0xff] %v157
    %222 = vst [vmem:[%s82 + $0x81] sm:$0xff] %v158
    %223 = vst [vmem:[%s82 + $0x91] sm:$0xff] %v159
    %224 = vst [vmem:[%s82 + $0x99] sm:$0xff] %v160
    %225 = vst [vmem:[%s82 + $0xa9] sm:$0xff] %v161
    %226 = vst [vmem:[%s82 + $0xb1] sm:$0xff] %v162
    %227 = vst [vmem:[%s82 + $0xc1] sm:$0xff] %v163
    %228 = vst [vmem:[%s82 + $0xc9] sm:$0xff] %v164
    %229 = vst [vmem:[%s82 + $0xd9] sm:$0xff] %v165
    %230 = vst [vmem:[%s82 + $0xe1] sm:$0xff] %v166
    %231 = vst [vmem:[%s82 + $0xf1] sm:$0xff] %v167
    %232 = vst [vmem:[%s82 + $0xf9] sm:$0xff] %v168
    %233 = vst [vmem:[%s82 + $0x109] sm:$0xff] %v169
    %234 = vst [vmem:[%s82 + $0x111] sm:$0xff] %v170
    %235 = vst [vmem:[%s82 + $0x121] sm:$0xff] %v171
    %236 = vst [vmem:[%s82 + $0x129] sm:$0xff] %v172
    %237 = vst [vmem:[%s82 + $0x139] sm:$0xff] %v173
    %238 = vst [vmem:[%s82 + $0x141] sm:$0xff] %v174
    %239 = vst [vmem:[%s82 + $0x151] sm:$0xff] %v175
    %240 = vst [vmem:[%s82 + $0x159] sm:$0xff] %v176
    %241 = vst [vmem:[%s82 + $0x169] sm:$0xff] %v177
    %242 = vst [vmem:[%s82 + $0x171] sm:$0xff] %v178
    %243 = vst [vmem:[%s82 + $0x1b1] sm:$0xff] %v179
    %244 = vst [vmem:[%s82 + $0x1b9] sm:$0xff] %v180
    %245 = vst [vmem:[%s82 + $0x1c9] sm:$0xff] %v181
    %246 = vst [vmem:[%s82 + $0x1d1] sm:$0xff] %v182
    %247 = vst [vmem:[%s82 + $0x1e1] sm:$0xff] %v183
    %248 = vst [vmem:[%s82 + $0x1e9] sm:$0xff] %v184
    %249 = vst [vmem:[%s82 + $0x1f9] sm:$0xff] %v185
    %250 = vst [vmem:[%s82 + $0x201] sm:$0xff] %v186
    %251 = vst [vmem:[%s82 + $0x211] sm:$0xff] %v187
    %252 = vst [vmem:[%s82 + $0x219] sm:$0xff] %v188
    %253 = vst [vmem:[%s82 + $0x229] sm:$0xff] %v189
    %254 = vst [vmem:[%s82 + $0x231] sm:$0xff] %v190
    %255 = vst [vmem:[%s82 + $0x241] sm:$0xff] %v191
    %256 = vst [vmem:[%s82 + $0x249] sm:$0xff] %v192
    %257 = vst [vmem:[%s82 + $0x259] sm:$0xff] %v193
    %258 = vst [vmem:[%s82 + $0x261] sm:$0xff] %v194
    %259 = vst [vmem:[%s82 + $0x271] sm:$0xff] %v195
    %260 = vst [vmem:[%s82 + $0x279] sm:$0xff] %v196
    %261 = vst [vmem:[%s82 + $0x289] sm:$0xff] %v197
    %262 = vst [vmem:[%s82 + $0x291] sm:$0xff] %v198
    %263 = vst [vmem:[%s82 + $0x2a1] sm:$0xff] %v199
    %264 = vst [vmem:[%s82 + $0x2a9] sm:$0xff] %v200
    %265 = vst [vmem:[%s82 + $0x2b9] sm:$0xff] %v201
    %266 = vst [vmem:[%s82 + $0x2c1] sm:$0xff] %v202
    %267 = vst [vmem:[%s82 + $0x2d1] sm:$0xff] %v203
    %268 = vst [vmem:[%s82 + $0x2d9] sm:$0xff] %v204
    %269 = vst [vmem:[%s82 + $0x2e9] sm:$0xff] %v205
    %270 = vst [vmem:[%s82 + $0x2f1] sm:$0xff] %v206
    %271 = vst [vmem:[%s82 + $0x301] sm:$0xff] %v207
    %272 = vst [vmem:[%s82 + $0x309] sm:$0xff] %v208
    %273 = vst [vmem:[%s82 + $0x319] sm:$0xff] %v209
    %274 = vst [vmem:[%s82 + $0x321] sm:$0xff] %v210
    %v275 = vld [vmem:[#allocation2] sm:$0xff]
    %v276 = vld [vmem:[#allocation2 + $0x8] sm:$0xff]
    %v277 = vld [vmem:[#allocation2 + $0x10] sm:$0x3]
    %v278 = vld [vmem:[#allocation2 + $0x18] sm:$0xff]
    %v279 = vld [vmem:[#allocation2 + $0x20] sm:$0xff]
    %v280 = vld [vmem:[#allocation2 + $0x28] sm:$0x3]
    %v281 = vld [vmem:[#allocation2 + $0x30] sm:$0xff]
    %v282 = vld [vmem:[#allocation2 + $0x38] sm:$0xff]
    %v283 = vld [vmem:[#allocation2 + $0x40] sm:$0x3]
    %v284 = vld [vmem:[#allocation2 + $0x48] sm:$0xff]
    %v285 = vld [vmem:[#allocation2 + $0x50] sm:$0xff]
    %v286 = vld [vmem:[#allocation2 + $0x58] sm:$0x3]
    %v287 = vld [vmem:[#allocation2 + $0x60] sm:$0xff]
    %v288 = vld [vmem:[#allocation2 + $0x68] sm:$0xff]
    %v289 = vld [vmem:[#allocation2 + $0x70] sm:$0x3]
    %v290 = vld [vmem:[#allocation2 + $0x78] sm:$0xff]
    %v291 = vld [vmem:[#allocation2 + $0x80] sm:$0xff]
    %v292 = vld [vmem:[#allocation2 + $0x88] sm:$0x3]
    %v293 = vld [vmem:[#allocation2 + $0x90] sm:$0xff]
    %v294 = vld [vmem:[#allocation2 + $0x98] sm:$0xff]
    %v295 = vld [vmem:[#allocation2 + $0xa0] sm:$0x3]
    %v296 = vld [vmem:[#allocation2 + $0xa8] sm:$0xff]
    %v297 = vld [vmem:[#allocation2 + $0xb0] sm:$0xff]
    %v298 = vld [vmem:[#allocation2 + $0xb8] sm:$0x3]
    %v299 = vld [vmem:[#allocation2 + $0xc0] sm:$0xff]
    %v300 = vld [vmem:[#allocation2 + $0xc8] sm:$0xff]
    %v301 = vld [vmem:[#allocation2 + $0xd0] sm:$0x3]
    %v302 = vld [vmem:[#allocation2 + $0xd8] sm:$0xff]
    %v303 = vld [vmem:[#allocation2 + $0xe0] sm:$0xff]
    %v304 = vld [vmem:[#allocation2 + $0xe8] sm:$0x3]
    %v305 = vld [vmem:[#allocation2 + $0xf0] sm:$0xff]
    %v306 = vld [vmem:[#allocation2 + $0xf8] sm:$0xff]
    %v307 = vld [vmem:[#allocation2 + $0x100] sm:$0x3]
    %v308 = vld [vmem:[#allocation2 + $0x108] sm:$0xff]
    %v309 = vld [vmem:[#allocation2 + $0x110] sm:$0xff]
    %v310 = vld [vmem:[#allocation2 + $0x118] sm:$0x3]
    %v311 = vld [vmem:[#allocation2 + $0x120] sm:$0xff]
    %v312 = vld [vmem:[#allocation2 + $0x128] sm:$0xff]
    %v313 = vld [vmem:[#allocation2 + $0x130] sm:$0x3]
    %v314 = vld [vmem:[#allocation2 + $0x138] sm:$0xff]
    %v315 = vld [vmem:[#allocation2 + $0x140] sm:$0xff]
    %v316 = vld [vmem:[#allocation2 + $0x148] sm:$0x3]
    %v317 = vld [vmem:[#allocation2 + $0x150] sm:$0xff]
    %v318 = vld [vmem:[#allocation2 + $0x158] sm:$0xff]
    %v319 = vld [vmem:[#allocation2 + $0x160] sm:$0x3]
    %v320 = vld [vmem:[#allocation2 + $0x168] sm:$0xff]
    %v321 = vld [vmem:[#allocation2 + $0x170] sm:$0xff]
    %v322 = vld [vmem:[#allocation2 + $0x178] sm:$0x3]
    %v323 = vld [vmem:[#allocation2 + $0x180] sm:$0xff]
    %v324 = vld [vmem:[#allocation2 + $0x188] sm:$0xff]
    %v325 = vld [vmem:[#allocation2 + $0x190] sm:$0x3]
    %v326 = vld [vmem:[#allocation2 + $0x198] sm:$0xff]
    %v327 = vld [vmem:[#allocation2 + $0x1a0] sm:$0xff]
    %v328 = vld [vmem:[#allocation2 + $0x1a8] sm:$0x3]
    %v329 = vld [vmem:[#allocation2 + $0x1b0] sm:$0xff]
    %v330 = vld [vmem:[#allocation2 + $0x1b8] sm:$0xff]
    %v331 = vld [vmem:[#allocation2 + $0x1c0] sm:$0x3]
    %v332 = vld [vmem:[#allocation2 + $0x1c8] sm:$0xff]
    %v333 = vld [vmem:[#allocation2 + $0x1d0] sm:$0xff]
    %v334 = vld [vmem:[#allocation2 + $0x1d8] sm:$0x3]
    %v335 = vld [vmem:[#allocation2 + $0x1e0] sm:$0xff]
    %v336 = vld [vmem:[#allocation2 + $0x1e8] sm:$0xff]
    %v337 = vld [vmem:[#allocation2 + $0x1f0] sm:$0x3]
    %v338 = vld [vmem:[#allocation2 + $0x1f8] sm:$0xff]
    %v339 = vld [vmem:[#allocation2 + $0x200] sm:$0xff]
    %v340 = vld [vmem:[#allocation2 + $0x208] sm:$0x3]
    %v341 = vld [vmem:[#allocation2 + $0x210] sm:$0xff]
    %v342 = vld [vmem:[#allocation2 + $0x218] sm:$0xff]
    %v343 = vld [vmem:[#allocation2 + $0x220] sm:$0x3]
    %v344 = vld [vmem:[#allocation2 + $0x228] sm:$0xff]
    %v345 = vld [vmem:[#allocation2 + $0x230] sm:$0xff]
    %v346 = vld [vmem:[#allocation2 + $0x238] sm:$0x3]
    %v347 = vld [vmem:[#allocation2 + $0x240] sm:$0xff]
    %v348 = vld [vmem:[#allocation2 + $0x248] sm:$0xff]
    %v349 = vld [vmem:[#allocation2 + $0x250] sm:$0x3]
    %v350 = vld [vmem:[#allocation2 + $0x258] sm:$0xff]
    %v351 = vld [vmem:[#allocation2 + $0x260] sm:$0xff]
    %v352 = vld [vmem:[#allocation2 + $0x268] sm:$0x3]
    %v353 = vld [vmem:[#allocation2 + $0x270] sm:$0xff]
    %v354 = vld [vmem:[#allocation2 + $0x278] sm:$0xff]
    %v355 = vld [vmem:[#allocation2 + $0x280] sm:$0x3]
    %v356 = vld [vmem:[#allocation2 + $0x288] sm:$0xff]
    %v357 = vld [vmem:[#allocation2 + $0x290] sm:$0xff]
    %v358 = vld [vmem:[#allocation2 + $0x298] sm:$0x3]
    %v359 = vld [vmem:[#allocation2 + $0x2a0] sm:$0xff]
    %v360 = vld [vmem:[#allocation2 + $0x2a8] sm:$0xff]
    %v361 = vld [vmem:[#allocation2 + $0x2b0] sm:$0x3]
    %v362 = vld [vmem:[#allocation2 + $0x2b8] sm:$0xff]
    %v363 = vld [vmem:[#allocation2 + $0x2c0] sm:$0xff]
    %v364 = vld [vmem:[#allocation2 + $0x2c8] sm:$0x3]
    %v365 = vld [vmem:[#allocation2 + $0x2d0] sm:$0xff]
    %v366 = vld [vmem:[#allocation2 + $0x2d8] sm:$0xff]
    %v367 = vld [vmem:[#allocation2 + $0x2e0] sm:$0x3]
    %v368 = vld [vmem:[#allocation2 + $0x2e8] sm:$0xff]
    %v369 = vld [vmem:[#allocation2 + $0x2f0] sm:$0xff]
    %v370 = vld [vmem:[#allocation2 + $0x2f8] sm:$0x3]
    %v371 = vld [vmem:[#allocation2 + $0x300] sm:$0xff]
    %v372 = vld [vmem:[#allocation2 + $0x308] sm:$0xff]
    %v373 = vld [vmem:[#allocation2 + $0x310] sm:$0x3]
    %v374 = vld [vmem:[#allocation2 + $0x318] sm:$0xff]
    %v375 = vld [vmem:[#allocation2 + $0x320] sm:$0xff]
    %v376 = vld [vmem:[#allocation2 + $0x328] sm:$0x3]
    %v377 = vld [vmem:[#allocation2 + $0x330] sm:$0xff]
    %v378 = vld [vmem:[#allocation2 + $0x338] sm:$0xff]
    %v379 = vld [vmem:[#allocation2 + $0x340] sm:$0x3]
    %v380 = vld [vmem:[#allocation2 + $0x348] sm:$0xff]
    %v381 = vld [vmem:[#allocation2 + $0x350] sm:$0xff]
    %v382 = vld [vmem:[#allocation2 + $0x358] sm:$0x3]
    %v383 = vpack.c.bf16 %v276, %v275
    %v384 = vpack.c.bf16 %v279, %v278
    %v385 = vpack.c.bf16 %v282, %v281
    %v386 = vpack.c.bf16 %v285, %v284
    %v387 = vpack.c.bf16 %v288, %v287
    %v388 = vpack.c.bf16 %v291, %v290
    %v389 = vpack.c.bf16 %v294, %v293
    %v390 = vpack.c.bf16 %v297, %v296
    %v391 = vpack.c.bf16 %v300, %v299
    %v392 = vpack.c.bf16 %v303, %v302
    %v393 = vpack.c.bf16 %v306, %v305
    %v394 = vpack.c.bf16 %v309, %v308
    %v395 = vpack.c.bf16 %v312, %v311
    %v396 = vpack.c.bf16 %v315, %v314
    %v397 = vpack.c.bf16 %v318, %v317
    %v398 = vpack.c.bf16 %v321, %v320
    %v399 = vpack.c.bf16 %v330, %v329
    %v400 = vpack.c.bf16 %v333, %v332
    %v401 = vpack.c.bf16 %v336, %v335
    %v402 = vpack.c.bf16 %v339, %v338
    %v403 = vpack.c.bf16 %v342, %v341
    %v404 = vpack.c.bf16 %v345, %v344
    %v405 = vpack.c.bf16 %v348, %v347
    %v406 = vpack.c.bf16 %v351, %v350
    %v407 = vpack.c.bf16 %v354, %v353
    %v408 = vpack.c.bf16 %v357, %v356
    %v409 = vpack.c.bf16 %v360, %v359
    %v410 = vpack.c.bf16 %v363, %v362
    %v411 = vpack.c.bf16 %v366, %v365
    %v412 = vpack.c.bf16 %v369, %v368
    %v413 = vpack.c.bf16 %v372, %v371
    %v414 = vpack.c.bf16 %v375, %v374
    %v415 = vpack.c.bf16 %v277, %v277
    %v416 = vpack.c.bf16 %v280, %v280
    %v417 = vpack.c.bf16 %v283, %v283
    %v418 = vpack.c.bf16 %v286, %v286
    %v419 = vpack.c.bf16 %v289, %v289
    %v420 = vpack.c.bf16 %v292, %v292
    %v421 = vpack.c.bf16 %v295, %v295
    %v422 = vpack.c.bf16 %v298, %v298
    %v423 = vpack.c.bf16 %v301, %v301
    %v424 = vpack.c.bf16 %v304, %v304
    %v425 = vpack.c.bf16 %v307, %v307
    %v426 = vpack.c.bf16 %v310, %v310
    %v427 = vpack.c.bf16 %v313, %v313
    %v428 = vpack.c.bf16 %v316, %v316
    %v429 = vpack.c.bf16 %v319, %v319
    %v430 = vpack.c.bf16 %v322, %v322
    %v431 = vpack.c.bf16 %v331, %v331
    %v432 = vpack.c.bf16 %v334, %v334
    %v433 = vpack.c.bf16 %v337, %v337
    %v434 = vpack.c.bf16 %v340, %v340
    %v435 = vpack.c.bf16 %v343, %v343
    %v436 = vpack.c.bf16 %v346, %v346
    %v437 = vpack.c.bf16 %v349, %v349
    %v438 = vpack.c.bf16 %v352, %v352
    %v439 = vpack.c.bf16 %v355, %v355
    %v440 = vpack.c.bf16 %v358, %v358
    %v441 = vpack.c.bf16 %v361, %v361
    %v442 = vpack.c.bf16 %v364, %v364
    %v443 = vpack.c.bf16 %v367, %v367
    %v444 = vpack.c.bf16 %v370, %v370
    %v445 = vpack.c.bf16 %v373, %v373
    %v446 = vpack.c.bf16 %v376, %v376
    %v447 = vpack.c.bf16 %v324, %v323
    %v448 = vpack.c.bf16 %v378, %v377
    %v449 = vpack.c.bf16 %v325, %v325
    %v450 = vpack.c.bf16 %v379, %v379
    %v451 = vpack.c.bf16 %v327, %v326
    %v452 = vpack.c.bf16 %v381, %v380
    %v453 = vpack.c.bf16 %v328, %v328
    %v454 = vpack.c.bf16 %v382, %v382
    %vm455 = vsmask.f32 7424
    %v457 = vshrl.u32 %v383, 16
    %v459 = vshll.u32 %v383, 16
    %v461 = vrot.slane %v459, 1
    %v462 = vor.u32 %v457, %v461
    %v464 = vshll.u32 %v415, 16
    %v466 = vrot.slane %v464, 1
    %v467 = vsel %vm455, %v462, %v466
    %v469 = vshrl.u32 %v384, 16
    %v471 = vshll.u32 %v384, 16
    %v473 = vrot.slane %v471, 1
    %v474 = vor.u32 %v469, %v473
    %v476 = vshll.u32 %v416, 16
    %v478 = vrot.slane %v476, 1
    %v479 = vsel %vm455, %v474, %v478
    %v481 = vshrl.u32 %v385, 16
    %v483 = vshll.u32 %v385, 16
    %v485 = vrot.slane %v483, 1
    %v486 = vor.u32 %v481, %v485
    %v488 = vshll.u32 %v417, 16
    %v490 = vrot.slane %v488, 1
    %v491 = vsel %vm455, %v486, %v490
    %v493 = vshrl.u32 %v386, 16
    %v495 = vshll.u32 %v386, 16
    %v497 = vrot.slane %v495, 1
    %v498 = vor.u32 %v493, %v497
    %v500 = vshll.u32 %v418, 16
    %v502 = vrot.slane %v500, 1
    %v503 = vsel %vm455, %v498, %v502
    %v505 = vshrl.u32 %v387, 16
    %v507 = vshll.u32 %v387, 16
    %v509 = vrot.slane %v507, 1
    %v510 = vor.u32 %v505, %v509
    %v512 = vshll.u32 %v419, 16
    %v514 = vrot.slane %v512, 1
    %v515 = vsel %vm455, %v510, %v514
    %v517 = vshrl.u32 %v388, 16
    %v519 = vshll.u32 %v388, 16
    %v521 = vrot.slane %v519, 1
    %v522 = vor.u32 %v517, %v521
    %v524 = vshll.u32 %v420, 16
    %v526 = vrot.slane %v524, 1
    %v527 = vsel %vm455, %v522, %v526
    %v529 = vshrl.u32 %v389, 16
    %v531 = vshll.u32 %v389, 16
    %v533 = vrot.slane %v531, 1
    %v534 = vor.u32 %v529, %v533
    %v536 = vshll.u32 %v421, 16
    %v538 = vrot.slane %v536, 1
    %v539 = vsel %vm455, %v534, %v538
    %v541 = vshrl.u32 %v390, 16
    %v543 = vshll.u32 %v390, 16
    %v545 = vrot.slane %v543, 1
    %v546 = vor.u32 %v541, %v545
    %v548 = vshll.u32 %v422, 16
    %v550 = vrot.slane %v548, 1
    %v551 = vsel %vm455, %v546, %v550
    %v553 = vshrl.u32 %v391, 16
    %v555 = vshll.u32 %v391, 16
    %v557 = vrot.slane %v555, 1
    %v558 = vor.u32 %v553, %v557
    %v560 = vshll.u32 %v423, 16
    %v562 = vrot.slane %v560, 1
    %v563 = vsel %vm455, %v558, %v562
    %v565 = vshrl.u32 %v392, 16
    %v567 = vshll.u32 %v392, 16
    %v569 = vrot.slane %v567, 1
    %v570 = vor.u32 %v565, %v569
    %v572 = vshll.u32 %v424, 16
    %v574 = vrot.slane %v572, 1
    %v575 = vsel %vm455, %v570, %v574
    %v577 = vshrl.u32 %v393, 16
    %v579 = vshll.u32 %v393, 16
    %v581 = vrot.slane %v579, 1
    %v582 = vor.u32 %v577, %v581
    %v584 = vshll.u32 %v425, 16
    %v586 = vrot.slane %v584, 1
    %v587 = vsel %vm455, %v582, %v586
    %v589 = vshrl.u32 %v394, 16
    %v591 = vshll.u32 %v394, 16
    %v593 = vrot.slane %v591, 1
    %v594 = vor.u32 %v589, %v593
    %v596 = vshll.u32 %v426, 16
    %v598 = vrot.slane %v596, 1
    %v599 = vsel %vm455, %v594, %v598
    %v601 = vshrl.u32 %v395, 16
    %v603 = vshll.u32 %v395, 16
    %v605 = vrot.slane %v603, 1
    %v606 = vor.u32 %v601, %v605
    %v608 = vshll.u32 %v427, 16
    %v610 = vrot.slane %v608, 1
    %v611 = vsel %vm455, %v606, %v610
    %v613 = vshrl.u32 %v396, 16
    %v615 = vshll.u32 %v396, 16
    %v617 = vrot.slane %v615, 1
    %v618 = vor.u32 %v613, %v617
    %v620 = vshll.u32 %v428, 16
    %v622 = vrot.slane %v620, 1
    %v623 = vsel %vm455, %v618, %v622
    %v625 = vshrl.u32 %v397, 16
    %v627 = vshll.u32 %v397, 16
    %v629 = vrot.slane %v627, 1
    %v630 = vor.u32 %v625, %v629
    %v632 = vshll.u32 %v429, 16
    %v634 = vrot.slane %v632, 1
    %v635 = vsel %vm455, %v630, %v634
    %v637 = vshrl.u32 %v398, 16
    %v639 = vshll.u32 %v398, 16
    %v641 = vrot.slane %v639, 1
    %v642 = vor.u32 %v637, %v641
    %v644 = vshll.u32 %v430, 16
    %v646 = vrot.slane %v644, 1
    %v647 = vsel %vm455, %v642, %v646
    %v649 = vshrl.u32 %v399, 16
    %v651 = vshll.u32 %v399, 16
    %v653 = vrot.slane %v651, 1
    %v654 = vor.u32 %v649, %v653
    %v656 = vshll.u32 %v431, 16
    %v658 = vrot.slane %v656, 1
    %v659 = vsel %vm455, %v654, %v658
    %v661 = vshrl.u32 %v400, 16
    %v663 = vshll.u32 %v400, 16
    %v665 = vrot.slane %v663, 1
    %v666 = vor.u32 %v661, %v665
    %v668 = vshll.u32 %v432, 16
    %v670 = vrot.slane %v668, 1
    %v671 = vsel %vm455, %v666, %v670
    %v673 = vshrl.u32 %v401, 16
    %v675 = vshll.u32 %v401, 16
    %v677 = vrot.slane %v675, 1
    %v678 = vor.u32 %v673, %v677
    %v680 = vshll.u32 %v433, 16
    %v682 = vrot.slane %v680, 1
    %v683 = vsel %vm455, %v678, %v682
    %v685 = vshrl.u32 %v402, 16
    %v687 = vshll.u32 %v402, 16
    %v689 = vrot.slane %v687, 1
    %v690 = vor.u32 %v685, %v689
    %v692 = vshll.u32 %v434, 16
    %v694 = vrot.slane %v692, 1
    %v695 = vsel %vm455, %v690, %v694
    %v697 = vshrl.u32 %v403, 16
    %v699 = vshll.u32 %v403, 16
    %v701 = vrot.slane %v699, 1
    %v702 = vor.u32 %v697, %v701
    %v704 = vshll.u32 %v435, 16
    %v706 = vrot.slane %v704, 1
    %v707 = vsel %vm455, %v702, %v706
    %v709 = vshrl.u32 %v404, 16
    %v711 = vshll.u32 %v404, 16
    %v713 = vrot.slane %v711, 1
    %v714 = vor.u32 %v709, %v713
    %v716 = vshll.u32 %v436, 16
    %v718 = vrot.slane %v716, 1
    %v719 = vsel %vm455, %v714, %v718
    %v721 = vshrl.u32 %v405, 16
    %v723 = vshll.u32 %v405, 16
    %v725 = vrot.slane %v723, 1
    %v726 = vor.u32 %v721, %v725
    %v728 = vshll.u32 %v437, 16
    %v730 = vrot.slane %v728, 1
    %v731 = vsel %vm455, %v726, %v730
    %v733 = vshrl.u32 %v406, 16
    %v735 = vshll.u32 %v406, 16
    %v737 = vrot.slane %v735, 1
    %v738 = vor.u32 %v733, %v737
    %v740 = vshll.u32 %v438, 16
    %v742 = vrot.slane %v740, 1
    %v743 = vsel %vm455, %v738, %v742
    %v745 = vshrl.u32 %v407, 16
    %v747 = vshll.u32 %v407, 16
    %v749 = vrot.slane %v747, 1
    %v750 = vor.u32 %v745, %v749
    %v752 = vshll.u32 %v439, 16
    %v754 = vrot.slane %v752, 1
    %v755 = vsel %vm455, %v750, %v754
    %v757 = vshrl.u32 %v408, 16
    %v759 = vshll.u32 %v408, 16
    %v761 = vrot.slane %v759, 1
    %v762 = vor.u32 %v757, %v761
    %v764 = vshll.u32 %v440, 16
    %v766 = vrot.slane %v764, 1
    %v767 = vsel %vm455, %v762, %v766
    %v769 = vshrl.u32 %v409, 16
    %v771 = vshll.u32 %v409, 16
    %v773 = vrot.slane %v771, 1
    %v774 = vor.u32 %v769, %v773
    %v776 = vshll.u32 %v441, 16
    %v778 = vrot.slane %v776, 1
    %v779 = vsel %vm455, %v774, %v778
    %v781 = vshrl.u32 %v410, 16
    %v783 = vshll.u32 %v410, 16
    %v785 = vrot.slane %v783, 1
    %v786 = vor.u32 %v781, %v785
    %v788 = vshll.u32 %v442, 16
    %v790 = vrot.slane %v788, 1
    %v791 = vsel %vm455, %v786, %v790
    %v793 = vshrl.u32 %v411, 16
    %v795 = vshll.u32 %v411, 16
    %v797 = vrot.slane %v795, 1
    %v798 = vor.u32 %v793, %v797
    %v800 = vshll.u32 %v443, 16
    %v802 = vrot.slane %v800, 1
    %v803 = vsel %vm455, %v798, %v802
    %v805 = vshrl.u32 %v412, 16
    %v807 = vshll.u32 %v412, 16
    %v809 = vrot.slane %v807, 1
    %v810 = vor.u32 %v805, %v809
    %v812 = vshll.u32 %v444, 16
    %v814 = vrot.slane %v812, 1
    %v815 = vsel %vm455, %v810, %v814
    %v817 = vshrl.u32 %v413, 16
    %v819 = vshll.u32 %v413, 16
    %v821 = vrot.slane %v819, 1
    %v822 = vor.u32 %v817, %v821
    %v824 = vshll.u32 %v445, 16
    %v826 = vrot.slane %v824, 1
    %v827 = vsel %vm455, %v822, %v826
    %v829 = vshrl.u32 %v414, 16
    %v831 = vshll.u32 %v414, 16
    %v833 = vrot.slane %v831, 1
    %v834 = vor.u32 %v829, %v833
    %v836 = vshll.u32 %v446, 16
    %v838 = vrot.slane %v836, 1
    %v839 = vsel %vm455, %v834, %v838
    %vm936 = vcmask 1046528
    %v937 = vrot.slane %v383, 1
    %v938 = vrot.slane %v415, 1
    %v939 = vsel %vm936, %v937, %v938
    %v940 = vrot.slane %v384, 1
    %v941 = vrot.slane %v416, 1
    %v942 = vsel %vm936, %v940, %v941
    %v943 = vrot.slane %v385, 1
    %v944 = vrot.slane %v417, 1
    %v945 = vsel %vm936, %v943, %v944
    %v946 = vrot.slane %v386, 1
    %v947 = vrot.slane %v418, 1
    %v948 = vsel %vm936, %v946, %v947
    %v949 = vrot.slane %v387, 1
    %v950 = vrot.slane %v419, 1
    %v951 = vsel %vm936, %v949, %v950
    %v952 = vrot.slane %v388, 1
    %v953 = vrot.slane %v420, 1
    %v954 = vsel %vm936, %v952, %v953
    %v955 = vrot.slane %v389, 1
    %v956 = vrot.slane %v421, 1
    %v957 = vsel %vm936, %v955, %v956
    %v958 = vrot.slane %v390, 1
    %v959 = vrot.slane %v422, 1
    %v960 = vsel %vm936, %v958, %v959
    %v961 = vrot.slane %v391, 1
    %v962 = vrot.slane %v423, 1
    %v963 = vsel %vm936, %v961, %v962
    %v964 = vrot.slane %v392, 1
    %v965 = vrot.slane %v424, 1
    %v966 = vsel %vm936, %v964, %v965
    %v967 = vrot.slane %v393, 1
    %v968 = vrot.slane %v425, 1
    %v969 = vsel %vm936, %v967, %v968
    %v970 = vrot.slane %v394, 1
    %v971 = vrot.slane %v426, 1
    %v972 = vsel %vm936, %v970, %v971
    %v973 = vrot.slane %v395, 1
    %v974 = vrot.slane %v427, 1
    %v975 = vsel %vm936, %v973, %v974
    %v976 = vrot.slane %v396, 1
    %v977 = vrot.slane %v428, 1
    %v978 = vsel %vm936, %v976, %v977
    %v979 = vrot.slane %v397, 1
    %v980 = vrot.slane %v429, 1
    %v981 = vsel %vm936, %v979, %v980
    %v982 = vrot.slane %v398, 1
    %v983 = vrot.slane %v430, 1
    %v984 = vsel %vm936, %v982, %v983
    %v985 = vrot.slane %v399, 1
    %v986 = vrot.slane %v431, 1
    %v987 = vsel %vm936, %v985, %v986
    %v988 = vrot.slane %v400, 1
    %v989 = vrot.slane %v432, 1
    %v990 = vsel %vm936, %v988, %v989
    %v991 = vrot.slane %v401, 1
    %v992 = vrot.slane %v433, 1
    %v993 = vsel %vm936, %v991, %v992
    %v994 = vrot.slane %v402, 1
    %v995 = vrot.slane %v434, 1
    %v996 = vsel %vm936, %v994, %v995
    %v997 = vrot.slane %v403, 1
    %v998 = vrot.slane %v435, 1
    %v999 = vsel %vm936, %v997, %v998
    %v1000 = vrot.slane %v404, 1
    %v1001 = vrot.slane %v436, 1
    %v1002 = vsel %vm936, %v1000, %v1001
    %v1003 = vrot.slane %v405, 1
    %v1004 = vrot.slane %v437, 1
    %v1005 = vsel %vm936, %v1003, %v1004
    %v1006 = vrot.slane %v406, 1
    %v1007 = vrot.slane %v438, 1
    %v1008 = vsel %vm936, %v1006, %v1007
    %v1009 = vrot.slane %v407, 1
    %v1010 = vrot.slane %v439, 1
    %v1011 = vsel %vm936, %v1009, %v1010
    %v1012 = vrot.slane %v408, 1
    %v1013 = vrot.slane %v440, 1
    %v1014 = vsel %vm936, %v1012, %v1013
    %v1015 = vrot.slane %v409, 1
    %v1016 = vrot.slane %v441, 1
    %v1017 = vsel %vm936, %v1015, %v1016
    %v1018 = vrot.slane %v410, 1
    %v1019 = vrot.slane %v442, 1
    %v1020 = vsel %vm936, %v1018, %v1019
    %v1021 = vrot.slane %v411, 1
    %v1022 = vrot.slane %v443, 1
    %v1023 = vsel %vm936, %v1021, %v1022
    %v1024 = vrot.slane %v412, 1
    %v1025 = vrot.slane %v444, 1
    %v1026 = vsel %vm936, %v1024, %v1025
    %v1027 = vrot.slane %v413, 1
    %v1028 = vrot.slane %v445, 1
    %v1029 = vsel %vm936, %v1027, %v1028
    %v1030 = vrot.slane %v414, 1
    %v1031 = vrot.slane %v446, 1
    %v1032 = vsel %vm936, %v1030, %v1031
    %v1066 = vshrl.u32 %v447, 16
    %v1068 = vshll.u32 %v447, 16
    %v1070 = vrot.slane %v1068, 1
    %v1071 = vor.u32 %v1066, %v1070
    %v1073 = vshll.u32 %v449, 16
    %v1075 = vrot.slane %v1073, 1
    %v1076 = vsel %vm455, %v1071, %v1075
    %v1078 = vshrl.u32 %v448, 16
    %v1080 = vshll.u32 %v448, 16
    %v1082 = vrot.slane %v1080, 1
    %v1083 = vor.u32 %v1078, %v1082
    %v1085 = vshll.u32 %v450, 16
    %v1087 = vrot.slane %v1085, 1
    %v1088 = vsel %vm455, %v1083, %v1087
    %v1095 = vrot.slane %v447, 1
    %v1096 = vrot.slane %v449, 1
    %v1097 = vsel %vm936, %v1095, %v1096
    %v1098 = vrot.slane %v448, 1
    %v1099 = vrot.slane %v450, 1
    %v1100 = vsel %vm936, %v1098, %v1099
    %v1104 = vshrl.u32 %v451, 16
    %v1106 = vshll.u32 %v451, 16
    %v1108 = vrot.slane %v1106, 1
    %v1109 = vor.u32 %v1104, %v1108
    %v1111 = vshll.u32 %v453, 16
    %v1113 = vrot.slane %v1111, 1
    %v1114 = vsel %vm455, %v1109, %v1113
    %v1116 = vshrl.u32 %v452, 16
    %v1118 = vshll.u32 %v452, 16
    %v1120 = vrot.slane %v1118, 1
    %v1121 = vor.u32 %v1116, %v1120
    %v1123 = vshll.u32 %v454, 16
    %v1125 = vrot.slane %v1123, 1
    %v1126 = vsel %vm455, %v1121, %v1125
    %v1133 = vrot.slane %v451, 1
    %v1134 = vrot.slane %v453, 1
    %v1135 = vsel %vm936, %v1133, %v1134
    %v1136 = vrot.slane %v452, 1
    %v1137 = vrot.slane %v454, 1
    %v1138 = vsel %vm936, %v1136, %v1137
    %v1141 = vld [vmem:[#allocation6] sm:$0xf]
    %v1142 = vld [vmem:[#allocation6 + $0x4] sm:$0xf]
    %v1143 = vld [vmem:[#allocation6 + $0x8] sm:$0xf]
    %v1144 = vld [vmem:[#allocation6 + $0xc] sm:$0xf]
    %v1145 = vld [vmem:[#allocation6 + $0x10] sm:$0xf]
    %v1146 = vld [vmem:[#allocation6 + $0x14] sm:$0xf]
    %v1147 = vld [vmem:[#allocation6 + $0x18] sm:$0xf]
    %v1148 = vld [vmem:[#allocation6 + $0x1c] sm:$0xf]
    %v1149 = vld [vmem:[#allocation6 + $0x20] sm:$0xf]
    %v1150 = vld [vmem:[#allocation6 + $0x24] sm:$0xf]
    %v1151 = vld [vmem:[#allocation6 + $0x28] sm:$0xf]
    %v1152 = vld [vmem:[#allocation6 + $0x2c] sm:$0xf]
    %v1153 = vld [vmem:[#allocation6 + $0x30] sm:$0xf]
    %v1154 = vld [vmem:[#allocation6 + $0x34] sm:$0xf]
    %v1155 = vld [vmem:[#allocation6 + $0x38] sm:$0xf]
    %v1156 = vld [vmem:[#allocation6 + $0x3c] sm:$0xf]
    %v1157 = vld [vmem:[#allocation6 + $0x40] sm:$0xf]
    %v1158 = vld [vmem:[#allocation6 + $0x44] sm:$0xf]
    %v1159 = vld [vmem:[#allocation6 + $0x48] sm:$0xf]
    %v1160 = vld [vmem:[#allocation6 + $0x4c] sm:$0xf]
    %v1161 = vld [vmem:[#allocation6 + $0x50] sm:$0xf]
    %v1162 = vld [vmem:[#allocation6 + $0x54] sm:$0xf]
    %v1163 = vld [vmem:[#allocation6 + $0x58] sm:$0xf]
    %v1164 = vld [vmem:[#allocation6 + $0x5c] sm:$0xf]
    %v1165 = vld [vmem:[#allocation6 + $0x60] sm:$0xf]
    %v1166 = vld [vmem:[#allocation6 + $0x64] sm:$0xf]
    %v1167 = vld [vmem:[#allocation6 + $0x68] sm:$0xf]
    %v1168 = vld [vmem:[#allocation6 + $0x6c] sm:$0xf]
    %v1169 = vld [vmem:[#allocation6 + $0x70] sm:$0xf]
    %v1170 = vld [vmem:[#allocation6 + $0x74] sm:$0xf]
    %v1171 = vld [vmem:[#allocation6 + $0x78] sm:$0xf]
    %v1172 = vld [vmem:[#allocation6 + $0x7c] sm:$0xf]
    %v1173 = vld [vmem:[#allocation6 + $0x80] sm:$0xf]
    %v1174 = vld [vmem:[#allocation6 + $0x84] sm:$0xf]
    %v1175 = vld [vmem:[#allocation6 + $0x88] sm:$0xf]
    %v1176 = vld [vmem:[#allocation6 + $0x8c] sm:$0xf]
    %v1177 = vld [vmem:[#allocation6 + $0x90] sm:$0xf]
    %v1178 = vld [vmem:[#allocation6 + $0x94] sm:$0xf]
    %v1179 = vld [vmem:[#allocation6 + $0x98] sm:$0xf]
    %v1180 = vld [vmem:[#allocation6 + $0x9c] sm:$0xf]
    %v1181 = vld [vmem:[#allocation6 + $0xa0] sm:$0xf]
    %v1182 = vld [vmem:[#allocation6 + $0xa4] sm:$0xf]
    %v1183 = vld [vmem:[#allocation6 + $0xa8] sm:$0xf]
    %v1184 = vld [vmem:[#allocation6 + $0xac] sm:$0xf]
    %v1185 = vld [vmem:[#allocation6 + $0xb0] sm:$0xf]
    %v1186 = vld [vmem:[#allocation6 + $0xb4] sm:$0xf]
    %v1187 = vld [vmem:[#allocation6 + $0xb8] sm:$0xf]
    %v1188 = vld [vmem:[#allocation6 + $0xbc] sm:$0xf]
    %v1189 = vld [vmem:[#allocation6 + $0xc0] sm:$0xf]
    %v1190 = vld [vmem:[#allocation6 + $0xc4] sm:$0xf]
    %v1191 = vld [vmem:[#allocation6 + $0xc8] sm:$0xf]
    %v1192 = vld [vmem:[#allocation6 + $0xcc] sm:$0xf]
    %v1193 = vld [vmem:[#allocation6 + $0xd0] sm:$0xf]
    %v1194 = vld [vmem:[#allocation6 + $0xd4] sm:$0xf]
    %v1195 = vld [vmem:[#allocation6 + $0xd8] sm:$0xf]
    %v1196 = vld [vmem:[#allocation6 + $0xdc] sm:$0xf]
    %v1197 = vld [vmem:[#allocation6 + $0xe0] sm:$0xf]
    %v1198 = vld [vmem:[#allocation6 + $0xe4] sm:$0xf]
    %v1199 = vld [vmem:[#allocation6 + $0xe8] sm:$0xf]
    %v1200 = vld [vmem:[#allocation6 + $0xec] sm:$0xf]
    %v1201 = vld [vmem:[#allocation6 + $0xf0] sm:$0xf]
    %v1202 = vld [vmem:[#allocation6 + $0xf4] sm:$0xf]
    %v1203 = vld [vmem:[#allocation6 + $0xf8] sm:$0xf]
    %v1204 = vld [vmem:[#allocation6 + $0xfc] sm:$0xf]
    %v1205 = vld [vmem:[#allocation6 + $0x100] sm:$0xf]
    %v1206 = vld [vmem:[#allocation6 + $0x104] sm:$0xf]
    %v1207 = vld [vmem:[#allocation6 + $0x108] sm:$0xf]
    %v1208 = vld [vmem:[#allocation6 + $0x10c] sm:$0xf]
    %v1209 = vld [vmem:[#allocation6 + $0x110] sm:$0xf]
    %v1210 = vld [vmem:[#allocation6 + $0x114] sm:$0xf]
    %v1211 = vld [vmem:[#allocation6 + $0x118] sm:$0xf]
    %v1212 = vld [vmem:[#allocation6 + $0x11c] sm:$0xf]
    %v1213 = vld [vmem:[#allocation6 + $0x120] sm:$0xf]
    %v1214 = vld [vmem:[#allocation6 + $0x124] sm:$0xf]
    %v1215 = vld [vmem:[#allocation6 + $0x128] sm:$0xf]
    %v1216 = vld [vmem:[#allocation6 + $0x12c] sm:$0xf]
    %v1217 = vld [vmem:[#allocation6 + $0x130] sm:$0xf]
    %v1218 = vld [vmem:[#allocation6 + $0x134] sm:$0xf]
    %v1219 = vld [vmem:[#allocation6 + $0x138] sm:$0xf]
    %v1220 = vld [vmem:[#allocation6 + $0x13c] sm:$0xf]
    %v1221 = vld [vmem:[#allocation6 + $0x140] sm:$0xf]
    %v1222 = vld [vmem:[#allocation6 + $0x144] sm:$0xf]
    %v1223 = vld [vmem:[#allocation6 + $0x148] sm:$0xf]
    %v1224 = vld [vmem:[#allocation6 + $0x14c] sm:$0xf]
    %v1225 = vld [vmem:[#allocation6 + $0x150] sm:$0xf]
    %v1226 = vld [vmem:[#allocation6 + $0x154] sm:$0xf]
    %v1227 = vld [vmem:[#allocation6 + $0x158] sm:$0xf]
    %v1228 = vld [vmem:[#allocation6 + $0x15c] sm:$0xf]
    %v1229 = vld [vmem:[#allocation6 + $0x160] sm:$0xf]
    %v1230 = vld [vmem:[#allocation6 + $0x164] sm:$0xf]
    %v1231 = vld [vmem:[#allocation6 + $0x168] sm:$0xf]
    %v1232 = vld [vmem:[#allocation6 + $0x16c] sm:$0xf]
    %v1233 = vld [vmem:[#allocation6 + $0x170] sm:$0xf]
    %v1234 = vld [vmem:[#allocation6 + $0x174] sm:$0xf]
    %v1235 = vld [vmem:[#allocation6 + $0x178] sm:$0xf]
    %v1236 = vld [vmem:[#allocation6 + $0x17c] sm:$0xf]
    %v1237 = vld [vmem:[#allocation6 + $0x180] sm:$0xf]
    %v1238 = vld [vmem:[#allocation6 + $0x184] sm:$0xf]
    %v1239 = vld [vmem:[#allocation6 + $0x188] sm:$0xf]
    %v1240 = vld [vmem:[#allocation6 + $0x18c] sm:$0xf]
    %v1241 = vld [vmem:[#allocation6 + $0x190] sm:$0xf]
    %v1242 = vld [vmem:[#allocation6 + $0x194] sm:$0xf]
    %v1243 = vld [vmem:[#allocation6 + $0x198] sm:$0xf]
    %v1244 = vld [vmem:[#allocation6 + $0x19c] sm:$0xf]
    %v1245 = vld [vmem:[#allocation6 + $0x1a0] sm:$0xf]
    %v1246 = vld [vmem:[#allocation6 + $0x1a4] sm:$0xf]
    %v1247 = vld [vmem:[#allocation6 + $0x1a8] sm:$0xf]
    %v1248 = vld [vmem:[#allocation6 + $0x1ac] sm:$0xf]
    %v1249 = vld [vmem:[#allocation6 + $0x1b0] sm:$0xf]
    %v1250 = vld [vmem:[#allocation6 + $0x1b4] sm:$0xf]
    %v1251 = vld [vmem:[#allocation6 + $0x1b8] sm:$0xf]
    %v1252 = vld [vmem:[#allocation6 + $0x1bc] sm:$0xf]
    %v1253 = vld [vmem:[#allocation6 + $0x1c0] sm:$0xf]
    %v1254 = vld [vmem:[#allocation6 + $0x1c4] sm:$0xf]
    %v1255 = vld [vmem:[#allocation6 + $0x1c8] sm:$0xf]
    %v1256 = vld [vmem:[#allocation6 + $0x1cc] sm:$0xf]
    %v1257 = vld [vmem:[#allocation6 + $0x1d0] sm:$0xf]
    %v1258 = vld [vmem:[#allocation6 + $0x1d4] sm:$0xf]
    %v1259 = vld [vmem:[#allocation6 + $0x1d8] sm:$0xf]
    %v1260 = vld [vmem:[#allocation6 + $0x1dc] sm:$0xf]
    %v1261 = vld [vmem:[#allocation6 + $0x1e0] sm:$0xf]
    %v1262 = vld [vmem:[#allocation6 + $0x1e4] sm:$0xf]
    %v1263 = vld [vmem:[#allocation6 + $0x1e8] sm:$0xf]
    %v1264 = vld [vmem:[#allocation6 + $0x1ec] sm:$0xf]
    %v1265 = vld [vmem:[#allocation6 + $0x1f0] sm:$0xf]
    %v1266 = vld [vmem:[#allocation6 + $0x1f4] sm:$0xf]
    %v1267 = vld [vmem:[#allocation6 + $0x1f8] sm:$0xf]
    %v1268 = vld [vmem:[#allocation6 + $0x1fc] sm:$0xf]
    %v1269 = vld [vmem:[#allocation6 + $0x200] sm:$0xf]
    %v1270 = vld [vmem:[#allocation6 + $0x204] sm:$0xf]
    %v1271 = vld [vmem:[#allocation6 + $0x208] sm:$0xf]
    %v1272 = vld [vmem:[#allocation6 + $0x20c] sm:$0xf]
    %v1273 = vld [vmem:[#allocation6 + $0x210] sm:$0xf]
    %v1274 = vld [vmem:[#allocation6 + $0x214] sm:$0xf]
    %v1275 = vld [vmem:[#allocation6 + $0x218] sm:$0xf]
    %v1276 = vld [vmem:[#allocation6 + $0x21c] sm:$0xf]
    %v1277 = vld [vmem:[#allocation6 + $0x220] sm:$0xf]
    %v1278 = vld [vmem:[#allocation6 + $0x224] sm:$0xf]
    %v1279 = vld [vmem:[#allocation6 + $0x228] sm:$0xf]
    %v1280 = vld [vmem:[#allocation6 + $0x22c] sm:$0xf]
    %v1281 = vld [vmem:[#allocation6 + $0x230] sm:$0xf]
    %v1282 = vld [vmem:[#allocation6 + $0x234] sm:$0xf]
    %v1283 = vld [vmem:[#allocation6 + $0x238] sm:$0xf]
    %v1284 = vld [vmem:[#allocation6 + $0x23c] sm:$0xf]
    %v1429 = vunpack.c.l.b16 %v1141
    %v1430 = vunpack.c.l.b16 %v1142
    %v1431 = vunpack.c.l.b16 %v1143
    %v1432 = vunpack.c.l.b16 %v1144
    %v1433 = vunpack.c.l.b16 %v1145
    %v1434 = vunpack.c.l.b16 %v1146
    %v1435 = vunpack.c.l.b16 %v1147
    %v1436 = vunpack.c.l.b16 %v1148
    %v1437 = vunpack.c.l.b16 %v1149
    %v1438 = vunpack.c.l.b16 %v1150
    %v1439 = vunpack.c.l.b16 %v1151
    %v1440 = vunpack.c.l.b16 %v1152
    %v1441 = vunpack.c.l.b16 %v1153
    %v1442 = vunpack.c.l.b16 %v1154
    %v1443 = vunpack.c.l.b16 %v1155
    %v1444 = vunpack.c.l.b16 %v1156
    %v1445 = vunpack.c.l.b16 %v1157
    %v1446 = vunpack.c.l.b16 %v1158
    %v1447 = vunpack.c.l.b16 %v1159
    %v1448 = vunpack.c.l.b16 %v1160
    %v1449 = vunpack.c.l.b16 %v1161
    %v1450 = vunpack.c.l.b16 %v1162
    %v1451 = vunpack.c.l.b16 %v1163
    %v1452 = vunpack.c.l.b16 %v1164
    %v1453 = vunpack.c.l.b16 %v1165
    %v1454 = vunpack.c.l.b16 %v1166
    %v1455 = vunpack.c.l.b16 %v1167
    %v1456 = vunpack.c.l.b16 %v1168
    %v1457 = vunpack.c.l.b16 %v1169
    %v1458 = vunpack.c.l.b16 %v1170
    %v1459 = vunpack.c.l.b16 %v1171
    %v1460 = vunpack.c.l.b16 %v1172
    %v1461 = vunpack.c.l.b16 %v1173
    %v1462 = vunpack.c.l.b16 %v1174
    %v1463 = vunpack.c.l.b16 %v1175
    %v1464 = vunpack.c.l.b16 %v1176
    %v1465 = vunpack.c.l.b16 %v1177
    %v1466 = vunpack.c.l.b16 %v1178
    %v1467 = vunpack.c.l.b16 %v1179
    %v1468 = vunpack.c.l.b16 %v1180
    %v1469 = vunpack.c.l.b16 %v1181
    %v1470 = vunpack.c.l.b16 %v1182
    %v1471 = vunpack.c.l.b16 %v1183
    %v1472 = vunpack.c.l.b16 %v1184
    %v1473 = vunpack.c.l.b16 %v1185
    %v1474 = vunpack.c.l.b16 %v1186
    %v1475 = vunpack.c.l.b16 %v1187
    %v1476 = vunpack.c.l.b16 %v1188
    %v1477 = vunpack.c.l.b16 %v1189
    %v1478 = vunpack.c.l.b16 %v1190
    %v1479 = vunpack.c.l.b16 %v1191
    %v1480 = vunpack.c.l.b16 %v1192
    %v1481 = vunpack.c.l.b16 %v1193
    %v1482 = vunpack.c.l.b16 %v1194
    %v1483 = vunpack.c.l.b16 %v1195
    %v1484 = vunpack.c.l.b16 %v1196
    %v1485 = vunpack.c.l.b16 %v1197
    %v1486 = vunpack.c.l.b16 %v1198
    %v1487 = vunpack.c.l.b16 %v1199
    %v1488 = vunpack.c.l.b16 %v1200
    %v1489 = vunpack.c.l.b16 %v1201
    %v1490 = vunpack.c.l.b16 %v1202
    %v1491 = vunpack.c.l.b16 %v1203
    %v1492 = vunpack.c.l.b16 %v1204
    %v1493 = vunpack.c.l.b16 %v1205
    %v1494 = vunpack.c.l.b16 %v1206
    %v1495 = vunpack.c.l.b16 %v1207
    %v1496 = vunpack.c.l.b16 %v1208
    %v1497 = vunpack.c.l.b16 %v1209
    %v1498 = vunpack.c.l.b16 %v1210
    %v1499 = vunpack.c.l.b16 %v1211
    %v1500 = vunpack.c.l.b16 %v1212
    %v1501 = vunpack.c.l.b16 %v1213
    %v1502 = vunpack.c.l.b16 %v1214
    %v1503 = vunpack.c.l.b16 %v1215
    %v1504 = vunpack.c.l.b16 %v1216
    %v1505 = vunpack.c.l.b16 %v1217
    %v1506 = vunpack.c.l.b16 %v1218
    %v1507 = vunpack.c.l.b16 %v1219
    %v1508 = vunpack.c.l.b16 %v1220
    %v1509 = vunpack.c.l.b16 %v1221
    %v1510 = vunpack.c.l.b16 %v1222
    %v1511 = vunpack.c.l.b16 %v1223
    %v1512 = vunpack.c.l.b16 %v1224
    %v1513 = vunpack.c.l.b16 %v1225
    %v1514 = vunpack.c.l.b16 %v1226
    %v1515 = vunpack.c.l.b16 %v1227
    %v1516 = vunpack.c.l.b16 %v1228
    %v1517 = vunpack.c.l.b16 %v1229
    %v1518 = vunpack.c.l.b16 %v1230
    %v1519 = vunpack.c.l.b16 %v1231
    %v1520 = vunpack.c.l.b16 %v1232
    %v1521 = vunpack.c.l.b16 %v1233
    %v1522 = vunpack.c.l.b16 %v1234
    %v1523 = vunpack.c.l.b16 %v1235
    %v1524 = vunpack.c.l.b16 %v1236
    %v1525 = vunpack.c.l.b16 %v1237
    %v1526 = vunpack.c.l.b16 %v1238
    %v1527 = vunpack.c.l.b16 %v1239
    %v1528 = vunpack.c.l.b16 %v1240
    %v1529 = vunpack.c.l.b16 %v1241
    %v1530 = vunpack.c.l.b16 %v1242
    %v1531 = vunpack.c.l.b16 %v1243
    %v1532 = vunpack.c.l.b16 %v1244
    %v1533 = vunpack.c.l.b16 %v1245
    %v1534 = vunpack.c.l.b16 %v1246
    %v1535 = vunpack.c.l.b16 %v1247
    %v1536 = vunpack.c.l.b16 %v1248
    %v1537 = vunpack.c.l.b16 %v1249
    %v1538 = vunpack.c.l.b16 %v1250
    %v1539 = vunpack.c.l.b16 %v1251
    %v1540 = vunpack.c.l.b16 %v1252
    %v1541 = vunpack.c.l.b16 %v1253
    %v1542 = vunpack.c.l.b16 %v1254
    %v1543 = vunpack.c.l.b16 %v1255
    %v1544 = vunpack.c.l.b16 %v1256
    %v1545 = vunpack.c.l.b16 %v1257
    %v1546 = vunpack.c.l.b16 %v1258
    %v1547 = vunpack.c.l.b16 %v1259
    %v1548 = vunpack.c.l.b16 %v1260
    %v1549 = vunpack.c.l.b16 %v1261
    %v1550 = vunpack.c.l.b16 %v1262
    %v1551 = vunpack.c.l.b16 %v1263
    %v1552 = vunpack.c.l.b16 %v1264
    %v1553 = vunpack.c.l.b16 %v1265
    %v1554 = vunpack.c.l.b16 %v1266
    %v1555 = vunpack.c.l.b16 %v1267
    %v1556 = vunpack.c.l.b16 %v1268
    %v1557 = vunpack.c.l.b16 %v1269
    %v1558 = vunpack.c.l.b16 %v1270
    %v1559 = vunpack.c.l.b16 %v1271
    %v1560 = vunpack.c.l.b16 %v1272
    %v1561 = vunpack.c.l.b16 %v1273
    %v1562 = vunpack.c.l.b16 %v1274
    %v1563 = vunpack.c.l.b16 %v1275
    %v1564 = vunpack.c.l.b16 %v1276
    %v1565 = vunpack.c.l.b16 %v1277
    %v1566 = vunpack.c.l.b16 %v1278
    %v1567 = vunpack.c.l.b16 %v1279
    %v1568 = vunpack.c.l.b16 %v1280
    %v1569 = vunpack.c.l.b16 %v1281
    %v1570 = vunpack.c.l.b16 %v1282
    %v1571 = vunpack.c.l.b16 %v1283
    %v1572 = vunpack.c.l.b16 %v1284
    %v1573 = vpack.c.b16 %v1430, %v1429
    %v1574 = vpack.c.b16 %v1432, %v1431
    %v1575 = vpack.c.b16 %v1434, %v1433
    %v1576 = vpack.c.b16 %v1436, %v1435
    %v1577 = vpack.c.b16 %v1438, %v1437
    %v1578 = vpack.c.b16 %v1440, %v1439
    %v1579 = vpack.c.b16 %v1442, %v1441
    %v1580 = vpack.c.b16 %v1444, %v1443
    %v1581 = vpack.c.b16 %v1446, %v1445
    %v1582 = vpack.c.b16 %v1448, %v1447
    %v1583 = vpack.c.b16 %v1450, %v1449
    %v1584 = vpack.c.b16 %v1452, %v1451
    %v1585 = vpack.c.b16 %v1454, %v1453
    %v1586 = vpack.c.b16 %v1456, %v1455
    %v1587 = vpack.c.b16 %v1458, %v1457
    %v1588 = vpack.c.b16 %v1460, %v1459
    %v1589 = vpack.c.b16 %v1462, %v1461
    %v1590 = vpack.c.b16 %v1464, %v1463
    %v1591 = vpack.c.b16 %v1466, %v1465
    %v1592 = vpack.c.b16 %v1468, %v1467
    %v1593 = vpack.c.b16 %v1470, %v1469
    %v1594 = vpack.c.b16 %v1472, %v1471
    %v1595 = vpack.c.b16 %v1474, %v1473
    %v1596 = vpack.c.b16 %v1476, %v1475
    %v1597 = vpack.c.b16 %v1478, %v1477
    %v1598 = vpack.c.b16 %v1480, %v1479
    %v1599 = vpack.c.b16 %v1482, %v1481
    %v1600 = vpack.c.b16 %v1484, %v1483
    %v1601 = vpack.c.b16 %v1486, %v1485
    %v1602 = vpack.c.b16 %v1488, %v1487
    %v1603 = vpack.c.b16 %v1490, %v1489
    %v1604 = vpack.c.b16 %v1492, %v1491
    %v1605 = vpack.c.b16 %v1494, %v1493
    %v1606 = vpack.c.b16 %v1496, %v1495
    %v1607 = vpack.c.b16 %v1498, %v1497
    %v1608 = vpack.c.b16 %v1500, %v1499
    %v1609 = vpack.c.b16 %v1502, %v1501
    %v1610 = vpack.c.b16 %v1504, %v1503
    %v1611 = vpack.c.b16 %v1506, %v1505
    %v1612 = vpack.c.b16 %v1508, %v1507
    %v1613 = vpack.c.b16 %v1510, %v1509
    %v1614 = vpack.c.b16 %v1512, %v1511
    %v1615 = vpack.c.b16 %v1514, %v1513
    %v1616 = vpack.c.b16 %v1516, %v1515
    %v1617 = vpack.c.b16 %v1518, %v1517
    %v1618 = vpack.c.b16 %v1520, %v1519
    %v1619 = vpack.c.b16 %v1522, %v1521
    %v1620 = vpack.c.b16 %v1524, %v1523
    %v1621 = vpack.c.b16 %v1526, %v1525
    %v1622 = vpack.c.b16 %v1528, %v1527
    %v1623 = vpack.c.b16 %v1530, %v1529
    %v1624 = vpack.c.b16 %v1532, %v1531
    %v1625 = vpack.c.b16 %v1534, %v1533
    %v1626 = vpack.c.b16 %v1536, %v1535
    %v1627 = vpack.c.b16 %v1538, %v1537
    %v1628 = vpack.c.b16 %v1540, %v1539
    %v1629 = vpack.c.b16 %v1542, %v1541
    %v1630 = vpack.c.b16 %v1544, %v1543
    %v1631 = vpack.c.b16 %v1546, %v1545
    %v1632 = vpack.c.b16 %v1548, %v1547
    %v1633 = vpack.c.b16 %v1550, %v1549
    %v1634 = vpack.c.b16 %v1552, %v1551
    %v1635 = vpack.c.b16 %v1554, %v1553
    %v1636 = vpack.c.b16 %v1556, %v1555
    %v1637 = vpack.c.b16 %v1558, %v1557
    %v1638 = vpack.c.b16 %v1560, %v1559
    %v1639 = vpack.c.b16 %v1562, %v1561
    %v1640 = vpack.c.b16 %v1564, %v1563
    %v1641 = vpack.c.b16 %v1566, %v1565
    %v1642 = vpack.c.b16 %v1568, %v1567
    %v1643 = vpack.c.b16 %v1570, %v1569
    %v1644 = vpack.c.b16 %v1572, %v1571
    %1717 = vmatprep.subr.bf16.mxu0 0
    %1718 = vmatpush1.bf16.msra.mxu0 %v1580
    %1719 = vmatprep.subr.bf16.mxu0 0
    %1720 = vmatpush1.bf16.msra.mxu0 %v1579
    %1721 = vmatprep.subr.bf16.mxu0 0
    %1722 = vmatpush1.bf16.msra.mxu0 %v1578
    %1723 = vmatprep.subr.bf16.mxu0 0
    %1724 = vmatpush1.bf16.msra.mxu0 %v1577
    %1725 = vmatprep.subr.bf16.mxu0 0
    %1726 = vmatpush1.bf16.msra.mxu0 %v1576
    %1727 = vmatprep.subr.bf16.mxu0 0
    %1728 = vmatpush1.bf16.msra.mxu0 %v1575
    %1729 = vmatprep.subr.bf16.mxu0 0
    %1730 = vmatpush1.bf16.msra.mxu0 %v1574
    %1731 = vmatprep.subr.bf16.mxu0 0
    %1732 = vmatpush1.bf16.msra.mxu0 %v1573
    %1733 = vmatprep.subr.bf16.mxu0 0
    %1734 = vmatpush2.bf16.msra.mxu0 %v1588
    %1735 = vmatprep.subr.bf16.mxu0 0
    %1736 = vmatpush2.bf16.msra.mxu0 %v1587
    %1737 = vmatprep.subr.bf16.mxu0 0
    %1738 = vmatpush2.bf16.msra.mxu0 %v1586
    %1739 = vmatprep.subr.bf16.mxu0 0
    %1740 = vmatpush2.bf16.msra.mxu0 %v1585
    %1741 = vmatprep.subr.bf16.mxu0 0
    %1742 = vmatpush2.bf16.msra.mxu0 %v1584
    %1743 = vmatprep.subr.bf16.mxu0 0
    %1744 = vmatpush2.bf16.msra.mxu0 %v1583
    %1745 = vmatprep.subr.bf16.mxu0 0
    %1746 = vmatpush2.bf16.msra.mxu0 %v1582
    %1747 = vmatprep.subr.bf16.mxu0 0
    %1748 = vmatpush2.bf16.msra.mxu0 %v1581
    %1749 = vmatprep.mubr.bf16.mxu0 %v467
    %1750 = vmatmul.mubr.bf16.gmra.mxu0 %v383
    %v1751 = vpop.f32.mrf.mxu0
    %v1752 = vadd.f32 0.0, %v1751
    %v1753 = vpop.f32.mrf.mxu0
    %v1754 = vpop.f32.mrf.mxu0
    %v1755 = vadd.f32 0.0, %v1754
    %v1756 = vpop.f32.mrf.mxu0
    %1757 = vmatprep.mubr.bf16.mxu0 %v479
    %1758 = vmatmul.mubr.bf16.gmra.mxu0 %v384
    %v1759 = vpop.f32.mrf.mxu0
    %v1760 = vadd.f32 0.0, %v1759
    %v1761 = vpop.f32.mrf.mxu0
    %v1762 = vpop.f32.mrf.mxu0
    %v1763 = vadd.f32 0.0, %v1762
    %v1764 = vpop.f32.mrf.mxu0
    %1765 = vmatprep.mubr.bf16.mxu0 %v491
    %1766 = vmatmul.mubr.bf16.gmra.mxu0 %v385
    %v1767 = vpop.f32.mrf.mxu0
    %v1768 = vadd.f32 0.0, %v1767
    %v1769 = vpop.f32.mrf.mxu0
    %v1770 = vpop.f32.mrf.mxu0
    %v1771 = vadd.f32 0.0, %v1770
    %v1772 = vpop.f32.mrf.mxu0
    %1773 = vmatprep.mubr.bf16.mxu0 %v503
    %1774 = vmatmul.mubr.bf16.gmra.mxu0 %v386
    %v1775 = vpop.f32.mrf.mxu0
    %v1776 = vadd.f32 0.0, %v1775
    %v1777 = vpop.f32.mrf.mxu0
    %v1778 = vpop.f32.mrf.mxu0
    %v1779 = vadd.f32 0.0, %v1778
    %v1780 = vpop.f32.mrf.mxu0
    %1781 = vmatprep.mubr.bf16.mxu0 %v515
    %1782 = vmatmul.mubr.bf16.gmra.mxu0 %v387
    %v1783 = vpop.f32.mrf.mxu0
    %v1784 = vadd.f32 0.0, %v1783
    %v1785 = vpop.f32.mrf.mxu0
    %v1786 = vpop.f32.mrf.mxu0
    %v1787 = vadd.f32 0.0, %v1786
    %v1788 = vpop.f32.mrf.mxu0
    %1789 = vmatprep.mubr.bf16.mxu0 %v527
    %1790 = vmatmul.mubr.bf16.gmra.mxu0 %v388
    %v1791 = vpop.f32.mrf.mxu0
    %v1792 = vadd.f32 0.0, %v1791
    %v1793 = vpop.f32.mrf.mxu0
    %v1794 = vpop.f32.mrf.mxu0
    %v1795 = vadd.f32 0.0, %v1794
    %v1796 = vpop.f32.mrf.mxu0
    %1797 = vmatprep.mubr.bf16.mxu0 %v539
    %1798 = vmatmul.mubr.bf16.gmra.mxu0 %v389
    %v1799 = vpop.f32.mrf.mxu0
    %v1800 = vadd.f32 0.0, %v1799
    %v1801 = vpop.f32.mrf.mxu0
    %v1802 = vpop.f32.mrf.mxu0
    %v1803 = vadd.f32 0.0, %v1802
    %v1804 = vpop.f32.mrf.mxu0
    %1805 = vmatprep.mubr.bf16.mxu0 %v551
    %1806 = vmatmul.mubr.bf16.gmra.mxu0 %v390
    %v1807 = vpop.f32.mrf.mxu0
    %v1808 = vadd.f32 0.0, %v1807
    %v1809 = vpop.f32.mrf.mxu0
    %v1810 = vpop.f32.mrf.mxu0
    %v1811 = vadd.f32 0.0, %v1810
    %v1812 = vpop.f32.mrf.mxu0
    %1813 = vmatprep.mubr.bf16.mxu0 %v563
    %1814 = vmatmul.mubr.bf16.gmra.mxu0 %v391
    %v1815 = vpop.f32.mrf.mxu0
    %v1816 = vadd.f32 0.0, %v1815
    %v1817 = vpop.f32.mrf.mxu0
    %v1818 = vpop.f32.mrf.mxu0
    %v1819 = vadd.f32 0.0, %v1818
    %v1820 = vpop.f32.mrf.mxu0
    %1821 = vmatprep.mubr.bf16.mxu0 %v575
    %1822 = vmatmul.mubr.bf16.gmra.mxu0 %v392
    %v1823 = vpop.f32.mrf.mxu0
    %v1824 = vadd.f32 0.0, %v1823
    %v1825 = vpop.f32.mrf.mxu0
    %v1826 = vpop.f32.mrf.mxu0
    %v1827 = vadd.f32 0.0, %v1826
    %v1828 = vpop.f32.mrf.mxu0
    %1829 = vmatprep.mubr.bf16.mxu0 %v587
    %1830 = vmatmul.mubr.bf16.gmra.mxu0 %v393
    %v1831 = vpop.f32.mrf.mxu0
    %v1832 = vadd.f32 0.0, %v1831
    %v1833 = vpop.f32.mrf.mxu0
    %v1834 = vpop.f32.mrf.mxu0
    %v1835 = vadd.f32 0.0, %v1834
    %v1836 = vpop.f32.mrf.mxu0
    %1837 = vmatprep.mubr.bf16.mxu0 %v599
    %1838 = vmatmul.mubr.bf16.gmra.mxu0 %v394
    %v1839 = vpop.f32.mrf.mxu0
    %v1840 = vadd.f32 0.0, %v1839
    %v1841 = vpop.f32.mrf.mxu0
    %v1842 = vpop.f32.mrf.mxu0
    %v1843 = vadd.f32 0.0, %v1842
    %v1844 = vpop.f32.mrf.mxu0
    %1845 = vmatprep.mubr.bf16.mxu0 %v611
    %1846 = vmatmul.mubr.bf16.gmra.mxu0 %v395
    %v1847 = vpop.f32.mrf.mxu0
    %v1848 = vadd.f32 0.0, %v1847
    %v1849 = vpop.f32.mrf.mxu0
    %v1850 = vpop.f32.mrf.mxu0
    %v1851 = vadd.f32 0.0, %v1850
    %v1852 = vpop.f32.mrf.mxu0
    %1853 = vmatprep.mubr.bf16.mxu0 %v623
    %1854 = vmatmul.mubr.bf16.gmra.mxu0 %v396
    %v1855 = vpop.f32.mrf.mxu0
    %v1856 = vadd.f32 0.0, %v1855
    %v1857 = vpop.f32.mrf.mxu0
    %v1858 = vpop.f32.mrf.mxu0
    %v1859 = vadd.f32 0.0, %v1858
    %v1860 = vpop.f32.mrf.mxu0
    %1861 = vmatprep.mubr.bf16.mxu0 %v635
    %1862 = vmatmul.mubr.bf16.gmra.mxu0 %v397
    %v1863 = vpop.f32.mrf.mxu0
    %v1864 = vadd.f32 0.0, %v1863
    %v1865 = vpop.f32.mrf.mxu0
    %v1866 = vpop.f32.mrf.mxu0
    %v1867 = vadd.f32 0.0, %v1866
    %v1868 = vpop.f32.mrf.mxu0
    %1869 = vmatprep.mubr.bf16.mxu0 %v647
    %1870 = vmatmul.mubr.bf16.gmra.mxu0 %v398
    %v1871 = vpop.f32.mrf.mxu0
    %v1872 = vadd.f32 0.0, %v1871
    %v1873 = vpop.f32.mrf.mxu0
    %v1874 = vpop.f32.mrf.mxu0
    %v1875 = vadd.f32 0.0, %v1874
    %v1876 = vpop.f32.mrf.mxu0
    %1877 = vmatprep.mubr.bf16.mxu0 %v659
    %1878 = vmatmul.mubr.bf16.gmra.mxu0 %v399
    %v1879 = vpop.f32.mrf.mxu0
    %v1880 = vadd.f32 0.0, %v1879
    %v1881 = vpop.f32.mrf.mxu0
    %v1882 = vpop.f32.mrf.mxu0
    %v1883 = vadd.f32 0.0, %v1882
    %v1884 = vpop.f32.mrf.mxu0
    %1885 = vmatprep.mubr.bf16.mxu0 %v671
    %1886 = vmatmul.mubr.bf16.gmra.mxu0 %v400
    %v1887 = vpop.f32.mrf.mxu0
    %v1888 = vadd.f32 0.0, %v1887
    %v1889 = vpop.f32.mrf.mxu0
    %v1890 = vpop.f32.mrf.mxu0
    %v1891 = vadd.f32 0.0, %v1890
    %v1892 = vpop.f32.mrf.mxu0
    %1893 = vmatprep.mubr.bf16.mxu0 %v683
    %1894 = vmatmul.mubr.bf16.gmra.mxu0 %v401
    %v1895 = vpop.f32.mrf.mxu0
    %v1896 = vadd.f32 0.0, %v1895
    %v1897 = vpop.f32.mrf.mxu0
    %v1898 = vpop.f32.mrf.mxu0
    %v1899 = vadd.f32 0.0, %v1898
    %v1900 = vpop.f32.mrf.mxu0
    %1901 = vmatprep.mubr.bf16.mxu0 %v695
    %1902 = vmatmul.mubr.bf16.gmra.mxu0 %v402
    %v1903 = vpop.f32.mrf.mxu0
    %v1904 = vadd.f32 0.0, %v1903
    %v1905 = vpop.f32.mrf.mxu0
    %v1906 = vpop.f32.mrf.mxu0
    %v1907 = vadd.f32 0.0, %v1906
    %v1908 = vpop.f32.mrf.mxu0
    %1909 = vmatprep.mubr.bf16.mxu0 %v707
    %1910 = vmatmul.mubr.bf16.gmra.mxu0 %v403
    %v1911 = vpop.f32.mrf.mxu0
    %v1912 = vadd.f32 0.0, %v1911
    %v1913 = vpop.f32.mrf.mxu0
    %v1914 = vpop.f32.mrf.mxu0
    %v1915 = vadd.f32 0.0, %v1914
    %v1916 = vpop.f32.mrf.mxu0
    %1917 = vmatprep.mubr.bf16.mxu0 %v719
    %1918 = vmatmul.mubr.bf16.gmra.mxu0 %v404
    %v1919 = vpop.f32.mrf.mxu0
    %v1920 = vadd.f32 0.0, %v1919
    %v1921 = vpop.f32.mrf.mxu0
    %v1922 = vpop.f32.mrf.mxu0
    %v1923 = vadd.f32 0.0, %v1922
    %v1924 = vpop.f32.mrf.mxu0
    %1925 = vmatprep.mubr.bf16.mxu0 %v731
    %1926 = vmatmul.mubr.bf16.gmra.mxu0 %v405
    %v1927 = vpop.f32.mrf.mxu0
    %v1928 = vadd.f32 0.0, %v1927
    %v1929 = vpop.f32.mrf.mxu0
    %v1930 = vpop.f32.mrf.mxu0
    %v1931 = vadd.f32 0.0, %v1930
    %v1932 = vpop.f32.mrf.mxu0
    %1933 = vmatprep.mubr.bf16.mxu0 %v743
    %1934 = vmatmul.mubr.bf16.gmra.mxu0 %v406
    %v1935 = vpop.f32.mrf.mxu0
    %v1936 = vadd.f32 0.0, %v1935
    %v1937 = vpop.f32.mrf.mxu0
    %v1938 = vpop.f32.mrf.mxu0
    %v1939 = vadd.f32 0.0, %v1938
    %v1940 = vpop.f32.mrf.mxu0
    %1941 = vmatprep.mubr.bf16.mxu0 %v755
    %1942 = vmatmul.mubr.bf16.gmra.mxu0 %v407
    %v1943 = vpop.f32.mrf.mxu0
    %v1944 = vadd.f32 0.0, %v1943
    %v1945 = vpop.f32.mrf.mxu0
    %v1946 = vpop.f32.mrf.mxu0
    %v1947 = vadd.f32 0.0, %v1946
    %v1948 = vpop.f32.mrf.mxu0
    %1949 = vmatprep.mubr.bf16.mxu0 %v767
    %1950 = vmatmul.mubr.bf16.gmra.mxu0 %v408
    %v1951 = vpop.f32.mrf.mxu0
    %v1952 = vadd.f32 0.0, %v1951
    %v1953 = vpop.f32.mrf.mxu0
    %v1954 = vpop.f32.mrf.mxu0
    %v1955 = vadd.f32 0.0, %v1954
    %v1956 = vpop.f32.mrf.mxu0
    %1957 = vmatprep.mubr.bf16.mxu0 %v779
    %1958 = vmatmul.mubr.bf16.gmra.mxu0 %v409
    %v1959 = vpop.f32.mrf.mxu0
    %v1960 = vadd.f32 0.0, %v1959
    %v1961 = vpop.f32.mrf.mxu0
    %v1962 = vpop.f32.mrf.mxu0
    %v1963 = vadd.f32 0.0, %v1962
    %v1964 = vpop.f32.mrf.mxu0
    %1965 = vmatprep.mubr.bf16.mxu0 %v791
    %1966 = vmatmul.mubr.bf16.gmra.mxu0 %v410
    %v1967 = vpop.f32.mrf.mxu0
    %v1968 = vadd.f32 0.0, %v1967
    %v1969 = vpop.f32.mrf.mxu0
    %v1970 = vpop.f32.mrf.mxu0
    %v1971 = vadd.f32 0.0, %v1970
    %v1972 = vpop.f32.mrf.mxu0
    %1973 = vmatprep.mubr.bf16.mxu0 %v803
    %1974 = vmatmul.mubr.bf16.gmra.mxu0 %v411
    %v1975 = vpop.f32.mrf.mxu0
    %v1976 = vadd.f32 0.0, %v1975
    %v1977 = vpop.f32.mrf.mxu0
    %v1978 = vpop.f32.mrf.mxu0
    %v1979 = vadd.f32 0.0, %v1978
    %v1980 = vpop.f32.mrf.mxu0
    %1981 = vmatprep.mubr.bf16.mxu0 %v815
    %1982 = vmatmul.mubr.bf16.gmra.mxu0 %v412
    %v1983 = vpop.f32.mrf.mxu0
    %v1984 = vadd.f32 0.0, %v1983
    %v1985 = vpop.f32.mrf.mxu0
    %v1986 = vpop.f32.mrf.mxu0
    %v1987 = vadd.f32 0.0, %v1986
    %v1988 = vpop.f32.mrf.mxu0
    %1989 = vmatprep.mubr.bf16.mxu0 %v827
    %1990 = vmatmul.mubr.bf16.gmra.mxu0 %v413
    %v1991 = vpop.f32.mrf.mxu0
    %v1992 = vadd.f32 0.0, %v1991
    %v1993 = vpop.f32.mrf.mxu0
    %v1994 = vpop.f32.mrf.mxu0
    %v1995 = vadd.f32 0.0, %v1994
    %v1996 = vpop.f32.mrf.mxu0
    %1997 = vmatprep.mubr.bf16.mxu0 %v839
    %1998 = vmatmul.mubr.bf16.gmra.mxu0 %v414
    %v1999 = vpop.f32.mrf.mxu0
    %v2000 = vadd.f32 0.0, %v1999
    %v2001 = vpop.f32.mrf.mxu0
    %v2002 = vpop.f32.mrf.mxu0
    %v2003 = vadd.f32 0.0, %v2002
    %v2004 = vpop.f32.mrf.mxu0
    %2005 = vdwg.mxu0
    %2006 = vmatprep.subr.bf16.mxu0 0
    %2007 = vmatpush1.bf16.msra.mxu0 %v1596
    %2008 = vmatprep.subr.bf16.mxu0 0
    %2009 = vmatpush1.bf16.msra.mxu0 %v1595
    %2010 = vmatprep.subr.bf16.mxu0 0
    %2011 = vmatpush1.bf16.msra.mxu0 %v1594
    %2012 = vmatprep.subr.bf16.mxu0 0
    %2013 = vmatpush1.bf16.msra.mxu0 %v1593
    %2014 = vmatprep.subr.bf16.mxu0 0
    %2015 = vmatpush1.bf16.msra.mxu0 %v1592
    %2016 = vmatprep.subr.bf16.mxu0 0
    %2017 = vmatpush1.bf16.msra.mxu0 %v1591
    %2018 = vmatprep.subr.bf16.mxu0 0
    %2019 = vmatpush1.bf16.msra.mxu0 %v1590
    %2020 = vmatprep.subr.bf16.mxu0 0
    %2021 = vmatpush1.bf16.msra.mxu0 %v1589
    %2022 = vmatprep.subr.bf16.mxu0 0
    %2023 = vmatpush2.bf16.msra.mxu0 %v1604
    %2024 = vmatprep.subr.bf16.mxu0 0
    %2025 = vmatpush2.bf16.msra.mxu0 %v1603
    %2026 = vmatprep.subr.bf16.mxu0 0
    %2027 = vmatpush2.bf16.msra.mxu0 %v1602
    %2028 = vmatprep.subr.bf16.mxu0 0
    %2029 = vmatpush2.bf16.msra.mxu0 %v1601
    %2030 = vmatprep.subr.bf16.mxu0 0
    %2031 = vmatpush2.bf16.msra.mxu0 %v1600
    %2032 = vmatprep.subr.bf16.mxu0 0
    %2033 = vmatpush2.bf16.msra.mxu0 %v1599
    %2034 = vmatprep.subr.bf16.mxu0 0
    %2035 = vmatpush2.bf16.msra.mxu0 %v1598
    %2036 = vmatprep.subr.bf16.mxu0 0
    %2037 = vmatpush2.bf16.msra.mxu0 %v1597
    %2038 = vmatprep.mubr.bf16.mxu0 %v384
    %2039 = vmatmul.mubr.bf16.gmra.mxu0 %v939
    %v2040 = vpop.f32.mrf.mxu0
    %v2041 = vadd.f32 %v1752, %v2040
    %v2042 = vpop.f32.mrf.mxu0
    %v2043 = vpop.f32.mrf.mxu0
    %v2044 = vadd.f32 %v1755, %v2043
    %v2045 = vpop.f32.mrf.mxu0
    %2046 = vmatprep.mubr.bf16.mxu0 %v385
    %2047 = vmatmul.mubr.bf16.gmra.mxu0 %v942
    %v2048 = vpop.f32.mrf.mxu0
    %v2049 = vadd.f32 %v1760, %v2048
    %v2050 = vpop.f32.mrf.mxu0
    %v2051 = vpop.f32.mrf.mxu0
    %v2052 = vadd.f32 %v1763, %v2051
    %v2053 = vpop.f32.mrf.mxu0
    %2054 = vmatprep.mubr.bf16.mxu0 %v386
    %2055 = vmatmul.mubr.bf16.gmra.mxu0 %v945
    %v2056 = vpop.f32.mrf.mxu0
    %v2057 = vadd.f32 %v1768, %v2056
    %v2058 = vpop.f32.mrf.mxu0
    %v2059 = vpop.f32.mrf.mxu0
    %v2060 = vadd.f32 %v1771, %v2059
    %v2061 = vpop.f32.mrf.mxu0
    %2062 = vmatprep.mubr.bf16.mxu0 %v387
    %2063 = vmatmul.mubr.bf16.gmra.mxu0 %v948
    %v2064 = vpop.f32.mrf.mxu0
    %v2065 = vadd.f32 %v1776, %v2064
    %v2066 = vpop.f32.mrf.mxu0
    %v2067 = vpop.f32.mrf.mxu0
    %v2068 = vadd.f32 %v1779, %v2067
    %v2069 = vpop.f32.mrf.mxu0
    %2070 = vmatprep.mubr.bf16.mxu0 %v388
    %2071 = vmatmul.mubr.bf16.gmra.mxu0 %v951
    %v2072 = vpop.f32.mrf.mxu0
    %v2073 = vadd.f32 %v1784, %v2072
    %v2074 = vpop.f32.mrf.mxu0
    %v2075 = vpop.f32.mrf.mxu0
    %v2076 = vadd.f32 %v1787, %v2075
    %v2077 = vpop.f32.mrf.mxu0
    %2078 = vmatprep.mubr.bf16.mxu0 %v389
    %2079 = vmatmul.mubr.bf16.gmra.mxu0 %v954
    %v2080 = vpop.f32.mrf.mxu0
    %v2081 = vadd.f32 %v1792, %v2080
    %v2082 = vpop.f32.mrf.mxu0
    %v2083 = vpop.f32.mrf.mxu0
    %v2084 = vadd.f32 %v1795, %v2083
    %v2085 = vpop.f32.mrf.mxu0
    %2086 = vmatprep.mubr.bf16.mxu0 %v390
    %2087 = vmatmul.mubr.bf16.gmra.mxu0 %v957
    %v2088 = vpop.f32.mrf.mxu0
    %v2089 = vadd.f32 %v1800, %v2088
    %v2090 = vpop.f32.mrf.mxu0
    %v2091 = vpop.f32.mrf.mxu0
    %v2092 = vadd.f32 %v1803, %v2091
    %v2093 = vpop.f32.mrf.mxu0
    %2094 = vmatprep.mubr.bf16.mxu0 %v391
    %2095 = vmatmul.mubr.bf16.gmra.mxu0 %v960
    %v2096 = vpop.f32.mrf.mxu0
    %v2097 = vadd.f32 %v1808, %v2096
    %v2098 = vpop.f32.mrf.mxu0
    %v2099 = vpop.f32.mrf.mxu0
    %v2100 = vadd.f32 %v1811, %v2099
    %v2101 = vpop.f32.mrf.mxu0
    %2102 = vmatprep.mubr.bf16.mxu0 %v392
    %2103 = vmatmul.mubr.bf16.gmra.mxu0 %v963
    %v2104 = vpop.f32.mrf.mxu0
    %v2105 = vadd.f32 %v1816, %v2104
    %v2106 = vpop.f32.mrf.mxu0
    %v2107 = vpop.f32.mrf.mxu0
    %v2108 = vadd.f32 %v1819, %v2107
    %v2109 = vpop.f32.mrf.mxu0
    %2110 = vmatprep.mubr.bf16.mxu0 %v393
    %2111 = vmatmul.mubr.bf16.gmra.mxu0 %v966
    %v2112 = vpop.f32.mrf.mxu0
    %v2113 = vadd.f32 %v1824, %v2112
    %v2114 = vpop.f32.mrf.mxu0
    %v2115 = vpop.f32.mrf.mxu0
    %v2116 = vadd.f32 %v1827, %v2115
    %v2117 = vpop.f32.mrf.mxu0
    %2118 = vmatprep.mubr.bf16.mxu0 %v394
    %2119 = vmatmul.mubr.bf16.gmra.mxu0 %v969
    %v2120 = vpop.f32.mrf.mxu0
    %v2121 = vadd.f32 %v1832, %v2120
    %v2122 = vpop.f32.mrf.mxu0
    %v2123 = vpop.f32.mrf.mxu0
    %v2124 = vadd.f32 %v1835, %v2123
    %v2125 = vpop.f32.mrf.mxu0
    %2126 = vmatprep.mubr.bf16.mxu0 %v395
    %2127 = vmatmul.mubr.bf16.gmra.mxu0 %v972
    %v2128 = vpop.f32.mrf.mxu0
    %v2129 = vadd.f32 %v1840, %v2128
    %v2130 = vpop.f32.mrf.mxu0
    %v2131 = vpop.f32.mrf.mxu0
    %v2132 = vadd.f32 %v1843, %v2131
    %v2133 = vpop.f32.mrf.mxu0
    %2134 = vmatprep.mubr.bf16.mxu0 %v396
    %2135 = vmatmul.mubr.bf16.gmra.mxu0 %v975
    %v2136 = vpop.f32.mrf.mxu0
    %v2137 = vadd.f32 %v1848, %v2136
    %v2138 = vpop.f32.mrf.mxu0
    %v2139 = vpop.f32.mrf.mxu0
    %v2140 = vadd.f32 %v1851, %v2139
    %v2141 = vpop.f32.mrf.mxu0
    %2142 = vmatprep.mubr.bf16.mxu0 %v397
    %2143 = vmatmul.mubr.bf16.gmra.mxu0 %v978
    %v2144 = vpop.f32.mrf.mxu0
    %v2145 = vadd.f32 %v1856, %v2144
    %v2146 = vpop.f32.mrf.mxu0
    %v2147 = vpop.f32.mrf.mxu0
    %v2148 = vadd.f32 %v1859, %v2147
    %v2149 = vpop.f32.mrf.mxu0
    %2150 = vmatprep.mubr.bf16.mxu0 %v398
    %2151 = vmatmul.mubr.bf16.gmra.mxu0 %v981
    %v2152 = vpop.f32.mrf.mxu0
    %v2153 = vadd.f32 %v1864, %v2152
    %v2154 = vpop.f32.mrf.mxu0
    %v2155 = vpop.f32.mrf.mxu0
    %v2156 = vadd.f32 %v1867, %v2155
    %v2157 = vpop.f32.mrf.mxu0
    %2158 = vmatprep.mubr.bf16.mxu0 %v447
    %2159 = vmatmul.mubr.bf16.gmra.mxu0 %v984
    %v2160 = vpop.f32.mrf.mxu0
    %v2161 = vadd.f32 %v1872, %v2160
    %v2162 = vpop.f32.mrf.mxu0
    %v2163 = vpop.f32.mrf.mxu0
    %v2164 = vadd.f32 %v1875, %v2163
    %v2165 = vpop.f32.mrf.mxu0
    %2166 = vmatprep.mubr.bf16.mxu0 %v400
    %2167 = vmatmul.mubr.bf16.gmra.mxu0 %v987
    %v2168 = vpop.f32.mrf.mxu0
    %v2169 = vadd.f32 %v1880, %v2168
    %v2170 = vpop.f32.mrf.mxu0
    %v2171 = vpop.f32.mrf.mxu0
    %v2172 = vadd.f32 %v1883, %v2171
    %v2173 = vpop.f32.mrf.mxu0
    %2174 = vmatprep.mubr.bf16.mxu0 %v401
    %2175 = vmatmul.mubr.bf16.gmra.mxu0 %v990
    %v2176 = vpop.f32.mrf.mxu0
    %v2177 = vadd.f32 %v1888, %v2176
    %v2178 = vpop.f32.mrf.mxu0
    %v2179 = vpop.f32.mrf.mxu0
    %v2180 = vadd.f32 %v1891, %v2179
    %v2181 = vpop.f32.mrf.mxu0
    %2182 = vmatprep.mubr.bf16.mxu0 %v402
    %2183 = vmatmul.mubr.bf16.gmra.mxu0 %v993
    %v2184 = vpop.f32.mrf.mxu0
    %v2185 = vadd.f32 %v1896, %v2184
    %v2186 = vpop.f32.mrf.mxu0
    %v2187 = vpop.f32.mrf.mxu0
    %v2188 = vadd.f32 %v1899, %v2187
    %v2189 = vpop.f32.mrf.mxu0
    %2190 = vmatprep.mubr.bf16.mxu0 %v403
    %2191 = vmatmul.mubr.bf16.gmra.mxu0 %v996
    %v2192 = vpop.f32.mrf.mxu0
    %v2193 = vadd.f32 %v1904, %v2192
    %v2194 = vpop.f32.mrf.mxu0
    %v2195 = vpop.f32.mrf.mxu0
    %v2196 = vadd.f32 %v1907, %v2195
    %v2197 = vpop.f32.mrf.mxu0
    %2198 = vmatprep.mubr.bf16.mxu0 %v404
    %2199 = vmatmul.mubr.bf16.gmra.mxu0 %v999
    %v2200 = vpop.f32.mrf.mxu0
    %v2201 = vadd.f32 %v1912, %v2200
    %v2202 = vpop.f32.mrf.mxu0
    %v2203 = vpop.f32.mrf.mxu0
    %v2204 = vadd.f32 %v1915, %v2203
    %v2205 = vpop.f32.mrf.mxu0
    %2206 = vmatprep.mubr.bf16.mxu0 %v405
    %2207 = vmatmul.mubr.bf16.gmra.mxu0 %v1002
    %v2208 = vpop.f32.mrf.mxu0
    %v2209 = vadd.f32 %v1920, %v2208
    %v2210 = vpop.f32.mrf.mxu0
    %v2211 = vpop.f32.mrf.mxu0
    %v2212 = vadd.f32 %v1923, %v2211
    %v2213 = vpop.f32.mrf.mxu0
    %2214 = vmatprep.mubr.bf16.mxu0 %v406
    %2215 = vmatmul.mubr.bf16.gmra.mxu0 %v1005
    %v2216 = vpop.f32.mrf.mxu0
    %v2217 = vadd.f32 %v1928, %v2216
    %v2218 = vpop.f32.mrf.mxu0
    %v2219 = vpop.f32.mrf.mxu0
    %v2220 = vadd.f32 %v1931, %v2219
    %v2221 = vpop.f32.mrf.mxu0
    %2222 = vmatprep.mubr.bf16.mxu0 %v407
    %2223 = vmatmul.mubr.bf16.gmra.mxu0 %v1008
    %v2224 = vpop.f32.mrf.mxu0
    %v2225 = vadd.f32 %v1936, %v2224
    %v2226 = vpop.f32.mrf.mxu0
    %v2227 = vpop.f32.mrf.mxu0
    %v2228 = vadd.f32 %v1939, %v2227
    %v2229 = vpop.f32.mrf.mxu0
    %2230 = vmatprep.mubr.bf16.mxu0 %v408
    %2231 = vmatmul.mubr.bf16.gmra.mxu0 %v1011
    %v2232 = vpop.f32.mrf.mxu0
    %v2233 = vadd.f32 %v1944, %v2232
    %v2234 = vpop.f32.mrf.mxu0
    %v2235 = vpop.f32.mrf.mxu0
    %v2236 = vadd.f32 %v1947, %v2235
    %v2237 = vpop.f32.mrf.mxu0
    %2238 = vmatprep.mubr.bf16.mxu0 %v409
    %2239 = vmatmul.mubr.bf16.gmra.mxu0 %v1014
    %v2240 = vpop.f32.mrf.mxu0
    %v2241 = vadd.f32 %v1952, %v2240
    %v2242 = vpop.f32.mrf.mxu0
    %v2243 = vpop.f32.mrf.mxu0
    %v2244 = vadd.f32 %v1955, %v2243
    %v2245 = vpop.f32.mrf.mxu0
    %2246 = vmatprep.mubr.bf16.mxu0 %v410
    %2247 = vmatmul.mubr.bf16.gmra.mxu0 %v1017
    %v2248 = vpop.f32.mrf.mxu0
    %v2249 = vadd.f32 %v1960, %v2248
    %v2250 = vpop.f32.mrf.mxu0
    %v2251 = vpop.f32.mrf.mxu0
    %v2252 = vadd.f32 %v1963, %v2251
    %v2253 = vpop.f32.mrf.mxu0
    %2254 = vmatprep.mubr.bf16.mxu0 %v411
    %2255 = vmatmul.mubr.bf16.gmra.mxu0 %v1020
    %v2256 = vpop.f32.mrf.mxu0
    %v2257 = vadd.f32 %v1968, %v2256
    %v2258 = vpop.f32.mrf.mxu0
    %v2259 = vpop.f32.mrf.mxu0
    %v2260 = vadd.f32 %v1971, %v2259
    %v2261 = vpop.f32.mrf.mxu0
    %2262 = vmatprep.mubr.bf16.mxu0 %v412
    %2263 = vmatmul.mubr.bf16.gmra.mxu0 %v1023
    %v2264 = vpop.f32.mrf.mxu0
    %v2265 = vadd.f32 %v1976, %v2264
    %v2266 = vpop.f32.mrf.mxu0
    %v2267 = vpop.f32.mrf.mxu0
    %v2268 = vadd.f32 %v1979, %v2267
    %v2269 = vpop.f32.mrf.mxu0
    %2270 = vmatprep.mubr.bf16.mxu0 %v413
    %2271 = vmatmul.mubr.bf16.gmra.mxu0 %v1026
    %v2272 = vpop.f32.mrf.mxu0
    %v2273 = vadd.f32 %v1984, %v2272
    %v2274 = vpop.f32.mrf.mxu0
    %v2275 = vpop.f32.mrf.mxu0
    %v2276 = vadd.f32 %v1987, %v2275
    %v2277 = vpop.f32.mrf.mxu0
    %2278 = vmatprep.mubr.bf16.mxu0 %v414
    %2279 = vmatmul.mubr.bf16.gmra.mxu0 %v1029
    %v2280 = vpop.f32.mrf.mxu0
    %v2281 = vadd.f32 %v1992, %v2280
    %v2282 = vpop.f32.mrf.mxu0
    %v2283 = vpop.f32.mrf.mxu0
    %v2284 = vadd.f32 %v1995, %v2283
    %v2285 = vpop.f32.mrf.mxu0
    %2286 = vmatprep.mubr.bf16.mxu0 %v448
    %2287 = vmatmul.mubr.bf16.gmra.mxu0 %v1032
    %v2288 = vpop.f32.mrf.mxu0
    %v2289 = vadd.f32 %v2000, %v2288
    %v2290 = vpop.f32.mrf.mxu0
    %v2291 = vpop.f32.mrf.mxu0
    %v2292 = vadd.f32 %v2003, %v2291
    %v2293 = vpop.f32.mrf.mxu0
    %2294 = vdwg.mxu0
    %2295 = vmatprep.subr.bf16.mxu0 0
    %2296 = vmatpush1.bf16.msra.mxu0 %v1612
    %2297 = vmatprep.subr.bf16.mxu0 0
    %2298 = vmatpush1.bf16.msra.mxu0 %v1611
    %2299 = vmatprep.subr.bf16.mxu0 0
    %2300 = vmatpush1.bf16.msra.mxu0 %v1610
    %2301 = vmatprep.subr.bf16.mxu0 0
    %2302 = vmatpush1.bf16.msra.mxu0 %v1609
    %2303 = vmatprep.subr.bf16.mxu0 0
    %2304 = vmatpush1.bf16.msra.mxu0 %v1608
    %2305 = vmatprep.subr.bf16.mxu0 0
    %2306 = vmatpush1.bf16.msra.mxu0 %v1607
    %2307 = vmatprep.subr.bf16.mxu0 0
    %2308 = vmatpush1.bf16.msra.mxu0 %v1606
    %2309 = vmatprep.subr.bf16.mxu0 0
    %2310 = vmatpush1.bf16.msra.mxu0 %v1605
    %2311 = vmatprep.subr.bf16.mxu0 0
    %2312 = vmatpush2.bf16.msra.mxu0 %v1620
    %2313 = vmatprep.subr.bf16.mxu0 0
    %2314 = vmatpush2.bf16.msra.mxu0 %v1619
    %2315 = vmatprep.subr.bf16.mxu0 0
    %2316 = vmatpush2.bf16.msra.mxu0 %v1618
    %2317 = vmatprep.subr.bf16.mxu0 0
    %2318 = vmatpush2.bf16.msra.mxu0 %v1617
    %2319 = vmatprep.subr.bf16.mxu0 0
    %2320 = vmatpush2.bf16.msra.mxu0 %v1616
    %2321 = vmatprep.subr.bf16.mxu0 0
    %2322 = vmatpush2.bf16.msra.mxu0 %v1615
    %2323 = vmatprep.subr.bf16.mxu0 0
    %2324 = vmatpush2.bf16.msra.mxu0 %v1614
    %2325 = vmatprep.subr.bf16.mxu0 0
    %2326 = vmatpush2.bf16.msra.mxu0 %v1613
    %2327 = vmatprep.mubr.bf16.mxu0 %v942
    %2328 = vmatmul.mubr.bf16.gmra.mxu0 %v479
    %v2329 = vpop.f32.mrf.mxu0
    %v2330 = vadd.f32 %v2041, %v2329
    %v2331 = vpop.f32.mrf.mxu0
    %v2332 = vpop.f32.mrf.mxu0
    %v2333 = vadd.f32 %v2044, %v2332
    %v2334 = vpop.f32.mrf.mxu0
    %2335 = vmatprep.mubr.bf16.mxu0 %v945
    %2336 = vmatmul.mubr.bf16.gmra.mxu0 %v491
    %v2337 = vpop.f32.mrf.mxu0
    %v2338 = vadd.f32 %v2049, %v2337
    %v2339 = vpop.f32.mrf.mxu0
    %v2340 = vpop.f32.mrf.mxu0
    %v2341 = vadd.f32 %v2052, %v2340
    %v2342 = vpop.f32.mrf.mxu0
    %2343 = vmatprep.mubr.bf16.mxu0 %v948
    %2344 = vmatmul.mubr.bf16.gmra.mxu0 %v503
    %v2345 = vpop.f32.mrf.mxu0
    %v2346 = vadd.f32 %v2057, %v2345
    %v2347 = vpop.f32.mrf.mxu0
    %v2348 = vpop.f32.mrf.mxu0
    %v2349 = vadd.f32 %v2060, %v2348
    %v2350 = vpop.f32.mrf.mxu0
    %2351 = vmatprep.mubr.bf16.mxu0 %v951
    %2352 = vmatmul.mubr.bf16.gmra.mxu0 %v515
    %v2353 = vpop.f32.mrf.mxu0
    %v2354 = vadd.f32 %v2065, %v2353
    %v2355 = vpop.f32.mrf.mxu0
    %v2356 = vpop.f32.mrf.mxu0
    %v2357 = vadd.f32 %v2068, %v2356
    %v2358 = vpop.f32.mrf.mxu0
    %2359 = vmatprep.mubr.bf16.mxu0 %v954
    %2360 = vmatmul.mubr.bf16.gmra.mxu0 %v527
    %v2361 = vpop.f32.mrf.mxu0
    %v2362 = vadd.f32 %v2073, %v2361
    %v2363 = vpop.f32.mrf.mxu0
    %v2364 = vpop.f32.mrf.mxu0
    %v2365 = vadd.f32 %v2076, %v2364
    %v2366 = vpop.f32.mrf.mxu0
    %2367 = vmatprep.mubr.bf16.mxu0 %v957
    %2368 = vmatmul.mubr.bf16.gmra.mxu0 %v539
    %v2369 = vpop.f32.mrf.mxu0
    %v2370 = vadd.f32 %v2081, %v2369
    %v2371 = vpop.f32.mrf.mxu0
    %v2372 = vpop.f32.mrf.mxu0
    %v2373 = vadd.f32 %v2084, %v2372
    %v2374 = vpop.f32.mrf.mxu0
    %2375 = vmatprep.mubr.bf16.mxu0 %v960
    %2376 = vmatmul.mubr.bf16.gmra.mxu0 %v551
    %v2377 = vpop.f32.mrf.mxu0
    %v2378 = vadd.f32 %v2089, %v2377
    %v2379 = vpop.f32.mrf.mxu0
    %v2380 = vpop.f32.mrf.mxu0
    %v2381 = vadd.f32 %v2092, %v2380
    %v2382 = vpop.f32.mrf.mxu0
    %2383 = vmatprep.mubr.bf16.mxu0 %v963
    %2384 = vmatmul.mubr.bf16.gmra.mxu0 %v563
    %v2385 = vpop.f32.mrf.mxu0
    %v2386 = vadd.f32 %v2097, %v2385
    %v2387 = vpop.f32.mrf.mxu0
    %v2388 = vpop.f32.mrf.mxu0
    %v2389 = vadd.f32 %v2100, %v2388
    %v2390 = vpop.f32.mrf.mxu0
    %2391 = vmatprep.mubr.bf16.mxu0 %v966
    %2392 = vmatmul.mubr.bf16.gmra.mxu0 %v575
    %v2393 = vpop.f32.mrf.mxu0
    %v2394 = vadd.f32 %v2105, %v2393
    %v2395 = vpop.f32.mrf.mxu0
    %v2396 = vpop.f32.mrf.mxu0
    %v2397 = vadd.f32 %v2108, %v2396
    %v2398 = vpop.f32.mrf.mxu0
    %2399 = vmatprep.mubr.bf16.mxu0 %v969
    %2400 = vmatmul.mubr.bf16.gmra.mxu0 %v587
    %v2401 = vpop.f32.mrf.mxu0
    %v2402 = vadd.f32 %v2113, %v2401
    %v2403 = vpop.f32.mrf.mxu0
    %v2404 = vpop.f32.mrf.mxu0
    %v2405 = vadd.f32 %v2116, %v2404
    %v2406 = vpop.f32.mrf.mxu0
    %2407 = vmatprep.mubr.bf16.mxu0 %v972
    %2408 = vmatmul.mubr.bf16.gmra.mxu0 %v599
    %v2409 = vpop.f32.mrf.mxu0
    %v2410 = vadd.f32 %v2121, %v2409
    %v2411 = vpop.f32.mrf.mxu0
    %v2412 = vpop.f32.mrf.mxu0
    %v2413 = vadd.f32 %v2124, %v2412
    %v2414 = vpop.f32.mrf.mxu0
    %2415 = vmatprep.mubr.bf16.mxu0 %v975
    %2416 = vmatmul.mubr.bf16.gmra.mxu0 %v611
    %v2417 = vpop.f32.mrf.mxu0
    %v2418 = vadd.f32 %v2129, %v2417
    %v2419 = vpop.f32.mrf.mxu0
    %v2420 = vpop.f32.mrf.mxu0
    %v2421 = vadd.f32 %v2132, %v2420
    %v2422 = vpop.f32.mrf.mxu0
    %2423 = vmatprep.mubr.bf16.mxu0 %v978
    %2424 = vmatmul.mubr.bf16.gmra.mxu0 %v623
    %v2425 = vpop.f32.mrf.mxu0
    %v2426 = vadd.f32 %v2137, %v2425
    %v2427 = vpop.f32.mrf.mxu0
    %v2428 = vpop.f32.mrf.mxu0
    %v2429 = vadd.f32 %v2140, %v2428
    %v2430 = vpop.f32.mrf.mxu0
    %2431 = vmatprep.mubr.bf16.mxu0 %v981
    %2432 = vmatmul.mubr.bf16.gmra.mxu0 %v635
    %v2433 = vpop.f32.mrf.mxu0
    %v2434 = vadd.f32 %v2145, %v2433
    %v2435 = vpop.f32.mrf.mxu0
    %v2436 = vpop.f32.mrf.mxu0
    %v2437 = vadd.f32 %v2148, %v2436
    %v2438 = vpop.f32.mrf.mxu0
    %2439 = vmatprep.mubr.bf16.mxu0 %v984
    %2440 = vmatmul.mubr.bf16.gmra.mxu0 %v647
    %v2441 = vpop.f32.mrf.mxu0
    %v2442 = vadd.f32 %v2153, %v2441
    %v2443 = vpop.f32.mrf.mxu0
    %v2444 = vpop.f32.mrf.mxu0
    %v2445 = vadd.f32 %v2156, %v2444
    %v2446 = vpop.f32.mrf.mxu0
    %2447 = vmatprep.mubr.bf16.mxu0 %v1097
    %2448 = vmatmul.mubr.bf16.gmra.mxu0 %v1076
    %v2449 = vpop.f32.mrf.mxu0
    %v2450 = vadd.f32 %v2161, %v2449
    %v2451 = vpop.f32.mrf.mxu0
    %v2452 = vpop.f32.mrf.mxu0
    %v2453 = vadd.f32 %v2164, %v2452
    %v2454 = vpop.f32.mrf.mxu0
    %2455 = vmatprep.mubr.bf16.mxu0 %v990
    %2456 = vmatmul.mubr.bf16.gmra.mxu0 %v671
    %v2457 = vpop.f32.mrf.mxu0
    %v2458 = vadd.f32 %v2169, %v2457
    %v2459 = vpop.f32.mrf.mxu0
    %v2460 = vpop.f32.mrf.mxu0
    %v2461 = vadd.f32 %v2172, %v2460
    %v2462 = vpop.f32.mrf.mxu0
    %2463 = vmatprep.mubr.bf16.mxu0 %v993
    %2464 = vmatmul.mubr.bf16.gmra.mxu0 %v683
    %v2465 = vpop.f32.mrf.mxu0
    %v2466 = vadd.f32 %v2177, %v2465
    %v2467 = vpop.f32.mrf.mxu0
    %v2468 = vpop.f32.mrf.mxu0
    %v2469 = vadd.f32 %v2180, %v2468
    %v2470 = vpop.f32.mrf.mxu0
    %2471 = vmatprep.mubr.bf16.mxu0 %v996
    %2472 = vmatmul.mubr.bf16.gmra.mxu0 %v695
    %v2473 = vpop.f32.mrf.mxu0
    %v2474 = vadd.f32 %v2185, %v2473
    %v2475 = vpop.f32.mrf.mxu0
    %v2476 = vpop.f32.mrf.mxu0
    %v2477 = vadd.f32 %v2188, %v2476
    %v2478 = vpop.f32.mrf.mxu0
    %2479 = vmatprep.mubr.bf16.mxu0 %v999
    %2480 = vmatmul.mubr.bf16.gmra.mxu0 %v707
    %v2481 = vpop.f32.mrf.mxu0
    %v2482 = vadd.f32 %v2193, %v2481
    %v2483 = vpop.f32.mrf.mxu0
    %v2484 = vpop.f32.mrf.mxu0
    %v2485 = vadd.f32 %v2196, %v2484
    %v2486 = vpop.f32.mrf.mxu0
    %2487 = vmatprep.mubr.bf16.mxu0 %v1002
    %2488 = vmatmul.mubr.bf16.gmra.mxu0 %v719
    %v2489 = vpop.f32.mrf.mxu0
    %v2490 = vadd.f32 %v2201, %v2489
    %v2491 = vpop.f32.mrf.mxu0
    %v2492 = vpop.f32.mrf.mxu0
    %v2493 = vadd.f32 %v2204, %v2492
    %v2494 = vpop.f32.mrf.mxu0
    %2495 = vmatprep.mubr.bf16.mxu0 %v1005
    %2496 = vmatmul.mubr.bf16.gmra.mxu0 %v731
    %v2497 = vpop.f32.mrf.mxu0
    %v2498 = vadd.f32 %v2209, %v2497
    %v2499 = vpop.f32.mrf.mxu0
    %v2500 = vpop.f32.mrf.mxu0
    %v2501 = vadd.f32 %v2212, %v2500
    %v2502 = vpop.f32.mrf.mxu0
    %2503 = vmatprep.mubr.bf16.mxu0 %v1008
    %2504 = vmatmul.mubr.bf16.gmra.mxu0 %v743
    %v2505 = vpop.f32.mrf.mxu0
    %v2506 = vadd.f32 %v2217, %v2505
    %v2507 = vpop.f32.mrf.mxu0
    %v2508 = vpop.f32.mrf.mxu0
    %v2509 = vadd.f32 %v2220, %v2508
    %v2510 = vpop.f32.mrf.mxu0
    %2511 = vmatprep.mubr.bf16.mxu0 %v1011
    %2512 = vmatmul.mubr.bf16.gmra.mxu0 %v755
    %v2513 = vpop.f32.mrf.mxu0
    %v2514 = vadd.f32 %v2225, %v2513
    %v2515 = vpop.f32.mrf.mxu0
    %v2516 = vpop.f32.mrf.mxu0
    %v2517 = vadd.f32 %v2228, %v2516
    %v2518 = vpop.f32.mrf.mxu0
    %2519 = vmatprep.mubr.bf16.mxu0 %v1014
    %2520 = vmatmul.mubr.bf16.gmra.mxu0 %v767
    %v2521 = vpop.f32.mrf.mxu0
    %v2522 = vadd.f32 %v2233, %v2521
    %v2523 = vpop.f32.mrf.mxu0
    %v2524 = vpop.f32.mrf.mxu0
    %v2525 = vadd.f32 %v2236, %v2524
    %v2526 = vpop.f32.mrf.mxu0
    %2527 = vmatprep.mubr.bf16.mxu0 %v1017
    %2528 = vmatmul.mubr.bf16.gmra.mxu0 %v779
    %v2529 = vpop.f32.mrf.mxu0
    %v2530 = vadd.f32 %v2241, %v2529
    %v2531 = vpop.f32.mrf.mxu0
    %v2532 = vpop.f32.mrf.mxu0
    %v2533 = vadd.f32 %v2244, %v2532
    %v2534 = vpop.f32.mrf.mxu0
    %2535 = vmatprep.mubr.bf16.mxu0 %v1020
    %2536 = vmatmul.mubr.bf16.gmra.mxu0 %v791
    %v2537 = vpop.f32.mrf.mxu0
    %v2538 = vadd.f32 %v2249, %v2537
    %v2539 = vpop.f32.mrf.mxu0
    %v2540 = vpop.f32.mrf.mxu0
    %v2541 = vadd.f32 %v2252, %v2540
    %v2542 = vpop.f32.mrf.mxu0
    %2543 = vmatprep.mubr.bf16.mxu0 %v1023
    %2544 = vmatmul.mubr.bf16.gmra.mxu0 %v803
    %v2545 = vpop.f32.mrf.mxu0
    %v2546 = vadd.f32 %v2257, %v2545
    %v2547 = vpop.f32.mrf.mxu0
    %v2548 = vpop.f32.mrf.mxu0
    %v2549 = vadd.f32 %v2260, %v2548
    %v2550 = vpop.f32.mrf.mxu0
    %2551 = vmatprep.mubr.bf16.mxu0 %v1026
    %2552 = vmatmul.mubr.bf16.gmra.mxu0 %v815
    %v2553 = vpop.f32.mrf.mxu0
    %v2554 = vadd.f32 %v2265, %v2553
    %v2555 = vpop.f32.mrf.mxu0
    %v2556 = vpop.f32.mrf.mxu0
    %v2557 = vadd.f32 %v2268, %v2556
    %v2558 = vpop.f32.mrf.mxu0
    %2559 = vmatprep.mubr.bf16.mxu0 %v1029
    %2560 = vmatmul.mubr.bf16.gmra.mxu0 %v827
    %v2561 = vpop.f32.mrf.mxu0
    %v2562 = vadd.f32 %v2273, %v2561
    %v2563 = vpop.f32.mrf.mxu0
    %v2564 = vpop.f32.mrf.mxu0
    %v2565 = vadd.f32 %v2276, %v2564
    %v2566 = vpop.f32.mrf.mxu0
    %2567 = vmatprep.mubr.bf16.mxu0 %v1032
    %2568 = vmatmul.mubr.bf16.gmra.mxu0 %v839
    %v2569 = vpop.f32.mrf.mxu0
    %v2570 = vadd.f32 %v2281, %v2569
    %v2571 = vpop.f32.mrf.mxu0
    %v2572 = vpop.f32.mrf.mxu0
    %v2573 = vadd.f32 %v2284, %v2572
    %v2574 = vpop.f32.mrf.mxu0
    %2575 = vmatprep.mubr.bf16.mxu0 %v1100
    %2576 = vmatmul.mubr.bf16.gmra.mxu0 %v1088
    %v2577 = vpop.f32.mrf.mxu0
    %v2578 = vadd.f32 %v2289, %v2577
    %v2579 = vpop.f32.mrf.mxu0
    %v2580 = vpop.f32.mrf.mxu0
    %v2581 = vadd.f32 %v2292, %v2580
    %v2582 = vpop.f32.mrf.mxu0
    %2583 = vdwg.mxu0
    %2584 = vmatprep.subr.bf16.mxu0 0
    %2585 = vmatpush1.bf16.msra.mxu0 %v1628
    %2586 = vmatprep.subr.bf16.mxu0 0
    %2587 = vmatpush1.bf16.msra.mxu0 %v1627
    %2588 = vmatprep.subr.bf16.mxu0 0
    %2589 = vmatpush1.bf16.msra.mxu0 %v1626
    %2590 = vmatprep.subr.bf16.mxu0 0
    %2591 = vmatpush1.bf16.msra.mxu0 %v1625
    %2592 = vmatprep.subr.bf16.mxu0 0
    %2593 = vmatpush1.bf16.msra.mxu0 %v1624
    %2594 = vmatprep.subr.bf16.mxu0 0
    %2595 = vmatpush1.bf16.msra.mxu0 %v1623
    %2596 = vmatprep.subr.bf16.mxu0 0
    %2597 = vmatpush1.bf16.msra.mxu0 %v1622
    %2598 = vmatprep.subr.bf16.mxu0 0
    %2599 = vmatpush1.bf16.msra.mxu0 %v1621
    %2600 = vmatprep.subr.bf16.mxu0 0
    %2601 = vmatpush2.bf16.msra.mxu0 %v1636
    %2602 = vmatprep.subr.bf16.mxu0 0
    %2603 = vmatpush2.bf16.msra.mxu0 %v1635
    %2604 = vmatprep.subr.bf16.mxu0 0
    %2605 = vmatpush2.bf16.msra.mxu0 %v1634
    %2606 = vmatprep.subr.bf16.mxu0 0
    %2607 = vmatpush2.bf16.msra.mxu0 %v1633
    %2608 = vmatprep.subr.bf16.mxu0 0
    %2609 = vmatpush2.bf16.msra.mxu0 %v1632
    %2610 = vmatprep.subr.bf16.mxu0 0
    %2611 = vmatpush2.bf16.msra.mxu0 %v1631
    %2612 = vmatprep.subr.bf16.mxu0 0
    %2613 = vmatpush2.bf16.msra.mxu0 %v1630
    %2614 = vmatprep.subr.bf16.mxu0 0
    %2615 = vmatpush2.bf16.msra.mxu0 %v1629
    %2616 = vmatprep.mubr.bf16.mxu0 %v491
    %2617 = vmatmul.mubr.bf16.gmra.mxu0 %v385
    %v2618 = vpop.f32.mrf.mxu0
    %v2619 = vadd.f32 %v2330, %v2618
    %v2620 = vpop.f32.mrf.mxu0
    %v2621 = vpop.f32.mrf.mxu0
    %v2622 = vadd.f32 %v2333, %v2621
    %v2623 = vpop.f32.mrf.mxu0
    %2624 = vmatprep.mubr.bf16.mxu0 %v503
    %2625 = vmatmul.mubr.bf16.gmra.mxu0 %v386
    %v2626 = vpop.f32.mrf.mxu0
    %v2627 = vadd.f32 %v2338, %v2626
    %v2628 = vpop.f32.mrf.mxu0
    %v2629 = vpop.f32.mrf.mxu0
    %v2630 = vadd.f32 %v2341, %v2629
    %v2631 = vpop.f32.mrf.mxu0
    %2632 = vmatprep.mubr.bf16.mxu0 %v515
    %2633 = vmatmul.mubr.bf16.gmra.mxu0 %v387
    %v2634 = vpop.f32.mrf.mxu0
    %v2635 = vadd.f32 %v2346, %v2634
    %v2636 = vpop.f32.mrf.mxu0
    %v2637 = vpop.f32.mrf.mxu0
    %v2638 = vadd.f32 %v2349, %v2637
    %v2639 = vpop.f32.mrf.mxu0
    %2640 = vmatprep.mubr.bf16.mxu0 %v527
    %2641 = vmatmul.mubr.bf16.gmra.mxu0 %v388
    %v2642 = vpop.f32.mrf.mxu0
    %v2643 = vadd.f32 %v2354, %v2642
    %v2644 = vpop.f32.mrf.mxu0
    %v2645 = vpop.f32.mrf.mxu0
    %v2646 = vadd.f32 %v2357, %v2645
    %v2647 = vpop.f32.mrf.mxu0
    %2648 = vmatprep.mubr.bf16.mxu0 %v539
    %2649 = vmatmul.mubr.bf16.gmra.mxu0 %v389
    %v2650 = vpop.f32.mrf.mxu0
    %v2651 = vadd.f32 %v2362, %v2650
    %v2652 = vpop.f32.mrf.mxu0
    %v2653 = vpop.f32.mrf.mxu0
    %v2654 = vadd.f32 %v2365, %v2653
    %v2655 = vpop.f32.mrf.mxu0
    %2656 = vmatprep.mubr.bf16.mxu0 %v551
    %2657 = vmatmul.mubr.bf16.gmra.mxu0 %v390
    %v2658 = vpop.f32.mrf.mxu0
    %v2659 = vadd.f32 %v2370, %v2658
    %v2660 = vpop.f32.mrf.mxu0
    %v2661 = vpop.f32.mrf.mxu0
    %v2662 = vadd.f32 %v2373, %v2661
    %v2663 = vpop.f32.mrf.mxu0
    %2664 = vmatprep.mubr.bf16.mxu0 %v563
    %2665 = vmatmul.mubr.bf16.gmra.mxu0 %v391
    %v2666 = vpop.f32.mrf.mxu0
    %v2667 = vadd.f32 %v2378, %v2666
    %v2668 = vpop.f32.mrf.mxu0
    %v2669 = vpop.f32.mrf.mxu0
    %v2670 = vadd.f32 %v2381, %v2669
    %v2671 = vpop.f32.mrf.mxu0
    %2672 = vmatprep.mubr.bf16.mxu0 %v575
    %2673 = vmatmul.mubr.bf16.gmra.mxu0 %v392
    %v2674 = vpop.f32.mrf.mxu0
    %v2675 = vadd.f32 %v2386, %v2674
    %v2676 = vpop.f32.mrf.mxu0
    %v2677 = vpop.f32.mrf.mxu0
    %v2678 = vadd.f32 %v2389, %v2677
    %v2679 = vpop.f32.mrf.mxu0
    %2680 = vmatprep.mubr.bf16.mxu0 %v587
    %2681 = vmatmul.mubr.bf16.gmra.mxu0 %v393
    %v2682 = vpop.f32.mrf.mxu0
    %v2683 = vadd.f32 %v2394, %v2682
    %v2684 = vpop.f32.mrf.mxu0
    %v2685 = vpop.f32.mrf.mxu0
    %v2686 = vadd.f32 %v2397, %v2685
    %v2687 = vpop.f32.mrf.mxu0
    %2688 = vmatprep.mubr.bf16.mxu0 %v599
    %2689 = vmatmul.mubr.bf16.gmra.mxu0 %v394
    %v2690 = vpop.f32.mrf.mxu0
    %v2691 = vadd.f32 %v2402, %v2690
    %v2692 = vpop.f32.mrf.mxu0
    %v2693 = vpop.f32.mrf.mxu0
    %v2694 = vadd.f32 %v2405, %v2693
    %v2695 = vpop.f32.mrf.mxu0
    %2696 = vmatprep.mubr.bf16.mxu0 %v611
    %2697 = vmatmul.mubr.bf16.gmra.mxu0 %v395
    %v2698 = vpop.f32.mrf.mxu0
    %v2699 = vadd.f32 %v2410, %v2698
    %v2700 = vpop.f32.mrf.mxu0
    %v2701 = vpop.f32.mrf.mxu0
    %v2702 = vadd.f32 %v2413, %v2701
    %v2703 = vpop.f32.mrf.mxu0
    %2704 = vmatprep.mubr.bf16.mxu0 %v623
    %2705 = vmatmul.mubr.bf16.gmra.mxu0 %v396
    %v2706 = vpop.f32.mrf.mxu0
    %v2707 = vadd.f32 %v2418, %v2706
    %v2708 = vpop.f32.mrf.mxu0
    %v2709 = vpop.f32.mrf.mxu0
    %v2710 = vadd.f32 %v2421, %v2709
    %v2711 = vpop.f32.mrf.mxu0
    %2712 = vmatprep.mubr.bf16.mxu0 %v635
    %2713 = vmatmul.mubr.bf16.gmra.mxu0 %v397
    %v2714 = vpop.f32.mrf.mxu0
    %v2715 = vadd.f32 %v2426, %v2714
    %v2716 = vpop.f32.mrf.mxu0
    %v2717 = vpop.f32.mrf.mxu0
    %v2718 = vadd.f32 %v2429, %v2717
    %v2719 = vpop.f32.mrf.mxu0
    %2720 = vmatprep.mubr.bf16.mxu0 %v647
    %2721 = vmatmul.mubr.bf16.gmra.mxu0 %v398
    %v2722 = vpop.f32.mrf.mxu0
    %v2723 = vadd.f32 %v2434, %v2722
    %v2724 = vpop.f32.mrf.mxu0
    %v2725 = vpop.f32.mrf.mxu0
    %v2726 = vadd.f32 %v2437, %v2725
    %v2727 = vpop.f32.mrf.mxu0
    %2728 = vmatprep.mubr.bf16.mxu0 %v1076
    %2729 = vmatmul.mubr.bf16.gmra.mxu0 %v447
    %v2730 = vpop.f32.mrf.mxu0
    %v2731 = vadd.f32 %v2442, %v2730
    %v2732 = vpop.f32.mrf.mxu0
    %v2733 = vpop.f32.mrf.mxu0
    %v2734 = vadd.f32 %v2445, %v2733
    %v2735 = vpop.f32.mrf.mxu0
    %2736 = vmatprep.mubr.bf16.mxu0 %v1114
    %2737 = vmatmul.mubr.bf16.gmra.mxu0 %v451
    %v2738 = vpop.f32.mrf.mxu0
    %v2739 = vadd.f32 %v2450, %v2738
    %v2740 = vpop.f32.mrf.mxu0
    %v2741 = vpop.f32.mrf.mxu0
    %v2742 = vadd.f32 %v2453, %v2741
    %v2743 = vpop.f32.mrf.mxu0
    %2744 = vmatprep.mubr.bf16.mxu0 %v683
    %2745 = vmatmul.mubr.bf16.gmra.mxu0 %v401
    %v2746 = vpop.f32.mrf.mxu0
    %v2747 = vadd.f32 %v2458, %v2746
    %v2748 = vpop.f32.mrf.mxu0
    %v2749 = vpop.f32.mrf.mxu0
    %v2750 = vadd.f32 %v2461, %v2749
    %v2751 = vpop.f32.mrf.mxu0
    %2752 = vmatprep.mubr.bf16.mxu0 %v695
    %2753 = vmatmul.mubr.bf16.gmra.mxu0 %v402
    %v2754 = vpop.f32.mrf.mxu0
    %v2755 = vadd.f32 %v2466, %v2754
    %v2756 = vpop.f32.mrf.mxu0
    %v2757 = vpop.f32.mrf.mxu0
    %v2758 = vadd.f32 %v2469, %v2757
    %v2759 = vpop.f32.mrf.mxu0
    %2760 = vmatprep.mubr.bf16.mxu0 %v707
    %2761 = vmatmul.mubr.bf16.gmra.mxu0 %v403
    %v2762 = vpop.f32.mrf.mxu0
    %v2763 = vadd.f32 %v2474, %v2762
    %v2764 = vpop.f32.mrf.mxu0
    %v2765 = vpop.f32.mrf.mxu0
    %v2766 = vadd.f32 %v2477, %v2765
    %v2767 = vpop.f32.mrf.mxu0
    %2768 = vmatprep.mubr.bf16.mxu0 %v719
    %2769 = vmatmul.mubr.bf16.gmra.mxu0 %v404
    %v2770 = vpop.f32.mrf.mxu0
    %v2771 = vadd.f32 %v2482, %v2770
    %v2772 = vpop.f32.mrf.mxu0
    %v2773 = vpop.f32.mrf.mxu0
    %v2774 = vadd.f32 %v2485, %v2773
    %v2775 = vpop.f32.mrf.mxu0
    %2776 = vmatprep.mubr.bf16.mxu0 %v731
    %2777 = vmatmul.mubr.bf16.gmra.mxu0 %v405
    %v2778 = vpop.f32.mrf.mxu0
    %v2779 = vadd.f32 %v2490, %v2778
    %v2780 = vpop.f32.mrf.mxu0
    %v2781 = vpop.f32.mrf.mxu0
    %v2782 = vadd.f32 %v2493, %v2781
    %v2783 = vpop.f32.mrf.mxu0
    %2784 = vmatprep.mubr.bf16.mxu0 %v743
    %2785 = vmatmul.mubr.bf16.gmra.mxu0 %v406
    %v2786 = vpop.f32.mrf.mxu0
    %v2787 = vadd.f32 %v2498, %v2786
    %v2788 = vpop.f32.mrf.mxu0
    %v2789 = vpop.f32.mrf.mxu0
    %v2790 = vadd.f32 %v2501, %v2789
    %v2791 = vpop.f32.mrf.mxu0
    %2792 = vmatprep.mubr.bf16.mxu0 %v755
    %2793 = vmatmul.mubr.bf16.gmra.mxu0 %v407
    %v2794 = vpop.f32.mrf.mxu0
    %v2795 = vadd.f32 %v2506, %v2794
    %v2796 = vpop.f32.mrf.mxu0
    %v2797 = vpop.f32.mrf.mxu0
    %v2798 = vadd.f32 %v2509, %v2797
    %v2799 = vpop.f32.mrf.mxu0
    %2800 = vmatprep.mubr.bf16.mxu0 %v767
    %2801 = vmatmul.mubr.bf16.gmra.mxu0 %v408
    %v2802 = vpop.f32.mrf.mxu0
    %v2803 = vadd.f32 %v2514, %v2802
    %v2804 = vpop.f32.mrf.mxu0
    %v2805 = vpop.f32.mrf.mxu0
    %v2806 = vadd.f32 %v2517, %v2805
    %v2807 = vpop.f32.mrf.mxu0
    %2808 = vmatprep.mubr.bf16.mxu0 %v779
    %2809 = vmatmul.mubr.bf16.gmra.mxu0 %v409
    %v2810 = vpop.f32.mrf.mxu0
    %v2811 = vadd.f32 %v2522, %v2810
    %v2812 = vpop.f32.mrf.mxu0
    %v2813 = vpop.f32.mrf.mxu0
    %v2814 = vadd.f32 %v2525, %v2813
    %v2815 = vpop.f32.mrf.mxu0
    %2816 = vmatprep.mubr.bf16.mxu0 %v791
    %2817 = vmatmul.mubr.bf16.gmra.mxu0 %v410
    %v2818 = vpop.f32.mrf.mxu0
    %v2819 = vadd.f32 %v2530, %v2818
    %v2820 = vpop.f32.mrf.mxu0
    %v2821 = vpop.f32.mrf.mxu0
    %v2822 = vadd.f32 %v2533, %v2821
    %v2823 = vpop.f32.mrf.mxu0
    %2824 = vmatprep.mubr.bf16.mxu0 %v803
    %2825 = vmatmul.mubr.bf16.gmra.mxu0 %v411
    %v2826 = vpop.f32.mrf.mxu0
    %v2827 = vadd.f32 %v2538, %v2826
    %v2828 = vpop.f32.mrf.mxu0
    %v2829 = vpop.f32.mrf.mxu0
    %v2830 = vadd.f32 %v2541, %v2829
    %v2831 = vpop.f32.mrf.mxu0
    %2832 = vmatprep.mubr.bf16.mxu0 %v815
    %2833 = vmatmul.mubr.bf16.gmra.mxu0 %v412
    %v2834 = vpop.f32.mrf.mxu0
    %v2835 = vadd.f32 %v2546, %v2834
    %v2836 = vpop.f32.mrf.mxu0
    %v2837 = vpop.f32.mrf.mxu0
    %v2838 = vadd.f32 %v2549, %v2837
    %v2839 = vpop.f32.mrf.mxu0
    %2840 = vmatprep.mubr.bf16.mxu0 %v827
    %2841 = vmatmul.mubr.bf16.gmra.mxu0 %v413
    %v2842 = vpop.f32.mrf.mxu0
    %v2843 = vadd.f32 %v2554, %v2842
    %v2844 = vpop.f32.mrf.mxu0
    %v2845 = vpop.f32.mrf.mxu0
    %v2846 = vadd.f32 %v2557, %v2845
    %v2847 = vpop.f32.mrf.mxu0
    %2848 = vmatprep.mubr.bf16.mxu0 %v839
    %2849 = vmatmul.mubr.bf16.gmra.mxu0 %v414
    %v2850 = vpop.f32.mrf.mxu0
    %v2851 = vadd.f32 %v2562, %v2850
    %v2852 = vpop.f32.mrf.mxu0
    %v2853 = vpop.f32.mrf.mxu0
    %v2854 = vadd.f32 %v2565, %v2853
    %v2855 = vpop.f32.mrf.mxu0
    %2856 = vmatprep.mubr.bf16.mxu0 %v1088
    %2857 = vmatmul.mubr.bf16.gmra.mxu0 %v448
    %v2858 = vpop.f32.mrf.mxu0
    %v2859 = vadd.f32 %v2570, %v2858
    %v2860 = vpop.f32.mrf.mxu0
    %v2861 = vpop.f32.mrf.mxu0
    %v2862 = vadd.f32 %v2573, %v2861
    %v2863 = vpop.f32.mrf.mxu0
    %2864 = vmatprep.mubr.bf16.mxu0 %v1126
    %2865 = vmatmul.mubr.bf16.gmra.mxu0 %v452
    %v2866 = vpop.f32.mrf.mxu0
    %v2867 = vadd.f32 %v2578, %v2866
    %v2868 = vpop.f32.mrf.mxu0
    %v2869 = vpop.f32.mrf.mxu0
    %v2870 = vadd.f32 %v2581, %v2869
    %v2871 = vpop.f32.mrf.mxu0
    %2872 = vdwg.mxu0
    %2873 = vmatprep.subr.bf16.mxu0 0
    %2874 = vmatpush1.bf16.msra.mxu0 %v1644
    %2875 = vmatprep.subr.bf16.mxu0 0
    %2876 = vmatpush1.bf16.msra.mxu0 %v1643
    %2877 = vmatprep.subr.bf16.mxu0 0
    %2878 = vmatpush1.bf16.msra.mxu0 %v1642
    %2879 = vmatprep.subr.bf16.mxu0 0
    %2880 = vmatpush1.bf16.msra.mxu0 %v1641
    %2881 = vmatprep.subr.bf16.mxu0 0
    %2882 = vmatpush1.bf16.msra.mxu0 %v1640
    %2883 = vmatprep.subr.bf16.mxu0 0
    %2884 = vmatpush1.bf16.msra.mxu0 %v1639
    %2885 = vmatprep.subr.bf16.mxu0 0
    %2886 = vmatpush1.bf16.msra.mxu0 %v1638
    %2887 = vmatprep.subr.bf16.mxu0 0
    %2888 = vmatpush1.bf16.msra.mxu0 %v1637
    %2889 = vmatprep.subr.bf16.mxu0 0
    %2890 = vmatpush2.bf16.msra.mxu0 0
    %2891 = vmatprep.subr.bf16.mxu0 0
    %2892 = vmatpush2.bf16.msra.mxu0 0
    %2893 = vmatprep.subr.bf16.mxu0 0
    %2894 = vmatpush2.bf16.msra.mxu0 0
    %2895 = vmatprep.subr.bf16.mxu0 0
    %2896 = vmatpush2.bf16.msra.mxu0 0
    %2897 = vmatprep.subr.bf16.mxu0 0
    %2898 = vmatpush2.bf16.msra.mxu0 0
    %2899 = vmatprep.subr.bf16.mxu0 0
    %2900 = vmatpush2.bf16.msra.mxu0 0
    %2901 = vmatprep.subr.bf16.mxu0 0
    %2902 = vmatpush2.bf16.msra.mxu0 0
    %2903 = vmatprep.subr.bf16.mxu0 0
    %2904 = vmatpush2.bf16.msra.mxu0 0
    %2905 = vmatprep.mubr.bf16.mxu0 0
    %2906 = vmatmul.mubr.bf16.gmra.mxu0 %v945
    %v2907 = vpop.f32.mrf.mxu0
    %v2908 = vadd.f32 %v2619, %v2907
    %v2909 = vpop.f32.mrf.mxu0
    %v2910 = vpop.f32.mrf.mxu0
    %v2911 = vadd.f32 %v2622, %v2910
    %v2912 = vpop.f32.mrf.mxu0
    %2913 = vmatprep.mubr.bf16.mxu0 0
    %2914 = vmatmul.mubr.bf16.gmra.mxu0 %v948
    %v2915 = vpop.f32.mrf.mxu0
    %v2916 = vadd.f32 %v2627, %v2915
    %v2917 = vpop.f32.mrf.mxu0
    %v2918 = vpop.f32.mrf.mxu0
    %v2919 = vadd.f32 %v2630, %v2918
    %v2920 = vpop.f32.mrf.mxu0
    %2921 = vmatprep.mubr.bf16.mxu0 0
    %2922 = vmatmul.mubr.bf16.gmra.mxu0 %v951
    %v2923 = vpop.f32.mrf.mxu0
    %v2924 = vadd.f32 %v2635, %v2923
    %v2925 = vpop.f32.mrf.mxu0
    %v2926 = vpop.f32.mrf.mxu0
    %v2927 = vadd.f32 %v2638, %v2926
    %v2928 = vpop.f32.mrf.mxu0
    %2929 = vmatprep.mubr.bf16.mxu0 0
    %2930 = vmatmul.mubr.bf16.gmra.mxu0 %v954
    %v2931 = vpop.f32.mrf.mxu0
    %v2932 = vadd.f32 %v2643, %v2931
    %v2933 = vpop.f32.mrf.mxu0
    %v2934 = vpop.f32.mrf.mxu0
    %v2935 = vadd.f32 %v2646, %v2934
    %v2936 = vpop.f32.mrf.mxu0
    %2937 = vmatprep.mubr.bf16.mxu0 0
    %2938 = vmatmul.mubr.bf16.gmra.mxu0 %v957
    %v2939 = vpop.f32.mrf.mxu0
    %v2940 = vadd.f32 %v2651, %v2939
    %v2941 = vpop.f32.mrf.mxu0
    %v2942 = vpop.f32.mrf.mxu0
    %v2943 = vadd.f32 %v2654, %v2942
    %v2944 = vpop.f32.mrf.mxu0
    %2945 = vmatprep.mubr.bf16.mxu0 0
    %2946 = vmatmul.mubr.bf16.gmra.mxu0 %v960
    %v2947 = vpop.f32.mrf.mxu0
    %v2948 = vadd.f32 %v2659, %v2947
    %v2949 = vpop.f32.mrf.mxu0
    %v2950 = vpop.f32.mrf.mxu0
    %v2951 = vadd.f32 %v2662, %v2950
    %v2952 = vpop.f32.mrf.mxu0
    %2953 = vmatprep.mubr.bf16.mxu0 0
    %2954 = vmatmul.mubr.bf16.gmra.mxu0 %v963
    %v2955 = vpop.f32.mrf.mxu0
    %v2956 = vadd.f32 %v2667, %v2955
    %v2957 = vpop.f32.mrf.mxu0
    %v2958 = vpop.f32.mrf.mxu0
    %v2959 = vadd.f32 %v2670, %v2958
    %v2960 = vpop.f32.mrf.mxu0
    %2961 = vmatprep.mubr.bf16.mxu0 0
    %2962 = vmatmul.mubr.bf16.gmra.mxu0 %v966
    %v2963 = vpop.f32.mrf.mxu0
    %v2964 = vadd.f32 %v2675, %v2963
    %v2965 = vpop.f32.mrf.mxu0
    %v2966 = vpop.f32.mrf.mxu0
    %v2967 = vadd.f32 %v2678, %v2966
    %v2968 = vpop.f32.mrf.mxu0
    %2969 = vmatprep.mubr.bf16.mxu0 0
    %2970 = vmatmul.mubr.bf16.gmra.mxu0 %v969
    %v2971 = vpop.f32.mrf.mxu0
    %v2972 = vadd.f32 %v2683, %v2971
    %v2973 = vpop.f32.mrf.mxu0
    %v2974 = vpop.f32.mrf.mxu0
    %v2975 = vadd.f32 %v2686, %v2974
    %v2976 = vpop.f32.mrf.mxu0
    %2977 = vmatprep.mubr.bf16.mxu0 0
    %2978 = vmatmul.mubr.bf16.gmra.mxu0 %v972
    %v2979 = vpop.f32.mrf.mxu0
    %v2980 = vadd.f32 %v2691, %v2979
    %v2981 = vpop.f32.mrf.mxu0
    %v2982 = vpop.f32.mrf.mxu0
    %v2983 = vadd.f32 %v2694, %v2982
    %v2984 = vpop.f32.mrf.mxu0
    %2985 = vmatprep.mubr.bf16.mxu0 0
    %2986 = vmatmul.mubr.bf16.gmra.mxu0 %v975
    %v2987 = vpop.f32.mrf.mxu0
    %v2988 = vadd.f32 %v2699, %v2987
    %v2989 = vpop.f32.mrf.mxu0
    %v2990 = vpop.f32.mrf.mxu0
    %v2991 = vadd.f32 %v2702, %v2990
    %v2992 = vpop.f32.mrf.mxu0
    %2993 = vmatprep.mubr.bf16.mxu0 0
    %2994 = vmatmul.mubr.bf16.gmra.mxu0 %v978
    %v2995 = vpop.f32.mrf.mxu0
    %v2996 = vadd.f32 %v2707, %v2995
    %v2997 = vpop.f32.mrf.mxu0
    %v2998 = vpop.f32.mrf.mxu0
    %v2999 = vadd.f32 %v2710, %v2998
    %v3000 = vpop.f32.mrf.mxu0
    %3001 = vmatprep.mubr.bf16.mxu0 0
    %3002 = vmatmul.mubr.bf16.gmra.mxu0 %v981
    %v3003 = vpop.f32.mrf.mxu0
    %v3004 = vadd.f32 %v2715, %v3003
    %v3005 = vpop.f32.mrf.mxu0
    %v3006 = vpop.f32.mrf.mxu0
    %v3007 = vadd.f32 %v2718, %v3006
    %v3008 = vpop.f32.mrf.mxu0
    %3009 = vmatprep.mubr.bf16.mxu0 0
    %3010 = vmatmul.mubr.bf16.gmra.mxu0 %v984
    %v3011 = vpop.f32.mrf.mxu0
    %v3012 = vadd.f32 %v2723, %v3011
    %v3013 = vpop.f32.mrf.mxu0
    %v3014 = vpop.f32.mrf.mxu0
    %v3015 = vadd.f32 %v2726, %v3014
    %v3016 = vpop.f32.mrf.mxu0
    %3017 = vmatprep.mubr.bf16.mxu0 0
    %3018 = vmatmul.mubr.bf16.gmra.mxu0 %v1097
    %v3019 = vpop.f32.mrf.mxu0
    %v3020 = vadd.f32 %v2731, %v3019
    %v3021 = vpop.f32.mrf.mxu0
    %v3022 = vpop.f32.mrf.mxu0
    %v3023 = vadd.f32 %v2734, %v3022
    %v3024 = vpop.f32.mrf.mxu0
    %3025 = vmatprep.mubr.bf16.mxu0 0
    %3026 = vmatmul.mubr.bf16.gmra.mxu0 %v1135
    %v3027 = vpop.f32.mrf.mxu0
    %v3028 = vadd.f32 %v2739, %v3027
    %v3029 = vpop.f32.mrf.mxu0
    %v3030 = vpop.f32.mrf.mxu0
    %v3031 = vadd.f32 %v2742, %v3030
    %v3032 = vpop.f32.mrf.mxu0
    %3033 = vmatprep.mubr.bf16.mxu0 0
    %3034 = vmatmul.mubr.bf16.gmra.mxu0 %v993
    %v3035 = vpop.f32.mrf.mxu0
    %v3036 = vadd.f32 %v2747, %v3035
    %v3037 = vpop.f32.mrf.mxu0
    %v3038 = vpop.f32.mrf.mxu0
    %v3039 = vadd.f32 %v2750, %v3038
    %v3040 = vpop.f32.mrf.mxu0
    %3041 = vmatprep.mubr.bf16.mxu0 0
    %3042 = vmatmul.mubr.bf16.gmra.mxu0 %v996
    %v3043 = vpop.f32.mrf.mxu0
    %v3044 = vadd.f32 %v2755, %v3043
    %v3045 = vpop.f32.mrf.mxu0
    %v3046 = vpop.f32.mrf.mxu0
    %v3047 = vadd.f32 %v2758, %v3046
    %v3048 = vpop.f32.mrf.mxu0
    %3049 = vmatprep.mubr.bf16.mxu0 0
    %3050 = vmatmul.mubr.bf16.gmra.mxu0 %v999
    %v3051 = vpop.f32.mrf.mxu0
    %v3052 = vadd.f32 %v2763, %v3051
    %v3053 = vpop.f32.mrf.mxu0
    %v3054 = vpop.f32.mrf.mxu0
    %v3055 = vadd.f32 %v2766, %v3054
    %v3056 = vpop.f32.mrf.mxu0
    %3057 = vmatprep.mubr.bf16.mxu0 0
    %3058 = vmatmul.mubr.bf16.gmra.mxu0 %v1002
    %v3059 = vpop.f32.mrf.mxu0
    %v3060 = vadd.f32 %v2771, %v3059
    %v3061 = vpop.f32.mrf.mxu0
    %v3062 = vpop.f32.mrf.mxu0
    %v3063 = vadd.f32 %v2774, %v3062
    %v3064 = vpop.f32.mrf.mxu0
    %3065 = vmatprep.mubr.bf16.mxu0 0
    %3066 = vmatmul.mubr.bf16.gmra.mxu0 %v1005
    %v3067 = vpop.f32.mrf.mxu0
    %v3068 = vadd.f32 %v2779, %v3067
    %v3069 = vpop.f32.mrf.mxu0
    %v3070 = vpop.f32.mrf.mxu0
    %v3071 = vadd.f32 %v2782, %v3070
    %v3072 = vpop.f32.mrf.mxu0
    %3073 = vmatprep.mubr.bf16.mxu0 0
    %3074 = vmatmul.mubr.bf16.gmra.mxu0 %v1008
    %v3075 = vpop.f32.mrf.mxu0
    %v3076 = vadd.f32 %v2787, %v3075
    %v3077 = vpop.f32.mrf.mxu0
    %v3078 = vpop.f32.mrf.mxu0
    %v3079 = vadd.f32 %v2790, %v3078
    %v3080 = vpop.f32.mrf.mxu0
    %3081 = vmatprep.mubr.bf16.mxu0 0
    %3082 = vmatmul.mubr.bf16.gmra.mxu0 %v1011
    %v3083 = vpop.f32.mrf.mxu0
    %v3084 = vadd.f32 %v2795, %v3083
    %v3085 = vpop.f32.mrf.mxu0
    %v3086 = vpop.f32.mrf.mxu0
    %v3087 = vadd.f32 %v2798, %v3086
    %v3088 = vpop.f32.mrf.mxu0
    %3089 = vmatprep.mubr.bf16.mxu0 0
    %3090 = vmatmul.mubr.bf16.gmra.mxu0 %v1014
    %v3091 = vpop.f32.mrf.mxu0
    %v3092 = vadd.f32 %v2803, %v3091
    %v3093 = vpop.f32.mrf.mxu0
    %v3094 = vpop.f32.mrf.mxu0
    %v3095 = vadd.f32 %v2806, %v3094
    %v3096 = vpop.f32.mrf.mxu0
    %3097 = vmatprep.mubr.bf16.mxu0 0
    %3098 = vmatmul.mubr.bf16.gmra.mxu0 %v1017
    %v3099 = vpop.f32.mrf.mxu0
    %v3100 = vadd.f32 %v2811, %v3099
    %v3101 = vpop.f32.mrf.mxu0
    %v3102 = vpop.f32.mrf.mxu0
    %v3103 = vadd.f32 %v2814, %v3102
    %v3104 = vpop.f32.mrf.mxu0
    %3105 = vmatprep.mubr.bf16.mxu0 0
    %3106 = vmatmul.mubr.bf16.gmra.mxu0 %v1020
    %v3107 = vpop.f32.mrf.mxu0
    %v3108 = vadd.f32 %v2819, %v3107
    %v3109 = vpop.f32.mrf.mxu0
    %v3110 = vpop.f32.mrf.mxu0
    %v3111 = vadd.f32 %v2822, %v3110
    %v3112 = vpop.f32.mrf.mxu0
    %3113 = vmatprep.mubr.bf16.mxu0 0
    %3114 = vmatmul.mubr.bf16.gmra.mxu0 %v1023
    %v3115 = vpop.f32.mrf.mxu0
    %v3116 = vadd.f32 %v2827, %v3115
    %v3117 = vpop.f32.mrf.mxu0
    %v3118 = vpop.f32.mrf.mxu0
    %v3119 = vadd.f32 %v2830, %v3118
    %v3120 = vpop.f32.mrf.mxu0
    %3121 = vmatprep.mubr.bf16.mxu0 0
    %3122 = vmatmul.mubr.bf16.gmra.mxu0 %v1026
    %v3123 = vpop.f32.mrf.mxu0
    %v3124 = vadd.f32 %v2835, %v3123
    %v3125 = vpop.f32.mrf.mxu0
    %v3126 = vpop.f32.mrf.mxu0
    %v3127 = vadd.f32 %v2838, %v3126
    %v3128 = vpop.f32.mrf.mxu0
    %3129 = vmatprep.mubr.bf16.mxu0 0
    %3130 = vmatmul.mubr.bf16.gmra.mxu0 %v1029
    %v3131 = vpop.f32.mrf.mxu0
    %v3132 = vadd.f32 %v2843, %v3131
    %v3133 = vpop.f32.mrf.mxu0
    %v3134 = vpop.f32.mrf.mxu0
    %v3135 = vadd.f32 %v2846, %v3134
    %v3136 = vpop.f32.mrf.mxu0
    %3137 = vmatprep.mubr.bf16.mxu0 0
    %3138 = vmatmul.mubr.bf16.gmra.mxu0 %v1032
    %v3139 = vpop.f32.mrf.mxu0
    %v3140 = vadd.f32 %v2851, %v3139
    %v3141 = vpop.f32.mrf.mxu0
    %v3142 = vpop.f32.mrf.mxu0
    %v3143 = vadd.f32 %v2854, %v3142
    %v3144 = vpop.f32.mrf.mxu0
    %3145 = vmatprep.mubr.bf16.mxu0 0
    %3146 = vmatmul.mubr.bf16.gmra.mxu0 %v1100
    %v3147 = vpop.f32.mrf.mxu0
    %v3148 = vadd.f32 %v2859, %v3147
    %v3149 = vpop.f32.mrf.mxu0
    %v3150 = vpop.f32.mrf.mxu0
    %v3151 = vadd.f32 %v2862, %v3150
    %v3152 = vpop.f32.mrf.mxu0
    %3153 = vmatprep.mubr.bf16.mxu0 0
    %3154 = vmatmul.mubr.bf16.gmra.mxu0 %v1138
    %v3155 = vpop.f32.mrf.mxu0
    %v3156 = vadd.f32 %v2867, %v3155
    %v3157 = vpop.f32.mrf.mxu0
    %v3158 = vpop.f32.mrf.mxu0
    %v3159 = vadd.f32 %v2870, %v3158
    %v3160 = vpop.f32.mrf.mxu0
    %3161 = vdwg.mxu0
    %v3162 = vadd.f32 %v2908, %v2911
    %v3163 = vadd.f32 %v3162, %v2916
    %v3164 = vadd.f32 %v3163, %v2919
    %v3165 = vadd.f32 %v3164, %v2924
    %v3166 = vadd.f32 %v3165, %v2927
    %v3167 = vadd.f32 %v3166, %v2932
    %v3168 = vadd.f32 %v3167, %v2935
    %v3169 = vadd.f32 %v3168, %v2940
    %v3170 = vadd.f32 %v3169, %v2943
    %v3171 = vadd.f32 %v3170, %v2948
    %v3172 = vadd.f32 %v3171, %v2951
    %v3173 = vadd.f32 %v3172, %v2956
    %v3174 = vadd.f32 %v3173, %v2959
    %v3175 = vadd.f32 %v3174, %v2964
    %v3176 = vadd.f32 %v3175, %v2967
    %v3177 = vadd.f32 %v3176, %v2972
    %v3178 = vadd.f32 %v3177, %v2975
    %v3179 = vadd.f32 %v3178, %v2980
    %v3180 = vadd.f32 %v3179, %v2983
    %v3181 = vadd.f32 %v3180, %v2988
    %v3182 = vadd.f32 %v3181, %v2991
    %v3183 = vadd.f32 %v3182, %v2996
    %v3184 = vadd.f32 %v3183, %v2999
    %v3185 = vadd.f32 %v3184, %v3004
    %v3186 = vadd.f32 %v3185, %v3007
    %v3187 = vadd.f32 %v3186, %v3012
    %v3188 = vadd.f32 %v3187, %v3015
    %v3189 = vadd.f32 %v3188, %v3020
    %v3190 = vadd.f32 %v3189, %v3023
    %v3191 = vadd.f32 %v3190, %v3028
    %v3192 = vadd.f32 %v3191, %v3031
    %v3193 = vadd.f32 %v3192, %v3036
    %v3194 = vadd.f32 %v3193, %v3039
    %v3195 = vadd.f32 %v3194, %v3044
    %v3196 = vadd.f32 %v3195, %v3047
    %v3197 = vadd.f32 %v3196, %v3052
    %v3198 = vadd.f32 %v3197, %v3055
    %v3199 = vadd.f32 %v3198, %v3060
    %v3200 = vadd.f32 %v3199, %v3063
    %v3201 = vadd.f32 %v3200, %v3068
    %v3202 = vadd.f32 %v3201, %v3071
    %v3203 = vadd.f32 %v3202, %v3076
    %v3204 = vadd.f32 %v3203, %v3079
    %v3205 = vadd.f32 %v3204, %v3084
    %v3206 = vadd.f32 %v3205, %v3087
    %v3207 = vadd.f32 %v3206, %v3092
    %v3208 = vadd.f32 %v3207, %v3095
    %v3209 = vadd.f32 %v3208, %v3100
    %v3210 = vadd.f32 %v3209, %v3103
    %v3211 = vadd.f32 %v3210, %v3108
    %v3212 = vadd.f32 %v3211, %v3111
    %v3213 = vadd.f32 %v3212, %v3116
    %v3214 = vadd.f32 %v3213, %v3119
    %v3215 = vadd.f32 %v3214, %v3124
    %v3216 = vadd.f32 %v3215, %v3127
    %v3217 = vadd.f32 %v3216, %v3132
    %v3218 = vadd.f32 %v3217, %v3135
    %v3219 = vadd.f32 %v3218, %v3140
    %v3220 = vadd.f32 %v3219, %v3143
    %v3221 = vadd.f32 %v3220, %v3148
    %v3222 = vadd.f32 %v3221, %v3151
    %v3223 = vadd.f32 %v3222, %v3156
    %v3224 = vadd.f32 %v3223, %v3159
    %v3225 = vrot.slane %v3224, 4
    %v3226 = vadd.f32 %v3224, %v3225
    %v3227 = vrot.slane %v3226, 2
    %v3228 = vadd.f32 %v3226, %v3227
    %v3229 = vrot.slane %v3228, 1
    %v3230 = vadd.f32 %v3228, %v3229
    %v3231 = vmul.f32 %v3230, 0.001953125
    %v3232 = vmul.f32 %v2908, %v2908
    %v3233 = vmul.f32 %v2911, %v2911
    %v3234 = vmul.f32 %v2916, %v2916
    %v3235 = vmul.f32 %v2919, %v2919
    %v3236 = vmul.f32 %v2924, %v2924
    %v3237 = vmul.f32 %v2927, %v2927
    %v3238 = vmul.f32 %v2932, %v2932
    %v3239 = vmul.f32 %v2935, %v2935
    %v3240 = vmul.f32 %v2940, %v2940
    %v3241 = vmul.f32 %v2943, %v2943
    %v3242 = vmul.f32 %v2948, %v2948
    %v3243 = vmul.f32 %v2951, %v2951
    %v3244 = vmul.f32 %v2956, %v2956
    %v3245 = vmul.f32 %v2959, %v2959
    %v3246 = vmul.f32 %v2964, %v2964
    %v3247 = vmul.f32 %v2967, %v2967
    %v3248 = vmul.f32 %v2972, %v2972
    %v3249 = vmul.f32 %v2975, %v2975
    %v3250 = vmul.f32 %v2980, %v2980
    %v3251 = vmul.f32 %v2983, %v2983
    %v3252 = vmul.f32 %v2988, %v2988
    %v3253 = vmul.f32 %v2991, %v2991
    %v3254 = vmul.f32 %v2996, %v2996
    %v3255 = vmul.f32 %v2999, %v2999
    %v3256 = vmul.f32 %v3004, %v3004
    %v3257 = vmul.f32 %v3007, %v3007
    %v3258 = vmul.f32 %v3012, %v3012
    %v3259 = vmul.f32 %v3015, %v3015
    %v3260 = vmul.f32 %v3020, %v3020
    %v3261 = vmul.f32 %v3023, %v3023
    %v3262 = vmul.f32 %v3028, %v3028
    %v3263 = vmul.f32 %v3031, %v3031
    %v3264 = vmul.f32 %v3036, %v3036
    %v3265 = vmul.f32 %v3039, %v3039
    %v3266 = vmul.f32 %v3044, %v3044
    %v3267 = vmul.f32 %v3047, %v3047
    %v3268 = vmul.f32 %v3052, %v3052
    %v3269 = vmul.f32 %v3055, %v3055
    %v3270 = vmul.f32 %v3060, %v3060
    %v3271 = vmul.f32 %v3063, %v3063
    %v3272 = vmul.f32 %v3068, %v3068
    %v3273 = vmul.f32 %v3071, %v3071
    %v3274 = vmul.f32 %v3076, %v3076
    %v3275 = vmul.f32 %v3079, %v3079
    %v3276 = vmul.f32 %v3084, %v3084
    %v3277 = vmul.f32 %v3087, %v3087
    %v3278 = vmul.f32 %v3092, %v3092
    %v3279 = vmul.f32 %v3095, %v3095
    %v3280 = vmul.f32 %v3100, %v3100
    %v3281 = vmul.f32 %v3103, %v3103
    %v3282 = vmul.f32 %v3108, %v3108
    %v3283 = vmul.f32 %v3111, %v3111
    %v3284 = vmul.f32 %v3116, %v3116
    %v3285 = vmul.f32 %v3119, %v3119
    %v3286 = vmul.f32 %v3124, %v3124
    %v3287 = vmul.f32 %v3127, %v3127
    %v3288 = vmul.f32 %v3132, %v3132
    %v3289 = vmul.f32 %v3135, %v3135
    %v3290 = vmul.f32 %v3140, %v3140
    %v3291 = vmul.f32 %v3143, %v3143
    %v3292 = vmul.f32 %v3148, %v3148
    %v3293 = vmul.f32 %v3151, %v3151
    %v3294 = vmul.f32 %v3156, %v3156
    %v3295 = vmul.f32 %v3159, %v3159
    %v3296 = vadd.f32 %v3232, %v3233
    %v3297 = vadd.f32 %v3296, %v3234
    %v3298 = vadd.f32 %v3297, %v3235
    %v3299 = vadd.f32 %v3298, %v3236
    %v3300 = vadd.f32 %v3299, %v3237
    %v3301 = vadd.f32 %v3300, %v3238
    %v3302 = vadd.f32 %v3301, %v3239
    %v3303 = vadd.f32 %v3302, %v3240
    %v3304 = vadd.f32 %v3303, %v3241
    %v3305 = vadd.f32 %v3304, %v3242
    %v3306 = vadd.f32 %v3305, %v3243
    %v3307 = vadd.f32 %v3306, %v3244
    %v3308 = vadd.f32 %v3307, %v3245
    %v3309 = vadd.f32 %v3308, %v3246
    %v3310 = vadd.f32 %v3309, %v3247
    %v3311 = vadd.f32 %v3310, %v3248
    %v3312 = vadd.f32 %v3311, %v3249
    %v3313 = vadd.f32 %v3312, %v3250
    %v3314 = vadd.f32 %v3313, %v3251
    %v3315 = vadd.f32 %v3314, %v3252
    %v3316 = vadd.f32 %v3315, %v3253
    %v3317 = vadd.f32 %v3316, %v3254
    %v3318 = vadd.f32 %v3317, %v3255
    %v3319 = vadd.f32 %v3318, %v3256
    %v3320 = vadd.f32 %v3319, %v3257
    %v3321 = vadd.f32 %v3320, %v3258
    %v3322 = vadd.f32 %v3321, %v3259
    %v3323 = vadd.f32 %v3322, %v3260
    %v3324 = vadd.f32 %v3323, %v3261
    %v3325 = vadd.f32 %v3324, %v3262
    %v3326 = vadd.f32 %v3325, %v3263
    %v3327 = vadd.f32 %v3326, %v3264
    %v3328 = vadd.f32 %v3327, %v3265
    %v3329 = vadd.f32 %v3328, %v3266
    %v3330 = vadd.f32 %v3329, %v3267
    %v3331 = vadd.f32 %v3330, %v3268
    %v3332 = vadd.f32 %v3331, %v3269
    %v3333 = vadd.f32 %v3332, %v3270
    %v3334 = vadd.f32 %v3333, %v3271
    %v3335 = vadd.f32 %v3334, %v3272
    %v3336 = vadd.f32 %v3335, %v3273
    %v3337 = vadd.f32 %v3336, %v3274
    %v3338 = vadd.f32 %v3337, %v3275
    %v3339 = vadd.f32 %v3338, %v3276
    %v3340 = vadd.f32 %v3339, %v3277
    %v3341 = vadd.f32 %v3340, %v3278
    %v3342 = vadd.f32 %v3341, %v3279
    %v3343 = vadd.f32 %v3342, %v3280
    %v3344 = vadd.f32 %v3343, %v3281
    %v3345 = vadd.f32 %v3344, %v3282
    %v3346 = vadd.f32 %v3345, %v3283
    %v3347 = vadd.f32 %v3346, %v3284
    %v3348 = vadd.f32 %v3347, %v3285
    %v3349 = vadd.f32 %v3348, %v3286
    %v3350 = vadd.f32 %v3349, %v3287
    %v3351 = vadd.f32 %v3350, %v3288
    %v3352 = vadd.f32 %v3351, %v3289
    %v3353 = vadd.f32 %v3352, %v3290
    %v3354 = vadd.f32 %v3353, %v3291
    %v3355 = vadd.f32 %v3354, %v3292
    %v3356 = vadd.f32 %v3355, %v3293
    %v3357 = vadd.f32 %v3356, %v3294
    %v3358 = vadd.f32 %v3357, %v3295
    %v3359 = vrot.slane %v3358, 4
    %v3360 = vadd.f32 %v3358, %v3359
    %v3361 = vrot.slane %v3360, 2
    %v3362 = vadd.f32 %v3360, %v3361
    %v3363 = vrot.slane %v3362, 1
    %v3364 = vadd.f32 %v3362, %v3363
    %v3365 = vmul.f32 %v3364, 0.001953125
    %v3366 = vmul.f32 %v3231, %v3231
    %v3367 = vsub.f32 %v3365, %v3366
    %v3368 = vld [vmem:[%s2] sm:$0x1]
    %v3369 = vadd.f32 %v3367, 1e-05
    %v3370 = vrsqrt.pop %v3369
    %v3371 = vmul.f32 %v3368, %v3370
    %v3372 = vld [vmem:[%s3] sm:$0x1]
    %v3373 = vmul.f32 %v3231, %v3371
    %v3374 = vsub.f32 %v3372, %v3373
    %v3376 = vlaneseq
    %v3377 = vshrl.u32 %v3376, 7
    %v3378 = vsub.s32 0, %v3377
    %v3379 = vrot.slane %v3371, %v3378
    %v3381 = vmul.f32 %v2908, %v3379
    %v3382 = vmul.f32 %v2911, %v3379
    %v3383 = vmul.f32 %v2916, %v3379
    %v3384 = vmul.f32 %v2919, %v3379
    %v3385 = vmul.f32 %v2924, %v3379
    %v3386 = vmul.f32 %v2927, %v3379
    %v3387 = vmul.f32 %v2932, %v3379
    %v3388 = vmul.f32 %v2935, %v3379
    %v3389 = vmul.f32 %v2940, %v3379
    %v3390 = vmul.f32 %v2943, %v3379
    %v3391 = vmul.f32 %v2948, %v3379
    %v3392 = vmul.f32 %v2951, %v3379
    %v3393 = vmul.f32 %v2956, %v3379
    %v3394 = vmul.f32 %v2959, %v3379
    %v3395 = vmul.f32 %v2964, %v3379
    %v3396 = vmul.f32 %v2967, %v3379
    %v3397 = vmul.f32 %v2972, %v3379
    %v3398 = vmul.f32 %v2975, %v3379
    %v3399 = vmul.f32 %v2980, %v3379
    %v3400 = vmul.f32 %v2983, %v3379
    %v3401 = vmul.f32 %v2988, %v3379
    %v3402 = vmul.f32 %v2991, %v3379
    %v3403 = vmul.f32 %v2996, %v3379
    %v3404 = vmul.f32 %v2999, %v3379
    %v3405 = vmul.f32 %v3004, %v3379
    %v3406 = vmul.f32 %v3007, %v3379
    %v3407 = vmul.f32 %v3012, %v3379
    %v3408 = vmul.f32 %v3015, %v3379
    %v3409 = vmul.f32 %v3020, %v3379
    %v3410 = vmul.f32 %v3023, %v3379
    %v3411 = vmul.f32 %v3028, %v3379
    %v3412 = vmul.f32 %v3031, %v3379
    %v3413 = vmul.f32 %v3036, %v3379
    %v3414 = vmul.f32 %v3039, %v3379
    %v3415 = vmul.f32 %v3044, %v3379
    %v3416 = vmul.f32 %v3047, %v3379
    %v3417 = vmul.f32 %v3052, %v3379
    %v3418 = vmul.f32 %v3055, %v3379
    %v3419 = vmul.f32 %v3060, %v3379
    %v3420 = vmul.f32 %v3063, %v3379
    %v3421 = vmul.f32 %v3068, %v3379
    %v3422 = vmul.f32 %v3071, %v3379
    %v3423 = vmul.f32 %v3076, %v3379
    %v3424 = vmul.f32 %v3079, %v3379
    %v3425 = vmul.f32 %v3084, %v3379
    %v3426 = vmul.f32 %v3087, %v3379
    %v3427 = vmul.f32 %v3092, %v3379
    %v3428 = vmul.f32 %v3095, %v3379
    %v3429 = vmul.f32 %v3100, %v3379
    %v3430 = vmul.f32 %v3103, %v3379
    %v3431 = vmul.f32 %v3108, %v3379
    %v3432 = vmul.f32 %v3111, %v3379
    %v3433 = vmul.f32 %v3116, %v3379
    %v3434 = vmul.f32 %v3119, %v3379
    %v3435 = vmul.f32 %v3124, %v3379
    %v3436 = vmul.f32 %v3127, %v3379
    %v3437 = vmul.f32 %v3132, %v3379
    %v3438 = vmul.f32 %v3135, %v3379
    %v3439 = vmul.f32 %v3140, %v3379
    %v3440 = vmul.f32 %v3143, %v3379
    %v3441 = vmul.f32 %v3148, %v3379
    %v3442 = vmul.f32 %v3151, %v3379
    %v3443 = vmul.f32 %v3156, %v3379
    %v3444 = vmul.f32 %v3159, %v3379
    %v3446 = vlaneseq
    %v3447 = vshrl.u32 %v3446, 7
    %v3448 = vsub.s32 0, %v3447
    %v3449 = vrot.slane %v3374, %v3448
    %v3451 = vadd.f32 %v3381, %v3449
    %v3452 = vadd.f32 %v3382, %v3449
    %v3453 = vadd.f32 %v3383, %v3449
    %v3454 = vadd.f32 %v3384, %v3449
    %v3455 = vadd.f32 %v3385, %v3449
    %v3456 = vadd.f32 %v3386, %v3449
    %v3457 = vadd.f32 %v3387, %v3449
    %v3458 = vadd.f32 %v3388, %v3449
    %v3459 = vadd.f32 %v3389, %v3449
    %v3460 = vadd.f32 %v3390, %v3449
    %v3461 = vadd.f32 %v3391, %v3449
    %v3462 = vadd.f32 %v3392, %v3449
    %v3463 = vadd.f32 %v3393, %v3449
    %v3464 = vadd.f32 %v3394, %v3449
    %v3465 = vadd.f32 %v3395, %v3449
    %v3466 = vadd.f32 %v3396, %v3449
    %v3467 = vadd.f32 %v3397, %v3449
    %v3468 = vadd.f32 %v3398, %v3449
    %v3469 = vadd.f32 %v3399, %v3449
    %v3470 = vadd.f32 %v3400, %v3449
    %v3471 = vadd.f32 %v3401, %v3449
    %v3472 = vadd.f32 %v3402, %v3449
    %v3473 = vadd.f32 %v3403, %v3449
    %v3474 = vadd.f32 %v3404, %v3449
    %v3475 = vadd.f32 %v3405, %v3449
    %v3476 = vadd.f32 %v3406, %v3449
    %v3477 = vadd.f32 %v3407, %v3449
    %v3478 = vadd.f32 %v3408, %v3449
    %v3479 = vadd.f32 %v3409, %v3449
    %v3480 = vadd.f32 %v3410, %v3449
    %v3481 = vadd.f32 %v3411, %v3449
    %v3482 = vadd.f32 %v3412, %v3449
    %v3483 = vadd.f32 %v3413, %v3449
    %v3484 = vadd.f32 %v3414, %v3449
    %v3485 = vadd.f32 %v3415, %v3449
    %v3486 = vadd.f32 %v3416, %v3449
    %v3487 = vadd.f32 %v3417, %v3449
    %v3488 = vadd.f32 %v3418, %v3449
    %v3489 = vadd.f32 %v3419, %v3449
    %v3490 = vadd.f32 %v3420, %v3449
    %v3491 = vadd.f32 %v3421, %v3449
    %v3492 = vadd.f32 %v3422, %v3449
    %v3493 = vadd.f32 %v3423, %v3449
    %v3494 = vadd.f32 %v3424, %v3449
    %v3495 = vadd.f32 %v3425, %v3449
    %v3496 = vadd.f32 %v3426, %v3449
    %v3497 = vadd.f32 %v3427, %v3449
    %v3498 = vadd.f32 %v3428, %v3449
    %v3499 = vadd.f32 %v3429, %v3449
    %v3500 = vadd.f32 %v3430, %v3449
    %v3501 = vadd.f32 %v3431, %v3449
    %v3502 = vadd.f32 %v3432, %v3449
    %v3503 = vadd.f32 %v3433, %v3449
    %v3504 = vadd.f32 %v3434, %v3449
    %v3505 = vadd.f32 %v3435, %v3449
    %v3506 = vadd.f32 %v3436, %v3449
    %v3507 = vadd.f32 %v3437, %v3449
    %v3508 = vadd.f32 %v3438, %v3449
    %v3509 = vadd.f32 %v3439, %v3449
    %v3510 = vadd.f32 %v3440, %v3449
    %v3511 = vadd.f32 %v3441, %v3449
    %v3512 = vadd.f32 %v3442, %v3449
    %v3513 = vadd.f32 %v3443, %v3449
    %v3514 = vadd.f32 %v3444, %v3449
    %v3515 = vmax.f32 %v3451, 0.0
    %v3516 = vmax.f32 %v3452, 0.0
    %v3517 = vmax.f32 %v3453, 0.0
    %v3518 = vmax.f32 %v3454, 0.0
    %v3519 = vmax.f32 %v3455, 0.0
    %v3520 = vmax.f32 %v3456, 0.0
    %v3521 = vmax.f32 %v3457, 0.0
    %v3522 = vmax.f32 %v3458, 0.0
    %v3523 = vmax.f32 %v3459, 0.0
    %v3524 = vmax.f32 %v3460, 0.0
    %v3525 = vmax.f32 %v3461, 0.0
    %v3526 = vmax.f32 %v3462, 0.0
    %v3527 = vmax.f32 %v3463, 0.0
    %v3528 = vmax.f32 %v3464, 0.0
    %v3529 = vmax.f32 %v3465, 0.0
    %v3530 = vmax.f32 %v3466, 0.0
    %v3531 = vmax.f32 %v3467, 0.0
    %v3532 = vmax.f32 %v3468, 0.0
    %v3533 = vmax.f32 %v3469, 0.0
    %v3534 = vmax.f32 %v3470, 0.0
    %v3535 = vmax.f32 %v3471, 0.0
    %v3536 = vmax.f32 %v3472, 0.0
    %v3537 = vmax.f32 %v3473, 0.0
    %v3538 = vmax.f32 %v3474, 0.0
    %v3539 = vmax.f32 %v3475, 0.0
    %v3540 = vmax.f32 %v3476, 0.0
    %v3541 = vmax.f32 %v3477, 0.0
    %v3542 = vmax.f32 %v3478, 0.0
    %v3543 = vmax.f32 %v3479, 0.0
    %v3544 = vmax.f32 %v3480, 0.0
    %v3545 = vmax.f32 %v3481, 0.0
    %v3546 = vmax.f32 %v3482, 0.0
    %v3547 = vmax.f32 %v3483, 0.0
    %v3548 = vmax.f32 %v3484, 0.0
    %v3549 = vmax.f32 %v3485, 0.0
    %v3550 = vmax.f32 %v3486, 0.0
    %v3551 = vmax.f32 %v3487, 0.0
    %v3552 = vmax.f32 %v3488, 0.0
    %v3553 = vmax.f32 %v3489, 0.0
    %v3554 = vmax.f32 %v3490, 0.0
    %v3555 = vmax.f32 %v3491, 0.0
    %v3556 = vmax.f32 %v3492, 0.0
    %v3557 = vmax.f32 %v3493, 0.0
    %v3558 = vmax.f32 %v3494, 0.0
    %v3559 = vmax.f32 %v3495, 0.0
    %v3560 = vmax.f32 %v3496, 0.0
    %v3561 = vmax.f32 %v3497, 0.0
    %v3562 = vmax.f32 %v3498, 0.0
    %v3563 = vmax.f32 %v3499, 0.0
    %v3564 = vmax.f32 %v3500, 0.0
    %v3565 = vmax.f32 %v3501, 0.0
    %v3566 = vmax.f32 %v3502, 0.0
    %v3567 = vmax.f32 %v3503, 0.0
    %v3568 = vmax.f32 %v3504, 0.0
    %v3569 = vmax.f32 %v3505, 0.0
    %v3570 = vmax.f32 %v3506, 0.0
    %v3571 = vmax.f32 %v3507, 0.0
    %v3572 = vmax.f32 %v3508, 0.0
    %v3573 = vmax.f32 %v3509, 0.0
    %v3574 = vmax.f32 %v3510, 0.0
    %v3575 = vmax.f32 %v3511, 0.0
    %v3576 = vmax.f32 %v3512, 0.0
    %v3577 = vmax.f32 %v3513, 0.0
    %v3578 = vmax.f32 %v3514, 0.0
    %3579 = vst [vmem:[%s82 + $0x1] sm:$0xff] %v3515
    %3580 = vst [vmem:[%s82 + $0x9] sm:$0xff] %v3516
    %3581 = vst [vmem:[%s82 + $0x19] sm:$0xff] %v3517
    %3582 = vst [vmem:[%s82 + $0x21] sm:$0xff] %v3518
    %3583 = vst [vmem:[%s82 + $0x31] sm:$0xff] %v3519
    %3584 = vst [vmem:[%s82 + $0x39] sm:$0xff] %v3520
    %3585 = vst [vmem:[%s82 + $0x49] sm:$0xff] %v3521
    %3586 = vst [vmem:[%s82 + $0x51] sm:$0xff] %v3522
    %3587 = vst [vmem:[%s82 + $0x61] sm:$0xff] %v3523
    %3588 = vst [vmem:[%s82 + $0x69] sm:$0xff] %v3524
    %3589 = vst [vmem:[%s82 + $0x79] sm:$0xff] %v3525
    %3590 = vst [vmem:[%s82 + $0x81] sm:$0xff] %v3526
    %3591 = vst [vmem:[%s82 + $0x91] sm:$0xff] %v3527
    %3592 = vst [vmem:[%s82 + $0x99] sm:$0xff] %v3528
    %3593 = vst [vmem:[%s82 + $0xa9] sm:$0xff] %v3529
    %3594 = vst [vmem:[%s82 + $0xb1] sm:$0xff] %v3530
    %3595 = vst [vmem:[%s82 + $0xc1] sm:$0xff] %v3531
    %3596 = vst [vmem:[%s82 + $0xc9] sm:$0xff] %v3532
    %3597 = vst [vmem:[%s82 + $0xd9] sm:$0xff] %v3533
    %3598 = vst [vmem:[%s82 + $0xe1] sm:$0xff] %v3534
    %3599 = vst [vmem:[%s82 + $0xf1] sm:$0xff] %v3535
    %3600 = vst [vmem:[%s82 + $0xf9] sm:$0xff] %v3536
    %3601 = vst [vmem:[%s82 + $0x109] sm:$0xff] %v3537
    %3602 = vst [vmem:[%s82 + $0x111] sm:$0xff] %v3538
    %3603 = vst [vmem:[%s82 + $0x121] sm:$0xff] %v3539
    %3604 = vst [vmem:[%s82 + $0x129] sm:$0xff] %v3540
    %3605 = vst [vmem:[%s82 + $0x139] sm:$0xff] %v3541
    %3606 = vst [vmem:[%s82 + $0x141] sm:$0xff] %v3542
    %3607 = vst [vmem:[%s82 + $0x151] sm:$0xff] %v3543
    %3608 = vst [vmem:[%s82 + $0x159] sm:$0xff] %v3544
    %3609 = vst [vmem:[%s82 + $0x169] sm:$0xff] %v3545
    %3610 = vst [vmem:[%s82 + $0x171] sm:$0xff] %v3546
    %3611 = vst [vmem:[%s82 + $0x1b1] sm:$0xff] %v3547
    %3612 = vst [vmem:[%s82 + $0x1b9] sm:$0xff] %v3548
    %3613 = vst [vmem:[%s82 + $0x1c9] sm:$0xff] %v3549
    %3614 = vst [vmem:[%s82 + $0x1d1] sm:$0xff] %v3550
    %3615 = vst [vmem:[%s82 + $0x1e1] sm:$0xff] %v3551
    %3616 = vst [vmem:[%s82 + $0x1e9] sm:$0xff] %v3552
    %3617 = vst [vmem:[%s82 + $0x1f9] sm:$0xff] %v3553
    %3618 = vst [vmem:[%s82 + $0x201] sm:$0xff] %v3554
    %3619 = vst [vmem:[%s82 + $0x211] sm:$0xff] %v3555
    %3620 = vst [vmem:[%s82 + $0x219] sm:$0xff] %v3556
    %3621 = vst [vmem:[%s82 + $0x229] sm:$0xff] %v3557
    %3622 = vst [vmem:[%s82 + $0x231] sm:$0xff] %v3558
    %3623 = vst [vmem:[%s82 + $0x241] sm:$0xff] %v3559
    %3624 = vst [vmem:[%s82 + $0x249] sm:$0xff] %v3560
    %3625 = vst [vmem:[%s82 + $0x259] sm:$0xff] %v3561
    %3626 = vst [vmem:[%s82 + $0x261] sm:$0xff] %v3562
    %3627 = vst [vmem:[%s82 + $0x271] sm:$0xff] %v3563
    %3628 = vst [vmem:[%s82 + $0x279] sm:$0xff] %v3564
    %3629 = vst [vmem:[%s82 + $0x289] sm:$0xff] %v3565
    %3630 = vst [vmem:[%s82 + $0x291] sm:$0xff] %v3566
    %3631 = vst [vmem:[%s82 + $0x2a1] sm:$0xff] %v3567
    %3632 = vst [vmem:[%s82 + $0x2a9] sm:$0xff] %v3568
    %3633 = vst [vmem:[%s82 + $0x2b9] sm:$0xff] %v3569
    %3634 = vst [vmem:[%s82 + $0x2c1] sm:$0xff] %v3570
    %3635 = vst [vmem:[%s82 + $0x2d1] sm:$0xff] %v3571
    %3636 = vst [vmem:[%s82 + $0x2d9] sm:$0xff] %v3572
    %3637 = vst [vmem:[%s82 + $0x2e9] sm:$0xff] %v3573
    %3638 = vst [vmem:[%s82 + $0x2f1] sm:$0xff] %v3574
    %3639 = vst [vmem:[%s82 + $0x301] sm:$0xff] %v3575
    %3640 = vst [vmem:[%s82 + $0x309] sm:$0xff] %v3576
    %3641 = vst [vmem:[%s82 + $0x319] sm:$0xff] %v3577
    %3642 = vst [vmem:[%s82 + $0x321] sm:$0xff] %v3578
    %v3643 = vld [vmem:[#allocation2] sm:$0xff]
    %v3644 = vld [vmem:[#allocation2 + $0x8] sm:$0xff]
    %v3645 = vld [vmem:[#allocation2 + $0x10] sm:$0x3]
    %v3646 = vld [vmem:[#allocation2 + $0x18] sm:$0xff]
    %v3647 = vld [vmem:[#allocation2 + $0x20] sm:$0xff]
    %v3648 = vld [vmem:[#allocation2 + $0x28] sm:$0x3]
    %v3649 = vld [vmem:[#allocation2 + $0x30] sm:$0xff]
    %v3650 = vld [vmem:[#allocation2 + $0x38] sm:$0xff]
    %v3651 = vld [vmem:[#allocation2 + $0x40] sm:$0x3]
    %v3652 = vld [vmem:[#allocation2 + $0x48] sm:$0xff]
    %v3653 = vld [vmem:[#allocation2 + $0x50] sm:$0xff]
    %v3654 = vld [vmem:[#allocation2 + $0x58] sm:$0x3]
    %v3655 = vld [vmem:[#allocation2 + $0x60] sm:$0xff]
    %v3656 = vld [vmem:[#allocation2 + $0x68] sm:$0xff]
    %v3657 = vld [vmem:[#allocation2 + $0x70] sm:$0x3]
    %v3658 = vld [vmem:[#allocation2 + $0x78] sm:$0xff]
    %v3659 = vld [vmem:[#allocation2 + $0x80] sm:$0xff]
    %v3660 = vld [vmem:[#allocation2 + $0x88] sm:$0x3]
    %v3661 = vld [vmem:[#allocation2 + $0x90] sm:$0xff]
    %v3662 = vld [vmem:[#allocation2 + $0x98] sm:$0xff]
    %v3663 = vld [vmem:[#allocation2 + $0xa0] sm:$0x3]
    %v3664 = vld [vmem:[#allocation2 + $0xa8] sm:$0xff]
    %v3665 = vld [vmem:[#allocation2 + $0xb0] sm:$0xff]
    %v3666 = vld [vmem:[#allocation2 + $0xb8] sm:$0x3]
    %v3667 = vld [vmem:[#allocation2 + $0xc0] sm:$0xff]
    %v3668 = vld [vmem:[#allocation2 + $0xc8] sm:$0xff]
    %v3669 = vld [vmem:[#allocation2 + $0xd0] sm:$0x3]
    %v3670 = vld [vmem:[#allocation2 + $0xd8] sm:$0xff]
    %v3671 = vld [vmem:[#allocation2 + $0xe0] sm:$0xff]
    %v3672 = vld [vmem:[#allocation2 + $0xe8] sm:$0x3]
    %v3673 = vld [vmem:[#allocation2 + $0xf0] sm:$0xff]
    %v3674 = vld [vmem:[#allocation2 + $0xf8] sm:$0xff]
    %v3675 = vld [vmem:[#allocation2 + $0x100] sm:$0x3]
    %v3676 = vld [vmem:[#allocation2 + $0x108] sm:$0xff]
    %v3677 = vld [vmem:[#allocation2 + $0x110] sm:$0xff]
    %v3678 = vld [vmem:[#allocation2 + $0x118] sm:$0x3]
    %v3679 = vld [vmem:[#allocation2 + $0x120] sm:$0xff]
    %v3680 = vld [vmem:[#allocation2 + $0x128] sm:$0xff]
    %v3681 = vld [vmem:[#allocation2 + $0x130] sm:$0x3]
    %v3682 = vld [vmem:[#allocation2 + $0x138] sm:$0xff]
    %v3683 = vld [vmem:[#allocation2 + $0x140] sm:$0xff]
    %v3684 = vld [vmem:[#allocation2 + $0x148] sm:$0x3]
    %v3685 = vld [vmem:[#allocation2 + $0x150] sm:$0xff]
    %v3686 = vld [vmem:[#allocation2 + $0x158] sm:$0xff]
    %v3687 = vld [vmem:[#allocation2 + $0x160] sm:$0x3]
    %v3688 = vld [vmem:[#allocation2 + $0x168] sm:$0xff]
    %v3689 = vld [vmem:[#allocation2 + $0x170] sm:$0xff]
    %v3690 = vld [vmem:[#allocation2 + $0x178] sm:$0x3]
    %v3691 = vld [vmem:[#allocation2 + $0x180] sm:$0xff]
    %v3692 = vld [vmem:[#allocation2 + $0x188] sm:$0xff]
    %v3693 = vld [vmem:[#allocation2 + $0x190] sm:$0x3]
    %v3694 = vld [vmem:[#allocation2 + $0x198] sm:$0xff]
    %v3695 = vld [vmem:[#allocation2 + $0x1a0] sm:$0xff]
    %v3696 = vld [vmem:[#allocation2 + $0x1a8] sm:$0x3]
    %v3697 = vld [vmem:[#allocation2 + $0x1b0] sm:$0xff]
    %v3698 = vld [vmem:[#allocation2 + $0x1b8] sm:$0xff]
    %v3699 = vld [vmem:[#allocation2 + $0x1c0] sm:$0x3]
    %v3700 = vld [vmem:[#allocation2 + $0x1c8] sm:$0xff]
    %v3701 = vld [vmem:[#allocation2 + $0x1d0] sm:$0xff]
    %v3702 = vld [vmem:[#allocation2 + $0x1d8] sm:$0x3]
    %v3703 = vld [vmem:[#allocation2 + $0x1e0] sm:$0xff]
    %v3704 = vld [vmem:[#allocation2 + $0x1e8] sm:$0xff]
    %v3705 = vld [vmem:[#allocation2 + $0x1f0] sm:$0x3]
    %v3706 = vld [vmem:[#allocation2 + $0x1f8] sm:$0xff]
    %v3707 = vld [vmem:[#allocation2 + $0x200] sm:$0xff]
    %v3708 = vld [vmem:[#allocation2 + $0x208] sm:$0x3]
    %v3709 = vld [vmem:[#allocation2 + $0x210] sm:$0xff]
    %v3710 = vld [vmem:[#allocation2 + $0x218] sm:$0xff]
    %v3711 = vld [vmem:[#allocation2 + $0x220] sm:$0x3]
    %v3712 = vld [vmem:[#allocation2 + $0x228] sm:$0xff]
    %v3713 = vld [vmem:[#allocation2 + $0x230] sm:$0xff]
    %v3714 = vld [vmem:[#allocation2 + $0x238] sm:$0x3]
    %v3715 = vld [vmem:[#allocation2 + $0x240] sm:$0xff]
    %v3716 = vld [vmem:[#allocation2 + $0x248] sm:$0xff]
    %v3717 = vld [vmem:[#allocation2 + $0x250] sm:$0x3]
    %v3718 = vld [vmem:[#allocation2 + $0x258] sm:$0xff]
    %v3719 = vld [vmem:[#allocation2 + $0x260] sm:$0xff]
    %v3720 = vld [vmem:[#allocation2 + $0x268] sm:$0x3]
    %v3721 = vld [vmem:[#allocation2 + $0x270] sm:$0xff]
    %v3722 = vld [vmem:[#allocation2 + $0x278] sm:$0xff]
    %v3723 = vld [vmem:[#allocation2 + $0x280] sm:$0x3]
    %v3724 = vld [vmem:[#allocation2 + $0x288] sm:$0xff]
    %v3725 = vld [vmem:[#allocation2 + $0x290] sm:$0xff]
    %v3726 = vld [vmem:[#allocation2 + $0x298] sm:$0x3]
    %v3727 = vld [vmem:[#allocation2 + $0x2a0] sm:$0xff]
    %v3728 = vld [vmem:[#allocation2 + $0x2a8] sm:$0xff]
    %v3729 = vld [vmem:[#allocation2 + $0x2b0] sm:$0x3]
    %v3730 = vld [vmem:[#allocation2 + $0x2b8] sm:$0xff]
    %v3731 = vld [vmem:[#allocation2 + $0x2c0] sm:$0xff]
    %v3732 = vld [vmem:[#allocation2 + $0x2c8] sm:$0x3]
    %v3733 = vld [vmem:[#allocation2 + $0x2d0] sm:$0xff]
    %v3734 = vld [vmem:[#allocation2 + $0x2d8] sm:$0xff]
    %v3735 = vld [vmem:[#allocation2 + $0x2e0] sm:$0x3]
    %v3736 = vld [vmem:[#allocation2 + $0x2e8] sm:$0xff]
    %v3737 = vld [vmem:[#allocation2 + $0x2f0] sm:$0xff]
    %v3738 = vld [vmem:[#allocation2 + $0x2f8] sm:$0x3]
    %v3739 = vld [vmem:[#allocation2 + $0x300] sm:$0xff]
    %v3740 = vld [vmem:[#allocation2 + $0x308] sm:$0xff]
    %v3741 = vld [vmem:[#allocation2 + $0x310] sm:$0x3]
    %v3742 = vld [vmem:[#allocation2 + $0x318] sm:$0xff]
    %v3743 = vld [vmem:[#allocation2 + $0x320] sm:$0xff]
    %v3744 = vld [vmem:[#allocation2 + $0x328] sm:$0x3]
    %v3745 = vld [vmem:[#allocation2 + $0x330] sm:$0xff]
    %v3746 = vld [vmem:[#allocation2 + $0x338] sm:$0xff]
    %v3747 = vld [vmem:[#allocation2 + $0x340] sm:$0x3]
    %v3748 = vld [vmem:[#allocation2 + $0x348] sm:$0xff]
    %v3749 = vld [vmem:[#allocation2 + $0x350] sm:$0xff]
    %v3750 = vld [vmem:[#allocation2 + $0x358] sm:$0x3]
    %v3751 = vpack.c.bf16 %v3644, %v3643
    %v3752 = vpack.c.bf16 %v3647, %v3646
    %v3753 = vpack.c.bf16 %v3650, %v3649
    %v3754 = vpack.c.bf16 %v3653, %v3652
    %v3755 = vpack.c.bf16 %v3656, %v3655
    %v3756 = vpack.c.bf16 %v3659, %v3658
    %v3757 = vpack.c.bf16 %v3662, %v3661
    %v3758 = vpack.c.bf16 %v3665, %v3664
    %v3759 = vpack.c.bf16 %v3668, %v3667
    %v3760 = vpack.c.bf16 %v3671, %v3670
    %v3761 = vpack.c.bf16 %v3674, %v3673
    %v3762 = vpack.c.bf16 %v3677, %v3676
    %v3763 = vpack.c.bf16 %v3680, %v3679
    %v3764 = vpack.c.bf16 %v3683, %v3682
    %v3765 = vpack.c.bf16 %v3686, %v3685
    %v3766 = vpack.c.bf16 %v3689, %v3688
    %v3767 = vpack.c.bf16 %v3698, %v3697
    %v3768 = vpack.c.bf16 %v3701, %v3700
    %v3769 = vpack.c.bf16 %v3704, %v3703
    %v3770 = vpack.c.bf16 %v3707, %v3706
    %v3771 = vpack.c.bf16 %v3710, %v3709
    %v3772 = vpack.c.bf16 %v3713, %v3712
    %v3773 = vpack.c.bf16 %v3716, %v3715
    %v3774 = vpack.c.bf16 %v3719, %v3718
    %v3775 = vpack.c.bf16 %v3722, %v3721
    %v3776 = vpack.c.bf16 %v3725, %v3724
    %v3777 = vpack.c.bf16 %v3728, %v3727
    %v3778 = vpack.c.bf16 %v3731, %v3730
    %v3779 = vpack.c.bf16 %v3734, %v3733
    %v3780 = vpack.c.bf16 %v3737, %v3736
    %v3781 = vpack.c.bf16 %v3740, %v3739
    %v3782 = vpack.c.bf16 %v3743, %v3742
    %v3783 = vpack.c.bf16 %v3645, %v3645
    %v3784 = vpack.c.bf16 %v3648, %v3648
    %v3785 = vpack.c.bf16 %v3651, %v3651
    %v3786 = vpack.c.bf16 %v3654, %v3654
    %v3787 = vpack.c.bf16 %v3657, %v3657
    %v3788 = vpack.c.bf16 %v3660, %v3660
    %v3789 = vpack.c.bf16 %v3663, %v3663
    %v3790 = vpack.c.bf16 %v3666, %v3666
    %v3791 = vpack.c.bf16 %v3669, %v3669
    %v3792 = vpack.c.bf16 %v3672, %v3672
    %v3793 = vpack.c.bf16 %v3675, %v3675
    %v3794 = vpack.c.bf16 %v3678, %v3678
    %v3795 = vpack.c.bf16 %v3681, %v3681
    %v3796 = vpack.c.bf16 %v3684, %v3684
    %v3797 = vpack.c.bf16 %v3687, %v3687
    %v3798 = vpack.c.bf16 %v3690, %v3690
    %v3799 = vpack.c.bf16 %v3699, %v3699
    %v3800 = vpack.c.bf16 %v3702, %v3702
    %v3801 = vpack.c.bf16 %v3705, %v3705
    %v3802 = vpack.c.bf16 %v3708, %v3708
    %v3803 = vpack.c.bf16 %v3711, %v3711
    %v3804 = vpack.c.bf16 %v3714, %v3714
    %v3805 = vpack.c.bf16 %v3717, %v3717
    %v3806 = vpack.c.bf16 %v3720, %v3720
    %v3807 = vpack.c.bf16 %v3723, %v3723
    %v3808 = vpack.c.bf16 %v3726, %v3726
    %v3809 = vpack.c.bf16 %v3729, %v3729
    %v3810 = vpack.c.bf16 %v3732, %v3732
    %v3811 = vpack.c.bf16 %v3735, %v3735
    %v3812 = vpack.c.bf16 %v3738, %v3738
    %v3813 = vpack.c.bf16 %v3741, %v3741
    %v3814 = vpack.c.bf16 %v3744, %v3744
    %v3815 = vpack.c.bf16 %v3692, %v3691
    %v3816 = vpack.c.bf16 %v3746, %v3745
    %v3817 = vpack.c.bf16 %v3693, %v3693
    %v3818 = vpack.c.bf16 %v3747, %v3747
    %v3819 = vpack.c.bf16 %v3695, %v3694
    %v3820 = vpack.c.bf16 %v3749, %v3748
    %v3821 = vpack.c.bf16 %v3696, %v3696
    %v3822 = vpack.c.bf16 %v3750, %v3750
    %v3824 = vshrl.u32 %v3751, 16
    %v3826 = vshll.u32 %v3751, 16
    %v3828 = vrot.slane %v3826, 1
    %v3829 = vor.u32 %v3824, %v3828
    %v3831 = vshll.u32 %v3783, 16
    %v3833 = vrot.slane %v3831, 1
    %v3834 = vsel %vm455, %v3829, %v3833
    %v3836 = vshrl.u32 %v3752, 16
    %v3838 = vshll.u32 %v3752, 16
    %v3840 = vrot.slane %v3838, 1
    %v3841 = vor.u32 %v3836, %v3840
    %v3843 = vshll.u32 %v3784, 16
    %v3845 = vrot.slane %v3843, 1
    %v3846 = vsel %vm455, %v3841, %v3845
    %v3848 = vshrl.u32 %v3753, 16
    %v3850 = vshll.u32 %v3753, 16
    %v3852 = vrot.slane %v3850, 1
    %v3853 = vor.u32 %v3848, %v3852
    %v3855 = vshll.u32 %v3785, 16
    %v3857 = vrot.slane %v3855, 1
    %v3858 = vsel %vm455, %v3853, %v3857
    %v3860 = vshrl.u32 %v3754, 16
    %v3862 = vshll.u32 %v3754, 16
    %v3864 = vrot.slane %v3862, 1
    %v3865 = vor.u32 %v3860, %v3864
    %v3867 = vshll.u32 %v3786, 16
    %v3869 = vrot.slane %v3867, 1
    %v3870 = vsel %vm455, %v3865, %v3869
    %v3872 = vshrl.u32 %v3755, 16
    %v3874 = vshll.u32 %v3755, 16
    %v3876 = vrot.slane %v3874, 1
    %v3877 = vor.u32 %v3872, %v3876
    %v3879 = vshll.u32 %v3787, 16
    %v3881 = vrot.slane %v3879, 1
    %v3882 = vsel %vm455, %v3877, %v3881
    %v3884 = vshrl.u32 %v3756, 16
    %v3886 = vshll.u32 %v3756, 16
    %v3888 = vrot.slane %v3886, 1
    %v3889 = vor.u32 %v3884, %v3888
    %v3891 = vshll.u32 %v3788, 16
    %v3893 = vrot.slane %v3891, 1
    %v3894 = vsel %vm455, %v3889, %v3893
    %v3896 = vshrl.u32 %v3757, 16
    %v3898 = vshll.u32 %v3757, 16
    %v3900 = vrot.slane %v3898, 1
    %v3901 = vor.u32 %v3896, %v3900
    %v3903 = vshll.u32 %v3789, 16
    %v3905 = vrot.slane %v3903, 1
    %v3906 = vsel %vm455, %v3901, %v3905
    %v3908 = vshrl.u32 %v3758, 16
    %v3910 = vshll.u32 %v3758, 16
    %v3912 = vrot.slane %v3910, 1
    %v3913 = vor.u32 %v3908, %v3912
    %v3915 = vshll.u32 %v3790, 16
    %v3917 = vrot.slane %v3915, 1
    %v3918 = vsel %vm455, %v3913, %v3917
    %v3920 = vshrl.u32 %v3759, 16
    %v3922 = vshll.u32 %v3759, 16
    %v3924 = vrot.slane %v3922, 1
    %v3925 = vor.u32 %v3920, %v3924
    %v3927 = vshll.u32 %v3791, 16
    %v3929 = vrot.slane %v3927, 1
    %v3930 = vsel %vm455, %v3925, %v3929
    %v3932 = vshrl.u32 %v3760, 16
    %v3934 = vshll.u32 %v3760, 16
    %v3936 = vrot.slane %v3934, 1
    %v3937 = vor.u32 %v3932, %v3936
    %v3939 = vshll.u32 %v3792, 16
    %v3941 = vrot.slane %v3939, 1
    %v3942 = vsel %vm455, %v3937, %v3941
    %v3944 = vshrl.u32 %v3761, 16
    %v3946 = vshll.u32 %v3761, 16
    %v3948 = vrot.slane %v3946, 1
    %v3949 = vor.u32 %v3944, %v3948
    %v3951 = vshll.u32 %v3793, 16
    %v3953 = vrot.slane %v3951, 1
    %v3954 = vsel %vm455, %v3949, %v3953
    %v3956 = vshrl.u32 %v3762, 16
    %v3958 = vshll.u32 %v3762, 16
    %v3960 = vrot.slane %v3958, 1
    %v3961 = vor.u32 %v3956, %v3960
    %v3963 = vshll.u32 %v3794, 16
    %v3965 = vrot.slane %v3963, 1
    %v3966 = vsel %vm455, %v3961, %v3965
    %v3968 = vshrl.u32 %v3763, 16
    %v3970 = vshll.u32 %v3763, 16
    %v3972 = vrot.slane %v3970, 1
    %v3973 = vor.u32 %v3968, %v3972
    %v3975 = vshll.u32 %v3795, 16
    %v3977 = vrot.slane %v3975, 1
    %v3978 = vsel %vm455, %v3973, %v3977
    %v3980 = vshrl.u32 %v3764, 16
    %v3982 = vshll.u32 %v3764, 16
    %v3984 = vrot.slane %v3982, 1
    %v3985 = vor.u32 %v3980, %v3984
    %v3987 = vshll.u32 %v3796, 16
    %v3989 = vrot.slane %v3987, 1
    %v3990 = vsel %vm455, %v3985, %v3989
    %v3992 = vshrl.u32 %v3765, 16
    %v3994 = vshll.u32 %v3765, 16
    %v3996 = vrot.slane %v3994, 1
    %v3997 = vor.u32 %v3992, %v3996
    %v3999 = vshll.u32 %v3797, 16
    %v4001 = vrot.slane %v3999, 1
    %v4002 = vsel %vm455, %v3997, %v4001
    %v4004 = vshrl.u32 %v3766, 16
    %v4006 = vshll.u32 %v3766, 16
    %v4008 = vrot.slane %v4006, 1
    %v4009 = vor.u32 %v4004, %v4008
    %v4011 = vshll.u32 %v3798, 16
    %v4013 = vrot.slane %v4011, 1
    %v4014 = vsel %vm455, %v4009, %v4013
    %v4016 = vshrl.u32 %v3767, 16
    %v4018 = vshll.u32 %v3767, 16
    %v4020 = vrot.slane %v4018, 1
    %v4021 = vor.u32 %v4016, %v4020
    %v4023 = vshll.u32 %v3799, 16
    %v4025 = vrot.slane %v4023, 1
    %v4026 = vsel %vm455, %v4021, %v4025
    %v4028 = vshrl.u32 %v3768, 16
    %v4030 = vshll.u32 %v3768, 16
    %v4032 = vrot.slane %v4030, 1
    %v4033 = vor.u32 %v4028, %v4032
    %v4035 = vshll.u32 %v3800, 16
    %v4037 = vrot.slane %v4035, 1
    %v4038 = vsel %vm455, %v4033, %v4037
    %v4040 = vshrl.u32 %v3769, 16
    %v4042 = vshll.u32 %v3769, 16
    %v4044 = vrot.slane %v4042, 1
    %v4045 = vor.u32 %v4040, %v4044
    %v4047 = vshll.u32 %v3801, 16
    %v4049 = vrot.slane %v4047, 1
    %v4050 = vsel %vm455, %v4045, %v4049
    %v4052 = vshrl.u32 %v3770, 16
    %v4054 = vshll.u32 %v3770, 16
    %v4056 = vrot.slane %v4054, 1
    %v4057 = vor.u32 %v4052, %v4056
    %v4059 = vshll.u32 %v3802, 16
    %v4061 = vrot.slane %v4059, 1
    %v4062 = vsel %vm455, %v4057, %v4061
    %v4064 = vshrl.u32 %v3771, 16
    %v4066 = vshll.u32 %v3771, 16
    %v4068 = vrot.slane %v4066, 1
    %v4069 = vor.u32 %v4064, %v4068
    %v4071 = vshll.u32 %v3803, 16
    %v4073 = vrot.slane %v4071, 1
    %v4074 = vsel %vm455, %v4069, %v4073
    %v4076 = vshrl.u32 %v3772, 16
    %v4078 = vshll.u32 %v3772, 16
    %v4080 = vrot.slane %v4078, 1
    %v4081 = vor.u32 %v4076, %v4080
    %v4083 = vshll.u32 %v3804, 16
    %v4085 = vrot.slane %v4083, 1
    %v4086 = vsel %vm455, %v4081, %v4085
    %v4088 = vshrl.u32 %v3773, 16
    %v4090 = vshll.u32 %v3773, 16
    %v4092 = vrot.slane %v4090, 1
    %v4093 = vor.u32 %v4088, %v4092
    %v4095 = vshll.u32 %v3805, 16
    %v4097 = vrot.slane %v4095, 1
    %v4098 = vsel %vm455, %v4093, %v4097
    %v4100 = vshrl.u32 %v3774, 16
    %v4102 = vshll.u32 %v3774, 16
    %v4104 = vrot.slane %v4102, 1
    %v4105 = vor.u32 %v4100, %v4104
    %v4107 = vshll.u32 %v3806, 16
    %v4109 = vrot.slane %v4107, 1
    %v4110 = vsel %vm455, %v4105, %v4109
    %v4112 = vshrl.u32 %v3775, 16
    %v4114 = vshll.u32 %v3775, 16
    %v4116 = vrot.slane %v4114, 1
    %v4117 = vor.u32 %v4112, %v4116
    %v4119 = vshll.u32 %v3807, 16
    %v4121 = vrot.slane %v4119, 1
    %v4122 = vsel %vm455, %v4117, %v4121
    %v4124 = vshrl.u32 %v3776, 16
    %v4126 = vshll.u32 %v3776, 16
    %v4128 = vrot.slane %v4126, 1
    %v4129 = vor.u32 %v4124, %v4128
    %v4131 = vshll.u32 %v3808, 16
    %v4133 = vrot.slane %v4131, 1
    %v4134 = vsel %vm455, %v4129, %v4133
    %v4136 = vshrl.u32 %v3777, 16
    %v4138 = vshll.u32 %v3777, 16
    %v4140 = vrot.slane %v4138, 1
    %v4141 = vor.u32 %v4136, %v4140
    %v4143 = vshll.u32 %v3809, 16
    %v4145 = vrot.slane %v4143, 1
    %v4146 = vsel %vm455, %v4141, %v4145
    %v4148 = vshrl.u32 %v3778, 16
    %v4150 = vshll.u32 %v3778, 16
    %v4152 = vrot.slane %v4150, 1
    %v4153 = vor.u32 %v4148, %v4152
    %v4155 = vshll.u32 %v3810, 16
    %v4157 = vrot.slane %v4155, 1
    %v4158 = vsel %vm455, %v4153, %v4157
    %v4160 = vshrl.u32 %v3779, 16
    %v4162 = vshll.u32 %v3779, 16
    %v4164 = vrot.slane %v4162, 1
    %v4165 = vor.u32 %v4160, %v4164
    %v4167 = vshll.u32 %v3811, 16
    %v4169 = vrot.slane %v4167, 1
    %v4170 = vsel %vm455, %v4165, %v4169
    %v4172 = vshrl.u32 %v3780, 16
    %v4174 = vshll.u32 %v3780, 16
    %v4176 = vrot.slane %v4174, 1
    %v4177 = vor.u32 %v4172, %v4176
    %v4179 = vshll.u32 %v3812, 16
    %v4181 = vrot.slane %v4179, 1
    %v4182 = vsel %vm455, %v4177, %v4181
    %v4184 = vshrl.u32 %v3781, 16
    %v4186 = vshll.u32 %v3781, 16
    %v4188 = vrot.slane %v4186, 1
    %v4189 = vor.u32 %v4184, %v4188
    %v4191 = vshll.u32 %v3813, 16
    %v4193 = vrot.slane %v4191, 1
    %v4194 = vsel %vm455, %v4189, %v4193
    %v4196 = vshrl.u32 %v3782, 16
    %v4198 = vshll.u32 %v3782, 16
    %v4200 = vrot.slane %v4198, 1
    %v4201 = vor.u32 %v4196, %v4200
    %v4203 = vshll.u32 %v3814, 16
    %v4205 = vrot.slane %v4203, 1
    %v4206 = vsel %vm455, %v4201, %v4205
    %v4303 = vrot.slane %v3751, 1
    %v4304 = vrot.slane %v3783, 1
    %v4305 = vsel %vm936, %v4303, %v4304
    %v4306 = vrot.slane %v3752, 1
    %v4307 = vrot.slane %v3784, 1
    %v4308 = vsel %vm936, %v4306, %v4307
    %v4309 = vrot.slane %v3753, 1
    %v4310 = vrot.slane %v3785, 1
    %v4311 = vsel %vm936, %v4309, %v4310
    %v4312 = vrot.slane %v3754, 1
    %v4313 = vrot.slane %v3786, 1
    %v4314 = vsel %vm936, %v4312, %v4313
    %v4315 = vrot.slane %v3755, 1
    %v4316 = vrot.slane %v3787, 1
    %v4317 = vsel %vm936, %v4315, %v4316
    %v4318 = vrot.slane %v3756, 1
    %v4319 = vrot.slane %v3788, 1
    %v4320 = vsel %vm936, %v4318, %v4319
    %v4321 = vrot.slane %v3757, 1
    %v4322 = vrot.slane %v3789, 1
    %v4323 = vsel %vm936, %v4321, %v4322
    %v4324 = vrot.slane %v3758, 1
    %v4325 = vrot.slane %v3790, 1
    %v4326 = vsel %vm936, %v4324, %v4325
    %v4327 = vrot.slane %v3759, 1
    %v4328 = vrot.slane %v3791, 1
    %v4329 = vsel %vm936, %v4327, %v4328
    %v4330 = vrot.slane %v3760, 1
    %v4331 = vrot.slane %v3792, 1
    %v4332 = vsel %vm936, %v4330, %v4331
    %v4333 = vrot.slane %v3761, 1
    %v4334 = vrot.slane %v3793, 1
    %v4335 = vsel %vm936, %v4333, %v4334
    %v4336 = vrot.slane %v3762, 1
    %v4337 = vrot.slane %v3794, 1
    %v4338 = vsel %vm936, %v4336, %v4337
    %v4339 = vrot.slane %v3763, 1
    %v4340 = vrot.slane %v3795, 1
    %v4341 = vsel %vm936, %v4339, %v4340
    %v4342 = vrot.slane %v3764, 1
    %v4343 = vrot.slane %v3796, 1
    %v4344 = vsel %vm936, %v4342, %v4343
    %v4345 = vrot.slane %v3765, 1
    %v4346 = vrot.slane %v3797, 1
    %v4347 = vsel %vm936, %v4345, %v4346
    %v4348 = vrot.slane %v3766, 1
    %v4349 = vrot.slane %v3798, 1
    %v4350 = vsel %vm936, %v4348, %v4349
    %v4351 = vrot.slane %v3767, 1
    %v4352 = vrot.slane %v3799, 1
    %v4353 = vsel %vm936, %v4351, %v4352
    %v4354 = vrot.slane %v3768, 1
    %v4355 = vrot.slane %v3800, 1
    %v4356 = vsel %vm936, %v4354, %v4355
    %v4357 = vrot.slane %v3769, 1
    %v4358 = vrot.slane %v3801, 1
    %v4359 = vsel %vm936, %v4357, %v4358
    %v4360 = vrot.slane %v3770, 1
    %v4361 = vrot.slane %v3802, 1
    %v4362 = vsel %vm936, %v4360, %v4361
    %v4363 = vrot.slane %v3771, 1
    %v4364 = vrot.slane %v3803, 1
    %v4365 = vsel %vm936, %v4363, %v4364
    %v4366 = vrot.slane %v3772, 1
    %v4367 = vrot.slane %v3804, 1
    %v4368 = vsel %vm936, %v4366, %v4367
    %v4369 = vrot.slane %v3773, 1
    %v4370 = vrot.slane %v3805, 1
    %v4371 = vsel %vm936, %v4369, %v4370
    %v4372 = vrot.slane %v3774, 1
    %v4373 = vrot.slane %v3806, 1
    %v4374 = vsel %vm936, %v4372, %v4373
    %v4375 = vrot.slane %v3775, 1
    %v4376 = vrot.slane %v3807, 1
    %v4377 = vsel %vm936, %v4375, %v4376
    %v4378 = vrot.slane %v3776, 1
    %v4379 = vrot.slane %v3808, 1
    %v4380 = vsel %vm936, %v4378, %v4379
    %v4381 = vrot.slane %v3777, 1
    %v4382 = vrot.slane %v3809, 1
    %v4383 = vsel %vm936, %v4381, %v4382
    %v4384 = vrot.slane %v3778, 1
    %v4385 = vrot.slane %v3810, 1
    %v4386 = vsel %vm936, %v4384, %v4385
    %v4387 = vrot.slane %v3779, 1
    %v4388 = vrot.slane %v3811, 1
    %v4389 = vsel %vm936, %v4387, %v4388
    %v4390 = vrot.slane %v3780, 1
    %v4391 = vrot.slane %v3812, 1
    %v4392 = vsel %vm936, %v4390, %v4391
    %v4393 = vrot.slane %v3781, 1
    %v4394 = vrot.slane %v3813, 1
    %v4395 = vsel %vm936, %v4393, %v4394
    %v4396 = vrot.slane %v3782, 1
    %v4397 = vrot.slane %v3814, 1
    %v4398 = vsel %vm936, %v4396, %v4397
    %v4432 = vshrl.u32 %v3815, 16
    %v4434 = vshll.u32 %v3815, 16
    %v4436 = vrot.slane %v4434, 1
    %v4437 = vor.u32 %v4432, %v4436
    %v4439 = vshll.u32 %v3817, 16
    %v4441 = vrot.slane %v4439, 1
    %v4442 = vsel %vm455, %v4437, %v4441
    %v4444 = vshrl.u32 %v3816, 16
    %v4446 = vshll.u32 %v3816, 16
    %v4448 = vrot.slane %v4446, 1
    %v4449 = vor.u32 %v4444, %v4448
    %v4451 = vshll.u32 %v3818, 16
    %v4453 = vrot.slane %v4451, 1
    %v4454 = vsel %vm455, %v4449, %v4453
    %v4461 = vrot.slane %v3815, 1
    %v4462 = vrot.slane %v3817, 1
    %v4463 = vsel %vm936, %v4461, %v4462
    %v4464 = vrot.slane %v3816, 1
    %v4465 = vrot.slane %v3818, 1
    %v4466 = vsel %vm936, %v4464, %v4465
    %v4470 = vshrl.u32 %v3819, 16
    %v4472 = vshll.u32 %v3819, 16
    %v4474 = vrot.slane %v4472, 1
    %v4475 = vor.u32 %v4470, %v4474
    %v4477 = vshll.u32 %v3821, 16
    %v4479 = vrot.slane %v4477, 1
    %v4480 = vsel %vm455, %v4475, %v4479
    %v4482 = vshrl.u32 %v3820, 16
    %v4484 = vshll.u32 %v3820, 16
    %v4486 = vrot.slane %v4484, 1
    %v4487 = vor.u32 %v4482, %v4486
    %v4489 = vshll.u32 %v3822, 16
    %v4491 = vrot.slane %v4489, 1
    %v4492 = vsel %vm455, %v4487, %v4491
    %v4499 = vrot.slane %v3819, 1
    %v4500 = vrot.slane %v3821, 1
    %v4501 = vsel %vm936, %v4499, %v4500
    %v4502 = vrot.slane %v3820, 1
    %v4503 = vrot.slane %v3822, 1
    %v4504 = vsel %vm936, %v4502, %v4503
    %v4507 = vld [vmem:[#allocation8] sm:$0xf]
    %v4508 = vld [vmem:[#allocation8 + $0x4] sm:$0xf]
    %v4509 = vld [vmem:[#allocation8 + $0x8] sm:$0xf]
    %v4510 = vld [vmem:[#allocation8 + $0xc] sm:$0xf]
    %v4511 = vld [vmem:[#allocation8 + $0x10] sm:$0xf]
    %v4512 = vld [vmem:[#allocation8 + $0x14] sm:$0xf]
    %v4513 = vld [vmem:[#allocation8 + $0x18] sm:$0xf]
    %v4514 = vld [vmem:[#allocation8 + $0x1c] sm:$0xf]
    %v4515 = vld [vmem:[#allocation8 + $0x20] sm:$0xf]
    %v4516 = vld [vmem:[#allocation8 + $0x24] sm:$0xf]
    %v4517 = vld [vmem:[#allocation8 + $0x28] sm:$0xf]
    %v4518 = vld [vmem:[#allocation8 + $0x2c] sm:$0xf]
    %v4519 = vld [vmem:[#allocation8 + $0x30] sm:$0xf]
    %v4520 = vld [vmem:[#allocation8 + $0x34] sm:$0xf]
    %v4521 = vld [vmem:[#allocation8 + $0x38] sm:$0xf]
    %v4522 = vld [vmem:[#allocation8 + $0x3c] sm:$0xf]
    %v4523 = vld [vmem:[#allocation8 + $0x40] sm:$0xf]
    %v4524 = vld [vmem:[#allocation8 + $0x44] sm:$0xf]
    %v4525 = vld [vmem:[#allocation8 + $0x48] sm:$0xf]
    %v4526 = vld [vmem:[#allocation8 + $0x4c] sm:$0xf]
    %v4527 = vld [vmem:[#allocation8 + $0x50] sm:$0xf]
    %v4528 = vld [vmem:[#allocation8 + $0x54] sm:$0xf]
    %v4529 = vld [vmem:[#allocation8 + $0x58] sm:$0xf]
    %v4530 = vld [vmem:[#allocation8 + $0x5c] sm:$0xf]
    %v4531 = vld [vmem:[#allocation8 + $0x60] sm:$0xf]
    %v4532 = vld [vmem:[#allocation8 + $0x64] sm:$0xf]
    %v4533 = vld [vmem:[#allocation8 + $0x68] sm:$0xf]
    %v4534 = vld [vmem:[#allocation8 + $0x6c] sm:$0xf]
    %v4535 = vld [vmem:[#allocation8 + $0x70] sm:$0xf]
    %v4536 = vld [vmem:[#allocation8 + $0x74] sm:$0xf]
    %v4537 = vld [vmem:[#allocation8 + $0x78] sm:$0xf]
    %v4538 = vld [vmem:[#allocation8 + $0x7c] sm:$0xf]
    %v4539 = vld [vmem:[#allocation8 + $0x80] sm:$0xf]
    %v4540 = vld [vmem:[#allocation8 + $0x84] sm:$0xf]
    %v4541 = vld [vmem:[#allocation8 + $0x88] sm:$0xf]
    %v4542 = vld [vmem:[#allocation8 + $0x8c] sm:$0xf]
    %v4543 = vld [vmem:[#allocation8 + $0x90] sm:$0xf]
    %v4544 = vld [vmem:[#allocation8 + $0x94] sm:$0xf]
    %v4545 = vld [vmem:[#allocation8 + $0x98] sm:$0xf]
    %v4546 = vld [vmem:[#allocation8 + $0x9c] sm:$0xf]
    %v4547 = vld [vmem:[#allocation8 + $0xa0] sm:$0xf]
    %v4548 = vld [vmem:[#allocation8 + $0xa4] sm:$0xf]
    %v4549 = vld [vmem:[#allocation8 + $0xa8] sm:$0xf]
    %v4550 = vld [vmem:[#allocation8 + $0xac] sm:$0xf]
    %v4551 = vld [vmem:[#allocation8 + $0xb0] sm:$0xf]
    %v4552 = vld [vmem:[#allocation8 + $0xb4] sm:$0xf]
    %v4553 = vld [vmem:[#allocation8 + $0xb8] sm:$0xf]
    %v4554 = vld [vmem:[#allocation8 + $0xbc] sm:$0xf]
    %v4555 = vld [vmem:[#allocation8 + $0xc0] sm:$0xf]
    %v4556 = vld [vmem:[#allocation8 + $0xc4] sm:$0xf]
    %v4557 = vld [vmem:[#allocation8 + $0xc8] sm:$0xf]
    %v4558 = vld [vmem:[#allocation8 + $0xcc] sm:$0xf]
    %v4559 = vld [vmem:[#allocation8 + $0xd0] sm:$0xf]
    %v4560 = vld [vmem:[#allocation8 + $0xd4] sm:$0xf]
    %v4561 = vld [vmem:[#allocation8 + $0xd8] sm:$0xf]
    %v4562 = vld [vmem:[#allocation8 + $0xdc] sm:$0xf]
    %v4563 = vld [vmem:[#allocation8 + $0xe0] sm:$0xf]
    %v4564 = vld [vmem:[#allocation8 + $0xe4] sm:$0xf]
    %v4565 = vld [vmem:[#allocation8 + $0xe8] sm:$0xf]
    %v4566 = vld [vmem:[#allocation8 + $0xec] sm:$0xf]
    %v4567 = vld [vmem:[#allocation8 + $0xf0] sm:$0xf]
    %v4568 = vld [vmem:[#allocation8 + $0xf4] sm:$0xf]
    %v4569 = vld [vmem:[#allocation8 + $0xf8] sm:$0xf]
    %v4570 = vld [vmem:[#allocation8 + $0xfc] sm:$0xf]
    %v4571 = vld [vmem:[#allocation8 + $0x100] sm:$0xf]
    %v4572 = vld [vmem:[#allocation8 + $0x104] sm:$0xf]
    %v4573 = vld [vmem:[#allocation8 + $0x108] sm:$0xf]
    %v4574 = vld [vmem:[#allocation8 + $0x10c] sm:$0xf]
    %v4575 = vld [vmem:[#allocation8 + $0x110] sm:$0xf]
    %v4576 = vld [vmem:[#allocation8 + $0x114] sm:$0xf]
    %v4577 = vld [vmem:[#allocation8 + $0x118] sm:$0xf]
    %v4578 = vld [vmem:[#allocation8 + $0x11c] sm:$0xf]
    %v4579 = vld [vmem:[#allocation8 + $0x120] sm:$0xf]
    %v4580 = vld [vmem:[#allocation8 + $0x124] sm:$0xf]
    %v4581 = vld [vmem:[#allocation8 + $0x128] sm:$0xf]
    %v4582 = vld [vmem:[#allocation8 + $0x12c] sm:$0xf]
    %v4583 = vld [vmem:[#allocation8 + $0x130] sm:$0xf]
    %v4584 = vld [vmem:[#allocation8 + $0x134] sm:$0xf]
    %v4585 = vld [vmem:[#allocation8 + $0x138] sm:$0xf]
    %v4586 = vld [vmem:[#allocation8 + $0x13c] sm:$0xf]
    %v4587 = vld [vmem:[#allocation8 + $0x140] sm:$0xf]
    %v4588 = vld [vmem:[#allocation8 + $0x144] sm:$0xf]
    %v4589 = vld [vmem:[#allocation8 + $0x148] sm:$0xf]
    %v4590 = vld [vmem:[#allocation8 + $0x14c] sm:$0xf]
    %v4591 = vld [vmem:[#allocation8 + $0x150] sm:$0xf]
    %v4592 = vld [vmem:[#allocation8 + $0x154] sm:$0xf]
    %v4593 = vld [vmem:[#allocation8 + $0x158] sm:$0xf]
    %v4594 = vld [vmem:[#allocation8 + $0x15c] sm:$0xf]
    %v4595 = vld [vmem:[#allocation8 + $0x160] sm:$0xf]
    %v4596 = vld [vmem:[#allocation8 + $0x164] sm:$0xf]
    %v4597 = vld [vmem:[#allocation8 + $0x168] sm:$0xf]
    %v4598 = vld [vmem:[#allocation8 + $0x16c] sm:$0xf]
    %v4599 = vld [vmem:[#allocation8 + $0x170] sm:$0xf]
    %v4600 = vld [vmem:[#allocation8 + $0x174] sm:$0xf]
    %v4601 = vld [vmem:[#allocation8 + $0x178] sm:$0xf]
    %v4602 = vld [vmem:[#allocation8 + $0x17c] sm:$0xf]
    %v4603 = vld [vmem:[#allocation8 + $0x180] sm:$0xf]
    %v4604 = vld [vmem:[#allocation8 + $0x184] sm:$0xf]
    %v4605 = vld [vmem:[#allocation8 + $0x188] sm:$0xf]
    %v4606 = vld [vmem:[#allocation8 + $0x18c] sm:$0xf]
    %v4607 = vld [vmem:[#allocation8 + $0x190] sm:$0xf]
    %v4608 = vld [vmem:[#allocation8 + $0x194] sm:$0xf]
    %v4609 = vld [vmem:[#allocation8 + $0x198] sm:$0xf]
    %v4610 = vld [vmem:[#allocation8 + $0x19c] sm:$0xf]
    %v4611 = vld [vmem:[#allocation8 + $0x1a0] sm:$0xf]
    %v4612 = vld [vmem:[#allocation8 + $0x1a4] sm:$0xf]
    %v4613 = vld [vmem:[#allocation8 + $0x1a8] sm:$0xf]
    %v4614 = vld [vmem:[#allocation8 + $0x1ac] sm:$0xf]
    %v4615 = vld [vmem:[#allocation8 + $0x1b0] sm:$0xf]
    %v4616 = vld [vmem:[#allocation8 + $0x1b4] sm:$0xf]
    %v4617 = vld [vmem:[#allocation8 + $0x1b8] sm:$0xf]
    %v4618 = vld [vmem:[#allocation8 + $0x1bc] sm:$0xf]
    %v4619 = vld [vmem:[#allocation8 + $0x1c0] sm:$0xf]
    %v4620 = vld [vmem:[#allocation8 + $0x1c4] sm:$0xf]
    %v4621 = vld [vmem:[#allocation8 + $0x1c8] sm:$0xf]
    %v4622 = vld [vmem:[#allocation8 + $0x1cc] sm:$0xf]
    %v4623 = vld [vmem:[#allocation8 + $0x1d0] sm:$0xf]
    %v4624 = vld [vmem:[#allocation8 + $0x1d4] sm:$0xf]
    %v4625 = vld [vmem:[#allocation8 + $0x1d8] sm:$0xf]
    %v4626 = vld [vmem:[#allocation8 + $0x1dc] sm:$0xf]
    %v4627 = vld [vmem:[#allocation8 + $0x1e0] sm:$0xf]
    %v4628 = vld [vmem:[#allocation8 + $0x1e4] sm:$0xf]
    %v4629 = vld [vmem:[#allocation8 + $0x1e8] sm:$0xf]
    %v4630 = vld [vmem:[#allocation8 + $0x1ec] sm:$0xf]
    %v4631 = vld [vmem:[#allocation8 + $0x1f0] sm:$0xf]
    %v4632 = vld [vmem:[#allocation8 + $0x1f4] sm:$0xf]
    %v4633 = vld [vmem:[#allocation8 + $0x1f8] sm:$0xf]
    %v4634 = vld [vmem:[#allocation8 + $0x1fc] sm:$0xf]
    %v4635 = vld [vmem:[#allocation8 + $0x200] sm:$0xf]
    %v4636 = vld [vmem:[#allocation8 + $0x204] sm:$0xf]
    %v4637 = vld [vmem:[#allocation8 + $0x208] sm:$0xf]
    %v4638 = vld [vmem:[#allocation8 + $0x20c] sm:$0xf]
    %v4639 = vld [vmem:[#allocation8 + $0x210] sm:$0xf]
    %v4640 = vld [vmem:[#allocation8 + $0x214] sm:$0xf]
    %v4641 = vld [vmem:[#allocation8 + $0x218] sm:$0xf]
    %v4642 = vld [vmem:[#allocation8 + $0x21c] sm:$0xf]
    %v4643 = vld [vmem:[#allocation8 + $0x220] sm:$0xf]
    %v4644 = vld [vmem:[#allocation8 + $0x224] sm:$0xf]
    %v4645 = vld [vmem:[#allocation8 + $0x228] sm:$0xf]
    %v4646 = vld [vmem:[#allocation8 + $0x22c] sm:$0xf]
    %v4647 = vld [vmem:[#allocation8 + $0x230] sm:$0xf]
    %v4648 = vld [vmem:[#allocation8 + $0x234] sm:$0xf]
    %v4649 = vld [vmem:[#allocation8 + $0x238] sm:$0xf]
    %v4650 = vld [vmem:[#allocation8 + $0x23c] sm:$0xf]
    %v4795 = vunpack.c.l.b16 %v4507
    %v4796 = vunpack.c.l.b16 %v4508
    %v4797 = vunpack.c.l.b16 %v4509
    %v4798 = vunpack.c.l.b16 %v4510
    %v4799 = vunpack.c.l.b16 %v4511
    %v4800 = vunpack.c.l.b16 %v4512
    %v4801 = vunpack.c.l.b16 %v4513
    %v4802 = vunpack.c.l.b16 %v4514
    %v4803 = vunpack.c.l.b16 %v4515
    %v4804 = vunpack.c.l.b16 %v4516
    %v4805 = vunpack.c.l.b16 %v4517
    %v4806 = vunpack.c.l.b16 %v4518
    %v4807 = vunpack.c.l.b16 %v4519
    %v4808 = vunpack.c.l.b16 %v4520
    %v4809 = vunpack.c.l.b16 %v4521
    %v4810 = vunpack.c.l.b16 %v4522
    %v4811 = vunpack.c.l.b16 %v4523
    %v4812 = vunpack.c.l.b16 %v4524
    %v4813 = vunpack.c.l.b16 %v4525
    %v4814 = vunpack.c.l.b16 %v4526
    %v4815 = vunpack.c.l.b16 %v4527
    %v4816 = vunpack.c.l.b16 %v4528
    %v4817 = vunpack.c.l.b16 %v4529
    %v4818 = vunpack.c.l.b16 %v4530
    %v4819 = vunpack.c.l.b16 %v4531
    %v4820 = vunpack.c.l.b16 %v4532
    %v4821 = vunpack.c.l.b16 %v4533
    %v4822 = vunpack.c.l.b16 %v4534
    %v4823 = vunpack.c.l.b16 %v4535
    %v4824 = vunpack.c.l.b16 %v4536
    %v4825 = vunpack.c.l.b16 %v4537
    %v4826 = vunpack.c.l.b16 %v4538
    %v4827 = vunpack.c.l.b16 %v4539
    %v4828 = vunpack.c.l.b16 %v4540
    %v4829 = vunpack.c.l.b16 %v4541
    %v4830 = vunpack.c.l.b16 %v4542
    %v4831 = vunpack.c.l.b16 %v4543
    %v4832 = vunpack.c.l.b16 %v4544
    %v4833 = vunpack.c.l.b16 %v4545
    %v4834 = vunpack.c.l.b16 %v4546
    %v4835 = vunpack.c.l.b16 %v4547
    %v4836 = vunpack.c.l.b16 %v4548
    %v4837 = vunpack.c.l.b16 %v4549
    %v4838 = vunpack.c.l.b16 %v4550
    %v4839 = vunpack.c.l.b16 %v4551
    %v4840 = vunpack.c.l.b16 %v4552
    %v4841 = vunpack.c.l.b16 %v4553
    %v4842 = vunpack.c.l.b16 %v4554
    %v4843 = vunpack.c.l.b16 %v4555
    %v4844 = vunpack.c.l.b16 %v4556
    %v4845 = vunpack.c.l.b16 %v4557
    %v4846 = vunpack.c.l.b16 %v4558
    %v4847 = vunpack.c.l.b16 %v4559
    %v4848 = vunpack.c.l.b16 %v4560
    %v4849 = vunpack.c.l.b16 %v4561
    %v4850 = vunpack.c.l.b16 %v4562
    %v4851 = vunpack.c.l.b16 %v4563
    %v4852 = vunpack.c.l.b16 %v4564
    %v4853 = vunpack.c.l.b16 %v4565
    %v4854 = vunpack.c.l.b16 %v4566
    %v4855 = vunpack.c.l.b16 %v4567
    %v4856 = vunpack.c.l.b16 %v4568
    %v4857 = vunpack.c.l.b16 %v4569
    %v4858 = vunpack.c.l.b16 %v4570
    %v4859 = vunpack.c.l.b16 %v4571
    %v4860 = vunpack.c.l.b16 %v4572
    %v4861 = vunpack.c.l.b16 %v4573
    %v4862 = vunpack.c.l.b16 %v4574
    %v4863 = vunpack.c.l.b16 %v4575
    %v4864 = vunpack.c.l.b16 %v4576
    %v4865 = vunpack.c.l.b16 %v4577
    %v4866 = vunpack.c.l.b16 %v4578
    %v4867 = vunpack.c.l.b16 %v4579
    %v4868 = vunpack.c.l.b16 %v4580
    %v4869 = vunpack.c.l.b16 %v4581
    %v4870 = vunpack.c.l.b16 %v4582
    %v4871 = vunpack.c.l.b16 %v4583
    %v4872 = vunpack.c.l.b16 %v4584
    %v4873 = vunpack.c.l.b16 %v4585
    %v4874 = vunpack.c.l.b16 %v4586
    %v4875 = vunpack.c.l.b16 %v4587
    %v4876 = vunpack.c.l.b16 %v4588
    %v4877 = vunpack.c.l.b16 %v4589
    %v4878 = vunpack.c.l.b16 %v4590
    %v4879 = vunpack.c.l.b16 %v4591
    %v4880 = vunpack.c.l.b16 %v4592
    %v4881 = vunpack.c.l.b16 %v4593
    %v4882 = vunpack.c.l.b16 %v4594
    %v4883 = vunpack.c.l.b16 %v4595
    %v4884 = vunpack.c.l.b16 %v4596
    %v4885 = vunpack.c.l.b16 %v4597
    %v4886 = vunpack.c.l.b16 %v4598
    %v4887 = vunpack.c.l.b16 %v4599
    %v4888 = vunpack.c.l.b16 %v4600
    %v4889 = vunpack.c.l.b16 %v4601
    %v4890 = vunpack.c.l.b16 %v4602
    %v4891 = vunpack.c.l.b16 %v4603
    %v4892 = vunpack.c.l.b16 %v4604
    %v4893 = vunpack.c.l.b16 %v4605
    %v4894 = vunpack.c.l.b16 %v4606
    %v4895 = vunpack.c.l.b16 %v4607
    %v4896 = vunpack.c.l.b16 %v4608
    %v4897 = vunpack.c.l.b16 %v4609
    %v4898 = vunpack.c.l.b16 %v4610
    %v4899 = vunpack.c.l.b16 %v4611
    %v4900 = vunpack.c.l.b16 %v4612
    %v4901 = vunpack.c.l.b16 %v4613
    %v4902 = vunpack.c.l.b16 %v4614
    %v4903 = vunpack.c.l.b16 %v4615
    %v4904 = vunpack.c.l.b16 %v4616
    %v4905 = vunpack.c.l.b16 %v4617
    %v4906 = vunpack.c.l.b16 %v4618
    %v4907 = vunpack.c.l.b16 %v4619
    %v4908 = vunpack.c.l.b16 %v4620
    %v4909 = vunpack.c.l.b16 %v4621
    %v4910 = vunpack.c.l.b16 %v4622
    %v4911 = vunpack.c.l.b16 %v4623
    %v4912 = vunpack.c.l.b16 %v4624
    %v4913 = vunpack.c.l.b16 %v4625
    %v4914 = vunpack.c.l.b16 %v4626
    %v4915 = vunpack.c.l.b16 %v4627
    %v4916 = vunpack.c.l.b16 %v4628
    %v4917 = vunpack.c.l.b16 %v4629
    %v4918 = vunpack.c.l.b16 %v4630
    %v4919 = vunpack.c.l.b16 %v4631
    %v4920 = vunpack.c.l.b16 %v4632
    %v4921 = vunpack.c.l.b16 %v4633
    %v4922 = vunpack.c.l.b16 %v4634
    %v4923 = vunpack.c.l.b16 %v4635
    %v4924 = vunpack.c.l.b16 %v4636
    %v4925 = vunpack.c.l.b16 %v4637
    %v4926 = vunpack.c.l.b16 %v4638
    %v4927 = vunpack.c.l.b16 %v4639
    %v4928 = vunpack.c.l.b16 %v4640
    %v4929 = vunpack.c.l.b16 %v4641
    %v4930 = vunpack.c.l.b16 %v4642
    %v4931 = vunpack.c.l.b16 %v4643
    %v4932 = vunpack.c.l.b16 %v4644
    %v4933 = vunpack.c.l.b16 %v4645
    %v4934 = vunpack.c.l.b16 %v4646
    %v4935 = vunpack.c.l.b16 %v4647
    %v4936 = vunpack.c.l.b16 %v4648
    %v4937 = vunpack.c.l.b16 %v4649
    %v4938 = vunpack.c.l.b16 %v4650
    %v4939 = vpack.c.b16 %v4796, %v4795
    %v4940 = vpack.c.b16 %v4798, %v4797
    %v4941 = vpack.c.b16 %v4800, %v4799
    %v4942 = vpack.c.b16 %v4802, %v4801
    %v4943 = vpack.c.b16 %v4804, %v4803
    %v4944 = vpack.c.b16 %v4806, %v4805
    %v4945 = vpack.c.b16 %v4808, %v4807
    %v4946 = vpack.c.b16 %v4810, %v4809
    %v4947 = vpack.c.b16 %v4812, %v4811
    %v4948 = vpack.c.b16 %v4814, %v4813
    %v4949 = vpack.c.b16 %v4816, %v4815
    %v4950 = vpack.c.b16 %v4818, %v4817
    %v4951 = vpack.c.b16 %v4820, %v4819
    %v4952 = vpack.c.b16 %v4822, %v4821
    %v4953 = vpack.c.b16 %v4824, %v4823
    %v4954 = vpack.c.b16 %v4826, %v4825
    %v4955 = vpack.c.b16 %v4828, %v4827
    %v4956 = vpack.c.b16 %v4830, %v4829
    %v4957 = vpack.c.b16 %v4832, %v4831
    %v4958 = vpack.c.b16 %v4834, %v4833
    %v4959 = vpack.c.b16 %v4836, %v4835
    %v4960 = vpack.c.b16 %v4838, %v4837
    %v4961 = vpack.c.b16 %v4840, %v4839
    %v4962 = vpack.c.b16 %v4842, %v4841
    %v4963 = vpack.c.b16 %v4844, %v4843
    %v4964 = vpack.c.b16 %v4846, %v4845
    %v4965 = vpack.c.b16 %v4848, %v4847
    %v4966 = vpack.c.b16 %v4850, %v4849
    %v4967 = vpack.c.b16 %v4852, %v4851
    %v4968 = vpack.c.b16 %v4854, %v4853
    %v4969 = vpack.c.b16 %v4856, %v4855
    %v4970 = vpack.c.b16 %v4858, %v4857
    %v4971 = vpack.c.b16 %v4860, %v4859
    %v4972 = vpack.c.b16 %v4862, %v4861
    %v4973 = vpack.c.b16 %v4864, %v4863
    %v4974 = vpack.c.b16 %v4866, %v4865
    %v4975 = vpack.c.b16 %v4868, %v4867
    %v4976 = vpack.c.b16 %v4870, %v4869
    %v4977 = vpack.c.b16 %v4872, %v4871
    %v4978 = vpack.c.b16 %v4874, %v4873
    %v4979 = vpack.c.b16 %v4876, %v4875
    %v4980 = vpack.c.b16 %v4878, %v4877
    %v4981 = vpack.c.b16 %v4880, %v4879
    %v4982 = vpack.c.b16 %v4882, %v4881
    %v4983 = vpack.c.b16 %v4884, %v4883
    %v4984 = vpack.c.b16 %v4886, %v4885
    %v4985 = vpack.c.b16 %v4888, %v4887
    %v4986 = vpack.c.b16 %v4890, %v4889
    %v4987 = vpack.c.b16 %v4892, %v4891
    %v4988 = vpack.c.b16 %v4894, %v4893
    %v4989 = vpack.c.b16 %v4896, %v4895
    %v4990 = vpack.c.b16 %v4898, %v4897
    %v4991 = vpack.c.b16 %v4900, %v4899
    %v4992 = vpack.c.b16 %v4902, %v4901
    %v4993 = vpack.c.b16 %v4904, %v4903
    %v4994 = vpack.c.b16 %v4906, %v4905
    %v4995 = vpack.c.b16 %v4908, %v4907
    %v4996 = vpack.c.b16 %v4910, %v4909
    %v4997 = vpack.c.b16 %v4912, %v4911
    %v4998 = vpack.c.b16 %v4914, %v4913
    %v4999 = vpack.c.b16 %v4916, %v4915
    %v5000 = vpack.c.b16 %v4918, %v4917
    %v5001 = vpack.c.b16 %v4920, %v4919
    %v5002 = vpack.c.b16 %v4922, %v4921
    %v5003 = vpack.c.b16 %v4924, %v4923
    %v5004 = vpack.c.b16 %v4926, %v4925
    %v5005 = vpack.c.b16 %v4928, %v4927
    %v5006 = vpack.c.b16 %v4930, %v4929
    %v5007 = vpack.c.b16 %v4932, %v4931
    %v5008 = vpack.c.b16 %v4934, %v4933
    %v5009 = vpack.c.b16 %v4936, %v4935
    %v5010 = vpack.c.b16 %v4938, %v4937
    %5083 = vmatprep.subr.bf16.mxu0 0
    %5084 = vmatpush1.bf16.msra.mxu0 %v4946
    %5085 = vmatprep.subr.bf16.mxu0 0
    %5086 = vmatpush1.bf16.msra.mxu0 %v4945
    %5087 = vmatprep.subr.bf16.mxu0 0
    %5088 = vmatpush1.bf16.msra.mxu0 %v4944
    %5089 = vmatprep.subr.bf16.mxu0 0
    %5090 = vmatpush1.bf16.msra.mxu0 %v4943
    %5091 = vmatprep.subr.bf16.mxu0 0
    %5092 = vmatpush1.bf16.msra.mxu0 %v4942
    %5093 = vmatprep.subr.bf16.mxu0 0
    %5094 = vmatpush1.bf16.msra.mxu0 %v4941
    %5095 = vmatprep.subr.bf16.mxu0 0
    %5096 = vmatpush1.bf16.msra.mxu0 %v4940
    %5097 = vmatprep.subr.bf16.mxu0 0
    %5098 = vmatpush1.bf16.msra.mxu0 %v4939
    %5099 = vmatprep.subr.bf16.mxu0 0
    %5100 = vmatpush2.bf16.msra.mxu0 %v4954
    %5101 = vmatprep.subr.bf16.mxu0 0
    %5102 = vmatpush2.bf16.msra.mxu0 %v4953
    %5103 = vmatprep.subr.bf16.mxu0 0
    %5104 = vmatpush2.bf16.msra.mxu0 %v4952
    %5105 = vmatprep.subr.bf16.mxu0 0
    %5106 = vmatpush2.bf16.msra.mxu0 %v4951
    %5107 = vmatprep.subr.bf16.mxu0 0
    %5108 = vmatpush2.bf16.msra.mxu0 %v4950
    %5109 = vmatprep.subr.bf16.mxu0 0
    %5110 = vmatpush2.bf16.msra.mxu0 %v4949
    %5111 = vmatprep.subr.bf16.mxu0 0
    %5112 = vmatpush2.bf16.msra.mxu0 %v4948
    %5113 = vmatprep.subr.bf16.mxu0 0
    %5114 = vmatpush2.bf16.msra.mxu0 %v4947
    %5115 = vmatprep.mubr.bf16.mxu0 %v3834
    %5116 = vmatmul.mubr.bf16.gmra.mxu0 %v3751
    %v5117 = vpop.f32.mrf.mxu0
    %v5118 = vadd.f32 0.0, %v5117
    %v5119 = vpop.f32.mrf.mxu0
    %v5120 = vpop.f32.mrf.mxu0
    %v5121 = vadd.f32 0.0, %v5120
    %v5122 = vpop.f32.mrf.mxu0
    %5123 = vmatprep.mubr.bf16.mxu0 %v3846
    %5124 = vmatmul.mubr.bf16.gmra.mxu0 %v3752
    %v5125 = vpop.f32.mrf.mxu0
    %v5126 = vadd.f32 0.0, %v5125
    %v5127 = vpop.f32.mrf.mxu0
    %v5128 = vpop.f32.mrf.mxu0
    %v5129 = vadd.f32 0.0, %v5128
    %v5130 = vpop.f32.mrf.mxu0
    %5131 = vmatprep.mubr.bf16.mxu0 %v3858
    %5132 = vmatmul.mubr.bf16.gmra.mxu0 %v3753
    %v5133 = vpop.f32.mrf.mxu0
    %v5134 = vadd.f32 0.0, %v5133
    %v5135 = vpop.f32.mrf.mxu0
    %v5136 = vpop.f32.mrf.mxu0
    %v5137 = vadd.f32 0.0, %v5136
    %v5138 = vpop.f32.mrf.mxu0
    %5139 = vmatprep.mubr.bf16.mxu0 %v3870
    %5140 = vmatmul.mubr.bf16.gmra.mxu0 %v3754
    %v5141 = vpop.f32.mrf.mxu0
    %v5142 = vadd.f32 0.0, %v5141
    %v5143 = vpop.f32.mrf.mxu0
    %v5144 = vpop.f32.mrf.mxu0
    %v5145 = vadd.f32 0.0, %v5144
    %v5146 = vpop.f32.mrf.mxu0
    %5147 = vmatprep.mubr.bf16.mxu0 %v3882
    %5148 = vmatmul.mubr.bf16.gmra.mxu0 %v3755
    %v5149 = vpop.f32.mrf.mxu0
    %v5150 = vadd.f32 0.0, %v5149
    %v5151 = vpop.f32.mrf.mxu0
    %v5152 = vpop.f32.mrf.mxu0
    %v5153 = vadd.f32 0.0, %v5152
    %v5154 = vpop.f32.mrf.mxu0
    %5155 = vmatprep.mubr.bf16.mxu0 %v3894
    %5156 = vmatmul.mubr.bf16.gmra.mxu0 %v3756
    %v5157 = vpop.f32.mrf.mxu0
    %v5158 = vadd.f32 0.0, %v5157
    %v5159 = vpop.f32.mrf.mxu0
    %v5160 = vpop.f32.mrf.mxu0
    %v5161 = vadd.f32 0.0, %v5160
    %v5162 = vpop.f32.mrf.mxu0
    %5163 = vmatprep.mubr.bf16.mxu0 %v3906
    %5164 = vmatmul.mubr.bf16.gmra.mxu0 %v3757
    %v5165 = vpop.f32.mrf.mxu0
    %v5166 = vadd.f32 0.0, %v5165
    %v5167 = vpop.f32.mrf.mxu0
    %v5168 = vpop.f32.mrf.mxu0
    %v5169 = vadd.f32 0.0, %v5168
    %v5170 = vpop.f32.mrf.mxu0
    %5171 = vmatprep.mubr.bf16.mxu0 %v3918
    %5172 = vmatmul.mubr.bf16.gmra.mxu0 %v3758
    %v5173 = vpop.f32.mrf.mxu0
    %v5174 = vadd.f32 0.0, %v5173
    %v5175 = vpop.f32.mrf.mxu0
    %v5176 = vpop.f32.mrf.mxu0
    %v5177 = vadd.f32 0.0, %v5176
    %v5178 = vpop.f32.mrf.mxu0
    %5179 = vmatprep.mubr.bf16.mxu0 %v3930
    %5180 = vmatmul.mubr.bf16.gmra.mxu0 %v3759
    %v5181 = vpop.f32.mrf.mxu0
    %v5182 = vadd.f32 0.0, %v5181
    %v5183 = vpop.f32.mrf.mxu0
    %v5184 = vpop.f32.mrf.mxu0
    %v5185 = vadd.f32 0.0, %v5184
    %v5186 = vpop.f32.mrf.mxu0
    %5187 = vmatprep.mubr.bf16.mxu0 %v3942
    %5188 = vmatmul.mubr.bf16.gmra.mxu0 %v3760
    %v5189 = vpop.f32.mrf.mxu0
    %v5190 = vadd.f32 0.0, %v5189
    %v5191 = vpop.f32.mrf.mxu0
    %v5192 = vpop.f32.mrf.mxu0
    %v5193 = vadd.f32 0.0, %v5192
    %v5194 = vpop.f32.mrf.mxu0
    %5195 = vmatprep.mubr.bf16.mxu0 %v3954
    %5196 = vmatmul.mubr.bf16.gmra.mxu0 %v3761
    %v5197 = vpop.f32.mrf.mxu0
    %v5198 = vadd.f32 0.0, %v5197
    %v5199 = vpop.f32.mrf.mxu0
    %v5200 = vpop.f32.mrf.mxu0
    %v5201 = vadd.f32 0.0, %v5200
    %v5202 = vpop.f32.mrf.mxu0
    %5203 = vmatprep.mubr.bf16.mxu0 %v3966
    %5204 = vmatmul.mubr.bf16.gmra.mxu0 %v3762
    %v5205 = vpop.f32.mrf.mxu0
    %v5206 = vadd.f32 0.0, %v5205
    %v5207 = vpop.f32.mrf.mxu0
    %v5208 = vpop.f32.mrf.mxu0
    %v5209 = vadd.f32 0.0, %v5208
    %v5210 = vpop.f32.mrf.mxu0
    %5211 = vmatprep.mubr.bf16.mxu0 %v3978
    %5212 = vmatmul.mubr.bf16.gmra.mxu0 %v3763
    %v5213 = vpop.f32.mrf.mxu0
    %v5214 = vadd.f32 0.0, %v5213
    %v5215 = vpop.f32.mrf.mxu0
    %v5216 = vpop.f32.mrf.mxu0
    %v5217 = vadd.f32 0.0, %v5216
    %v5218 = vpop.f32.mrf.mxu0
    %5219 = vmatprep.mubr.bf16.mxu0 %v3990
    %5220 = vmatmul.mubr.bf16.gmra.mxu0 %v3764
    %v5221 = vpop.f32.mrf.mxu0
    %v5222 = vadd.f32 0.0, %v5221
    %v5223 = vpop.f32.mrf.mxu0
    %v5224 = vpop.f32.mrf.mxu0
    %v5225 = vadd.f32 0.0, %v5224
    %v5226 = vpop.f32.mrf.mxu0
    %5227 = vmatprep.mubr.bf16.mxu0 %v4002
    %5228 = vmatmul.mubr.bf16.gmra.mxu0 %v3765
    %v5229 = vpop.f32.mrf.mxu0
    %v5230 = vadd.f32 0.0, %v5229
    %v5231 = vpop.f32.mrf.mxu0
    %v5232 = vpop.f32.mrf.mxu0
    %v5233 = vadd.f32 0.0, %v5232
    %v5234 = vpop.f32.mrf.mxu0
    %5235 = vmatprep.mubr.bf16.mxu0 %v4014
    %5236 = vmatmul.mubr.bf16.gmra.mxu0 %v3766
    %v5237 = vpop.f32.mrf.mxu0
    %v5238 = vadd.f32 0.0, %v5237
    %v5239 = vpop.f32.mrf.mxu0
    %v5240 = vpop.f32.mrf.mxu0
    %v5241 = vadd.f32 0.0, %v5240
    %v5242 = vpop.f32.mrf.mxu0
    %5243 = vmatprep.mubr.bf16.mxu0 %v4026
    %5244 = vmatmul.mubr.bf16.gmra.mxu0 %v3767
    %v5245 = vpop.f32.mrf.mxu0
    %v5246 = vadd.f32 0.0, %v5245
    %v5247 = vpop.f32.mrf.mxu0
    %v5248 = vpop.f32.mrf.mxu0
    %v5249 = vadd.f32 0.0, %v5248
    %v5250 = vpop.f32.mrf.mxu0
    %5251 = vmatprep.mubr.bf16.mxu0 %v4038
    %5252 = vmatmul.mubr.bf16.gmra.mxu0 %v3768
    %v5253 = vpop.f32.mrf.mxu0
    %v5254 = vadd.f32 0.0, %v5253
    %v5255 = vpop.f32.mrf.mxu0
    %v5256 = vpop.f32.mrf.mxu0
    %v5257 = vadd.f32 0.0, %v5256
    %v5258 = vpop.f32.mrf.mxu0
    %5259 = vmatprep.mubr.bf16.mxu0 %v4050
    %5260 = vmatmul.mubr.bf16.gmra.mxu0 %v3769
    %v5261 = vpop.f32.mrf.mxu0
    %v5262 = vadd.f32 0.0, %v5261
    %v5263 = vpop.f32.mrf.mxu0
    %v5264 = vpop.f32.mrf.mxu0
    %v5265 = vadd.f32 0.0, %v5264
    %v5266 = vpop.f32.mrf.mxu0
    %5267 = vmatprep.mubr.bf16.mxu0 %v4062
    %5268 = vmatmul.mubr.bf16.gmra.mxu0 %v3770
    %v5269 = vpop.f32.mrf.mxu0
    %v5270 = vadd.f32 0.0, %v5269
    %v5271 = vpop.f32.mrf.mxu0
    %v5272 = vpop.f32.mrf.mxu0
    %v5273 = vadd.f32 0.0, %v5272
    %v5274 = vpop.f32.mrf.mxu0
    %5275 = vmatprep.mubr.bf16.mxu0 %v4074
    %5276 = vmatmul.mubr.bf16.gmra.mxu0 %v3771
    %v5277 = vpop.f32.mrf.mxu0
    %v5278 = vadd.f32 0.0, %v5277
    %v5279 = vpop.f32.mrf.mxu0
    %v5280 = vpop.f32.mrf.mxu0
    %v5281 = vadd.f32 0.0, %v5280
    %v5282 = vpop.f32.mrf.mxu0
    %5283 = vmatprep.mubr.bf16.mxu0 %v4086
    %5284 = vmatmul.mubr.bf16.gmra.mxu0 %v3772
    %v5285 = vpop.f32.mrf.mxu0
    %v5286 = vadd.f32 0.0, %v5285
    %v5287 = vpop.f32.mrf.mxu0
    %v5288 = vpop.f32.mrf.mxu0
    %v5289 = vadd.f32 0.0, %v5288
    %v5290 = vpop.f32.mrf.mxu0
    %5291 = vmatprep.mubr.bf16.mxu0 %v4098
    %5292 = vmatmul.mubr.bf16.gmra.mxu0 %v3773
    %v5293 = vpop.f32.mrf.mxu0
    %v5294 = vadd.f32 0.0, %v5293
    %v5295 = vpop.f32.mrf.mxu0
    %v5296 = vpop.f32.mrf.mxu0
    %v5297 = vadd.f32 0.0, %v5296
    %v5298 = vpop.f32.mrf.mxu0
    %5299 = vmatprep.mubr.bf16.mxu0 %v4110
    %5300 = vmatmul.mubr.bf16.gmra.mxu0 %v3774
    %v5301 = vpop.f32.mrf.mxu0
    %v5302 = vadd.f32 0.0, %v5301
    %v5303 = vpop.f32.mrf.mxu0
    %v5304 = vpop.f32.mrf.mxu0
    %v5305 = vadd.f32 0.0, %v5304
    %v5306 = vpop.f32.mrf.mxu0
    %5307 = vmatprep.mubr.bf16.mxu0 %v4122
    %5308 = vmatmul.mubr.bf16.gmra.mxu0 %v3775
    %v5309 = vpop.f32.mrf.mxu0
    %v5310 = vadd.f32 0.0, %v5309
    %v5311 = vpop.f32.mrf.mxu0
    %v5312 = vpop.f32.mrf.mxu0
    %v5313 = vadd.f32 0.0, %v5312
    %v5314 = vpop.f32.mrf.mxu0
    %5315 = vmatprep.mubr.bf16.mxu0 %v4134
    %5316 = vmatmul.mubr.bf16.gmra.mxu0 %v3776
    %v5317 = vpop.f32.mrf.mxu0
    %v5318 = vadd.f32 0.0, %v5317
    %v5319 = vpop.f32.mrf.mxu0
    %v5320 = vpop.f32.mrf.mxu0
    %v5321 = vadd.f32 0.0, %v5320
    %v5322 = vpop.f32.mrf.mxu0
    %5323 = vmatprep.mubr.bf16.mxu0 %v4146
    %5324 = vmatmul.mubr.bf16.gmra.mxu0 %v3777
    %v5325 = vpop.f32.mrf.mxu0
    %v5326 = vadd.f32 0.0, %v5325
    %v5327 = vpop.f32.mrf.mxu0
    %v5328 = vpop.f32.mrf.mxu0
    %v5329 = vadd.f32 0.0, %v5328
    %v5330 = vpop.f32.mrf.mxu0
    %5331 = vmatprep.mubr.bf16.mxu0 %v4158
    %5332 = vmatmul.mubr.bf16.gmra.mxu0 %v3778
    %v5333 = vpop.f32.mrf.mxu0
    %v5334 = vadd.f32 0.0, %v5333
    %v5335 = vpop.f32.mrf.mxu0
    %v5336 = vpop.f32.mrf.mxu0
    %v5337 = vadd.f32 0.0, %v5336
    %v5338 = vpop.f32.mrf.mxu0
    %5339 = vmatprep.mubr.bf16.mxu0 %v4170
    %5340 = vmatmul.mubr.bf16.gmra.mxu0 %v3779
    %v5341 = vpop.f32.mrf.mxu0
    %v5342 = vadd.f32 0.0, %v5341
    %v5343 = vpop.f32.mrf.mxu0
    %v5344 = vpop.f32.mrf.mxu0
    %v5345 = vadd.f32 0.0, %v5344
    %v5346 = vpop.f32.mrf.mxu0
    %5347 = vmatprep.mubr.bf16.mxu0 %v4182
    %5348 = vmatmul.mubr.bf16.gmra.mxu0 %v3780
    %v5349 = vpop.f32.mrf.mxu0
    %v5350 = vadd.f32 0.0, %v5349
    %v5351 = vpop.f32.mrf.mxu0
    %v5352 = vpop.f32.mrf.mxu0
    %v5353 = vadd.f32 0.0, %v5352
    %v5354 = vpop.f32.mrf.mxu0
    %5355 = vmatprep.mubr.bf16.mxu0 %v4194
    %5356 = vmatmul.mubr.bf16.gmra.mxu0 %v3781
    %v5357 = vpop.f32.mrf.mxu0
    %v5358 = vadd.f32 0.0, %v5357
    %v5359 = vpop.f32.mrf.mxu0
    %v5360 = vpop.f32.mrf.mxu0
    %v5361 = vadd.f32 0.0, %v5360
    %v5362 = vpop.f32.mrf.mxu0
    %5363 = vmatprep.mubr.bf16.mxu0 %v4206
    %5364 = vmatmul.mubr.bf16.gmra.mxu0 %v3782
    %v5365 = vpop.f32.mrf.mxu0
    %v5366 = vadd.f32 0.0, %v5365
    %v5367 = vpop.f32.mrf.mxu0
    %v5368 = vpop.f32.mrf.mxu0
    %v5369 = vadd.f32 0.0, %v5368
    %v5370 = vpop.f32.mrf.mxu0
    %5371 = vdwg.mxu0
    %5372 = vmatprep.subr.bf16.mxu0 0
    %5373 = vmatpush1.bf16.msra.mxu0 %v4962
    %5374 = vmatprep.subr.bf16.mxu0 0
    %5375 = vmatpush1.bf16.msra.mxu0 %v4961
    %5376 = vmatprep.subr.bf16.mxu0 0
    %5377 = vmatpush1.bf16.msra.mxu0 %v4960
    %5378 = vmatprep.subr.bf16.mxu0 0
    %5379 = vmatpush1.bf16.msra.mxu0 %v4959
    %5380 = vmatprep.subr.bf16.mxu0 0
    %5381 = vmatpush1.bf16.msra.mxu0 %v4958
    %5382 = vmatprep.subr.bf16.mxu0 0
    %5383 = vmatpush1.bf16.msra.mxu0 %v4957
    %5384 = vmatprep.subr.bf16.mxu0 0
    %5385 = vmatpush1.bf16.msra.mxu0 %v4956
    %5386 = vmatprep.subr.bf16.mxu0 0
    %5387 = vmatpush1.bf16.msra.mxu0 %v4955
    %5388 = vmatprep.subr.bf16.mxu0 0
    %5389 = vmatpush2.bf16.msra.mxu0 %v4970
    %5390 = vmatprep.subr.bf16.mxu0 0
    %5391 = vmatpush2.bf16.msra.mxu0 %v4969
    %5392 = vmatprep.subr.bf16.mxu0 0
    %5393 = vmatpush2.bf16.msra.mxu0 %v4968
    %5394 = vmatprep.subr.bf16.mxu0 0
    %5395 = vmatpush2.bf16.msra.mxu0 %v4967
    %5396 = vmatprep.subr.bf16.mxu0 0
    %5397 = vmatpush2.bf16.msra.mxu0 %v4966
    %5398 = vmatprep.subr.bf16.mxu0 0
    %5399 = vmatpush2.bf16.msra.mxu0 %v4965
    %5400 = vmatprep.subr.bf16.mxu0 0
    %5401 = vmatpush2.bf16.msra.mxu0 %v4964
    %5402 = vmatprep.subr.bf16.mxu0 0
    %5403 = vmatpush2.bf16.msra.mxu0 %v4963
    %5404 = vmatprep.mubr.bf16.mxu0 %v3752
    %5405 = vmatmul.mubr.bf16.gmra.mxu0 %v4305
    %v5406 = vpop.f32.mrf.mxu0
    %v5407 = vadd.f32 %v5118, %v5406
    %v5408 = vpop.f32.mrf.mxu0
    %v5409 = vpop.f32.mrf.mxu0
    %v5410 = vadd.f32 %v5121, %v5409
    %v5411 = vpop.f32.mrf.mxu0
    %5412 = vmatprep.mubr.bf16.mxu0 %v3753
    %5413 = vmatmul.mubr.bf16.gmra.mxu0 %v4308
    %v5414 = vpop.f32.mrf.mxu0
    %v5415 = vadd.f32 %v5126, %v5414
    %v5416 = vpop.f32.mrf.mxu0
    %v5417 = vpop.f32.mrf.mxu0
    %v5418 = vadd.f32 %v5129, %v5417
    %v5419 = vpop.f32.mrf.mxu0
    %5420 = vmatprep.mubr.bf16.mxu0 %v3754
    %5421 = vmatmul.mubr.bf16.gmra.mxu0 %v4311
    %v5422 = vpop.f32.mrf.mxu0
    %v5423 = vadd.f32 %v5134, %v5422
    %v5424 = vpop.f32.mrf.mxu0
    %v5425 = vpop.f32.mrf.mxu0
    %v5426 = vadd.f32 %v5137, %v5425
    %v5427 = vpop.f32.mrf.mxu0
    %5428 = vmatprep.mubr.bf16.mxu0 %v3755
    %5429 = vmatmul.mubr.bf16.gmra.mxu0 %v4314
    %v5430 = vpop.f32.mrf.mxu0
    %v5431 = vadd.f32 %v5142, %v5430
    %v5432 = vpop.f32.mrf.mxu0
    %v5433 = vpop.f32.mrf.mxu0
    %v5434 = vadd.f32 %v5145, %v5433
    %v5435 = vpop.f32.mrf.mxu0
    %5436 = vmatprep.mubr.bf16.mxu0 %v3756
    %5437 = vmatmul.mubr.bf16.gmra.mxu0 %v4317
    %v5438 = vpop.f32.mrf.mxu0
    %v5439 = vadd.f32 %v5150, %v5438
    %v5440 = vpop.f32.mrf.mxu0
    %v5441 = vpop.f32.mrf.mxu0
    %v5442 = vadd.f32 %v5153, %v5441
    %v5443 = vpop.f32.mrf.mxu0
    %5444 = vmatprep.mubr.bf16.mxu0 %v3757
    %5445 = vmatmul.mubr.bf16.gmra.mxu0 %v4320
    %v5446 = vpop.f32.mrf.mxu0
    %v5447 = vadd.f32 %v5158, %v5446
    %v5448 = vpop.f32.mrf.mxu0
    %v5449 = vpop.f32.mrf.mxu0
    %v5450 = vadd.f32 %v5161, %v5449
    %v5451 = vpop.f32.mrf.mxu0
    %5452 = vmatprep.mubr.bf16.mxu0 %v3758
    %5453 = vmatmul.mubr.bf16.gmra.mxu0 %v4323
    %v5454 = vpop.f32.mrf.mxu0
    %v5455 = vadd.f32 %v5166, %v5454
    %v5456 = vpop.f32.mrf.mxu0
    %v5457 = vpop.f32.mrf.mxu0
    %v5458 = vadd.f32 %v5169, %v5457
    %v5459 = vpop.f32.mrf.mxu0
    %5460 = vmatprep.mubr.bf16.mxu0 %v3759
    %5461 = vmatmul.mubr.bf16.gmra.mxu0 %v4326
    %v5462 = vpop.f32.mrf.mxu0
    %v5463 = vadd.f32 %v5174, %v5462
    %v5464 = vpop.f32.mrf.mxu0
    %v5465 = vpop.f32.mrf.mxu0
    %v5466 = vadd.f32 %v5177, %v5465
    %v5467 = vpop.f32.mrf.mxu0
    %5468 = vmatprep.mubr.bf16.mxu0 %v3760
    %5469 = vmatmul.mubr.bf16.gmra.mxu0 %v4329
    %v5470 = vpop.f32.mrf.mxu0
    %v5471 = vadd.f32 %v5182, %v5470
    %v5472 = vpop.f32.mrf.mxu0
    %v5473 = vpop.f32.mrf.mxu0
    %v5474 = vadd.f32 %v5185, %v5473
    %v5475 = vpop.f32.mrf.mxu0
    %5476 = vmatprep.mubr.bf16.mxu0 %v3761
    %5477 = vmatmul.mubr.bf16.gmra.mxu0 %v4332
    %v5478 = vpop.f32.mrf.mxu0
    %v5479 = vadd.f32 %v5190, %v5478
    %v5480 = vpop.f32.mrf.mxu0
    %v5481 = vpop.f32.mrf.mxu0
    %v5482 = vadd.f32 %v5193, %v5481
    %v5483 = vpop.f32.mrf.mxu0
    %5484 = vmatprep.mubr.bf16.mxu0 %v3762
    %5485 = vmatmul.mubr.bf16.gmra.mxu0 %v4335
    %v5486 = vpop.f32.mrf.mxu0
    %v5487 = vadd.f32 %v5198, %v5486
    %v5488 = vpop.f32.mrf.mxu0
    %v5489 = vpop.f32.mrf.mxu0
    %v5490 = vadd.f32 %v5201, %v5489
    %v5491 = vpop.f32.mrf.mxu0
    %5492 = vmatprep.mubr.bf16.mxu0 %v3763
    %5493 = vmatmul.mubr.bf16.gmra.mxu0 %v4338
    %v5494 = vpop.f32.mrf.mxu0
    %v5495 = vadd.f32 %v5206, %v5494
    %v5496 = vpop.f32.mrf.mxu0
    %v5497 = vpop.f32.mrf.mxu0
    %v5498 = vadd.f32 %v5209, %v5497
    %v5499 = vpop.f32.mrf.mxu0
    %5500 = vmatprep.mubr.bf16.mxu0 %v3764
    %5501 = vmatmul.mubr.bf16.gmra.mxu0 %v4341
    %v5502 = vpop.f32.mrf.mxu0
    %v5503 = vadd.f32 %v5214, %v5502
    %v5504 = vpop.f32.mrf.mxu0
    %v5505 = vpop.f32.mrf.mxu0
    %v5506 = vadd.f32 %v5217, %v5505
    %v5507 = vpop.f32.mrf.mxu0
    %5508 = vmatprep.mubr.bf16.mxu0 %v3765
    %5509 = vmatmul.mubr.bf16.gmra.mxu0 %v4344
    %v5510 = vpop.f32.mrf.mxu0
    %v5511 = vadd.f32 %v5222, %v5510
    %v5512 = vpop.f32.mrf.mxu0
    %v5513 = vpop.f32.mrf.mxu0
    %v5514 = vadd.f32 %v5225, %v5513
    %v5515 = vpop.f32.mrf.mxu0
    %5516 = vmatprep.mubr.bf16.mxu0 %v3766
    %5517 = vmatmul.mubr.bf16.gmra.mxu0 %v4347
    %v5518 = vpop.f32.mrf.mxu0
    %v5519 = vadd.f32 %v5230, %v5518
    %v5520 = vpop.f32.mrf.mxu0
    %v5521 = vpop.f32.mrf.mxu0
    %v5522 = vadd.f32 %v5233, %v5521
    %v5523 = vpop.f32.mrf.mxu0
    %5524 = vmatprep.mubr.bf16.mxu0 %v3815
    %5525 = vmatmul.mubr.bf16.gmra.mxu0 %v4350
    %v5526 = vpop.f32.mrf.mxu0
    %v5527 = vadd.f32 %v5238, %v5526
    %v5528 = vpop.f32.mrf.mxu0
    %v5529 = vpop.f32.mrf.mxu0
    %v5530 = vadd.f32 %v5241, %v5529
    %v5531 = vpop.f32.mrf.mxu0
    %5532 = vmatprep.mubr.bf16.mxu0 %v3768
    %5533 = vmatmul.mubr.bf16.gmra.mxu0 %v4353
    %v5534 = vpop.f32.mrf.mxu0
    %v5535 = vadd.f32 %v5246, %v5534
    %v5536 = vpop.f32.mrf.mxu0
    %v5537 = vpop.f32.mrf.mxu0
    %v5538 = vadd.f32 %v5249, %v5537
    %v5539 = vpop.f32.mrf.mxu0
    %5540 = vmatprep.mubr.bf16.mxu0 %v3769
    %5541 = vmatmul.mubr.bf16.gmra.mxu0 %v4356
    %v5542 = vpop.f32.mrf.mxu0
    %v5543 = vadd.f32 %v5254, %v5542
    %v5544 = vpop.f32.mrf.mxu0
    %v5545 = vpop.f32.mrf.mxu0
    %v5546 = vadd.f32 %v5257, %v5545
    %v5547 = vpop.f32.mrf.mxu0
    %5548 = vmatprep.mubr.bf16.mxu0 %v3770
    %5549 = vmatmul.mubr.bf16.gmra.mxu0 %v4359
    %v5550 = vpop.f32.mrf.mxu0
    %v5551 = vadd.f32 %v5262, %v5550
    %v5552 = vpop.f32.mrf.mxu0
    %v5553 = vpop.f32.mrf.mxu0
    %v5554 = vadd.f32 %v5265, %v5553
    %v5555 = vpop.f32.mrf.mxu0
    %5556 = vmatprep.mubr.bf16.mxu0 %v3771
    %5557 = vmatmul.mubr.bf16.gmra.mxu0 %v4362
    %v5558 = vpop.f32.mrf.mxu0
    %v5559 = vadd.f32 %v5270, %v5558
    %v5560 = vpop.f32.mrf.mxu0
    %v5561 = vpop.f32.mrf.mxu0
    %v5562 = vadd.f32 %v5273, %v5561
    %v5563 = vpop.f32.mrf.mxu0
    %5564 = vmatprep.mubr.bf16.mxu0 %v3772
    %5565 = vmatmul.mubr.bf16.gmra.mxu0 %v4365
    %v5566 = vpop.f32.mrf.mxu0
    %v5567 = vadd.f32 %v5278, %v5566
    %v5568 = vpop.f32.mrf.mxu0
    %v5569 = vpop.f32.mrf.mxu0
    %v5570 = vadd.f32 %v5281, %v5569
    %v5571 = vpop.f32.mrf.mxu0
    %5572 = vmatprep.mubr.bf16.mxu0 %v3773
    %5573 = vmatmul.mubr.bf16.gmra.mxu0 %v4368
    %v5574 = vpop.f32.mrf.mxu0
    %v5575 = vadd.f32 %v5286, %v5574
    %v5576 = vpop.f32.mrf.mxu0
    %v5577 = vpop.f32.mrf.mxu0
    %v5578 = vadd.f32 %v5289, %v5577
    %v5579 = vpop.f32.mrf.mxu0
    %5580 = vmatprep.mubr.bf16.mxu0 %v3774
    %5581 = vmatmul.mubr.bf16.gmra.mxu0 %v4371
    %v5582 = vpop.f32.mrf.mxu0
    %v5583 = vadd.f32 %v5294, %v5582
    %v5584 = vpop.f32.mrf.mxu0
    %v5585 = vpop.f32.mrf.mxu0
    %v5586 = vadd.f32 %v5297, %v5585
    %v5587 = vpop.f32.mrf.mxu0
    %5588 = vmatprep.mubr.bf16.mxu0 %v3775
    %5589 = vmatmul.mubr.bf16.gmra.mxu0 %v4374
    %v5590 = vpop.f32.mrf.mxu0
    %v5591 = vadd.f32 %v5302, %v5590
    %v5592 = vpop.f32.mrf.mxu0
    %v5593 = vpop.f32.mrf.mxu0
    %v5594 = vadd.f32 %v5305, %v5593
    %v5595 = vpop.f32.mrf.mxu0
    %5596 = vmatprep.mubr.bf16.mxu0 %v3776
    %5597 = vmatmul.mubr.bf16.gmra.mxu0 %v4377
    %v5598 = vpop.f32.mrf.mxu0
    %v5599 = vadd.f32 %v5310, %v5598
    %v5600 = vpop.f32.mrf.mxu0
    %v5601 = vpop.f32.mrf.mxu0
    %v5602 = vadd.f32 %v5313, %v5601
    %v5603 = vpop.f32.mrf.mxu0
    %5604 = vmatprep.mubr.bf16.mxu0 %v3777
    %5605 = vmatmul.mubr.bf16.gmra.mxu0 %v4380
    %v5606 = vpop.f32.mrf.mxu0
    %v5607 = vadd.f32 %v5318, %v5606
    %v5608 = vpop.f32.mrf.mxu0
    %v5609 = vpop.f32.mrf.mxu0
    %v5610 = vadd.f32 %v5321, %v5609
    %v5611 = vpop.f32.mrf.mxu0
    %5612 = vmatprep.mubr.bf16.mxu0 %v3778
    %5613 = vmatmul.mubr.bf16.gmra.mxu0 %v4383
    %v5614 = vpop.f32.mrf.mxu0
    %v5615 = vadd.f32 %v5326, %v5614
    %v5616 = vpop.f32.mrf.mxu0
    %v5617 = vpop.f32.mrf.mxu0
    %v5618 = vadd.f32 %v5329, %v5617
    %v5619 = vpop.f32.mrf.mxu0
    %5620 = vmatprep.mubr.bf16.mxu0 %v3779
    %5621 = vmatmul.mubr.bf16.gmra.mxu0 %v4386
    %v5622 = vpop.f32.mrf.mxu0
    %v5623 = vadd.f32 %v5334, %v5622
    %v5624 = vpop.f32.mrf.mxu0
    %v5625 = vpop.f32.mrf.mxu0
    %v5626 = vadd.f32 %v5337, %v5625
    %v5627 = vpop.f32.mrf.mxu0
    %5628 = vmatprep.mubr.bf16.mxu0 %v3780
    %5629 = vmatmul.mubr.bf16.gmra.mxu0 %v4389
    %v5630 = vpop.f32.mrf.mxu0
    %v5631 = vadd.f32 %v5342, %v5630
    %v5632 = vpop.f32.mrf.mxu0
    %v5633 = vpop.f32.mrf.mxu0
    %v5634 = vadd.f32 %v5345, %v5633
    %v5635 = vpop.f32.mrf.mxu0
    %5636 = vmatprep.mubr.bf16.mxu0 %v3781
    %5637 = vmatmul.mubr.bf16.gmra.mxu0 %v4392
    %v5638 = vpop.f32.mrf.mxu0
    %v5639 = vadd.f32 %v5350, %v5638
    %v5640 = vpop.f32.mrf.mxu0
    %v5641 = vpop.f32.mrf.mxu0
    %v5642 = vadd.f32 %v5353, %v5641
    %v5643 = vpop.f32.mrf.mxu0
    %5644 = vmatprep.mubr.bf16.mxu0 %v3782
    %5645 = vmatmul.mubr.bf16.gmra.mxu0 %v4395
    %v5646 = vpop.f32.mrf.mxu0
    %v5647 = vadd.f32 %v5358, %v5646
    %v5648 = vpop.f32.mrf.mxu0
    %v5649 = vpop.f32.mrf.mxu0
    %v5650 = vadd.f32 %v5361, %v5649
    %v5651 = vpop.f32.mrf.mxu0
    %5652 = vmatprep.mubr.bf16.mxu0 %v3816
    %5653 = vmatmul.mubr.bf16.gmra.mxu0 %v4398
    %v5654 = vpop.f32.mrf.mxu0
    %v5655 = vadd.f32 %v5366, %v5654
    %v5656 = vpop.f32.mrf.mxu0
    %v5657 = vpop.f32.mrf.mxu0
    %v5658 = vadd.f32 %v5369, %v5657
    %v5659 = vpop.f32.mrf.mxu0
    %5660 = vdwg.mxu0
    %5661 = vmatprep.subr.bf16.mxu0 0
    %5662 = vmatpush1.bf16.msra.mxu0 %v4978
    %5663 = vmatprep.subr.bf16.mxu0 0
    %5664 = vmatpush1.bf16.msra.mxu0 %v4977
    %5665 = vmatprep.subr.bf16.mxu0 0
    %5666 = vmatpush1.bf16.msra.mxu0 %v4976
    %5667 = vmatprep.subr.bf16.mxu0 0
    %5668 = vmatpush1.bf16.msra.mxu0 %v4975
    %5669 = vmatprep.subr.bf16.mxu0 0
    %5670 = vmatpush1.bf16.msra.mxu0 %v4974
    %5671 = vmatprep.subr.bf16.mxu0 0
    %5672 = vmatpush1.bf16.msra.mxu0 %v4973
    %5673 = vmatprep.subr.bf16.mxu0 0
    %5674 = vmatpush1.bf16.msra.mxu0 %v4972
    %5675 = vmatprep.subr.bf16.mxu0 0
    %5676 = vmatpush1.bf16.msra.mxu0 %v4971
    %5677 = vmatprep.subr.bf16.mxu0 0
    %5678 = vmatpush2.bf16.msra.mxu0 %v4986
    %5679 = vmatprep.subr.bf16.mxu0 0
    %5680 = vmatpush2.bf16.msra.mxu0 %v4985
    %5681 = vmatprep.subr.bf16.mxu0 0
    %5682 = vmatpush2.bf16.msra.mxu0 %v4984
    %5683 = vmatprep.subr.bf16.mxu0 0
    %5684 = vmatpush2.bf16.msra.mxu0 %v4983
    %5685 = vmatprep.subr.bf16.mxu0 0
    %5686 = vmatpush2.bf16.msra.mxu0 %v4982
    %5687 = vmatprep.subr.bf16.mxu0 0
    %5688 = vmatpush2.bf16.msra.mxu0 %v4981
    %5689 = vmatprep.subr.bf16.mxu0 0
    %5690 = vmatpush2.bf16.msra.mxu0 %v4980
    %5691 = vmatprep.subr.bf16.mxu0 0
    %5692 = vmatpush2.bf16.msra.mxu0 %v4979
    %5693 = vmatprep.mubr.bf16.mxu0 %v4308
    %5694 = vmatmul.mubr.bf16.gmra.mxu0 %v3846
    %v5695 = vpop.f32.mrf.mxu0
    %v5696 = vadd.f32 %v5407, %v5695
    %v5697 = vpop.f32.mrf.mxu0
    %v5698 = vpop.f32.mrf.mxu0
    %v5699 = vadd.f32 %v5410, %v5698
    %v5700 = vpop.f32.mrf.mxu0
    %5701 = vmatprep.mubr.bf16.mxu0 %v4311
    %5702 = vmatmul.mubr.bf16.gmra.mxu0 %v3858
    %v5703 = vpop.f32.mrf.mxu0
    %v5704 = vadd.f32 %v5415, %v5703
    %v5705 = vpop.f32.mrf.mxu0
    %v5706 = vpop.f32.mrf.mxu0
    %v5707 = vadd.f32 %v5418, %v5706
    %v5708 = vpop.f32.mrf.mxu0
    %5709 = vmatprep.mubr.bf16.mxu0 %v4314
    %5710 = vmatmul.mubr.bf16.gmra.mxu0 %v3870
    %v5711 = vpop.f32.mrf.mxu0
    %v5712 = vadd.f32 %v5423, %v5711
    %v5713 = vpop.f32.mrf.mxu0
    %v5714 = vpop.f32.mrf.mxu0
    %v5715 = vadd.f32 %v5426, %v5714
    %v5716 = vpop.f32.mrf.mxu0
    %5717 = vmatprep.mubr.bf16.mxu0 %v4317
    %5718 = vmatmul.mubr.bf16.gmra.mxu0 %v3882
    %v5719 = vpop.f32.mrf.mxu0
    %v5720 = vadd.f32 %v5431, %v5719
    %v5721 = vpop.f32.mrf.mxu0
    %v5722 = vpop.f32.mrf.mxu0
    %v5723 = vadd.f32 %v5434, %v5722
    %v5724 = vpop.f32.mrf.mxu0
    %5725 = vmatprep.mubr.bf16.mxu0 %v4320
    %5726 = vmatmul.mubr.bf16.gmra.mxu0 %v3894
    %v5727 = vpop.f32.mrf.mxu0
    %v5728 = vadd.f32 %v5439, %v5727
    %v5729 = vpop.f32.mrf.mxu0
    %v5730 = vpop.f32.mrf.mxu0
    %v5731 = vadd.f32 %v5442, %v5730
    %v5732 = vpop.f32.mrf.mxu0
    %5733 = vmatprep.mubr.bf16.mxu0 %v4323
    %5734 = vmatmul.mubr.bf16.gmra.mxu0 %v3906
    %v5735 = vpop.f32.mrf.mxu0
    %v5736 = vadd.f32 %v5447, %v5735
    %v5737 = vpop.f32.mrf.mxu0
    %v5738 = vpop.f32.mrf.mxu0
    %v5739 = vadd.f32 %v5450, %v5738
    %v5740 = vpop.f32.mrf.mxu0
    %5741 = vmatprep.mubr.bf16.mxu0 %v4326
    %5742 = vmatmul.mubr.bf16.gmra.mxu0 %v3918
    %v5743 = vpop.f32.mrf.mxu0
    %v5744 = vadd.f32 %v5455, %v5743
    %v5745 = vpop.f32.mrf.mxu0
    %v5746 = vpop.f32.mrf.mxu0
    %v5747 = vadd.f32 %v5458, %v5746
    %v5748 = vpop.f32.mrf.mxu0
    %5749 = vmatprep.mubr.bf16.mxu0 %v4329
    %5750 = vmatmul.mubr.bf16.gmra.mxu0 %v3930
    %v5751 = vpop.f32.mrf.mxu0
    %v5752 = vadd.f32 %v5463, %v5751
    %v5753 = vpop.f32.mrf.mxu0
    %v5754 = vpop.f32.mrf.mxu0
    %v5755 = vadd.f32 %v5466, %v5754
    %v5756 = vpop.f32.mrf.mxu0
    %5757 = vmatprep.mubr.bf16.mxu0 %v4332
    %5758 = vmatmul.mubr.bf16.gmra.mxu0 %v3942
    %v5759 = vpop.f32.mrf.mxu0
    %v5760 = vadd.f32 %v5471, %v5759
    %v5761 = vpop.f32.mrf.mxu0
    %v5762 = vpop.f32.mrf.mxu0
    %v5763 = vadd.f32 %v5474, %v5762
    %v5764 = vpop.f32.mrf.mxu0
    %5765 = vmatprep.mubr.bf16.mxu0 %v4335
    %5766 = vmatmul.mubr.bf16.gmra.mxu0 %v3954
    %v5767 = vpop.f32.mrf.mxu0
    %v5768 = vadd.f32 %v5479, %v5767
    %v5769 = vpop.f32.mrf.mxu0
    %v5770 = vpop.f32.mrf.mxu0
    %v5771 = vadd.f32 %v5482, %v5770
    %v5772 = vpop.f32.mrf.mxu0
    %5773 = vmatprep.mubr.bf16.mxu0 %v4338
    %5774 = vmatmul.mubr.bf16.gmra.mxu0 %v3966
    %v5775 = vpop.f32.mrf.mxu0
    %v5776 = vadd.f32 %v5487, %v5775
    %v5777 = vpop.f32.mrf.mxu0
    %v5778 = vpop.f32.mrf.mxu0
    %v5779 = vadd.f32 %v5490, %v5778
    %v5780 = vpop.f32.mrf.mxu0
    %5781 = vmatprep.mubr.bf16.mxu0 %v4341
    %5782 = vmatmul.mubr.bf16.gmra.mxu0 %v3978
    %v5783 = vpop.f32.mrf.mxu0
    %v5784 = vadd.f32 %v5495, %v5783
    %v5785 = vpop.f32.mrf.mxu0
    %v5786 = vpop.f32.mrf.mxu0
    %v5787 = vadd.f32 %v5498, %v5786
    %v5788 = vpop.f32.mrf.mxu0
    %5789 = vmatprep.mubr.bf16.mxu0 %v4344
    %5790 = vmatmul.mubr.bf16.gmra.mxu0 %v3990
    %v5791 = vpop.f32.mrf.mxu0
    %v5792 = vadd.f32 %v5503, %v5791
    %v5793 = vpop.f32.mrf.mxu0
    %v5794 = vpop.f32.mrf.mxu0
    %v5795 = vadd.f32 %v5506, %v5794
    %v5796 = vpop.f32.mrf.mxu0
    %5797 = vmatprep.mubr.bf16.mxu0 %v4347
    %5798 = vmatmul.mubr.bf16.gmra.mxu0 %v4002
    %v5799 = vpop.f32.mrf.mxu0
    %v5800 = vadd.f32 %v5511, %v5799
    %v5801 = vpop.f32.mrf.mxu0
    %v5802 = vpop.f32.mrf.mxu0
    %v5803 = vadd.f32 %v5514, %v5802
    %v5804 = vpop.f32.mrf.mxu0
    %5805 = vmatprep.mubr.bf16.mxu0 %v4350
    %5806 = vmatmul.mubr.bf16.gmra.mxu0 %v4014
    %v5807 = vpop.f32.mrf.mxu0
    %v5808 = vadd.f32 %v5519, %v5807
    %v5809 = vpop.f32.mrf.mxu0
    %v5810 = vpop.f32.mrf.mxu0
    %v5811 = vadd.f32 %v5522, %v5810
    %v5812 = vpop.f32.mrf.mxu0
    %5813 = vmatprep.mubr.bf16.mxu0 %v4463
    %5814 = vmatmul.mubr.bf16.gmra.mxu0 %v4442
    %v5815 = vpop.f32.mrf.mxu0
    %v5816 = vadd.f32 %v5527, %v5815
    %v5817 = vpop.f32.mrf.mxu0
    %v5818 = vpop.f32.mrf.mxu0
    %v5819 = vadd.f32 %v5530, %v5818
    %v5820 = vpop.f32.mrf.mxu0
    %5821 = vmatprep.mubr.bf16.mxu0 %v4356
    %5822 = vmatmul.mubr.bf16.gmra.mxu0 %v4038
    %v5823 = vpop.f32.mrf.mxu0
    %v5824 = vadd.f32 %v5535, %v5823
    %v5825 = vpop.f32.mrf.mxu0
    %v5826 = vpop.f32.mrf.mxu0
    %v5827 = vadd.f32 %v5538, %v5826
    %v5828 = vpop.f32.mrf.mxu0
    %5829 = vmatprep.mubr.bf16.mxu0 %v4359
    %5830 = vmatmul.mubr.bf16.gmra.mxu0 %v4050
    %v5831 = vpop.f32.mrf.mxu0
    %v5832 = vadd.f32 %v5543, %v5831
    %v5833 = vpop.f32.mrf.mxu0
    %v5834 = vpop.f32.mrf.mxu0
    %v5835 = vadd.f32 %v5546, %v5834
    %v5836 = vpop.f32.mrf.mxu0
    %5837 = vmatprep.mubr.bf16.mxu0 %v4362
    %5838 = vmatmul.mubr.bf16.gmra.mxu0 %v4062
    %v5839 = vpop.f32.mrf.mxu0
    %v5840 = vadd.f32 %v5551, %v5839
    %v5841 = vpop.f32.mrf.mxu0
    %v5842 = vpop.f32.mrf.mxu0
    %v5843 = vadd.f32 %v5554, %v5842
    %v5844 = vpop.f32.mrf.mxu0
    %5845 = vmatprep.mubr.bf16.mxu0 %v4365
    %5846 = vmatmul.mubr.bf16.gmra.mxu0 %v4074
    %v5847 = vpop.f32.mrf.mxu0
    %v5848 = vadd.f32 %v5559, %v5847
    %v5849 = vpop.f32.mrf.mxu0
    %v5850 = vpop.f32.mrf.mxu0
    %v5851 = vadd.f32 %v5562, %v5850
    %v5852 = vpop.f32.mrf.mxu0
    %5853 = vmatprep.mubr.bf16.mxu0 %v4368
    %5854 = vmatmul.mubr.bf16.gmra.mxu0 %v4086
    %v5855 = vpop.f32.mrf.mxu0
    %v5856 = vadd.f32 %v5567, %v5855
    %v5857 = vpop.f32.mrf.mxu0
    %v5858 = vpop.f32.mrf.mxu0
    %v5859 = vadd.f32 %v5570, %v5858
    %v5860 = vpop.f32.mrf.mxu0
    %5861 = vmatprep.mubr.bf16.mxu0 %v4371
    %5862 = vmatmul.mubr.bf16.gmra.mxu0 %v4098
    %v5863 = vpop.f32.mrf.mxu0
    %v5864 = vadd.f32 %v5575, %v5863
    %v5865 = vpop.f32.mrf.mxu0
    %v5866 = vpop.f32.mrf.mxu0
    %v5867 = vadd.f32 %v5578, %v5866
    %v5868 = vpop.f32.mrf.mxu0
    %5869 = vmatprep.mubr.bf16.mxu0 %v4374
    %5870 = vmatmul.mubr.bf16.gmra.mxu0 %v4110
    %v5871 = vpop.f32.mrf.mxu0
    %v5872 = vadd.f32 %v5583, %v5871
    %v5873 = vpop.f32.mrf.mxu0
    %v5874 = vpop.f32.mrf.mxu0
    %v5875 = vadd.f32 %v5586, %v5874
    %v5876 = vpop.f32.mrf.mxu0
    %5877 = vmatprep.mubr.bf16.mxu0 %v4377
    %5878 = vmatmul.mubr.bf16.gmra.mxu0 %v4122
    %v5879 = vpop.f32.mrf.mxu0
    %v5880 = vadd.f32 %v5591, %v5879
    %v5881 = vpop.f32.mrf.mxu0
    %v5882 = vpop.f32.mrf.mxu0
    %v5883 = vadd.f32 %v5594, %v5882
    %v5884 = vpop.f32.mrf.mxu0
    %5885 = vmatprep.mubr.bf16.mxu0 %v4380
    %5886 = vmatmul.mubr.bf16.gmra.mxu0 %v4134
    %v5887 = vpop.f32.mrf.mxu0
    %v5888 = vadd.f32 %v5599, %v5887
    %v5889 = vpop.f32.mrf.mxu0
    %v5890 = vpop.f32.mrf.mxu0
    %v5891 = vadd.f32 %v5602, %v5890
    %v5892 = vpop.f32.mrf.mxu0
    %5893 = vmatprep.mubr.bf16.mxu0 %v4383
    %5894 = vmatmul.mubr.bf16.gmra.mxu0 %v4146
    %v5895 = vpop.f32.mrf.mxu0
    %v5896 = vadd.f32 %v5607, %v5895
    %v5897 = vpop.f32.mrf.mxu0
    %v5898 = vpop.f32.mrf.mxu0
    %v5899 = vadd.f32 %v5610, %v5898
    %v5900 = vpop.f32.mrf.mxu0
    %5901 = vmatprep.mubr.bf16.mxu0 %v4386
    %5902 = vmatmul.mubr.bf16.gmra.mxu0 %v4158
    %v5903 = vpop.f32.mrf.mxu0
    %v5904 = vadd.f32 %v5615, %v5903
    %v5905 = vpop.f32.mrf.mxu0
    %v5906 = vpop.f32.mrf.mxu0
    %v5907 = vadd.f32 %v5618, %v5906
    %v5908 = vpop.f32.mrf.mxu0
    %5909 = vmatprep.mubr.bf16.mxu0 %v4389
    %5910 = vmatmul.mubr.bf16.gmra.mxu0 %v4170
    %v5911 = vpop.f32.mrf.mxu0
    %v5912 = vadd.f32 %v5623, %v5911
    %v5913 = vpop.f32.mrf.mxu0
    %v5914 = vpop.f32.mrf.mxu0
    %v5915 = vadd.f32 %v5626, %v5914
    %v5916 = vpop.f32.mrf.mxu0
    %5917 = vmatprep.mubr.bf16.mxu0 %v4392
    %5918 = vmatmul.mubr.bf16.gmra.mxu0 %v4182
    %v5919 = vpop.f32.mrf.mxu0
    %v5920 = vadd.f32 %v5631, %v5919
    %v5921 = vpop.f32.mrf.mxu0
    %v5922 = vpop.f32.mrf.mxu0
    %v5923 = vadd.f32 %v5634, %v5922
    %v5924 = vpop.f32.mrf.mxu0
    %5925 = vmatprep.mubr.bf16.mxu0 %v4395
    %5926 = vmatmul.mubr.bf16.gmra.mxu0 %v4194
    %v5927 = vpop.f32.mrf.mxu0
    %v5928 = vadd.f32 %v5639, %v5927
    %v5929 = vpop.f32.mrf.mxu0
    %v5930 = vpop.f32.mrf.mxu0
    %v5931 = vadd.f32 %v5642, %v5930
    %v5932 = vpop.f32.mrf.mxu0
    %5933 = vmatprep.mubr.bf16.mxu0 %v4398
    %5934 = vmatmul.mubr.bf16.gmra.mxu0 %v4206
    %v5935 = vpop.f32.mrf.mxu0
    %v5936 = vadd.f32 %v5647, %v5935
    %v5937 = vpop.f32.mrf.mxu0
    %v5938 = vpop.f32.mrf.mxu0
    %v5939 = vadd.f32 %v5650, %v5938
    %v5940 = vpop.f32.mrf.mxu0
    %5941 = vmatprep.mubr.bf16.mxu0 %v4466
    %5942 = vmatmul.mubr.bf16.gmra.mxu0 %v4454
    %v5943 = vpop.f32.mrf.mxu0
    %v5944 = vadd.f32 %v5655, %v5943
    %v5945 = vpop.f32.mrf.mxu0
    %v5946 = vpop.f32.mrf.mxu0
    %v5947 = vadd.f32 %v5658, %v5946
    %v5948 = vpop.f32.mrf.mxu0
    %5949 = vdwg.mxu0
    %5950 = vmatprep.subr.bf16.mxu0 0
    %5951 = vmatpush1.bf16.msra.mxu0 %v4994
    %5952 = vmatprep.subr.bf16.mxu0 0
    %5953 = vmatpush1.bf16.msra.mxu0 %v4993
    %5954 = vmatprep.subr.bf16.mxu0 0
    %5955 = vmatpush1.bf16.msra.mxu0 %v4992
    %5956 = vmatprep.subr.bf16.mxu0 0
    %5957 = vmatpush1.bf16.msra.mxu0 %v4991
    %5958 = vmatprep.subr.bf16.mxu0 0
    %5959 = vmatpush1.bf16.msra.mxu0 %v4990
    %5960 = vmatprep.subr.bf16.mxu0 0
    %5961 = vmatpush1.bf16.msra.mxu0 %v4989
    %5962 = vmatprep.subr.bf16.mxu0 0
    %5963 = vmatpush1.bf16.msra.mxu0 %v4988
    %5964 = vmatprep.subr.bf16.mxu0 0
    %5965 = vmatpush1.bf16.msra.mxu0 %v4987
    %5966 = vmatprep.subr.bf16.mxu0 0
    %5967 = vmatpush2.bf16.msra.mxu0 %v5002
    %5968 = vmatprep.subr.bf16.mxu0 0
    %5969 = vmatpush2.bf16.msra.mxu0 %v5001
    %5970 = vmatprep.subr.bf16.mxu0 0
    %5971 = vmatpush2.bf16.msra.mxu0 %v5000
    %5972 = vmatprep.subr.bf16.mxu0 0
    %5973 = vmatpush2.bf16.msra.mxu0 %v4999
    %5974 = vmatprep.subr.bf16.mxu0 0
    %5975 = vmatpush2.bf16.msra.mxu0 %v4998
    %5976 = vmatprep.subr.bf16.mxu0 0
    %5977 = vmatpush2.bf16.msra.mxu0 %v4997
    %5978 = vmatprep.subr.bf16.mxu0 0
    %5979 = vmatpush2.bf16.msra.mxu0 %v4996
    %5980 = vmatprep.subr.bf16.mxu0 0
    %5981 = vmatpush2.bf16.msra.mxu0 %v4995
    %5982 = vmatprep.mubr.bf16.mxu0 %v3858
    %5983 = vmatmul.mubr.bf16.gmra.mxu0 %v3753
    %v5984 = vpop.f32.mrf.mxu0
    %v5985 = vadd.f32 %v5696, %v5984
    %v5986 = vpop.f32.mrf.mxu0
    %v5987 = vpop.f32.mrf.mxu0
    %v5988 = vadd.f32 %v5699, %v5987
    %v5989 = vpop.f32.mrf.mxu0
    %5990 = vmatprep.mubr.bf16.mxu0 %v3870
    %5991 = vmatmul.mubr.bf16.gmra.mxu0 %v3754
    %v5992 = vpop.f32.mrf.mxu0
    %v5993 = vadd.f32 %v5704, %v5992
    %v5994 = vpop.f32.mrf.mxu0
    %v5995 = vpop.f32.mrf.mxu0
    %v5996 = vadd.f32 %v5707, %v5995
    %v5997 = vpop.f32.mrf.mxu0
    %5998 = vmatprep.mubr.bf16.mxu0 %v3882
    %5999 = vmatmul.mubr.bf16.gmra.mxu0 %v3755
    %v6000 = vpop.f32.mrf.mxu0
    %v6001 = vadd.f32 %v5712, %v6000
    %v6002 = vpop.f32.mrf.mxu0
    %v6003 = vpop.f32.mrf.mxu0
    %v6004 = vadd.f32 %v5715, %v6003
    %v6005 = vpop.f32.mrf.mxu0
    %6006 = vmatprep.mubr.bf16.mxu0 %v3894
    %6007 = vmatmul.mubr.bf16.gmra.mxu0 %v3756
    %v6008 = vpop.f32.mrf.mxu0
    %v6009 = vadd.f32 %v5720, %v6008
    %v6010 = vpop.f32.mrf.mxu0
    %v6011 = vpop.f32.mrf.mxu0
    %v6012 = vadd.f32 %v5723, %v6011
    %v6013 = vpop.f32.mrf.mxu0
    %6014 = vmatprep.mubr.bf16.mxu0 %v3906
    %6015 = vmatmul.mubr.bf16.gmra.mxu0 %v3757
    %v6016 = vpop.f32.mrf.mxu0
    %v6017 = vadd.f32 %v5728, %v6016
    %v6018 = vpop.f32.mrf.mxu0
    %v6019 = vpop.f32.mrf.mxu0
    %v6020 = vadd.f32 %v5731, %v6019
    %v6021 = vpop.f32.mrf.mxu0
    %6022 = vmatprep.mubr.bf16.mxu0 %v3918
    %6023 = vmatmul.mubr.bf16.gmra.mxu0 %v3758
    %v6024 = vpop.f32.mrf.mxu0
    %v6025 = vadd.f32 %v5736, %v6024
    %v6026 = vpop.f32.mrf.mxu0
    %v6027 = vpop.f32.mrf.mxu0
    %v6028 = vadd.f32 %v5739, %v6027
    %v6029 = vpop.f32.mrf.mxu0
    %6030 = vmatprep.mubr.bf16.mxu0 %v3930
    %6031 = vmatmul.mubr.bf16.gmra.mxu0 %v3759
    %v6032 = vpop.f32.mrf.mxu0
    %v6033 = vadd.f32 %v5744, %v6032
    %v6034 = vpop.f32.mrf.mxu0
    %v6035 = vpop.f32.mrf.mxu0
    %v6036 = vadd.f32 %v5747, %v6035
    %v6037 = vpop.f32.mrf.mxu0
    %6038 = vmatprep.mubr.bf16.mxu0 %v3942
    %6039 = vmatmul.mubr.bf16.gmra.mxu0 %v3760
    %v6040 = vpop.f32.mrf.mxu0
    %v6041 = vadd.f32 %v5752, %v6040
    %v6042 = vpop.f32.mrf.mxu0
    %v6043 = vpop.f32.mrf.mxu0
    %v6044 = vadd.f32 %v5755, %v6043
    %v6045 = vpop.f32.mrf.mxu0
    %6046 = vmatprep.mubr.bf16.mxu0 %v3954
    %6047 = vmatmul.mubr.bf16.gmra.mxu0 %v3761
    %v6048 = vpop.f32.mrf.mxu0
    %v6049 = vadd.f32 %v5760, %v6048
    %v6050 = vpop.f32.mrf.mxu0
    %v6051 = vpop.f32.mrf.mxu0
    %v6052 = vadd.f32 %v5763, %v6051
    %v6053 = vpop.f32.mrf.mxu0
    %6054 = vmatprep.mubr.bf16.mxu0 %v3966
    %6055 = vmatmul.mubr.bf16.gmra.mxu0 %v3762
    %v6056 = vpop.f32.mrf.mxu0
    %v6057 = vadd.f32 %v5768, %v6056
    %v6058 = vpop.f32.mrf.mxu0
    %v6059 = vpop.f32.mrf.mxu0
    %v6060 = vadd.f32 %v5771, %v6059
    %v6061 = vpop.f32.mrf.mxu0
    %6062 = vmatprep.mubr.bf16.mxu0 %v3978
    %6063 = vmatmul.mubr.bf16.gmra.mxu0 %v3763
    %v6064 = vpop.f32.mrf.mxu0
    %v6065 = vadd.f32 %v5776, %v6064
    %v6066 = vpop.f32.mrf.mxu0
    %v6067 = vpop.f32.mrf.mxu0
    %v6068 = vadd.f32 %v5779, %v6067
    %v6069 = vpop.f32.mrf.mxu0
    %6070 = vmatprep.mubr.bf16.mxu0 %v3990
    %6071 = vmatmul.mubr.bf16.gmra.mxu0 %v3764
    %v6072 = vpop.f32.mrf.mxu0
    %v6073 = vadd.f32 %v5784, %v6072
    %v6074 = vpop.f32.mrf.mxu0
    %v6075 = vpop.f32.mrf.mxu0
    %v6076 = vadd.f32 %v5787, %v6075
    %v6077 = vpop.f32.mrf.mxu0
    %6078 = vmatprep.mubr.bf16.mxu0 %v4002
    %6079 = vmatmul.mubr.bf16.gmra.mxu0 %v3765
    %v6080 = vpop.f32.mrf.mxu0
    %v6081 = vadd.f32 %v5792, %v6080
    %v6082 = vpop.f32.mrf.mxu0
    %v6083 = vpop.f32.mrf.mxu0
    %v6084 = vadd.f32 %v5795, %v6083
    %v6085 = vpop.f32.mrf.mxu0
    %6086 = vmatprep.mubr.bf16.mxu0 %v4014
    %6087 = vmatmul.mubr.bf16.gmra.mxu0 %v3766
    %v6088 = vpop.f32.mrf.mxu0
    %v6089 = vadd.f32 %v5800, %v6088
    %v6090 = vpop.f32.mrf.mxu0
    %v6091 = vpop.f32.mrf.mxu0
    %v6092 = vadd.f32 %v5803, %v6091
    %v6093 = vpop.f32.mrf.mxu0
    %6094 = vmatprep.mubr.bf16.mxu0 %v4442
    %6095 = vmatmul.mubr.bf16.gmra.mxu0 %v3815
    %v6096 = vpop.f32.mrf.mxu0
    %v6097 = vadd.f32 %v5808, %v6096
    %v6098 = vpop.f32.mrf.mxu0
    %v6099 = vpop.f32.mrf.mxu0
    %v6100 = vadd.f32 %v5811, %v6099
    %v6101 = vpop.f32.mrf.mxu0
    %6102 = vmatprep.mubr.bf16.mxu0 %v4480
    %6103 = vmatmul.mubr.bf16.gmra.mxu0 %v3819
    %v6104 = vpop.f32.mrf.mxu0
    %v6105 = vadd.f32 %v5816, %v6104
    %v6106 = vpop.f32.mrf.mxu0
    %v6107 = vpop.f32.mrf.mxu0
    %v6108 = vadd.f32 %v5819, %v6107
    %v6109 = vpop.f32.mrf.mxu0
    %6110 = vmatprep.mubr.bf16.mxu0 %v4050
    %6111 = vmatmul.mubr.bf16.gmra.mxu0 %v3769
    %v6112 = vpop.f32.mrf.mxu0
    %v6113 = vadd.f32 %v5824, %v6112
    %v6114 = vpop.f32.mrf.mxu0
    %v6115 = vpop.f32.mrf.mxu0
    %v6116 = vadd.f32 %v5827, %v6115
    %v6117 = vpop.f32.mrf.mxu0
    %6118 = vmatprep.mubr.bf16.mxu0 %v4062
    %6119 = vmatmul.mubr.bf16.gmra.mxu0 %v3770
    %v6120 = vpop.f32.mrf.mxu0
    %v6121 = vadd.f32 %v5832, %v6120
    %v6122 = vpop.f32.mrf.mxu0
    %v6123 = vpop.f32.mrf.mxu0
    %v6124 = vadd.f32 %v5835, %v6123
    %v6125 = vpop.f32.mrf.mxu0
    %6126 = vmatprep.mubr.bf16.mxu0 %v4074
    %6127 = vmatmul.mubr.bf16.gmra.mxu0 %v3771
    %v6128 = vpop.f32.mrf.mxu0
    %v6129 = vadd.f32 %v5840, %v6128
    %v6130 = vpop.f32.mrf.mxu0
    %v6131 = vpop.f32.mrf.mxu0
    %v6132 = vadd.f32 %v5843, %v6131
    %v6133 = vpop.f32.mrf.mxu0
    %6134 = vmatprep.mubr.bf16.mxu0 %v4086
    %6135 = vmatmul.mubr.bf16.gmra.mxu0 %v3772
    %v6136 = vpop.f32.mrf.mxu0
    %v6137 = vadd.f32 %v5848, %v6136
    %v6138 = vpop.f32.mrf.mxu0
    %v6139 = vpop.f32.mrf.mxu0
    %v6140 = vadd.f32 %v5851, %v6139
    %v6141 = vpop.f32.mrf.mxu0
    %6142 = vmatprep.mubr.bf16.mxu0 %v4098
    %6143 = vmatmul.mubr.bf16.gmra.mxu0 %v3773
    %v6144 = vpop.f32.mrf.mxu0
    %v6145 = vadd.f32 %v5856, %v6144
    %v6146 = vpop.f32.mrf.mxu0
    %v6147 = vpop.f32.mrf.mxu0
    %v6148 = vadd.f32 %v5859, %v6147
    %v6149 = vpop.f32.mrf.mxu0
    %6150 = vmatprep.mubr.bf16.mxu0 %v4110
    %6151 = vmatmul.mubr.bf16.gmra.mxu0 %v3774
    %v6152 = vpop.f32.mrf.mxu0
    %v6153 = vadd.f32 %v5864, %v6152
    %v6154 = vpop.f32.mrf.mxu0
    %v6155 = vpop.f32.mrf.mxu0
    %v6156 = vadd.f32 %v5867, %v6155
    %v6157 = vpop.f32.mrf.mxu0
    %6158 = vmatprep.mubr.bf16.mxu0 %v4122
    %6159 = vmatmul.mubr.bf16.gmra.mxu0 %v3775
    %v6160 = vpop.f32.mrf.mxu0
    %v6161 = vadd.f32 %v5872, %v6160
    %v6162 = vpop.f32.mrf.mxu0
    %v6163 = vpop.f32.mrf.mxu0
    %v6164 = vadd.f32 %v5875, %v6163
    %v6165 = vpop.f32.mrf.mxu0
    %6166 = vmatprep.mubr.bf16.mxu0 %v4134
    %6167 = vmatmul.mubr.bf16.gmra.mxu0 %v3776
    %v6168 = vpop.f32.mrf.mxu0
    %v6169 = vadd.f32 %v5880, %v6168
    %v6170 = vpop.f32.mrf.mxu0
    %v6171 = vpop.f32.mrf.mxu0
    %v6172 = vadd.f32 %v5883, %v6171
    %v6173 = vpop.f32.mrf.mxu0
    %6174 = vmatprep.mubr.bf16.mxu0 %v4146
    %6175 = vmatmul.mubr.bf16.gmra.mxu0 %v3777
    %v6176 = vpop.f32.mrf.mxu0
    %v6177 = vadd.f32 %v5888, %v6176
    %v6178 = vpop.f32.mrf.mxu0
    %v6179 = vpop.f32.mrf.mxu0
    %v6180 = vadd.f32 %v5891, %v6179
    %v6181 = vpop.f32.mrf.mxu0
    %6182 = vmatprep.mubr.bf16.mxu0 %v4158
    %6183 = vmatmul.mubr.bf16.gmra.mxu0 %v3778
    %v6184 = vpop.f32.mrf.mxu0
    %v6185 = vadd.f32 %v5896, %v6184
    %v6186 = vpop.f32.mrf.mxu0
    %v6187 = vpop.f32.mrf.mxu0
    %v6188 = vadd.f32 %v5899, %v6187
    %v6189 = vpop.f32.mrf.mxu0
    %6190 = vmatprep.mubr.bf16.mxu0 %v4170
    %6191 = vmatmul.mubr.bf16.gmra.mxu0 %v3779
    %v6192 = vpop.f32.mrf.mxu0
    %v6193 = vadd.f32 %v5904, %v6192
    %v6194 = vpop.f32.mrf.mxu0
    %v6195 = vpop.f32.mrf.mxu0
    %v6196 = vadd.f32 %v5907, %v6195
    %v6197 = vpop.f32.mrf.mxu0
    %6198 = vmatprep.mubr.bf16.mxu0 %v4182
    %6199 = vmatmul.mubr.bf16.gmra.mxu0 %v3780
    %v6200 = vpop.f32.mrf.mxu0
    %v6201 = vadd.f32 %v5912, %v6200
    %v6202 = vpop.f32.mrf.mxu0
    %v6203 = vpop.f32.mrf.mxu0
    %v6204 = vadd.f32 %v5915, %v6203
    %v6205 = vpop.f32.mrf.mxu0
    %6206 = vmatprep.mubr.bf16.mxu0 %v4194
    %6207 = vmatmul.mubr.bf16.gmra.mxu0 %v3781
    %v6208 = vpop.f32.mrf.mxu0
    %v6209 = vadd.f32 %v5920, %v6208
    %v6210 = vpop.f32.mrf.mxu0
    %v6211 = vpop.f32.mrf.mxu0
    %v6212 = vadd.f32 %v5923, %v6211
    %v6213 = vpop.f32.mrf.mxu0
    %6214 = vmatprep.mubr.bf16.mxu0 %v4206
    %6215 = vmatmul.mubr.bf16.gmra.mxu0 %v3782
    %v6216 = vpop.f32.mrf.mxu0
    %v6217 = vadd.f32 %v5928, %v6216
    %v6218 = vpop.f32.mrf.mxu0
    %v6219 = vpop.f32.mrf.mxu0
    %v6220 = vadd.f32 %v5931, %v6219
    %v6221 = vpop.f32.mrf.mxu0
    %6222 = vmatprep.mubr.bf16.mxu0 %v4454
    %6223 = vmatmul.mubr.bf16.gmra.mxu0 %v3816
    %v6224 = vpop.f32.mrf.mxu0
    %v6225 = vadd.f32 %v5936, %v6224
    %v6226 = vpop.f32.mrf.mxu0
    %v6227 = vpop.f32.mrf.mxu0
    %v6228 = vadd.f32 %v5939, %v6227
    %v6229 = vpop.f32.mrf.mxu0
    %6230 = vmatprep.mubr.bf16.mxu0 %v4492
    %6231 = vmatmul.mubr.bf16.gmra.mxu0 %v3820
    %v6232 = vpop.f32.mrf.mxu0
    %v6233 = vadd.f32 %v5944, %v6232
    %v6234 = vpop.f32.mrf.mxu0
    %v6235 = vpop.f32.mrf.mxu0
    %v6236 = vadd.f32 %v5947, %v6235
    %v6237 = vpop.f32.mrf.mxu0
    %6238 = vdwg.mxu0
    %6239 = vmatprep.subr.bf16.mxu0 0
    %6240 = vmatpush1.bf16.msra.mxu0 %v5010
    %6241 = vmatprep.subr.bf16.mxu0 0
    %6242 = vmatpush1.bf16.msra.mxu0 %v5009
    %6243 = vmatprep.subr.bf16.mxu0 0
    %6244 = vmatpush1.bf16.msra.mxu0 %v5008
    %6245 = vmatprep.subr.bf16.mxu0 0
    %6246 = vmatpush1.bf16.msra.mxu0 %v5007
    %6247 = vmatprep.subr.bf16.mxu0 0
    %6248 = vmatpush1.bf16.msra.mxu0 %v5006
    %6249 = vmatprep.subr.bf16.mxu0 0
    %6250 = vmatpush1.bf16.msra.mxu0 %v5005
    %6251 = vmatprep.subr.bf16.mxu0 0
    %6252 = vmatpush1.bf16.msra.mxu0 %v5004
    %6253 = vmatprep.subr.bf16.mxu0 0
    %6254 = vmatpush1.bf16.msra.mxu0 %v5003
    %6255 = vmatprep.subr.bf16.mxu0 0
    %6256 = vmatpush2.bf16.msra.mxu0 0
    %6257 = vmatprep.subr.bf16.mxu0 0
    %6258 = vmatpush2.bf16.msra.mxu0 0
    %6259 = vmatprep.subr.bf16.mxu0 0
    %6260 = vmatpush2.bf16.msra.mxu0 0
    %6261 = vmatprep.subr.bf16.mxu0 0
    %6262 = vmatpush2.bf16.msra.mxu0 0
    %6263 = vmatprep.subr.bf16.mxu0 0
    %6264 = vmatpush2.bf16.msra.mxu0 0
    %6265 = vmatprep.subr.bf16.mxu0 0
    %6266 = vmatpush2.bf16.msra.mxu0 0
    %6267 = vmatprep.subr.bf16.mxu0 0
    %6268 = vmatpush2.bf16.msra.mxu0 0
    %6269 = vmatprep.subr.bf16.mxu0 0
    %6270 = vmatpush2.bf16.msra.mxu0 0
    %6271 = vmatprep.mubr.bf16.mxu0 0
    %6272 = vmatmul.mubr.bf16.gmra.mxu0 %v4311
    %v6273 = vpop.f32.mrf.mxu0
    %v6274 = vadd.f32 %v5985, %v6273
    %v6275 = vpop.f32.mrf.mxu0
    %v6276 = vpop.f32.mrf.mxu0
    %v6277 = vadd.f32 %v5988, %v6276
    %v6278 = vpop.f32.mrf.mxu0
    %6279 = vmatprep.mubr.bf16.mxu0 0
    %6280 = vmatmul.mubr.bf16.gmra.mxu0 %v4314
    %v6281 = vpop.f32.mrf.mxu0
    %v6282 = vadd.f32 %v5993, %v6281
    %v6283 = vpop.f32.mrf.mxu0
    %v6284 = vpop.f32.mrf.mxu0
    %v6285 = vadd.f32 %v5996, %v6284
    %v6286 = vpop.f32.mrf.mxu0
    %6287 = vmatprep.mubr.bf16.mxu0 0
    %6288 = vmatmul.mubr.bf16.gmra.mxu0 %v4317
    %v6289 = vpop.f32.mrf.mxu0
    %v6290 = vadd.f32 %v6001, %v6289
    %v6291 = vpop.f32.mrf.mxu0
    %v6292 = vpop.f32.mrf.mxu0
    %v6293 = vadd.f32 %v6004, %v6292
    %v6294 = vpop.f32.mrf.mxu0
    %6295 = vmatprep.mubr.bf16.mxu0 0
    %6296 = vmatmul.mubr.bf16.gmra.mxu0 %v4320
    %v6297 = vpop.f32.mrf.mxu0
    %v6298 = vadd.f32 %v6009, %v6297
    %v6299 = vpop.f32.mrf.mxu0
    %v6300 = vpop.f32.mrf.mxu0
    %v6301 = vadd.f32 %v6012, %v6300
    %v6302 = vpop.f32.mrf.mxu0
    %6303 = vmatprep.mubr.bf16.mxu0 0
    %6304 = vmatmul.mubr.bf16.gmra.mxu0 %v4323
    %v6305 = vpop.f32.mrf.mxu0
    %v6306 = vadd.f32 %v6017, %v6305
    %v6307 = vpop.f32.mrf.mxu0
    %v6308 = vpop.f32.mrf.mxu0
    %v6309 = vadd.f32 %v6020, %v6308
    %v6310 = vpop.f32.mrf.mxu0
    %6311 = vmatprep.mubr.bf16.mxu0 0
    %6312 = vmatmul.mubr.bf16.gmra.mxu0 %v4326
    %v6313 = vpop.f32.mrf.mxu0
    %v6314 = vadd.f32 %v6025, %v6313
    %v6315 = vpop.f32.mrf.mxu0
    %v6316 = vpop.f32.mrf.mxu0
    %v6317 = vadd.f32 %v6028, %v6316
    %v6318 = vpop.f32.mrf.mxu0
    %6319 = vmatprep.mubr.bf16.mxu0 0
    %6320 = vmatmul.mubr.bf16.gmra.mxu0 %v4329
    %v6321 = vpop.f32.mrf.mxu0
    %v6322 = vadd.f32 %v6033, %v6321
    %v6323 = vpop.f32.mrf.mxu0
    %v6324 = vpop.f32.mrf.mxu0
    %v6325 = vadd.f32 %v6036, %v6324
    %v6326 = vpop.f32.mrf.mxu0
    %6327 = vmatprep.mubr.bf16.mxu0 0
    %6328 = vmatmul.mubr.bf16.gmra.mxu0 %v4332
    %v6329 = vpop.f32.mrf.mxu0
    %v6330 = vadd.f32 %v6041, %v6329
    %v6331 = vpop.f32.mrf.mxu0
    %v6332 = vpop.f32.mrf.mxu0
    %v6333 = vadd.f32 %v6044, %v6332
    %v6334 = vpop.f32.mrf.mxu0
    %6335 = vmatprep.mubr.bf16.mxu0 0
    %6336 = vmatmul.mubr.bf16.gmra.mxu0 %v4335
    %v6337 = vpop.f32.mrf.mxu0
    %v6338 = vadd.f32 %v6049, %v6337
    %v6339 = vpop.f32.mrf.mxu0
    %v6340 = vpop.f32.mrf.mxu0
    %v6341 = vadd.f32 %v6052, %v6340
    %v6342 = vpop.f32.mrf.mxu0
    %6343 = vmatprep.mubr.bf16.mxu0 0
    %6344 = vmatmul.mubr.bf16.gmra.mxu0 %v4338
    %v6345 = vpop.f32.mrf.mxu0
    %v6346 = vadd.f32 %v6057, %v6345
    %v6347 = vpop.f32.mrf.mxu0
    %v6348 = vpop.f32.mrf.mxu0
    %v6349 = vadd.f32 %v6060, %v6348
    %v6350 = vpop.f32.mrf.mxu0
    %6351 = vmatprep.mubr.bf16.mxu0 0
    %6352 = vmatmul.mubr.bf16.gmra.mxu0 %v4341
    %v6353 = vpop.f32.mrf.mxu0
    %v6354 = vadd.f32 %v6065, %v6353
    %v6355 = vpop.f32.mrf.mxu0
    %v6356 = vpop.f32.mrf.mxu0
    %v6357 = vadd.f32 %v6068, %v6356
    %v6358 = vpop.f32.mrf.mxu0
    %6359 = vmatprep.mubr.bf16.mxu0 0
    %6360 = vmatmul.mubr.bf16.gmra.mxu0 %v4344
    %v6361 = vpop.f32.mrf.mxu0
    %v6362 = vadd.f32 %v6073, %v6361
    %v6363 = vpop.f32.mrf.mxu0
    %v6364 = vpop.f32.mrf.mxu0
    %v6365 = vadd.f32 %v6076, %v6364
    %v6366 = vpop.f32.mrf.mxu0
    %6367 = vmatprep.mubr.bf16.mxu0 0
    %6368 = vmatmul.mubr.bf16.gmra.mxu0 %v4347
    %v6369 = vpop.f32.mrf.mxu0
    %v6370 = vadd.f32 %v6081, %v6369
    %v6371 = vpop.f32.mrf.mxu0
    %v6372 = vpop.f32.mrf.mxu0
    %v6373 = vadd.f32 %v6084, %v6372
    %v6374 = vpop.f32.mrf.mxu0
    %6375 = vmatprep.mubr.bf16.mxu0 0
    %6376 = vmatmul.mubr.bf16.gmra.mxu0 %v4350
    %v6377 = vpop.f32.mrf.mxu0
    %v6378 = vadd.f32 %v6089, %v6377
    %v6379 = vpop.f32.mrf.mxu0
    %v6380 = vpop.f32.mrf.mxu0
    %v6381 = vadd.f32 %v6092, %v6380
    %v6382 = vpop.f32.mrf.mxu0
    %6383 = vmatprep.mubr.bf16.mxu0 0
    %6384 = vmatmul.mubr.bf16.gmra.mxu0 %v4463
    %v6385 = vpop.f32.mrf.mxu0
    %v6386 = vadd.f32 %v6097, %v6385
    %v6387 = vpop.f32.mrf.mxu0
    %v6388 = vpop.f32.mrf.mxu0
    %v6389 = vadd.f32 %v6100, %v6388
    %v6390 = vpop.f32.mrf.mxu0
    %6391 = vmatprep.mubr.bf16.mxu0 0
    %6392 = vmatmul.mubr.bf16.gmra.mxu0 %v4501
    %v6393 = vpop.f32.mrf.mxu0
    %v6394 = vadd.f32 %v6105, %v6393
    %v6395 = vpop.f32.mrf.mxu0
    %v6396 = vpop.f32.mrf.mxu0
    %v6397 = vadd.f32 %v6108, %v6396
    %v6398 = vpop.f32.mrf.mxu0
    %6399 = vmatprep.mubr.bf16.mxu0 0
    %6400 = vmatmul.mubr.bf16.gmra.mxu0 %v4359
    %v6401 = vpop.f32.mrf.mxu0
    %v6402 = vadd.f32 %v6113, %v6401
    %v6403 = vpop.f32.mrf.mxu0
    %v6404 = vpop.f32.mrf.mxu0
    %v6405 = vadd.f32 %v6116, %v6404
    %v6406 = vpop.f32.mrf.mxu0
    %6407 = vmatprep.mubr.bf16.mxu0 0
    %6408 = vmatmul.mubr.bf16.gmra.mxu0 %v4362
    %v6409 = vpop.f32.mrf.mxu0
    %v6410 = vadd.f32 %v6121, %v6409
    %v6411 = vpop.f32.mrf.mxu0
    %v6412 = vpop.f32.mrf.mxu0
    %v6413 = vadd.f32 %v6124, %v6412
    %v6414 = vpop.f32.mrf.mxu0
    %6415 = vmatprep.mubr.bf16.mxu0 0
    %6416 = vmatmul.mubr.bf16.gmra.mxu0 %v4365
    %v6417 = vpop.f32.mrf.mxu0
    %v6418 = vadd.f32 %v6129, %v6417
    %v6419 = vpop.f32.mrf.mxu0
    %v6420 = vpop.f32.mrf.mxu0
    %v6421 = vadd.f32 %v6132, %v6420
    %v6422 = vpop.f32.mrf.mxu0
    %6423 = vmatprep.mubr.bf16.mxu0 0
    %6424 = vmatmul.mubr.bf16.gmra.mxu0 %v4368
    %v6425 = vpop.f32.mrf.mxu0
    %v6426 = vadd.f32 %v6137, %v6425
    %v6427 = vpop.f32.mrf.mxu0
    %v6428 = vpop.f32.mrf.mxu0
    %v6429 = vadd.f32 %v6140, %v6428
    %v6430 = vpop.f32.mrf.mxu0
    %6431 = vmatprep.mubr.bf16.mxu0 0
    %6432 = vmatmul.mubr.bf16.gmra.mxu0 %v4371
    %v6433 = vpop.f32.mrf.mxu0
    %v6434 = vadd.f32 %v6145, %v6433
    %v6435 = vpop.f32.mrf.mxu0
    %v6436 = vpop.f32.mrf.mxu0
    %v6437 = vadd.f32 %v6148, %v6436
    %v6438 = vpop.f32.mrf.mxu0
    %6439 = vmatprep.mubr.bf16.mxu0 0
    %6440 = vmatmul.mubr.bf16.gmra.mxu0 %v4374
    %v6441 = vpop.f32.mrf.mxu0
    %v6442 = vadd.f32 %v6153, %v6441
    %v6443 = vpop.f32.mrf.mxu0
    %v6444 = vpop.f32.mrf.mxu0
    %v6445 = vadd.f32 %v6156, %v6444
    %v6446 = vpop.f32.mrf.mxu0
    %6447 = vmatprep.mubr.bf16.mxu0 0
    %6448 = vmatmul.mubr.bf16.gmra.mxu0 %v4377
    %v6449 = vpop.f32.mrf.mxu0
    %v6450 = vadd.f32 %v6161, %v6449
    %v6451 = vpop.f32.mrf.mxu0
    %v6452 = vpop.f32.mrf.mxu0
    %v6453 = vadd.f32 %v6164, %v6452
    %v6454 = vpop.f32.mrf.mxu0
    %6455 = vmatprep.mubr.bf16.mxu0 0
    %6456 = vmatmul.mubr.bf16.gmra.mxu0 %v4380
    %v6457 = vpop.f32.mrf.mxu0
    %v6458 = vadd.f32 %v6169, %v6457
    %v6459 = vpop.f32.mrf.mxu0
    %v6460 = vpop.f32.mrf.mxu0
    %v6461 = vadd.f32 %v6172, %v6460
    %v6462 = vpop.f32.mrf.mxu0
    %6463 = vmatprep.mubr.bf16.mxu0 0
    %6464 = vmatmul.mubr.bf16.gmra.mxu0 %v4383
    %v6465 = vpop.f32.mrf.mxu0
    %v6466 = vadd.f32 %v6177, %v6465
    %v6467 = vpop.f32.mrf.mxu0
    %v6468 = vpop.f32.mrf.mxu0
    %v6469 = vadd.f32 %v6180, %v6468
    %v6470 = vpop.f32.mrf.mxu0
    %6471 = vmatprep.mubr.bf16.mxu0 0
    %6472 = vmatmul.mubr.bf16.gmra.mxu0 %v4386
    %v6473 = vpop.f32.mrf.mxu0
    %v6474 = vadd.f32 %v6185, %v6473
    %v6475 = vpop.f32.mrf.mxu0
    %v6476 = vpop.f32.mrf.mxu0
    %v6477 = vadd.f32 %v6188, %v6476
    %v6478 = vpop.f32.mrf.mxu0
    %6479 = vmatprep.mubr.bf16.mxu0 0
    %6480 = vmatmul.mubr.bf16.gmra.mxu0 %v4389
    %v6481 = vpop.f32.mrf.mxu0
    %v6482 = vadd.f32 %v6193, %v6481
    %v6483 = vpop.f32.mrf.mxu0
    %v6484 = vpop.f32.mrf.mxu0
    %v6485 = vadd.f32 %v6196, %v6484
    %v6486 = vpop.f32.mrf.mxu0
    %6487 = vmatprep.mubr.bf16.mxu0 0
    %6488 = vmatmul.mubr.bf16.gmra.mxu0 %v4392
    %v6489 = vpop.f32.mrf.mxu0
    %v6490 = vadd.f32 %v6201, %v6489
    %v6491 = vpop.f32.mrf.mxu0
    %v6492 = vpop.f32.mrf.mxu0
    %v6493 = vadd.f32 %v6204, %v6492
    %v6494 = vpop.f32.mrf.mxu0
    %6495 = vmatprep.mubr.bf16.mxu0 0
    %6496 = vmatmul.mubr.bf16.gmra.mxu0 %v4395
    %v6497 = vpop.f32.mrf.mxu0
    %v6498 = vadd.f32 %v6209, %v6497
    %v6499 = vpop.f32.mrf.mxu0
    %v6500 = vpop.f32.mrf.mxu0
    %v6501 = vadd.f32 %v6212, %v6500
    %v6502 = vpop.f32.mrf.mxu0
    %6503 = vmatprep.mubr.bf16.mxu0 0
    %6504 = vmatmul.mubr.bf16.gmra.mxu0 %v4398
    %v6505 = vpop.f32.mrf.mxu0
    %v6506 = vadd.f32 %v6217, %v6505
    %v6507 = vpop.f32.mrf.mxu0
    %v6508 = vpop.f32.mrf.mxu0
    %v6509 = vadd.f32 %v6220, %v6508
    %v6510 = vpop.f32.mrf.mxu0
    %6511 = vmatprep.mubr.bf16.mxu0 0
    %6512 = vmatmul.mubr.bf16.gmra.mxu0 %v4466
    %v6513 = vpop.f32.mrf.mxu0
    %v6514 = vadd.f32 %v6225, %v6513
    %v6515 = vpop.f32.mrf.mxu0
    %v6516 = vpop.f32.mrf.mxu0
    %v6517 = vadd.f32 %v6228, %v6516
    %v6518 = vpop.f32.mrf.mxu0
    %6519 = vmatprep.mubr.bf16.mxu0 0
    %6520 = vmatmul.mubr.bf16.gmra.mxu0 %v4504
    %v6521 = vpop.f32.mrf.mxu0
    %v6522 = vadd.f32 %v6233, %v6521
    %v6523 = vpop.f32.mrf.mxu0
    %v6524 = vpop.f32.mrf.mxu0
    %v6525 = vadd.f32 %v6236, %v6524
    %v6526 = vpop.f32.mrf.mxu0
    %6527 = vdwg.mxu0
    %v6528 = vadd.f32 %v6274, %v6277
    %v6529 = vadd.f32 %v6528, %v6282
    %v6530 = vadd.f32 %v6529, %v6285
    %v6531 = vadd.f32 %v6530, %v6290
    %v6532 = vadd.f32 %v6531, %v6293
    %v6533 = vadd.f32 %v6532, %v6298
    %v6534 = vadd.f32 %v6533, %v6301
    %v6535 = vadd.f32 %v6534, %v6306
    %v6536 = vadd.f32 %v6535, %v6309
    %v6537 = vadd.f32 %v6536, %v6314
    %v6538 = vadd.f32 %v6537, %v6317
    %v6539 = vadd.f32 %v6538, %v6322
    %v6540 = vadd.f32 %v6539, %v6325
    %v6541 = vadd.f32 %v6540, %v6330
    %v6542 = vadd.f32 %v6541, %v6333
    %v6543 = vadd.f32 %v6542, %v6338
    %v6544 = vadd.f32 %v6543, %v6341
    %v6545 = vadd.f32 %v6544, %v6346
    %v6546 = vadd.f32 %v6545, %v6349
    %v6547 = vadd.f32 %v6546, %v6354
    %v6548 = vadd.f32 %v6547, %v6357
    %v6549 = vadd.f32 %v6548, %v6362
    %v6550 = vadd.f32 %v6549, %v6365
    %v6551 = vadd.f32 %v6550, %v6370
    %v6552 = vadd.f32 %v6551, %v6373
    %v6553 = vadd.f32 %v6552, %v6378
    %v6554 = vadd.f32 %v6553, %v6381
    %v6555 = vadd.f32 %v6554, %v6386
    %v6556 = vadd.f32 %v6555, %v6389
    %v6557 = vadd.f32 %v6556, %v6394
    %v6558 = vadd.f32 %v6557, %v6397
    %v6559 = vadd.f32 %v6558, %v6402
    %v6560 = vadd.f32 %v6559, %v6405
    %v6561 = vadd.f32 %v6560, %v6410
    %v6562 = vadd.f32 %v6561, %v6413
    %v6563 = vadd.f32 %v6562, %v6418
    %v6564 = vadd.f32 %v6563, %v6421
    %v6565 = vadd.f32 %v6564, %v6426
    %v6566 = vadd.f32 %v6565, %v6429
    %v6567 = vadd.f32 %v6566, %v6434
    %v6568 = vadd.f32 %v6567, %v6437
    %v6569 = vadd.f32 %v6568, %v6442
    %v6570 = vadd.f32 %v6569, %v6445
    %v6571 = vadd.f32 %v6570, %v6450
    %v6572 = vadd.f32 %v6571, %v6453
    %v6573 = vadd.f32 %v6572, %v6458
    %v6574 = vadd.f32 %v6573, %v6461
    %v6575 = vadd.f32 %v6574, %v6466
    %v6576 = vadd.f32 %v6575, %v6469
    %v6577 = vadd.f32 %v6576, %v6474
    %v6578 = vadd.f32 %v6577, %v6477
    %v6579 = vadd.f32 %v6578, %v6482
    %v6580 = vadd.f32 %v6579, %v6485
    %v6581 = vadd.f32 %v6580, %v6490
    %v6582 = vadd.f32 %v6581, %v6493
    %v6583 = vadd.f32 %v6582, %v6498
    %v6584 = vadd.f32 %v6583, %v6501
    %v6585 = vadd.f32 %v6584, %v6506
    %v6586 = vadd.f32 %v6585, %v6509
    %v6587 = vadd.f32 %v6586, %v6514
    %v6588 = vadd.f32 %v6587, %v6517
    %v6589 = vadd.f32 %v6588, %v6522
    %v6590 = vadd.f32 %v6589, %v6525
    %v6591 = vrot.slane %v6590, 4
    %v6592 = vadd.f32 %v6590, %v6591
    %v6593 = vrot.slane %v6592, 2
    %v6594 = vadd.f32 %v6592, %v6593
    %v6595 = vrot.slane %v6594, 1
    %v6596 = vadd.f32 %v6594, %v6595
    %v6597 = vmul.f32 %v6596, 0.001953125
    %v6598 = vmul.f32 %v6274, %v6274
    %v6599 = vmul.f32 %v6277, %v6277
    %v6600 = vmul.f32 %v6282, %v6282
    %v6601 = vmul.f32 %v6285, %v6285
    %v6602 = vmul.f32 %v6290, %v6290
    %v6603 = vmul.f32 %v6293, %v6293
    %v6604 = vmul.f32 %v6298, %v6298
    %v6605 = vmul.f32 %v6301, %v6301
    %v6606 = vmul.f32 %v6306, %v6306
    %v6607 = vmul.f32 %v6309, %v6309
    %v6608 = vmul.f32 %v6314, %v6314
    %v6609 = vmul.f32 %v6317, %v6317
    %v6610 = vmul.f32 %v6322, %v6322
    %v6611 = vmul.f32 %v6325, %v6325
    %v6612 = vmul.f32 %v6330, %v6330
    %v6613 = vmul.f32 %v6333, %v6333
    %v6614 = vmul.f32 %v6338, %v6338
    %v6615 = vmul.f32 %v6341, %v6341
    %v6616 = vmul.f32 %v6346, %v6346
    %v6617 = vmul.f32 %v6349, %v6349
    %v6618 = vmul.f32 %v6354, %v6354
    %v6619 = vmul.f32 %v6357, %v6357
    %v6620 = vmul.f32 %v6362, %v6362
    %v6621 = vmul.f32 %v6365, %v6365
    %v6622 = vmul.f32 %v6370, %v6370
    %v6623 = vmul.f32 %v6373, %v6373
    %v6624 = vmul.f32 %v6378, %v6378
    %v6625 = vmul.f32 %v6381, %v6381
    %v6626 = vmul.f32 %v6386, %v6386
    %v6627 = vmul.f32 %v6389, %v6389
    %v6628 = vmul.f32 %v6394, %v6394
    %v6629 = vmul.f32 %v6397, %v6397
    %v6630 = vmul.f32 %v6402, %v6402
    %v6631 = vmul.f32 %v6405, %v6405
    %v6632 = vmul.f32 %v6410, %v6410
    %v6633 = vmul.f32 %v6413, %v6413
    %v6634 = vmul.f32 %v6418, %v6418
    %v6635 = vmul.f32 %v6421, %v6421
    %v6636 = vmul.f32 %v6426, %v6426
    %v6637 = vmul.f32 %v6429, %v6429
    %v6638 = vmul.f32 %v6434, %v6434
    %v6639 = vmul.f32 %v6437, %v6437
    %v6640 = vmul.f32 %v6442, %v6442
    %v6641 = vmul.f32 %v6445, %v6445
    %v6642 = vmul.f32 %v6450, %v6450
    %v6643 = vmul.f32 %v6453, %v6453
    %v6644 = vmul.f32 %v6458, %v6458
    %v6645 = vmul.f32 %v6461, %v6461
    %v6646 = vmul.f32 %v6466, %v6466
    %v6647 = vmul.f32 %v6469, %v6469
    %v6648 = vmul.f32 %v6474, %v6474
    %v6649 = vmul.f32 %v6477, %v6477
    %v6650 = vmul.f32 %v6482, %v6482
    %v6651 = vmul.f32 %v6485, %v6485
    %v6652 = vmul.f32 %v6490, %v6490
    %v6653 = vmul.f32 %v6493, %v6493
    %v6654 = vmul.f32 %v6498, %v6498
    %v6655 = vmul.f32 %v6501, %v6501
    %v6656 = vmul.f32 %v6506, %v6506
    %v6657 = vmul.f32 %v6509, %v6509
    %v6658 = vmul.f32 %v6514, %v6514
    %v6659 = vmul.f32 %v6517, %v6517
    %v6660 = vmul.f32 %v6522, %v6522
    %v6661 = vmul.f32 %v6525, %v6525
    %v6662 = vadd.f32 %v6598, %v6599
    %v6663 = vadd.f32 %v6662, %v6600
    %v6664 = vadd.f32 %v6663, %v6601
    %v6665 = vadd.f32 %v6664, %v6602
    %v6666 = vadd.f32 %v6665, %v6603
    %v6667 = vadd.f32 %v6666, %v6604
    %v6668 = vadd.f32 %v6667, %v6605
    %v6669 = vadd.f32 %v6668, %v6606
    %v6670 = vadd.f32 %v6669, %v6607
    %v6671 = vadd.f32 %v6670, %v6608
    %v6672 = vadd.f32 %v6671, %v6609
    %v6673 = vadd.f32 %v6672, %v6610
    %v6674 = vadd.f32 %v6673, %v6611
    %v6675 = vadd.f32 %v6674, %v6612
    %v6676 = vadd.f32 %v6675, %v6613
    %v6677 = vadd.f32 %v6676, %v6614
    %v6678 = vadd.f32 %v6677, %v6615
    %v6679 = vadd.f32 %v6678, %v6616
    %v6680 = vadd.f32 %v6679, %v6617
    %v6681 = vadd.f32 %v6680, %v6618
    %v6682 = vadd.f32 %v6681, %v6619
    %v6683 = vadd.f32 %v6682, %v6620
    %v6684 = vadd.f32 %v6683, %v6621
    %v6685 = vadd.f32 %v6684, %v6622
    %v6686 = vadd.f32 %v6685, %v6623
    %v6687 = vadd.f32 %v6686, %v6624
    %v6688 = vadd.f32 %v6687, %v6625
    %v6689 = vadd.f32 %v6688, %v6626
    %v6690 = vadd.f32 %v6689, %v6627
    %v6691 = vadd.f32 %v6690, %v6628
    %v6692 = vadd.f32 %v6691, %v6629
    %v6693 = vadd.f32 %v6692, %v6630
    %v6694 = vadd.f32 %v6693, %v6631
    %v6695 = vadd.f32 %v6694, %v6632
    %v6696 = vadd.f32 %v6695, %v6633
    %v6697 = vadd.f32 %v6696, %v6634
    %v6698 = vadd.f32 %v6697, %v6635
    %v6699 = vadd.f32 %v6698, %v6636
    %v6700 = vadd.f32 %v6699, %v6637
    %v6701 = vadd.f32 %v6700, %v6638
    %v6702 = vadd.f32 %v6701, %v6639
    %v6703 = vadd.f32 %v6702, %v6640
    %v6704 = vadd.f32 %v6703, %v6641
    %v6705 = vadd.f32 %v6704, %v6642
    %v6706 = vadd.f32 %v6705, %v6643
    %v6707 = vadd.f32 %v6706, %v6644
    %v6708 = vadd.f32 %v6707, %v6645
    %v6709 = vadd.f32 %v6708, %v6646
    %v6710 = vadd.f32 %v6709, %v6647
    %v6711 = vadd.f32 %v6710, %v6648
    %v6712 = vadd.f32 %v6711, %v6649
    %v6713 = vadd.f32 %v6712, %v6650
    %v6714 = vadd.f32 %v6713, %v6651
    %v6715 = vadd.f32 %v6714, %v6652
    %v6716 = vadd.f32 %v6715, %v6653
    %v6717 = vadd.f32 %v6716, %v6654
    %v6718 = vadd.f32 %v6717, %v6655
    %v6719 = vadd.f32 %v6718, %v6656
    %v6720 = vadd.f32 %v6719, %v6657
    %v6721 = vadd.f32 %v6720, %v6658
    %v6722 = vadd.f32 %v6721, %v6659
    %v6723 = vadd.f32 %v6722, %v6660
    %v6724 = vadd.f32 %v6723, %v6661
    %v6725 = vrot.slane %v6724, 4
    %v6726 = vadd.f32 %v6724, %v6725
    %v6727 = vrot.slane %v6726, 2
    %v6728 = vadd.f32 %v6726, %v6727
    %v6729 = vrot.slane %v6728, 1
    %v6730 = vadd.f32 %v6728, %v6729
    %v6731 = vmul.f32 %v6730, 0.001953125
    %v6732 = vmul.f32 %v6597, %v6597
    %v6733 = vsub.f32 %v6731, %v6732
    %v6734 = vld [vmem:[%s5] sm:$0x1]
    %v6735 = vadd.f32 %v6733, 1e-05
    %v6736 = vrsqrt.pop %v6735
    %v6737 = vmul.f32 %v6734, %v6736
    %v6738 = vld [vmem:[%s6] sm:$0x1]
    %v6739 = vmul.f32 %v6597, %v6737
    %v6740 = vsub.f32 %v6738, %v6739
    %v6742 = vlaneseq
    %v6743 = vshrl.u32 %v6742, 7
    %v6744 = vsub.s32 0, %v6743
    %v6745 = vrot.slane %v6737, %v6744
    %v6747 = vmul.f32 %v6274, %v6745
    %v6748 = vmul.f32 %v6277, %v6745
    %v6749 = vmul.f32 %v6282, %v6745
    %v6750 = vmul.f32 %v6285, %v6745
    %v6751 = vmul.f32 %v6290, %v6745
    %v6752 = vmul.f32 %v6293, %v6745
    %v6753 = vmul.f32 %v6298, %v6745
    %v6754 = vmul.f32 %v6301, %v6745
    %v6755 = vmul.f32 %v6306, %v6745
    %v6756 = vmul.f32 %v6309, %v6745
    %v6757 = vmul.f32 %v6314, %v6745
    %v6758 = vmul.f32 %v6317, %v6745
    %v6759 = vmul.f32 %v6322, %v6745
    %v6760 = vmul.f32 %v6325, %v6745
    %v6761 = vmul.f32 %v6330, %v6745
    %v6762 = vmul.f32 %v6333, %v6745
    %v6763 = vmul.f32 %v6338, %v6745
    %v6764 = vmul.f32 %v6341, %v6745
    %v6765 = vmul.f32 %v6346, %v6745
    %v6766 = vmul.f32 %v6349, %v6745
    %v6767 = vmul.f32 %v6354, %v6745
    %v6768 = vmul.f32 %v6357, %v6745
    %v6769 = vmul.f32 %v6362, %v6745
    %v6770 = vmul.f32 %v6365, %v6745
    %v6771 = vmul.f32 %v6370, %v6745
    %v6772 = vmul.f32 %v6373, %v6745
    %v6773 = vmul.f32 %v6378, %v6745
    %v6774 = vmul.f32 %v6381, %v6745
    %v6775 = vmul.f32 %v6386, %v6745
    %v6776 = vmul.f32 %v6389, %v6745
    %v6777 = vmul.f32 %v6394, %v6745
    %v6778 = vmul.f32 %v6397, %v6745
    %v6779 = vmul.f32 %v6402, %v6745
    %v6780 = vmul.f32 %v6405, %v6745
    %v6781 = vmul.f32 %v6410, %v6745
    %v6782 = vmul.f32 %v6413, %v6745
    %v6783 = vmul.f32 %v6418, %v6745
    %v6784 = vmul.f32 %v6421, %v6745
    %v6785 = vmul.f32 %v6426, %v6745
    %v6786 = vmul.f32 %v6429, %v6745
    %v6787 = vmul.f32 %v6434, %v6745
    %v6788 = vmul.f32 %v6437, %v6745
    %v6789 = vmul.f32 %v6442, %v6745
    %v6790 = vmul.f32 %v6445, %v6745
    %v6791 = vmul.f32 %v6450, %v6745
    %v6792 = vmul.f32 %v6453, %v6745
    %v6793 = vmul.f32 %v6458, %v6745
    %v6794 = vmul.f32 %v6461, %v6745
    %v6795 = vmul.f32 %v6466, %v6745
    %v6796 = vmul.f32 %v6469, %v6745
    %v6797 = vmul.f32 %v6474, %v6745
    %v6798 = vmul.f32 %v6477, %v6745
    %v6799 = vmul.f32 %v6482, %v6745
    %v6800 = vmul.f32 %v6485, %v6745
    %v6801 = vmul.f32 %v6490, %v6745
    %v6802 = vmul.f32 %v6493, %v6745
    %v6803 = vmul.f32 %v6498, %v6745
    %v6804 = vmul.f32 %v6501, %v6745
    %v6805 = vmul.f32 %v6506, %v6745
    %v6806 = vmul.f32 %v6509, %v6745
    %v6807 = vmul.f32 %v6514, %v6745
    %v6808 = vmul.f32 %v6517, %v6745
    %v6809 = vmul.f32 %v6522, %v6745
    %v6810 = vmul.f32 %v6525, %v6745
    %v6812 = vlaneseq
    %v6813 = vshrl.u32 %v6812, 7
    %v6814 = vsub.s32 0, %v6813
    %v6815 = vrot.slane %v6740, %v6814
    %v6817 = vadd.f32 %v6747, %v6815
    %v6818 = vadd.f32 %v6748, %v6815
    %v6819 = vadd.f32 %v6749, %v6815
    %v6820 = vadd.f32 %v6750, %v6815
    %v6821 = vadd.f32 %v6751, %v6815
    %v6822 = vadd.f32 %v6752, %v6815
    %v6823 = vadd.f32 %v6753, %v6815
    %v6824 = vadd.f32 %v6754, %v6815
    %v6825 = vadd.f32 %v6755, %v6815
    %v6826 = vadd.f32 %v6756, %v6815
    %v6827 = vadd.f32 %v6757, %v6815
    %v6828 = vadd.f32 %v6758, %v6815
    %v6829 = vadd.f32 %v6759, %v6815
    %v6830 = vadd.f32 %v6760, %v6815
    %v6831 = vadd.f32 %v6761, %v6815
    %v6832 = vadd.f32 %v6762, %v6815
    %v6833 = vadd.f32 %v6763, %v6815
    %v6834 = vadd.f32 %v6764, %v6815
    %v6835 = vadd.f32 %v6765, %v6815
    %v6836 = vadd.f32 %v6766, %v6815
    %v6837 = vadd.f32 %v6767, %v6815
    %v6838 = vadd.f32 %v6768, %v6815
    %v6839 = vadd.f32 %v6769, %v6815
    %v6840 = vadd.f32 %v6770, %v6815
    %v6841 = vadd.f32 %v6771, %v6815
    %v6842 = vadd.f32 %v6772, %v6815
    %v6843 = vadd.f32 %v6773, %v6815
    %v6844 = vadd.f32 %v6774, %v6815
    %v6845 = vadd.f32 %v6775, %v6815
    %v6846 = vadd.f32 %v6776, %v6815
    %v6847 = vadd.f32 %v6777, %v6815
    %v6848 = vadd.f32 %v6778, %v6815
    %v6849 = vadd.f32 %v6779, %v6815
    %v6850 = vadd.f32 %v6780, %v6815
    %v6851 = vadd.f32 %v6781, %v6815
    %v6852 = vadd.f32 %v6782, %v6815
    %v6853 = vadd.f32 %v6783, %v6815
    %v6854 = vadd.f32 %v6784, %v6815
    %v6855 = vadd.f32 %v6785, %v6815
    %v6856 = vadd.f32 %v6786, %v6815
    %v6857 = vadd.f32 %v6787, %v6815
    %v6858 = vadd.f32 %v6788, %v6815
    %v6859 = vadd.f32 %v6789, %v6815
    %v6860 = vadd.f32 %v6790, %v6815
    %v6861 = vadd.f32 %v6791, %v6815
    %v6862 = vadd.f32 %v6792, %v6815
    %v6863 = vadd.f32 %v6793, %v6815
    %v6864 = vadd.f32 %v6794, %v6815
    %v6865 = vadd.f32 %v6795, %v6815
    %v6866 = vadd.f32 %v6796, %v6815
    %v6867 = vadd.f32 %v6797, %v6815
    %v6868 = vadd.f32 %v6798, %v6815
    %v6869 = vadd.f32 %v6799, %v6815
    %v6870 = vadd.f32 %v6800, %v6815
    %v6871 = vadd.f32 %v6801, %v6815
    %v6872 = vadd.f32 %v6802, %v6815
    %v6873 = vadd.f32 %v6803, %v6815
    %v6874 = vadd.f32 %v6804, %v6815
    %v6875 = vadd.f32 %v6805, %v6815
    %v6876 = vadd.f32 %v6806, %v6815
    %v6877 = vadd.f32 %v6807, %v6815
    %v6878 = vadd.f32 %v6808, %v6815
    %v6879 = vadd.f32 %v6809, %v6815
    %v6880 = vadd.f32 %v6810, %v6815
    %v6881 = vmax.f32 %v6817, 0.0
    %v6882 = vmax.f32 %v6818, 0.0
    %v6883 = vmax.f32 %v6819, 0.0
    %v6884 = vmax.f32 %v6820, 0.0
    %v6885 = vmax.f32 %v6821, 0.0
    %v6886 = vmax.f32 %v6822, 0.0
    %v6887 = vmax.f32 %v6823, 0.0
    %v6888 = vmax.f32 %v6824, 0.0
    %v6889 = vmax.f32 %v6825, 0.0
    %v6890 = vmax.f32 %v6826, 0.0
    %v6891 = vmax.f32 %v6827, 0.0
    %v6892 = vmax.f32 %v6828, 0.0
    %v6893 = vmax.f32 %v6829, 0.0
    %v6894 = vmax.f32 %v6830, 0.0
    %v6895 = vmax.f32 %v6831, 0.0
    %v6896 = vmax.f32 %v6832, 0.0
    %v6897 = vmax.f32 %v6833, 0.0
    %v6898 = vmax.f32 %v6834, 0.0
    %v6899 = vmax.f32 %v6835, 0.0
    %v6900 = vmax.f32 %v6836, 0.0
    %v6901 = vmax.f32 %v6837, 0.0
    %v6902 = vmax.f32 %v6838, 0.0
    %v6903 = vmax.f32 %v6839, 0.0
    %v6904 = vmax.f32 %v6840, 0.0
    %v6905 = vmax.f32 %v6841, 0.0
    %v6906 = vmax.f32 %v6842, 0.0
    %v6907 = vmax.f32 %v6843, 0.0
    %v6908 = vmax.f32 %v6844, 0.0
    %v6909 = vmax.f32 %v6845, 0.0
    %v6910 = vmax.f32 %v6846, 0.0
    %v6911 = vmax.f32 %v6847, 0.0
    %v6912 = vmax.f32 %v6848, 0.0
    %v6913 = vmax.f32 %v6849, 0.0
    %v6914 = vmax.f32 %v6850, 0.0
    %v6915 = vmax.f32 %v6851, 0.0
    %v6916 = vmax.f32 %v6852, 0.0
    %v6917 = vmax.f32 %v6853, 0.0
    %v6918 = vmax.f32 %v6854, 0.0
    %v6919 = vmax.f32 %v6855, 0.0
    %v6920 = vmax.f32 %v6856, 0.0
    %v6921 = vmax.f32 %v6857, 0.0
    %v6922 = vmax.f32 %v6858, 0.0
    %v6923 = vmax.f32 %v6859, 0.0
    %v6924 = vmax.f32 %v6860, 0.0
    %v6925 = vmax.f32 %v6861, 0.0
    %v6926 = vmax.f32 %v6862, 0.0
    %v6927 = vmax.f32 %v6863, 0.0
    %v6928 = vmax.f32 %v6864, 0.0
    %v6929 = vmax.f32 %v6865, 0.0
    %v6930 = vmax.f32 %v6866, 0.0
    %v6931 = vmax.f32 %v6867, 0.0
    %v6932 = vmax.f32 %v6868, 0.0
    %v6933 = vmax.f32 %v6869, 0.0
    %v6934 = vmax.f32 %v6870, 0.0
    %v6935 = vmax.f32 %v6871, 0.0
    %v6936 = vmax.f32 %v6872, 0.0
    %v6937 = vmax.f32 %v6873, 0.0
    %v6938 = vmax.f32 %v6874, 0.0
    %v6939 = vmax.f32 %v6875, 0.0
    %v6940 = vmax.f32 %v6876, 0.0
    %v6941 = vmax.f32 %v6877, 0.0
    %v6942 = vmax.f32 %v6878, 0.0
    %v6943 = vmax.f32 %v6879, 0.0
    %v6944 = vmax.f32 %v6880, 0.0
    %6945 = vst [vmem:[#allocation9] sm:$0xff] %v6881
    %6946 = vst [vmem:[#allocation9 + $0x8] sm:$0xff] %v6882
    %6947 = vst [vmem:[#allocation9 + $0x10] sm:$0xff] %v6883
    %6948 = vst [vmem:[#allocation9 + $0x18] sm:$0xff] %v6884
    %6949 = vst [vmem:[#allocation9 + $0x20] sm:$0xff] %v6885
    %6950 = vst [vmem:[#allocation9 + $0x28] sm:$0xff] %v6886
    %6951 = vst [vmem:[#allocation9 + $0x30] sm:$0xff] %v6887
    %6952 = vst [vmem:[#allocation9 + $0x38] sm:$0xff] %v6888
    %6953 = vst [vmem:[#allocation9 + $0x40] sm:$0xff] %v6889
    %6954 = vst [vmem:[#allocation9 + $0x48] sm:$0xff] %v6890
    %6955 = vst [vmem:[#allocation9 + $0x50] sm:$0xff] %v6891
    %6956 = vst [vmem:[#allocation9 + $0x58] sm:$0xff] %v6892
    %6957 = vst [vmem:[#allocation9 + $0x60] sm:$0xff] %v6893
    %6958 = vst [vmem:[#allocation9 + $0x68] sm:$0xff] %v6894
    %6959 = vst [vmem:[#allocation9 + $0x70] sm:$0xff] %v6895
    %6960 = vst [vmem:[#allocation9 + $0x78] sm:$0xff] %v6896
    %6961 = vst [vmem:[#allocation9 + $0x80] sm:$0xff] %v6897
    %6962 = vst [vmem:[#allocation9 + $0x88] sm:$0xff] %v6898
    %6963 = vst [vmem:[#allocation9 + $0x90] sm:$0xff] %v6899
    %6964 = vst [vmem:[#allocation9 + $0x98] sm:$0xff] %v6900
    %6965 = vst [vmem:[#allocation9 + $0xa0] sm:$0xff] %v6901
    %6966 = vst [vmem:[#allocation9 + $0xa8] sm:$0xff] %v6902
    %6967 = vst [vmem:[#allocation9 + $0xb0] sm:$0xff] %v6903
    %6968 = vst [vmem:[#allocation9 + $0xb8] sm:$0xff] %v6904
    %6969 = vst [vmem:[#allocation9 + $0xc0] sm:$0xff] %v6905
    %6970 = vst [vmem:[#allocation9 + $0xc8] sm:$0xff] %v6906
    %6971 = vst [vmem:[#allocation9 + $0xd0] sm:$0xff] %v6907
    %6972 = vst [vmem:[#allocation9 + $0xd8] sm:$0xff] %v6908
    %6973 = vst [vmem:[#allocation9 + $0xe0] sm:$0xff] %v6909
    %6974 = vst [vmem:[#allocation9 + $0xe8] sm:$0xff] %v6910
    %6975 = vst [vmem:[#allocation9 + $0xf0] sm:$0xff] %v6911
    %6976 = vst [vmem:[#allocation9 + $0xf8] sm:$0xff] %v6912
    %6977 = vst [vmem:[#allocation9 + $0x100] sm:$0xff] %v6913
    %6978 = vst [vmem:[#allocation9 + $0x108] sm:$0xff] %v6914
    %6979 = vst [vmem:[#allocation9 + $0x110] sm:$0xff] %v6915
    %6980 = vst [vmem:[#allocation9 + $0x118] sm:$0xff] %v6916
    %6981 = vst [vmem:[#allocation9 + $0x120] sm:$0xff] %v6917
    %6982 = vst [vmem:[#allocation9 + $0x128] sm:$0xff] %v6918
    %6983 = vst [vmem:[#allocation9 + $0x130] sm:$0xff] %v6919
    %6984 = vst [vmem:[#allocation9 + $0x138] sm:$0xff] %v6920
    %6985 = vst [vmem:[#allocation9 + $0x140] sm:$0xff] %v6921
    %6986 = vst [vmem:[#allocation9 + $0x148] sm:$0xff] %v6922
    %6987 = vst [vmem:[#allocation9 + $0x150] sm:$0xff] %v6923
    %6988 = vst [vmem:[#allocation9 + $0x158] sm:$0xff] %v6924
    %6989 = vst [vmem:[#allocation9 + $0x160] sm:$0xff] %v6925
    %6990 = vst [vmem:[#allocation9 + $0x168] sm:$0xff] %v6926
    %6991 = vst [vmem:[#allocation9 + $0x170] sm:$0xff] %v6927
    %6992 = vst [vmem:[#allocation9 + $0x178] sm:$0xff] %v6928
    %6993 = vst [vmem:[#allocation9 + $0x180] sm:$0xff] %v6929
    %6994 = vst [vmem:[#allocation9 + $0x188] sm:$0xff] %v6930
    %6995 = vst [vmem:[#allocation9 + $0x190] sm:$0xff] %v6931
    %6996 = vst [vmem:[#allocation9 + $0x198] sm:$0xff] %v6932
    %6997 = vst [vmem:[#allocation9 + $0x1a0] sm:$0xff] %v6933
    %6998 = vst [vmem:[#allocation9 + $0x1a8] sm:$0xff] %v6934
    %6999 = vst [vmem:[#allocation9 + $0x1b0] sm:$0xff] %v6935
    %7000 = vst [vmem:[#allocation9 + $0x1b8] sm:$0xff] %v6936
    %7001 = vst [vmem:[#allocation9 + $0x1c0] sm:$0xff] %v6937
    %7002 = vst [vmem:[#allocation9 + $0x1c8] sm:$0xff] %v6938
    %7003 = vst [vmem:[#allocation9 + $0x1d0] sm:$0xff] %v6939
    %7004 = vst [vmem:[#allocation9 + $0x1d8] sm:$0xff] %v6940
    %7005 = vst [vmem:[#allocation9 + $0x1e0] sm:$0xff] %v6941
    %7006 = vst [vmem:[#allocation9 + $0x1e8] sm:$0xff] %v6942
    %7007 = vst [vmem:[#allocation9 + $0x1f0] sm:$0xff] %v6943
    %7008 = vst [vmem:[#allocation9 + $0x1f8] sm:$0xff] %v6944
    // Predicated region
    $region42: #{tpu_custom_call.1} parent=1 // pred_check
      _
    $region43: #{tpu_custom_call.1} parent=1 // pred_check_branch
      %7010 = sbr.rel (0) target = $region45
    $region44: #{tpu_custom_call.1} parent=1 // pred_region
      %s7012 = ssub.s32 8192, 8192
      %7013 = vsyncadd [#allocation5], %s7012
      %s7014 = sshll.u32 [#allocation9], 4
      %s7015 = int_to_ptr.vmem [resolvable:$true] %s7014
      %7020 = dma.vmem_to_hbm [thread:$0]  %s7015, 8192, %s7, [#allocation5], 128, 128, 8
    $region45: #{tpu_custom_call.1} parent=1 // pred_fallthru
      _
    // Predicated region
    $region46: #{tpu_custom_call.1} parent=1 // pred_check
      _
    $region47: #{tpu_custom_call.1} parent=1 // pred_check_branch
      %7022 = sbr.rel (0) target = $region49
    $region48: #{tpu_custom_call.1} parent=1 // pred_region
      %7023 = dma.done [#allocation5], 8192
    $region49: #{tpu_custom_call.1} parent=1 // pred_fallthru
      _
    %7024 = vsyncpa [#allocation4], 1
    %7025 = vsyncpa [#allocation7], 1
    %7026 = vsyncpa [#allocation5], 1

</llo_original>
